<compile_context>
chip_gen: v7x
topology: tpu7x:2x2x1
jax: 0.10.0
libtpu: 0.0.40
codegen_flags: <defaults>
</compile_context>

<pallas_src>
import jax
import jax.numpy as jnp
import numpy as np
from jax.experimental import pallas as pl
from jax.experimental.pallas import tpu as pltpu

LEAKY_SLOPE = 0.2
BN_EPS = 1e-5


# --------------------------------------------------------------------- helpers

def _ceil8(x):
    return ((x + 7) // 8) * 8


def _hpool_matrix(s_in, wq_in, f, wq_out):
    """Small separable horizontal-pooling + zero-halo re-pad matrix.

    Maps the wq_in padded columns of a row (interior at cols [1, s_in]) to the
    wq_out padded columns of the pooled row (interior at cols [1, s_in//f]),
    with weight 1/f**2 per tap (the vertical pooling step contributes a plain
    sum of f rows).  Halo / right-pad output columns are exactly zero.
    KB-scale, unlike the previous O((H*W)^2) dense pooling matrices.
    """
    m = np.zeros((wq_out, wq_in), np.float32)
    inv = 1.0 / float(f * f)
    for o in range(s_in // f):
        for j in range(f):
            m[o + 1, f * o + j + 1] = inv
    return jnp.asarray(m)


# ---------------------------------------------------------------------- kernel

def _make_tower_kernel(*, c0, pre, blocks, final, n_feat):
    """Build the fused per-tower kernel.

    pre:    None or (factor, s0, wq0, s_pre, wq_pre)            (static ints)
    blocks: tuple of (s, wq, cin, cout, wq_out) per conv block  (static ints)
    final:  (s, wq, cin)                                        (static ints)
    """

    def kernel(*refs):
        refs = list(refs)
        x_ref = refs.pop(0)
        pre_ref = refs.pop(0) if pre is not None else None
        w_refs = [refs.pop(0) for _ in blocks]
        hp_refs = [refs.pop(0) for _ in blocks]
        wf_ref = refs.pop(0)
        b_ref = refs.pop(0)
        out_ref = refs.pop(0)
        feat_refs = [refs.pop(0) for _ in range(n_feat)]
        cat_ref = refs.pop(0)          # VMEM scratch for the tap-folded input

        def make_plane(interior3, s, wq, c):
            """(s, wq, c) pooled rows -> guarded flat plane (16+(s+2)*wq, c)."""
            zrow = jnp.zeros((1, wq, c), jnp.float32)
            plane = jnp.concatenate([zrow, interior3, zrow], axis=0)
            plane = plane.reshape((s + 2) * wq, c)
            guard = jnp.zeros((8, c), jnp.float32)
            return jnp.concatenate([guard, plane, guard], axis=0)

        def conv3x3(a_g, s, wq, cin, cout, w_ref):
            """3x3 conv (pad=1) of a guarded flat plane.

            Returns (s*wq, cout) f32 for padded rows 1..s (interior columns
            valid; halo / right-pad columns are never consumed downstream).
            dx taps are folded into the contraction (K = 3*cin) via cat_ref;
            dy taps are 8-aligned row slices of it -> 3 fat MXU matmuls.
            """
            L = s * wq
            ext = L + 2 * wq
            for dxi in range(3):
                cat_ref[0:ext, dxi * cin:(dxi + 1) * cin] = (
                    a_g[7 + dxi:7 + dxi + ext, :])
            acc = jnp.zeros((L, cout), jnp.float32)
            for dy in range(3):
                xk = cat_ref[dy * wq:dy * wq + L, 0:3 * cin]
                acc = acc + jnp.dot(xk.astype(jnp.bfloat16), w_ref[dy],
                                    preferred_element_type=jnp.float32)
            return acc

        def hpool(vsum, rows, wq_in, wq_out, hp_ref):
            """Horizontal pooling + zero-halo re-pad: one small batched matmul."""
            hp = jnp.broadcast_to(hp_ref[...][None], (rows, wq_out, wq_in))
            return jax.lax.dot_general(
                hp, vsum, (((2,), (1,)), ((0,), (0,))),
                preferred_element_type=jnp.float32)

        a_g = x_ref[0]                                  # (16 + (s0+2)*wq0, c0)

        if pre is not None:                             # avg_pool2d(x, 2**scale)
            f, s0, wq0, s_p, wq_p = pre
            interior = a_g[8 + wq0:8 + (s0 + 1) * wq0, :]
            xr = interior.reshape(s_p, f * wq0, c0)
            vsum = xr[:, 0:wq0, :]
            for r in range(1, f):
                vsum = vsum + xr[:, r * wq0:(r + 1) * wq0, :]
            pooled = hpool(vsum, s_p, wq0, wq_p, pre_ref)
            a_g = make_plane(pooled, s_p, wq_p, c0)

        for li, (s, wq, cin, cout, wq_out) in enumerate(blocks):
            acc = conv3x3(a_g, s, wq, cin, cout, w_refs[li])
            z = jnp.where(acc >= 0, acc, LEAKY_SLOPE * acc)    # LeakyReLU, f32
            so = s // 2
            zr = z.reshape(so, 2 * wq, cout)                   # tile-preserving
            vsum = zr[:, 0:wq, :] + zr[:, wq:2 * wq, :]        # vertical 2-sum
            pooled = hpool(vsum, so, wq, wq_out, hp_refs[li])  # horiz + re-pad
            if n_feat:
                feat_refs[li][0] = pooled
            a_g = make_plane(pooled, so, wq_out, cout)

        fs, fwq, fcin = final                           # final 3x3 conv, Cout=1
        y = conv3x3(a_g, fs, fwq, fcin, 1, wf_ref) + b_ref[0]
        out_ref[0] = y

    return kernel


# --------------------------------------------------------------------- wrapper

def _tower_forward(tower, xg, s_img, pre_factor, return_features):
    """xg: (N, 16 + (s_img+2)*Wq0, C) guarded flat padded input (shared)."""
    n, mg0, c_img = xg.shape
    wq0 = _ceil8(s_img + 2)
    assert mg0 == 16 + (s_img + 2) * wq0

    if pre_factor > 1:
        assert s_img % pre_factor == 0
        s = s_img // pre_factor
        pre = (pre_factor, s_img, wq0, s, _ceil8(s + 2))
    else:
        s = s_img
        pre = None

    blocks_cfg = []
    for blk in tower["blocks"]:
        cin = blk["w"].shape[1] // 3
        cout = blk["w"].shape[2]
        assert s % 2 == 0, "spatial size must stay even through every block"
        blocks_cfg.append((s, _ceil8(s + 2), cin, cout, _ceil8(s // 2 + 2)))
        s //= 2
    fcin = tower["final"]["w"].shape[1] // 3
    s_f = s
    wq_f = _ceil8(s_f + 2)
    final_cfg = (s_f, wq_f, fcin)

    # tap-folding scratch: largest (ext, 3*cin) needed by any conv in the tower
    convs = [(bs, bwq, bcin) for (bs, bwq, bcin, _, _) in blocks_cfg]
    convs.append((s_f, wq_f, fcin))
    rows_max = max((cs + 2) * cwq for (cs, cwq, _) in convs)
    cols_max = max(3 * ccin for (_, _, ccin) in convs)

    inputs = [xg]
    in_specs = [pl.BlockSpec((1, mg0, c_img), lambda i: (i, 0, 0))]
    if pre is not None:
        inputs.append(tower["pre_hp"])
        in_specs.append(pl.BlockSpec(memory_space=pltpu.MemorySpace.VMEM))
    for blk in tower["blocks"]:
        inputs.append(blk["w"])
        in_specs.append(pl.BlockSpec(memory_space=pltpu.MemorySpace.VMEM))
    for blk in tower["blocks"]:
        inputs.append(blk["hp"])
        in_specs.append(pl.BlockSpec(memory_space=pltpu.MemorySpace.VMEM))
    inputs.append(tower["final"]["w"])
    in_specs.append(pl.BlockSpec(memory_space=pltpu.MemorySpace.VMEM))
    inputs.append(tower["final"]["b"])
    in_specs.append(pl.BlockSpec(memory_space=pltpu.MemorySpace.SMEM))

    lf = s_f * wq_f
    out_shapes = [jax.ShapeDtypeStruct((n, lf, 1), jnp.float32)]
    out_specs = [pl.BlockSpec((1, lf, 1), lambda i: (i, 0, 0))]
    n_feat = len(blocks_cfg) if return_features else 0
    for (bs, _bwq, _bcin, bcout, bwq_out) in (blocks_cfg if return_features else []):
        out_shapes.append(
            jax.ShapeDtypeStruct((n, bs // 2, bwq_out, bcout), jnp.float32))
        out_specs.append(
            pl.BlockSpec((1, bs // 2, bwq_out, bcout), lambda i: (i, 0, 0, 0)))

    kernel = _make_tower_kernel(c0=c_img, pre=pre, blocks=tuple(blocks_cfg),
                                final=final_cfg, n_feat=n_feat)

    outs = pl.pallas_call(
        kernel,
        grid=(n,),
        out_shape=tuple(out_shapes),
        in_specs=in_specs,
        out_specs=tuple(out_specs),
        scratch_shapes=[pltpu.VMEM((rows_max, cols_max), jnp.float32)],
        compiler_params=pltpu.CompilerParams(
            dimension_semantics=("parallel",),
            vmem_limit_bytes=48 * 1024 * 1024),
    )(*inputs)

    main = outs[0].reshape(n, s_f, wq_f)[:, :, 1:s_f + 1][:, None, :, :]
    feats = []
    if return_features:
        for i, (bs, _bwq, _bcin, bcout, bwq_out) in enumerate(blocks_cfg):
            so = bs // 2
            f4 = outs[1 + i][:, :, 1:so + 1, :]          # strip halo columns
            feats.append(jnp.transpose(f4, (0, 3, 1, 2)))
    return main, feats


# ---------------------------------------------------------------------- params

def _spectral_normalize(w, key, n_power_iterations=1, eps=1e-12):
    """w: (Cout, Cin, kh, kw); one power iteration like nn.utils.spectral_norm."""
    cout = w.shape[0]
    w_mat = w.reshape(cout, -1)
    u = jax.random.normal(key, (cout,), jnp.float32)
    u = u / (jnp.linalg.norm(u) + eps)
    v = None
    for _ in range(n_power_iterations):
        v = w_mat.T @ u
        v = v / (jnp.linalg.norm(v) + eps)
        u = w_mat @ v
        u = u / (jnp.linalg.norm(u) + eps)
    sigma = u @ (w_mat @ v)
    return w / sigma


def _pack_conv(w_oihw):
    """(Cout, Cin, 3, 3) -> (3, 3*Cin, Cout): [dy, dx*Cin + c, o]."""
    return jnp.transpose(w_oihw, (2, 3, 1, 0)).reshape(
        3, 3 * w_oihw.shape[1], w_oihw.shape[0])


def _init_tower(key, *, ndf, n_layers, channels, size, orig_size, pre_factor):
    blocks = []
    in_ch = channels
    s = size
    for i in range(n_layers):
        out_ch = min(ndf * 2 ** i, ndf * 8)
        key, kw, ku, kg = jax.random.split(key, 4)
        w = 0.02 * jax.random.normal(kw, (out_ch, in_ch, 3, 3), jnp.float32)
        w = _spectral_normalize(w, ku)
        gamma = 1.0 + 0.02 * jax.random.normal(kg, (out_ch,), jnp.float32)
        scale = gamma / jnp.sqrt(1.0 + BN_EPS)          # eval BN (mean0/var1)
        w = w * scale[:, None, None, None]              # fold BN into the conv
        blocks.append({
            "w": _pack_conv(w).astype(jnp.bfloat16),
            "hp": _hpool_matrix(s, _ceil8(s + 2), 2, _ceil8(s // 2 + 2)),
        })
        in_ch = out_ch
        s //= 2
    key, kw, ku, kb = jax.random.split(key, 4)
    wf = 0.02 * jax.random.normal(kw, (1, in_ch, 3, 3), jnp.float32)
    wf = _spectral_normalize(wf, ku)
    bound = 1.0 / np.sqrt(in_ch * 9)
    b = jax.random.uniform(kb, (1,), jnp.float32, minval=-bound, maxval=bound)
    tower = {"blocks": blocks,
             "final": {"w": _pack_conv(wf).astype(jnp.bfloat16), "b": b}}
    if pre_factor > 1:
        tower["pre_hp"] = _hpool_matrix(orig_size, _ceil8(orig_size + 2),
                                        pre_factor, _ceil8(size + 2))
    return tower


def init_fastgan_discriminator(key, *, ndf, n_layers, image_size, channels,
                               use_multiscale, num_scales):
    """Deterministic synthetic parameters mirroring __init__ + weights_init."""
    key, k_main = jax.random.split(key)
    main = _init_tower(k_main, ndf=ndf, n_layers=n_layers, channels=channels,
                       size=image_size, orig_size=image_size, pre_factor=1)
    scales = []
    if use_multiscale and num_scales > 1:
        for scale in range(1, num_scales):
            key, k_s = jax.random.split(key)
            scales.append(_init_tower(
                k_s, ndf=ndf // 2, n_layers=max(2, n_layers - 1),
                channels=channels, size=image_size // 2 ** scale,
                orig_size=image_size, pre_factor=2 ** scale))
    return {"main": main, "scales": scales}


# --------------------------------------------------------------------- forward

def fastgan_discriminator_forward(params, x_nchw, return_features=False):
    """External interface matches PyTorch: NCHW in, NCHW out."""
    x = jnp.transpose(x_nchw.astype(jnp.float32), (0, 2, 3, 1))      # -> NHWC
    n, h, w, c = x.shape
    assert h == w, "square images assumed"
    wq0 = _ceil8(h + 2)
    xp = jnp.pad(x, ((0, 0), (1, 1), (1, wq0 - w - 1), (0, 0)))
    xflat = xp.reshape(n, (h + 2) * wq0, c)
    xg = jnp.pad(xflat, ((0, 0), (8, 8), (0, 0)))       # guard rows (alignment)

    main_out, feats = _tower_forward(params["main"], xg, h, 1, return_features)
    if params["scales"]:
        scale_outs = [
            _tower_forward(t, xg, h, 2 ** (i + 1), False)[0]
            for i, t in enumerate(params["scales"])]
        if return_features:
            return main_out, scale_outs, feats
        return main_out, scale_outs
    if return_features:
        return main_out, feats
    return main_out


# ------------------------------------------------------------------- reference

def _avg_pool_nchw(x, f):
    n, c, h, w = x.shape
    return x.reshape(n, c, h // f, f, w // f, f).mean(axis=(3, 5))


def _packed_to_oihw(packed):
    three, k3, cout = packed.shape
    cin = k3 // 3
    w = packed.astype(jnp.float32).reshape(3, 3, cin, cout)
    return jnp.transpose(w, (3, 2, 0, 1))


def _reference_tower(tower, x_nchw, pre_factor):
    """Pure-JAX (XLA, HIGHEST precision) reference with the same bf16 weights."""
    x = x_nchw.astype(jnp.float32)
    if pre_factor > 1:
        x = _avg_pool_nchw(x, pre_factor)
    for blk in tower["blocks"]:
        w = _packed_to_oihw(blk["w"])
        y = jax.lax.conv_general_dilated(
            x, w, (1, 1), ((1, 1), (1, 1)),
            dimension_numbers=("NCHW", "OIHW", "NCHW"),
            precision=jax.lax.Precision.HIGHEST)
        y = jnp.where(y >= 0, y, LEAKY_SLOPE * y)
        x = _avg_pool_nchw(y, 2)
    wf = _packed_to_oihw(tower["final"]["w"])
    out = jax.lax.conv_general_dilated(
        x, wf, (1, 1), ((1, 1), (1, 1)),
        dimension_numbers=("NCHW", "OIHW", "NCHW"),
        precision=jax.lax.Precision.HIGHEST)
    return out + tower["final"]["b"][0]


# ------------------------------------------------------------------------ main

if __name__ == "__main__":
    ndf, n_layers, channels, image_size, batch = 8, 3, 4, 16, 2

    key = jax.random.PRNGKey(0)
    k_params, k_x = jax.random.split(key)
    params = init_fastgan_discriminator(
        k_params, ndf=ndf, n_layers=n_layers, image_size=image_size,
        channels=channels, use_multiscale=True, num_scales=2)
    x = jax.random.normal(k_x, (batch, channels, image_size, image_size),
                          jnp.float32)

    fwd = jax.jit(lambda p, xx: fastgan_discriminator_forward(
        p, xx, return_features=False))
    main_out, scale_outs = fwd(params, x)
    jax.block_until_ready(main_out)
    for so_ in scale_outs:
        jax.block_until_ready(so_)

    # shape checks (match the PyTorch module)
    fs = image_size // (2 ** n_layers)
    assert main_out.shape == (batch, 1, fs, fs), main_out.shape
    assert len(scale_outs) == 1
    ss = (image_size // 2) // (2 ** max(2, n_layers - 1))
    assert scale_outs[0].shape == (batch, 1, ss, ss), scale_outs[0].shape

    # numerical check vs a pure-JAX reference built from the same bf16 weights
    # (kernel uses bf16 MXU operands with f32 accumulation -> loose-ish tol)
    ref_main = _reference_tower(params["main"], x, 1)
    np.testing.assert_allclose(np.asarray(main_out), np.asarray(ref_main),
                               rtol=5e-2, atol=1e-2)
    for i, (a, t) in enumerate(zip(scale_outs, params["scales"])):
        ref = _reference_tower(t, x, 2 ** (i + 1))
        np.testing.assert_allclose(np.asarray(a), np.asarray(ref),
                                   rtol=5e-2, atol=1e-2)

    # exercise the return_features path
    fwd_f = jax.jit(lambda p, xx: fastgan_discriminator_forward(
        p, xx, return_features=True))
    m2, s2, feats = fwd_f(params, x)
    jax.block_until_ready(m2)
    assert len(feats) == n_layers
    assert feats[0].shape == (batch, ndf, image_size // 2, image_size // 2), \
        feats[0].shape
    np.testing.assert_allclose(np.asarray(m2), np.asarray(main_out),
                               rtol=1e-5, atol=1e-6)

    assert bool(jnp.all(jnp.isfinite(main_out)))
    print("KERNEL_OK")
</pallas_src>

<mosaic_0001>
module attributes {stable_mosaic.version = 11 : i64} {
  func.func @kernel(%arg0: i32, %arg1: memref<1x448x4xf32, #tpu.memory_space<vmem>>, %arg2: memref<3x12x8xbf16, #tpu.memory_space<vmem>>, %arg3: memref<3x24x16xbf16, #tpu.memory_space<vmem>>, %arg4: memref<3x48x32xbf16, #tpu.memory_space<vmem>>, %arg5: memref<16x24xf32, #tpu.memory_space<vmem>>, %arg6: memref<8x16xf32, #tpu.memory_space<vmem>>, %arg7: memref<8x8xf32, #tpu.memory_space<vmem>>, %arg8: memref<3x96x1xbf16, #tpu.memory_space<vmem>>, %arg9: memref<1xf32, #tpu.memory_space<smem>>, %arg10: memref<1x16x1xf32, #tpu.memory_space<vmem>>, %arg11: memref<432x96xf32, #tpu.memory_space<vmem>>) attributes {dimension_semantics = [#tpu.dimension_semantics<parallel>], iteration_bounds = array<i64: 2>, scalar_prefetch = 0 : i64, scratch_operands = 1 : i64, tpu.core_type = #tpu.core_type<tc>, window_params = [{transform_indices = @transform_0, window_bounds = array<i64: 1, 448, 4>}, {pipeline_mode = #tpu.pipeline_mode<synchronous>, transform_indices = @transform_1, window_bounds = array<i64: 3, 12, 8>}, {pipeline_mode = #tpu.pipeline_mode<synchronous>, transform_indices = @transform_2, window_bounds = array<i64: 3, 24, 16>}, {pipeline_mode = #tpu.pipeline_mode<synchronous>, transform_indices = @transform_3, window_bounds = array<i64: 3, 48, 32>}, {pipeline_mode = #tpu.pipeline_mode<synchronous>, transform_indices = @transform_4, window_bounds = array<i64: 16, 24>}, {pipeline_mode = #tpu.pipeline_mode<synchronous>, transform_indices = @transform_5, window_bounds = array<i64: 8, 16>}, {pipeline_mode = #tpu.pipeline_mode<synchronous>, transform_indices = @transform_6, window_bounds = array<i64: 8, 8>}, {pipeline_mode = #tpu.pipeline_mode<synchronous>, transform_indices = @transform_7, window_bounds = array<i64: 3, 96, 1>}, {transform_indices = @transform_8, window_bounds = array<i64: 1>}, {transform_indices = @transform_9, window_bounds = array<i64: 1, 16, 1>}]} {
    %c0 = arith.constant 0 : index
    %c0_0 = arith.constant 0 : index
    %c0_1 = arith.constant 0 : index
    %0 = vector.load %arg1[%c0, %c0_0, %c0_1] : memref<1x448x4xf32, #tpu.memory_space<vmem>>, vector<1x448x4xf32>
    %1 = vector.shape_cast %0 : vector<1x448x4xf32> to vector<448x4xf32>
    %2 = vector.extract_strided_slice %1 {offsets = [7, 0], sizes = [432, 4], strides = [1, 1]} : vector<448x4xf32> to vector<432x4xf32>
    %c0_2 = arith.constant 0 : index
    %c0_3 = arith.constant 0 : index
    %3 = vector.load %arg11[%c0_2, %c0_3] : memref<432x96xf32, #tpu.memory_space<vmem>>, vector<432x4xf32>
    tpu.vector_store %arg11[%c0_2, %c0_3], %2 {strides = array<i32>} : memref<432x96xf32, #tpu.memory_space<vmem>>, vector<432x4xf32>,
    %4 = vector.extract_strided_slice %1 {offsets = [8, 0], sizes = [432, 4], strides = [1, 1]} : vector<448x4xf32> to vector<432x4xf32>
    %c0_4 = arith.constant 0 : index
    %c4 = arith.constant 4 : index
    %5 = vector.load %arg11[%c0_4, %c4] : memref<432x96xf32, #tpu.memory_space<vmem>>, vector<432x4xf32>
    tpu.vector_store %arg11[%c0_4, %c4], %4 {strides = array<i32>} : memref<432x96xf32, #tpu.memory_space<vmem>>, vector<432x4xf32>,
    %6 = vector.extract_strided_slice %1 {offsets = [9, 0], sizes = [432, 4], strides = [1, 1]} : vector<448x4xf32> to vector<432x4xf32>
    %c0_5 = arith.constant 0 : index
    %c8 = arith.constant 8 : index
    %7 = vector.load %arg11[%c0_5, %c8] : memref<432x96xf32, #tpu.memory_space<vmem>>, vector<432x4xf32>
    tpu.vector_store %arg11[%c0_5, %c8], %6 {strides = array<i32>} : memref<432x96xf32, #tpu.memory_space<vmem>>, vector<432x4xf32>,
    %cst = arith.constant 0.000000e+00 : f32
    %8 = vector.broadcast %cst : f32 to vector<384x8xf32>
    %c0_6 = arith.constant 0 : index
    %c0_7 = arith.constant 0 : index
    %9 = vector.load %arg11[%c0_6, %c0_7] : memref<432x96xf32, #tpu.memory_space<vmem>>, vector<384x12xf32>
    %10 = arith.truncf %9 : vector<384x12xf32> to vector<384x12xbf16>
    %c0_8 = arith.constant 0 : index
    %c0_9 = arith.constant 0 : index
    %c0_10 = arith.constant 0 : index
    %11 = vector.load %arg2[%c0_8, %c0_9, %c0_10] : memref<3x12x8xbf16, #tpu.memory_space<vmem>>, vector<1x12x8xbf16>
    %12 = vector.shape_cast %11 : vector<1x12x8xbf16> to vector<12x8xbf16>
    %cst_11 = arith.constant dense<0.000000e+00> : vector<384x8xf32>
    %13 = tpu.matmul %10, %12, %cst_11 {dimension_numbers = #tpu.dot_dimension_numbers<[1], [0], [0], [1], [0, 0, 1, 1], [], []>} : vector<384x12xbf16>, vector<12x8xbf16>, vector<384x8xf32> -> vector<384x8xf32>
    %14 = arith.addf %8, %13 : vector<384x8xf32>
    %c24 = arith.constant 24 : index
    %c0_12 = arith.constant 0 : index
    %15 = vector.load %arg11[%c24, %c0_12] : memref<432x96xf32, #tpu.memory_space<vmem>>, vector<384x12xf32>
    %16 = arith.truncf %15 : vector<384x12xf32> to vector<384x12xbf16>
    %c1 = arith.constant 1 : index
    %c0_13 = arith.constant 0 : index
    %c0_14 = arith.constant 0 : index
    %17 = vector.load %arg2[%c1, %c0_13, %c0_14] : memref<3x12x8xbf16, #tpu.memory_space<vmem>>, vector<1x12x8xbf16>
    %18 = vector.shape_cast %17 : vector<1x12x8xbf16> to vector<12x8xbf16>
    %cst_15 = arith.constant dense<0.000000e+00> : vector<384x8xf32>
    %19 = tpu.matmul %16, %18, %cst_15 {dimension_numbers = #tpu.dot_dimension_numbers<[1], [0], [0], [1], [0, 0, 1, 1], [], []>} : vector<384x12xbf16>, vector<12x8xbf16>, vector<384x8xf32> -> vector<384x8xf32>
    %20 = arith.addf %14, %19 : vector<384x8xf32>
    %c48 = arith.constant 48 : index
    %c0_16 = arith.constant 0 : index
    %21 = vector.load %arg11[%c48, %c0_16] : memref<432x96xf32, #tpu.memory_space<vmem>>, vector<384x12xf32>
    %22 = arith.truncf %21 : vector<384x12xf32> to vector<384x12xbf16>
    %c2 = arith.constant 2 : index
    %c0_17 = arith.constant 0 : index
    %c0_18 = arith.constant 0 : index
    %23 = vector.load %arg2[%c2, %c0_17, %c0_18] : memref<3x12x8xbf16, #tpu.memory_space<vmem>>, vector<1x12x8xbf16>
    %24 = vector.shape_cast %23 : vector<1x12x8xbf16> to vector<12x8xbf16>
    %cst_19 = arith.constant dense<0.000000e+00> : vector<384x8xf32>
    %25 = tpu.matmul %22, %24, %cst_19 {dimension_numbers = #tpu.dot_dimension_numbers<[1], [0], [0], [1], [0, 0, 1, 1], [], []>} : vector<384x12xbf16>, vector<12x8xbf16>, vector<384x8xf32> -> vector<384x8xf32>
    %26 = arith.addf %20, %25 : vector<384x8xf32>
    %cst_20 = arith.constant 0.000000e+00 : f32
    %27 = vector.broadcast %cst_20 : f32 to vector<384x8xf32>
    %28 = arith.cmpf oge, %26, %27 : vector<384x8xf32>
    %cst_21 = arith.constant 2.000000e-01 : f32
    %29 = vector.broadcast %cst_21 : f32 to vector<384x8xf32>
    %30 = arith.mulf %29, %26 : vector<384x8xf32>
    %31 = arith.select %28, %26, %30 : vector<384x8xi1>, vector<384x8xf32>
    %32 = vector.shape_cast %31 : vector<384x8xf32> to vector<8x48x8xf32>
    %33 = vector.extract_strided_slice %32 {offsets = [0, 0, 0], sizes = [8, 24, 8], strides = [1, 1, 1]} : vector<8x48x8xf32> to vector<8x24x8xf32>
    %34 = vector.extract_strided_slice %32 {offsets = [0, 24, 0], sizes = [8, 24, 8], strides = [1, 1, 1]} : vector<8x48x8xf32> to vector<8x24x8xf32>
    %35 = arith.addf %33, %34 : vector<8x24x8xf32>
    %c0_22 = arith.constant 0 : index
    %c0_23 = arith.constant 0 : index
    %36 = vector.load %arg5[%c0_22, %c0_23] : memref<16x24xf32, #tpu.memory_space<vmem>>, vector<16x24xf32>
    %37 = vector.shape_cast %36 : vector<16x24xf32> to vector<1x16x24xf32>
    %38 = vector.shape_cast %37 : vector<1x16x24xf32> to vector<1x16x24xf32>
    %39 = vector.broadcast %38 : vector<1x16x24xf32> to vector<8x16x24xf32>
    %cst_24 = arith.constant dense<0.000000e+00> : vector<8x16x8xf32>
    %40 = tpu.matmul %39, %35, %cst_24 {dimension_numbers = #tpu.dot_dimension_numbers<[2], [1], [1], [2], [0, 0, 0, 1, 1, 2], [0], [0]>} : vector<8x16x24xf32>, vector<8x24x8xf32>, vector<8x16x8xf32> -> vector<8x16x8xf32>
    %cst_25 = arith.constant 0.000000e+00 : f32
    %41 = vector.broadcast %cst_25 : f32 to vector<1x16x8xf32>
    %42 = tpu.concatenate %41, %40, %41 in 0 : vector<1x16x8xf32>, vector<8x16x8xf32>, vector<1x16x8xf32> -> vector<10x16x8xf32>
    %43 = vector.shape_cast %42 : vector<10x16x8xf32> to vector<160x8xf32>
    %cst_26 = arith.constant 0.000000e+00 : f32
    %44 = vector.broadcast %cst_26 : f32 to vector<8x8xf32>
    %45 = tpu.concatenate %44, %43, %44 in 0 : vector<8x8xf32>, vector<160x8xf32>, vector<8x8xf32> -> vector<176x8xf32>
    %46 = vector.extract_strided_slice %45 {offsets = [7, 0], sizes = [160, 8], strides = [1, 1]} : vector<176x8xf32> to vector<160x8xf32>
    %c0_27 = arith.constant 0 : index
    %c0_28 = arith.constant 0 : index
    %47 = vector.load %arg11[%c0_27, %c0_28] : memref<432x96xf32, #tpu.memory_space<vmem>>, vector<160x8xf32>
    tpu.vector_store %arg11[%c0_27, %c0_28], %46 {strides = array<i32>} : memref<432x96xf32, #tpu.memory_space<vmem>>, vector<160x8xf32>,
    %48 = vector.extract_strided_slice %45 {offsets = [8, 0], sizes = [160, 8], strides = [1, 1]} : vector<176x8xf32> to vector<160x8xf32>
    %c0_29 = arith.constant 0 : index
    %c8_30 = arith.constant 8 : index
    %49 = vector.load %arg11[%c0_29, %c8_30] : memref<432x96xf32, #tpu.memory_space<vmem>>, vector<160x8xf32>
    tpu.vector_store %arg11[%c0_29, %c8_30], %48 {strides = array<i32>} : memref<432x96xf32, #tpu.memory_space<vmem>>, vector<160x8xf32>,
    %50 = vector.extract_strided_slice %45 {offsets = [9, 0], sizes = [160, 8], strides = [1, 1]} : vector<176x8xf32> to vector<160x8xf32>
    %c0_31 = arith.constant 0 : index
    %c16 = arith.constant 16 : index
    %51 = vector.load %arg11[%c0_31, %c16] : memref<432x96xf32, #tpu.memory_space<vmem>>, vector<160x8xf32>
    tpu.vector_store %arg11[%c0_31, %c16], %50 {strides = array<i32>} : memref<432x96xf32, #tpu.memory_space<vmem>>, vector<160x8xf32>,
    %cst_32 = arith.constant 0.000000e+00 : f32
    %52 = vector.broadcast %cst_32 : f32 to vector<128x16xf32>
    %c0_33 = arith.constant 0 : index
    %c0_34 = arith.constant 0 : index
    %53 = vector.load %arg11[%c0_33, %c0_34] : memref<432x96xf32, #tpu.memory_space<vmem>>, vector<128x24xf32>
    %54 = arith.truncf %53 : vector<128x24xf32> to vector<128x24xbf16>
    %c0_35 = arith.constant 0 : index
    %c0_36 = arith.constant 0 : index
    %c0_37 = arith.constant 0 : index
    %55 = vector.load %arg3[%c0_35, %c0_36, %c0_37] : memref<3x24x16xbf16, #tpu.memory_space<vmem>>, vector<1x24x16xbf16>
    %56 = vector.shape_cast %55 : vector<1x24x16xbf16> to vector<24x16xbf16>
    %cst_38 = arith.constant dense<0.000000e+00> : vector<128x16xf32>
    %57 = tpu.matmul %54, %56, %cst_38 {dimension_numbers = #tpu.dot_dimension_numbers<[1], [0], [0], [1], [0, 0, 1, 1], [], []>} : vector<128x24xbf16>, vector<24x16xbf16>, vector<128x16xf32> -> vector<128x16xf32>
    %58 = arith.addf %52, %57 : vector<128x16xf32>
    %c16_39 = arith.constant 16 : index
    %c0_40 = arith.constant 0 : index
    %59 = vector.load %arg11[%c16_39, %c0_40] : memref<432x96xf32, #tpu.memory_space<vmem>>, vector<128x24xf32>
    %60 = arith.truncf %59 : vector<128x24xf32> to vector<128x24xbf16>
    %c1_41 = arith.constant 1 : index
    %c0_42 = arith.constant 0 : index
    %c0_43 = arith.constant 0 : index
    %61 = vector.load %arg3[%c1_41, %c0_42, %c0_43] : memref<3x24x16xbf16, #tpu.memory_space<vmem>>, vector<1x24x16xbf16>
    %62 = vector.shape_cast %61 : vector<1x24x16xbf16> to vector<24x16xbf16>
    %cst_44 = arith.constant dense<0.000000e+00> : vector<128x16xf32>
    %63 = tpu.matmul %60, %62, %cst_44 {dimension_numbers = #tpu.dot_dimension_numbers<[1], [0], [0], [1], [0, 0, 1, 1], [], []>} : vector<128x24xbf16>, vector<24x16xbf16>, vector<128x16xf32> -> vector<128x16xf32>
    %64 = arith.addf %58, %63 : vector<128x16xf32>
    %c32 = arith.constant 32 : index
    %c0_45 = arith.constant 0 : index
    %65 = vector.load %arg11[%c32, %c0_45] : memref<432x96xf32, #tpu.memory_space<vmem>>, vector<128x24xf32>
    %66 = arith.truncf %65 : vector<128x24xf32> to vector<128x24xbf16>
    %c2_46 = arith.constant 2 : index
    %c0_47 = arith.constant 0 : index
    %c0_48 = arith.constant 0 : index
    %67 = vector.load %arg3[%c2_46, %c0_47, %c0_48] : memref<3x24x16xbf16, #tpu.memory_space<vmem>>, vector<1x24x16xbf16>
    %68 = vector.shape_cast %67 : vector<1x24x16xbf16> to vector<24x16xbf16>
    %cst_49 = arith.constant dense<0.000000e+00> : vector<128x16xf32>
    %69 = tpu.matmul %66, %68, %cst_49 {dimension_numbers = #tpu.dot_dimension_numbers<[1], [0], [0], [1], [0, 0, 1, 1], [], []>} : vector<128x24xbf16>, vector<24x16xbf16>, vector<128x16xf32> -> vector<128x16xf32>
    %70 = arith.addf %64, %69 : vector<128x16xf32>
    %cst_50 = arith.constant 0.000000e+00 : f32
    %71 = vector.broadcast %cst_50 : f32 to vector<128x16xf32>
    %72 = arith.cmpf oge, %70, %71 : vector<128x16xf32>
    %cst_51 = arith.constant 2.000000e-01 : f32
    %73 = vector.broadcast %cst_51 : f32 to vector<128x16xf32>
    %74 = arith.mulf %73, %70 : vector<128x16xf32>
    %75 = arith.select %72, %70, %74 : vector<128x16xi1>, vector<128x16xf32>
    %76 = vector.shape_cast %75 : vector<128x16xf32> to vector<4x32x16xf32>
    %77 = vector.extract_strided_slice %76 {offsets = [0, 0, 0], sizes = [4, 16, 16], strides = [1, 1, 1]} : vector<4x32x16xf32> to vector<4x16x16xf32>
    %78 = vector.extract_strided_slice %76 {offsets = [0, 16, 0], sizes = [4, 16, 16], strides = [1, 1, 1]} : vector<4x32x16xf32> to vector<4x16x16xf32>
    %79 = arith.addf %77, %78 : vector<4x16x16xf32>
    %c0_52 = arith.constant 0 : index
    %c0_53 = arith.constant 0 : index
    %80 = vector.load %arg6[%c0_52, %c0_53] : memref<8x16xf32, #tpu.memory_space<vmem>>, vector<8x16xf32>
    %81 = vector.shape_cast %80 : vector<8x16xf32> to vector<1x8x16xf32>
    %82 = vector.shape_cast %81 : vector<1x8x16xf32> to vector<1x8x16xf32>
    %83 = vector.broadcast %82 : vector<1x8x16xf32> to vector<4x8x16xf32>
    %cst_54 = arith.constant dense<0.000000e+00> : vector<4x8x16xf32>
    %84 = tpu.matmul %83, %79, %cst_54 {dimension_numbers = #tpu.dot_dimension_numbers<[2], [1], [1], [2], [0, 0, 0, 1, 1, 2], [0], [0]>} : vector<4x8x16xf32>, vector<4x16x16xf32>, vector<4x8x16xf32> -> vector<4x8x16xf32>
    %cst_55 = arith.constant 0.000000e+00 : f32
    %85 = vector.broadcast %cst_55 : f32 to vector<1x8x16xf32>
    %86 = tpu.concatenate %85, %84, %85 in 0 : vector<1x8x16xf32>, vector<4x8x16xf32>, vector<1x8x16xf32> -> vector<6x8x16xf32>
    %87 = vector.shape_cast %86 : vector<6x8x16xf32> to vector<48x16xf32>
    %cst_56 = arith.constant 0.000000e+00 : f32
    %88 = vector.broadcast %cst_56 : f32 to vector<8x16xf32>
    %89 = tpu.concatenate %88, %87, %88 in 0 : vector<8x16xf32>, vector<48x16xf32>, vector<8x16xf32> -> vector<64x16xf32>
    %90 = vector.extract_strided_slice %89 {offsets = [7, 0], sizes = [48, 16], strides = [1, 1]} : vector<64x16xf32> to vector<48x16xf32>
    %c0_57 = arith.constant 0 : index
    %c0_58 = arith.constant 0 : index
    %91 = vector.load %arg11[%c0_57, %c0_58] : memref<432x96xf32, #tpu.memory_space<vmem>>, vector<48x16xf32>
    tpu.vector_store %arg11[%c0_57, %c0_58], %90 {strides = array<i32>} : memref<432x96xf32, #tpu.memory_space<vmem>>, vector<48x16xf32>,
    %92 = vector.extract_strided_slice %89 {offsets = [8, 0], sizes = [48, 16], strides = [1, 1]} : vector<64x16xf32> to vector<48x16xf32>
    %c0_59 = arith.constant 0 : index
    %c16_60 = arith.constant 16 : index
    %93 = vector.load %arg11[%c0_59, %c16_60] : memref<432x96xf32, #tpu.memory_space<vmem>>, vector<48x16xf32>
    tpu.vector_store %arg11[%c0_59, %c16_60], %92 {strides = array<i32>} : memref<432x96xf32, #tpu.memory_space<vmem>>, vector<48x16xf32>,
    %94 = vector.extract_strided_slice %89 {offsets = [9, 0], sizes = [48, 16], strides = [1, 1]} : vector<64x16xf32> to vector<48x16xf32>
    %c0_61 = arith.constant 0 : index
    %c32_62 = arith.constant 32 : index
    %95 = vector.load %arg11[%c0_61, %c32_62] : memref<432x96xf32, #tpu.memory_space<vmem>>, vector<48x16xf32>
    tpu.vector_store %arg11[%c0_61, %c32_62], %94 {strides = array<i32>} : memref<432x96xf32, #tpu.memory_space<vmem>>, vector<48x16xf32>,
    %cst_63 = arith.constant 0.000000e+00 : f32
    %96 = vector.broadcast %cst_63 : f32 to vector<32x32xf32>
    %c0_64 = arith.constant 0 : index
    %c0_65 = arith.constant 0 : index
    %97 = vector.load %arg11[%c0_64, %c0_65] : memref<432x96xf32, #tpu.memory_space<vmem>>, vector<32x48xf32>
    %98 = arith.truncf %97 : vector<32x48xf32> to vector<32x48xbf16>
    %c0_66 = arith.constant 0 : index
    %c0_67 = arith.constant 0 : index
    %c0_68 = arith.constant 0 : index
    %99 = vector.load %arg4[%c0_66, %c0_67, %c0_68] : memref<3x48x32xbf16, #tpu.memory_space<vmem>>, vector<1x48x32xbf16>
    %100 = vector.shape_cast %99 : vector<1x48x32xbf16> to vector<48x32xbf16>
    %cst_69 = arith.constant dense<0.000000e+00> : vector<32x32xf32>
    %101 = tpu.matmul %98, %100, %cst_69 {dimension_numbers = #tpu.dot_dimension_numbers<[1], [0], [0], [1], [0, 0, 1, 1], [], []>} : vector<32x48xbf16>, vector<48x32xbf16>, vector<32x32xf32> -> vector<32x32xf32>
    %102 = arith.addf %96, %101 : vector<32x32xf32>
    %c8_70 = arith.constant 8 : index
    %c0_71 = arith.constant 0 : index
    %103 = vector.load %arg11[%c8_70, %c0_71] : memref<432x96xf32, #tpu.memory_space<vmem>>, vector<32x48xf32>
    %104 = arith.truncf %103 : vector<32x48xf32> to vector<32x48xbf16>
    %c1_72 = arith.constant 1 : index
    %c0_73 = arith.constant 0 : index
    %c0_74 = arith.constant 0 : index
    %105 = vector.load %arg4[%c1_72, %c0_73, %c0_74] : memref<3x48x32xbf16, #tpu.memory_space<vmem>>, vector<1x48x32xbf16>
    %106 = vector.shape_cast %105 : vector<1x48x32xbf16> to vector<48x32xbf16>
    %cst_75 = arith.constant dense<0.000000e+00> : vector<32x32xf32>
    %107 = tpu.matmul %104, %106, %cst_75 {dimension_numbers = #tpu.dot_dimension_numbers<[1], [0], [0], [1], [0, 0, 1, 1], [], []>} : vector<32x48xbf16>, vector<48x32xbf16>, vector<32x32xf32> -> vector<32x32xf32>
    %108 = arith.addf %102, %107 : vector<32x32xf32>
    %c16_76 = arith.constant 16 : index
    %c0_77 = arith.constant 0 : index
    %109 = vector.load %arg11[%c16_76, %c0_77] : memref<432x96xf32, #tpu.memory_space<vmem>>, vector<32x48xf32>
    %110 = arith.truncf %109 : vector<32x48xf32> to vector<32x48xbf16>
    %c2_78 = arith.constant 2 : index
    %c0_79 = arith.constant 0 : index
    %c0_80 = arith.constant 0 : index
    %111 = vector.load %arg4[%c2_78, %c0_79, %c0_80] : memref<3x48x32xbf16, #tpu.memory_space<vmem>>, vector<1x48x32xbf16>
    %112 = vector.shape_cast %111 : vector<1x48x32xbf16> to vector<48x32xbf16>
    %cst_81 = arith.constant dense<0.000000e+00> : vector<32x32xf32>
    %113 = tpu.matmul %110, %112, %cst_81 {dimension_numbers = #tpu.dot_dimension_numbers<[1], [0], [0], [1], [0, 0, 1, 1], [], []>} : vector<32x48xbf16>, vector<48x32xbf16>, vector<32x32xf32> -> vector<32x32xf32>
    %114 = arith.addf %108, %113 : vector<32x32xf32>
    %cst_82 = arith.constant 0.000000e+00 : f32
    %115 = vector.broadcast %cst_82 : f32 to vector<32x32xf32>
    %116 = arith.cmpf oge, %114, %115 : vector<32x32xf32>
    %cst_83 = arith.constant 2.000000e-01 : f32
    %117 = vector.broadcast %cst_83 : f32 to vector<32x32xf32>
    %118 = arith.mulf %117, %114 : vector<32x32xf32>
    %119 = arith.select %116, %114, %118 : vector<32x32xi1>, vector<32x32xf32>
    %120 = vector.shape_cast %119 : vector<32x32xf32> to vector<2x16x32xf32>
    %121 = vector.extract_strided_slice %120 {offsets = [0, 0, 0], sizes = [2, 8, 32], strides = [1, 1, 1]} : vector<2x16x32xf32> to vector<2x8x32xf32>
    %122 = vector.extract_strided_slice %120 {offsets = [0, 8, 0], sizes = [2, 8, 32], strides = [1, 1, 1]} : vector<2x16x32xf32> to vector<2x8x32xf32>
    %123 = arith.addf %121, %122 : vector<2x8x32xf32>
    %c0_84 = arith.constant 0 : index
    %c0_85 = arith.constant 0 : index
    %124 = vector.load %arg7[%c0_84, %c0_85] : memref<8x8xf32, #tpu.memory_space<vmem>>, vector<8x8xf32>
    %125 = vector.shape_cast %124 : vector<8x8xf32> to vector<1x8x8xf32>
    %126 = vector.shape_cast %125 : vector<1x8x8xf32> to vector<1x8x8xf32>
    %127 = vector.broadcast %126 : vector<1x8x8xf32> to vector<2x8x8xf32>
    %cst_86 = arith.constant dense<0.000000e+00> : vector<2x8x32xf32>
    %128 = tpu.matmul %127, %123, %cst_86 {dimension_numbers = #tpu.dot_dimension_numbers<[2], [1], [1], [2], [0, 0, 0, 1, 1, 2], [0], [0]>} : vector<2x8x8xf32>, vector<2x8x32xf32>, vector<2x8x32xf32> -> vector<2x8x32xf32>
    %cst_87 = arith.constant 0.000000e+00 : f32
    %129 = vector.broadcast %cst_87 : f32 to vector<1x8x32xf32>
    %130 = tpu.concatenate %129, %128, %129 in 0 : vector<1x8x32xf32>, vector<2x8x32xf32>, vector<1x8x32xf32> -> vector<4x8x32xf32>
    %131 = vector.shape_cast %130 : vector<4x8x32xf32> to vector<32x32xf32>
    %cst_88 = arith.constant 0.000000e+00 : f32
    %132 = vector.broadcast %cst_88 : f32 to vector<8x32xf32>
    %133 = tpu.concatenate %132, %131, %132 in 0 : vector<8x32xf32>, vector<32x32xf32>, vector<8x32xf32> -> vector<48x32xf32>
    %134 = vector.extract_strided_slice %133 {offsets = [7, 0], sizes = [32, 32], strides = [1, 1]} : vector<48x32xf32> to vector<32x32xf32>
    %c0_89 = arith.constant 0 : index
    %c0_90 = arith.constant 0 : index
    %135 = vector.load %arg11[%c0_89, %c0_90] : memref<432x96xf32, #tpu.memory_space<vmem>>, vector<32x32xf32>
    tpu.vector_store %arg11[%c0_89, %c0_90], %134 {strides = array<i32>} : memref<432x96xf32, #tpu.memory_space<vmem>>, vector<32x32xf32>,
    %136 = vector.extract_strided_slice %133 {offsets = [8, 0], sizes = [32, 32], strides = [1, 1]} : vector<48x32xf32> to vector<32x32xf32>
    %c0_91 = arith.constant 0 : index
    %c32_92 = arith.constant 32 : index
    %137 = vector.load %arg11[%c0_91, %c32_92] : memref<432x96xf32, #tpu.memory_space<vmem>>, vector<32x32xf32>
    tpu.vector_store %arg11[%c0_91, %c32_92], %136 {strides = array<i32>} : memref<432x96xf32, #tpu.memory_space<vmem>>, vector<32x32xf32>,
    %138 = vector.extract_strided_slice %133 {offsets = [9, 0], sizes = [32, 32], strides = [1, 1]} : vector<48x32xf32> to vector<32x32xf32>
    %c0_93 = arith.constant 0 : index
    %c64 = arith.constant 64 : index
    %139 = vector.load %arg11[%c0_93, %c64] : memref<432x96xf32, #tpu.memory_space<vmem>>, vector<32x32xf32>
    tpu.vector_store %arg11[%c0_93, %c64], %138 {strides = array<i32>} : memref<432x96xf32, #tpu.memory_space<vmem>>, vector<32x32xf32>,
    %cst_94 = arith.constant 0.000000e+00 : f32
    %140 = vector.broadcast %cst_94 : f32 to vector<16x1xf32>
    %c0_95 = arith.constant 0 : index
    %c0_96 = arith.constant 0 : index
    %141 = vector.load %arg11[%c0_95, %c0_96] : memref<432x96xf32, #tpu.memory_space<vmem>>, vector<16x96xf32>
    %142 = arith.truncf %141 : vector<16x96xf32> to vector<16x96xbf16>
    %c0_97 = arith.constant 0 : index
    %c0_98 = arith.constant 0 : index
    %c0_99 = arith.constant 0 : index
    %143 = vector.load %arg8[%c0_97, %c0_98, %c0_99] : memref<3x96x1xbf16, #tpu.memory_space<vmem>>, vector<1x96x1xbf16>
    %144 = vector.shape_cast %143 : vector<1x96x1xbf16> to vector<96x1xbf16>
    %cst_100 = arith.constant dense<0.000000e+00> : vector<16x1xf32>
    %145 = tpu.matmul %142, %144, %cst_100 {dimension_numbers = #tpu.dot_dimension_numbers<[1], [0], [0], [1], [0, 0, 1, 1], [], []>} : vector<16x96xbf16>, vector<96x1xbf16>, vector<16x1xf32> -> vector<16x1xf32>
    %146 = arith.addf %140, %145 : vector<16x1xf32>
    %c8_101 = arith.constant 8 : index
    %c0_102 = arith.constant 0 : index
    %147 = vector.load %arg11[%c8_101, %c0_102] : memref<432x96xf32, #tpu.memory_space<vmem>>, vector<16x96xf32>
    %148 = arith.truncf %147 : vector<16x96xf32> to vector<16x96xbf16>
    %c1_103 = arith.constant 1 : index
    %c0_104 = arith.constant 0 : index
    %c0_105 = arith.constant 0 : index
    %149 = vector.load %arg8[%c1_103, %c0_104, %c0_105] : memref<3x96x1xbf16, #tpu.memory_space<vmem>>, vector<1x96x1xbf16>
    %150 = vector.shape_cast %149 : vector<1x96x1xbf16> to vector<96x1xbf16>
    %cst_106 = arith.constant dense<0.000000e+00> : vector<16x1xf32>
    %151 = tpu.matmul %148, %150, %cst_106 {dimension_numbers = #tpu.dot_dimension_numbers<[1], [0], [0], [1], [0, 0, 1, 1], [], []>} : vector<16x96xbf16>, vector<96x1xbf16>, vector<16x1xf32> -> vector<16x1xf32>
    %152 = arith.addf %146, %151 : vector<16x1xf32>
    %c16_107 = arith.constant 16 : index
    %c0_108 = arith.constant 0 : index
    %153 = vector.load %arg11[%c16_107, %c0_108] : memref<432x96xf32, #tpu.memory_space<vmem>>, vector<16x96xf32>
    %154 = arith.truncf %153 : vector<16x96xf32> to vector<16x96xbf16>
    %c2_109 = arith.constant 2 : index
    %c0_110 = arith.constant 0 : index
    %c0_111 = arith.constant 0 : index
    %155 = vector.load %arg8[%c2_109, %c0_110, %c0_111] : memref<3x96x1xbf16, #tpu.memory_space<vmem>>, vector<1x96x1xbf16>
    %156 = vector.shape_cast %155 : vector<1x96x1xbf16> to vector<96x1xbf16>
    %cst_112 = arith.constant dense<0.000000e+00> : vector<16x1xf32>
    %157 = tpu.matmul %154, %156, %cst_112 {dimension_numbers = #tpu.dot_dimension_numbers<[1], [0], [0], [1], [0, 0, 1, 1], [], []>} : vector<16x96xbf16>, vector<96x1xbf16>, vector<16x1xf32> -> vector<16x1xf32>
    %158 = arith.addf %152, %157 : vector<16x1xf32>
    %c0_113 = arith.constant 0 : index
    %159 = memref.load %arg9[%c0_113] : memref<1xf32, #tpu.memory_space<smem>>
    %160 = vector.broadcast %159 : f32 to vector<16x1xf32>
    %161 = arith.addf %158, %160 : vector<16x1xf32>
    %c0_114 = arith.constant 0 : index
    %c0_115 = arith.constant 0 : index
    %c0_116 = arith.constant 0 : index
    %162 = vector.load %arg10[%c0_114, %c0_115, %c0_116] : memref<1x16x1xf32, #tpu.memory_space<vmem>>, vector<1x16x1xf32>
    %163 = vector.shape_cast %162 : vector<1x16x1xf32> to vector<16x1xf32>
    %164 = vector.shape_cast %161 : vector<16x1xf32> to vector<1x16x1xf32>
    tpu.vector_store %arg10[%c0_114, %c0_115, %c0_116], %164 {strides = array<i32>} : memref<1x16x1xf32, #tpu.memory_space<vmem>>, vector<1x16x1xf32>,
    return
  }
  func.func @transform_0(%arg0: i32) -> (i32, i32, i32) {
    %c0_i32 = arith.constant 0 : i32
    %c0_i32_0 = arith.constant 0 : i32
    %c0_i32_1 = arith.constant 0 : i32
    return %arg0, %c0_i32, %c0_i32_0 : i32, i32, i32
  }
  func.func @transform_1(%arg0: i32) -> (i32, i32, i32) {
    %c0_i32 = arith.constant 0 : i32
    %c0_i32_0 = arith.constant 0 : i32
    %c0_i32_1 = arith.constant 0 : i32
    %c0_i32_2 = arith.constant 0 : i32
    return %c0_i32, %c0_i32_0, %c0_i32_1 : i32, i32, i32
  }
  func.func @transform_2(%arg0: i32) -> (i32, i32, i32) {
    %c0_i32 = arith.constant 0 : i32
    %c0_i32_0 = arith.constant 0 : i32
    %c0_i32_1 = arith.constant 0 : i32
    %c0_i32_2 = arith.constant 0 : i32
    return %c0_i32, %c0_i32_0, %c0_i32_1 : i32, i32, i32
  }
  func.func @transform_3(%arg0: i32) -> (i32, i32, i32) {
    %c0_i32 = arith.constant 0 : i32
    %c0_i32_0 = arith.constant 0 : i32
    %c0_i32_1 = arith.constant 0 : i32
    %c0_i32_2 = arith.constant 0 : i32
    return %c0_i32, %c0_i32_0, %c0_i32_1 : i32, i32, i32
  }
  func.func @transform_4(%arg0: i32) -> (i32, i32) {
    %c0_i32 = arith.constant 0 : i32
    %c0_i32_0 = arith.constant 0 : i32
    %c0_i32_1 = arith.constant 0 : i32
    return %c0_i32, %c0_i32_0 : i32, i32
  }
  func.func @transform_5(%arg0: i32) -> (i32, i32) {
    %c0_i32 = arith.constant 0 : i32
    %c0_i32_0 = arith.constant 0 : i32
    %c0_i32_1 = arith.constant 0 : i32
    return %c0_i32, %c0_i32_0 : i32, i32
  }
  func.func @transform_6(%arg0: i32) -> (i32, i32) {
    %c0_i32 = arith.constant 0 : i32
    %c0_i32_0 = arith.constant 0 : i32
    %c0_i32_1 = arith.constant 0 : i32
    return %c0_i32, %c0_i32_0 : i32, i32
  }
  func.func @transform_7(%arg0: i32) -> (i32, i32, i32) {
    %c0_i32 = arith.constant 0 : i32
    %c0_i32_0 = arith.constant 0 : i32
    %c0_i32_1 = arith.constant 0 : i32
    %c0_i32_2 = arith.constant 0 : i32
    return %c0_i32, %c0_i32_0, %c0_i32_1 : i32, i32, i32
  }
  func.func @transform_8(%arg0: i32) -> i32 {
    %c0_i32 = arith.constant 0 : i32
    %c0_i32_0 = arith.constant 0 : i32
    return %c0_i32 : i32
  }
  func.func @transform_9(%arg0: i32) -> (i32, i32, i32) {
    %c0_i32 = arith.constant 0 : i32
    %c0_i32_0 = arith.constant 0 : i32
    %c0_i32_1 = arith.constant 0 : i32
    return %arg0, %c0_i32, %c0_i32_0 : i32, i32, i32
  }
}

module attributes {stable_mosaic.version = 11 : i64} {
  func.func @kernel(%arg0: i32, %arg1: memref<1x448x4xf32, #tpu.memory_space<vmem>>, %arg2: memref<16x24xf32, #tpu.memory_space<vmem>>, %arg3: memref<3x12x4xbf16, #tpu.memory_space<vmem>>, %arg4: memref<3x12x8xbf16, #tpu.memory_space<vmem>>, %arg5: memref<8x16xf32, #tpu.memory_space<vmem>>, %arg6: memref<8x8xf32, #tpu.memory_space<vmem>>, %arg7: memref<3x24x1xbf16, #tpu.memory_space<vmem>>, %arg8: memref<1xf32, #tpu.memory_space<smem>>, %arg9: memref<1x16x1xf32, #tpu.memory_space<vmem>>, %arg10: memref<160x24xf32, #tpu.memory_space<vmem>>) attributes {dimension_semantics = [#tpu.dimension_semantics<parallel>], iteration_bounds = array<i64: 2>, scalar_prefetch = 0 : i64, scratch_operands = 1 : i64, tpu.core_type = #tpu.core_type<tc>, window_params = [{transform_indices = @transform_0, window_bounds = array<i64: 1, 448, 4>}, {pipeline_mode = #tpu.pipeline_mode<synchronous>, transform_indices = @transform_1, window_bounds = array<i64: 16, 24>}, {pipeline_mode = #tpu.pipeline_mode<synchronous>, transform_indices = @transform_2, window_bounds = array<i64: 3, 12, 4>}, {pipeline_mode = #tpu.pipeline_mode<synchronous>, transform_indices = @transform_3, window_bounds = array<i64: 3, 12, 8>}, {pipeline_mode = #tpu.pipeline_mode<synchronous>, transform_indices = @transform_4, window_bounds = array<i64: 8, 16>}, {pipeline_mode = #tpu.pipeline_mode<synchronous>, transform_indices = @transform_5, window_bounds = array<i64: 8, 8>}, {pipeline_mode = #tpu.pipeline_mode<synchronous>, transform_indices = @transform_6, window_bounds = array<i64: 3, 24, 1>}, {transform_indices = @transform_7, window_bounds = array<i64: 1>}, {transform_indices = @transform_8, window_bounds = array<i64: 1, 16, 1>}]} {
    %c0 = arith.constant 0 : index
    %c0_0 = arith.constant 0 : index
    %c0_1 = arith.constant 0 : index
    %0 = vector.load %arg1[%c0, %c0_0, %c0_1] : memref<1x448x4xf32, #tpu.memory_space<vmem>>, vector<1x448x4xf32>
    %1 = vector.shape_cast %0 : vector<1x448x4xf32> to vector<448x4xf32>
    %2 = vector.extract_strided_slice %1 {offsets = [32, 0], sizes = [384, 4], strides = [1, 1]} : vector<448x4xf32> to vector<384x4xf32>
    %3 = vector.shape_cast %2 : vector<384x4xf32> to vector<8x48x4xf32>
    %4 = vector.extract_strided_slice %3 {offsets = [0, 0, 0], sizes = [8, 24, 4], strides = [1, 1, 1]} : vector<8x48x4xf32> to vector<8x24x4xf32>
    %5 = vector.extract_strided_slice %3 {offsets = [0, 24, 0], sizes = [8, 24, 4], strides = [1, 1, 1]} : vector<8x48x4xf32> to vector<8x24x4xf32>
    %6 = arith.addf %4, %5 : vector<8x24x4xf32>
    %c0_2 = arith.constant 0 : index
    %c0_3 = arith.constant 0 : index
    %7 = vector.load %arg2[%c0_2, %c0_3] : memref<16x24xf32, #tpu.memory_space<vmem>>, vector<16x24xf32>
    %8 = vector.shape_cast %7 : vector<16x24xf32> to vector<1x16x24xf32>
    %9 = vector.shape_cast %8 : vector<1x16x24xf32> to vector<1x16x24xf32>
    %10 = vector.broadcast %9 : vector<1x16x24xf32> to vector<8x16x24xf32>
    %cst = arith.constant dense<0.000000e+00> : vector<8x16x4xf32>
    %11 = tpu.matmul %10, %6, %cst {dimension_numbers = #tpu.dot_dimension_numbers<[2], [1], [1], [2], [0, 0, 0, 1, 1, 2], [0], [0]>} : vector<8x16x24xf32>, vector<8x24x4xf32>, vector<8x16x4xf32> -> vector<8x16x4xf32>
    %cst_4 = arith.constant 0.000000e+00 : f32
    %12 = vector.broadcast %cst_4 : f32 to vector<1x16x4xf32>
    %13 = tpu.concatenate %12, %11, %12 in 0 : vector<1x16x4xf32>, vector<8x16x4xf32>, vector<1x16x4xf32> -> vector<10x16x4xf32>
    %14 = vector.shape_cast %13 : vector<10x16x4xf32> to vector<160x4xf32>
    %cst_5 = arith.constant 0.000000e+00 : f32
    %15 = vector.broadcast %cst_5 : f32 to vector<8x4xf32>
    %16 = tpu.concatenate %15, %14, %15 in 0 : vector<8x4xf32>, vector<160x4xf32>, vector<8x4xf32> -> vector<176x4xf32>
    %17 = vector.extract_strided_slice %16 {offsets = [7, 0], sizes = [160, 4], strides = [1, 1]} : vector<176x4xf32> to vector<160x4xf32>
    %c0_6 = arith.constant 0 : index
    %c0_7 = arith.constant 0 : index
    %18 = vector.load %arg10[%c0_6, %c0_7] : memref<160x24xf32, #tpu.memory_space<vmem>>, vector<160x4xf32>
    tpu.vector_store %arg10[%c0_6, %c0_7], %17 {strides = array<i32>} : memref<160x24xf32, #tpu.memory_space<vmem>>, vector<160x4xf32>,
    %19 = vector.extract_strided_slice %16 {offsets = [8, 0], sizes = [160, 4], strides = [1, 1]} : vector<176x4xf32> to vector<160x4xf32>
    %c0_8 = arith.constant 0 : index
    %c4 = arith.constant 4 : index
    %20 = vector.load %arg10[%c0_8, %c4] : memref<160x24xf32, #tpu.memory_space<vmem>>, vector<160x4xf32>
    tpu.vector_store %arg10[%c0_8, %c4], %19 {strides = array<i32>} : memref<160x24xf32, #tpu.memory_space<vmem>>, vector<160x4xf32>,
    %21 = vector.extract_strided_slice %16 {offsets = [9, 0], sizes = [160, 4], strides = [1, 1]} : vector<176x4xf32> to vector<160x4xf32>
    %c0_9 = arith.constant 0 : index
    %c8 = arith.constant 8 : index
    %22 = vector.load %arg10[%c0_9, %c8] : memref<160x24xf32, #tpu.memory_space<vmem>>, vector<160x4xf32>
    tpu.vector_store %arg10[%c0_9, %c8], %21 {strides = array<i32>} : memref<160x24xf32, #tpu.memory_space<vmem>>, vector<160x4xf32>,
    %cst_10 = arith.constant 0.000000e+00 : f32
    %23 = vector.broadcast %cst_10 : f32 to vector<128x4xf32>
    %c0_11 = arith.constant 0 : index
    %c0_12 = arith.constant 0 : index
    %24 = vector.load %arg10[%c0_11, %c0_12] : memref<160x24xf32, #tpu.memory_space<vmem>>, vector<128x12xf32>
    %25 = arith.truncf %24 : vector<128x12xf32> to vector<128x12xbf16>
    %c0_13 = arith.constant 0 : index
    %c0_14 = arith.constant 0 : index
    %c0_15 = arith.constant 0 : index
    %26 = vector.load %arg3[%c0_13, %c0_14, %c0_15] : memref<3x12x4xbf16, #tpu.memory_space<vmem>>, vector<1x12x4xbf16>
    %27 = vector.shape_cast %26 : vector<1x12x4xbf16> to vector<12x4xbf16>
    %cst_16 = arith.constant dense<0.000000e+00> : vector<128x4xf32>
    %28 = tpu.matmul %25, %27, %cst_16 {dimension_numbers = #tpu.dot_dimension_numbers<[1], [0], [0], [1], [0, 0, 1, 1], [], []>} : vector<128x12xbf16>, vector<12x4xbf16>, vector<128x4xf32> -> vector<128x4xf32>
    %29 = arith.addf %23, %28 : vector<128x4xf32>
    %c16 = arith.constant 16 : index
    %c0_17 = arith.constant 0 : index
    %30 = vector.load %arg10[%c16, %c0_17] : memref<160x24xf32, #tpu.memory_space<vmem>>, vector<128x12xf32>
    %31 = arith.truncf %30 : vector<128x12xf32> to vector<128x12xbf16>
    %c1 = arith.constant 1 : index
    %c0_18 = arith.constant 0 : index
    %c0_19 = arith.constant 0 : index
    %32 = vector.load %arg3[%c1, %c0_18, %c0_19] : memref<3x12x4xbf16, #tpu.memory_space<vmem>>, vector<1x12x4xbf16>
    %33 = vector.shape_cast %32 : vector<1x12x4xbf16> to vector<12x4xbf16>
    %cst_20 = arith.constant dense<0.000000e+00> : vector<128x4xf32>
    %34 = tpu.matmul %31, %33, %cst_20 {dimension_numbers = #tpu.dot_dimension_numbers<[1], [0], [0], [1], [0, 0, 1, 1], [], []>} : vector<128x12xbf16>, vector<12x4xbf16>, vector<128x4xf32> -> vector<128x4xf32>
    %35 = arith.addf %29, %34 : vector<128x4xf32>
    %c32 = arith.constant 32 : index
    %c0_21 = arith.constant 0 : index
    %36 = vector.load %arg10[%c32, %c0_21] : memref<160x24xf32, #tpu.memory_space<vmem>>, vector<128x12xf32>
    %37 = arith.truncf %36 : vector<128x12xf32> to vector<128x12xbf16>
    %c2 = arith.constant 2 : index
    %c0_22 = arith.constant 0 : index
    %c0_23 = arith.constant 0 : index
    %38 = vector.load %arg3[%c2, %c0_22, %c0_23] : memref<3x12x4xbf16, #tpu.memory_space<vmem>>, vector<1x12x4xbf16>
    %39 = vector.shape_cast %38 : vector<1x12x4xbf16> to vector<12x4xbf16>
    %cst_24 = arith.constant dense<0.000000e+00> : vector<128x4xf32>
    %40 = tpu.matmul %37, %39, %cst_24 {dimension_numbers = #tpu.dot_dimension_numbers<[1], [0], [0], [1], [0, 0, 1, 1], [], []>} : vector<128x12xbf16>, vector<12x4xbf16>, vector<128x4xf32> -> vector<128x4xf32>
    %41 = arith.addf %35, %40 : vector<128x4xf32>
    %cst_25 = arith.constant 0.000000e+00 : f32
    %42 = vector.broadcast %cst_25 : f32 to vector<128x4xf32>
    %43 = arith.cmpf oge, %41, %42 : vector<128x4xf32>
    %cst_26 = arith.constant 2.000000e-01 : f32
    %44 = vector.broadcast %cst_26 : f32 to vector<128x4xf32>
    %45 = arith.mulf %44, %41 : vector<128x4xf32>
    %46 = arith.select %43, %41, %45 : vector<128x4xi1>, vector<128x4xf32>
    %47 = vector.shape_cast %46 : vector<128x4xf32> to vector<4x32x4xf32>
    %48 = vector.extract_strided_slice %47 {offsets = [0, 0, 0], sizes = [4, 16, 4], strides = [1, 1, 1]} : vector<4x32x4xf32> to vector<4x16x4xf32>
    %49 = vector.extract_strided_slice %47 {offsets = [0, 16, 0], sizes = [4, 16, 4], strides = [1, 1, 1]} : vector<4x32x4xf32> to vector<4x16x4xf32>
    %50 = arith.addf %48, %49 : vector<4x16x4xf32>
    %c0_27 = arith.constant 0 : index
    %c0_28 = arith.constant 0 : index
    %51 = vector.load %arg5[%c0_27, %c0_28] : memref<8x16xf32, #tpu.memory_space<vmem>>, vector<8x16xf32>
    %52 = vector.shape_cast %51 : vector<8x16xf32> to vector<1x8x16xf32>
    %53 = vector.shape_cast %52 : vector<1x8x16xf32> to vector<1x8x16xf32>
    %54 = vector.broadcast %53 : vector<1x8x16xf32> to vector<4x8x16xf32>
    %cst_29 = arith.constant dense<0.000000e+00> : vector<4x8x4xf32>
    %55 = tpu.matmul %54, %50, %cst_29 {dimension_numbers = #tpu.dot_dimension_numbers<[2], [1], [1], [2], [0, 0, 0, 1, 1, 2], [0], [0]>} : vector<4x8x16xf32>, vector<4x16x4xf32>, vector<4x8x4xf32> -> vector<4x8x4xf32>
    %cst_30 = arith.constant 0.000000e+00 : f32
    %56 = vector.broadcast %cst_30 : f32 to vector<1x8x4xf32>
    %57 = tpu.concatenate %56, %55, %56 in 0 : vector<1x8x4xf32>, vector<4x8x4xf32>, vector<1x8x4xf32> -> vector<6x8x4xf32>
    %58 = vector.shape_cast %57 : vector<6x8x4xf32> to vector<48x4xf32>
    %cst_31 = arith.constant 0.000000e+00 : f32
    %59 = vector.broadcast %cst_31 : f32 to vector<8x4xf32>
    %60 = tpu.concatenate %59, %58, %59 in 0 : vector<8x4xf32>, vector<48x4xf32>, vector<8x4xf32> -> vector<64x4xf32>
    %61 = vector.extract_strided_slice %60 {offsets = [7, 0], sizes = [48, 4], strides = [1, 1]} : vector<64x4xf32> to vector<48x4xf32>
    %c0_32 = arith.constant 0 : index
    %c0_33 = arith.constant 0 : index
    %62 = vector.load %arg10[%c0_32, %c0_33] : memref<160x24xf32, #tpu.memory_space<vmem>>, vector<48x4xf32>
    tpu.vector_store %arg10[%c0_32, %c0_33], %61 {strides = array<i32>} : memref<160x24xf32, #tpu.memory_space<vmem>>, vector<48x4xf32>,
    %63 = vector.extract_strided_slice %60 {offsets = [8, 0], sizes = [48, 4], strides = [1, 1]} : vector<64x4xf32> to vector<48x4xf32>
    %c0_34 = arith.constant 0 : index
    %c4_35 = arith.constant 4 : index
    %64 = vector.load %arg10[%c0_34, %c4_35] : memref<160x24xf32, #tpu.memory_space<vmem>>, vector<48x4xf32>
    tpu.vector_store %arg10[%c0_34, %c4_35], %63 {strides = array<i32>} : memref<160x24xf32, #tpu.memory_space<vmem>>, vector<48x4xf32>,
    %65 = vector.extract_strided_slice %60 {offsets = [9, 0], sizes = [48, 4], strides = [1, 1]} : vector<64x4xf32> to vector<48x4xf32>
    %c0_36 = arith.constant 0 : index
    %c8_37 = arith.constant 8 : index
    %66 = vector.load %arg10[%c0_36, %c8_37] : memref<160x24xf32, #tpu.memory_space<vmem>>, vector<48x4xf32>
    tpu.vector_store %arg10[%c0_36, %c8_37], %65 {strides = array<i32>} : memref<160x24xf32, #tpu.memory_space<vmem>>, vector<48x4xf32>,
    %cst_38 = arith.constant 0.000000e+00 : f32
    %67 = vector.broadcast %cst_38 : f32 to vector<32x8xf32>
    %c0_39 = arith.constant 0 : index
    %c0_40 = arith.constant 0 : index
    %68 = vector.load %arg10[%c0_39, %c0_40] : memref<160x24xf32, #tpu.memory_space<vmem>>, vector<32x12xf32>
    %69 = arith.truncf %68 : vector<32x12xf32> to vector<32x12xbf16>
    %c0_41 = arith.constant 0 : index
    %c0_42 = arith.constant 0 : index
    %c0_43 = arith.constant 0 : index
    %70 = vector.load %arg4[%c0_41, %c0_42, %c0_43] : memref<3x12x8xbf16, #tpu.memory_space<vmem>>, vector<1x12x8xbf16>
    %71 = vector.shape_cast %70 : vector<1x12x8xbf16> to vector<12x8xbf16>
    %cst_44 = arith.constant dense<0.000000e+00> : vector<32x8xf32>
    %72 = tpu.matmul %69, %71, %cst_44 {dimension_numbers = #tpu.dot_dimension_numbers<[1], [0], [0], [1], [0, 0, 1, 1], [], []>} : vector<32x12xbf16>, vector<12x8xbf16>, vector<32x8xf32> -> vector<32x8xf32>
    %73 = arith.addf %67, %72 : vector<32x8xf32>
    %c8_45 = arith.constant 8 : index
    %c0_46 = arith.constant 0 : index
    %74 = vector.load %arg10[%c8_45, %c0_46] : memref<160x24xf32, #tpu.memory_space<vmem>>, vector<32x12xf32>
    %75 = arith.truncf %74 : vector<32x12xf32> to vector<32x12xbf16>
    %c1_47 = arith.constant 1 : index
    %c0_48 = arith.constant 0 : index
    %c0_49 = arith.constant 0 : index
    %76 = vector.load %arg4[%c1_47, %c0_48, %c0_49] : memref<3x12x8xbf16, #tpu.memory_space<vmem>>, vector<1x12x8xbf16>
    %77 = vector.shape_cast %76 : vector<1x12x8xbf16> to vector<12x8xbf16>
    %cst_50 = arith.constant dense<0.000000e+00> : vector<32x8xf32>
    %78 = tpu.matmul %75, %77, %cst_50 {dimension_numbers = #tpu.dot_dimension_numbers<[1], [0], [0], [1], [0, 0, 1, 1], [], []>} : vector<32x12xbf16>, vector<12x8xbf16>, vector<32x8xf32> -> vector<32x8xf32>
    %79 = arith.addf %73, %78 : vector<32x8xf32>
    %c16_51 = arith.constant 16 : index
    %c0_52 = arith.constant 0 : index
    %80 = vector.load %arg10[%c16_51, %c0_52] : memref<160x24xf32, #tpu.memory_space<vmem>>, vector<32x12xf32>
    %81 = arith.truncf %80 : vector<32x12xf32> to vector<32x12xbf16>
    %c2_53 = arith.constant 2 : index
    %c0_54 = arith.constant 0 : index
    %c0_55 = arith.constant 0 : index
    %82 = vector.load %arg4[%c2_53, %c0_54, %c0_55] : memref<3x12x8xbf16, #tpu.memory_space<vmem>>, vector<1x12x8xbf16>
    %83 = vector.shape_cast %82 : vector<1x12x8xbf16> to vector<12x8xbf16>
    %cst_56 = arith.constant dense<0.000000e+00> : vector<32x8xf32>
    %84 = tpu.matmul %81, %83, %cst_56 {dimension_numbers = #tpu.dot_dimension_numbers<[1], [0], [0], [1], [0, 0, 1, 1], [], []>} : vector<32x12xbf16>, vector<12x8xbf16>, vector<32x8xf32> -> vector<32x8xf32>
    %85 = arith.addf %79, %84 : vector<32x8xf32>
    %cst_57 = arith.constant 0.000000e+00 : f32
    %86 = vector.broadcast %cst_57 : f32 to vector<32x8xf32>
    %87 = arith.cmpf oge, %85, %86 : vector<32x8xf32>
    %cst_58 = arith.constant 2.000000e-01 : f32
    %88 = vector.broadcast %cst_58 : f32 to vector<32x8xf32>
    %89 = arith.mulf %88, %85 : vector<32x8xf32>
    %90 = arith.select %87, %85, %89 : vector<32x8xi1>, vector<32x8xf32>
    %91 = vector.shape_cast %90 : vector<32x8xf32> to vector<2x16x8xf32>
    %92 = vector.extract_strided_slice %91 {offsets = [0, 0, 0], sizes = [2, 8, 8], strides = [1, 1, 1]} : vector<2x16x8xf32> to vector<2x8x8xf32>
    %93 = vector.extract_strided_slice %91 {offsets = [0, 8, 0], sizes = [2, 8, 8], strides = [1, 1, 1]} : vector<2x16x8xf32> to vector<2x8x8xf32>
    %94 = arith.addf %92, %93 : vector<2x8x8xf32>
    %c0_59 = arith.constant 0 : index
    %c0_60 = arith.constant 0 : index
    %95 = vector.load %arg6[%c0_59, %c0_60] : memref<8x8xf32, #tpu.memory_space<vmem>>, vector<8x8xf32>
    %96 = vector.shape_cast %95 : vector<8x8xf32> to vector<1x8x8xf32>
    %97 = vector.shape_cast %96 : vector<1x8x8xf32> to vector<1x8x8xf32>
    %98 = vector.broadcast %97 : vector<1x8x8xf32> to vector<2x8x8xf32>
    %cst_61 = arith.constant dense<0.000000e+00> : vector<2x8x8xf32>
    %99 = tpu.matmul %98, %94, %cst_61 {dimension_numbers = #tpu.dot_dimension_numbers<[2], [1], [1], [2], [0, 0, 0, 1, 1, 2], [0], [0]>} : vector<2x8x8xf32>, vector<2x8x8xf32>, vector<2x8x8xf32> -> vector<2x8x8xf32>
    %cst_62 = arith.constant 0.000000e+00 : f32
    %100 = vector.broadcast %cst_62 : f32 to vector<1x8x8xf32>
    %101 = tpu.concatenate %100, %99, %100 in 0 : vector<1x8x8xf32>, vector<2x8x8xf32>, vector<1x8x8xf32> -> vector<4x8x8xf32>
    %102 = vector.shape_cast %101 : vector<4x8x8xf32> to vector<32x8xf32>
    %cst_63 = arith.constant 0.000000e+00 : f32
    %103 = vector.broadcast %cst_63 : f32 to vector<8x8xf32>
    %104 = tpu.concatenate %103, %102, %103 in 0 : vector<8x8xf32>, vector<32x8xf32>, vector<8x8xf32> -> vector<48x8xf32>
    %105 = vector.extract_strided_slice %104 {offsets = [7, 0], sizes = [32, 8], strides = [1, 1]} : vector<48x8xf32> to vector<32x8xf32>
    %c0_64 = arith.constant 0 : index
    %c0_65 = arith.constant 0 : index
    %106 = vector.load %arg10[%c0_64, %c0_65] : memref<160x24xf32, #tpu.memory_space<vmem>>, vector<32x8xf32>
    tpu.vector_store %arg10[%c0_64, %c0_65], %105 {strides = array<i32>} : memref<160x24xf32, #tpu.memory_space<vmem>>, vector<32x8xf32>,
    %107 = vector.extract_strided_slice %104 {offsets = [8, 0], sizes = [32, 8], strides = [1, 1]} : vector<48x8xf32> to vector<32x8xf32>
    %c0_66 = arith.constant 0 : index
    %c8_67 = arith.constant 8 : index
    %108 = vector.load %arg10[%c0_66, %c8_67] : memref<160x24xf32, #tpu.memory_space<vmem>>, vector<32x8xf32>
    tpu.vector_store %arg10[%c0_66, %c8_67], %107 {strides = array<i32>} : memref<160x24xf32, #tpu.memory_space<vmem>>, vector<32x8xf32>,
    %109 = vector.extract_strided_slice %104 {offsets = [9, 0], sizes = [32, 8], strides = [1, 1]} : vector<48x8xf32> to vector<32x8xf32>
    %c0_68 = arith.constant 0 : index
    %c16_69 = arith.constant 16 : index
    %110 = vector.load %arg10[%c0_68, %c16_69] : memref<160x24xf32, #tpu.memory_space<vmem>>, vector<32x8xf32>
    tpu.vector_store %arg10[%c0_68, %c16_69], %109 {strides = array<i32>} : memref<160x24xf32, #tpu.memory_space<vmem>>, vector<32x8xf32>,
    %cst_70 = arith.constant 0.000000e+00 : f32
    %111 = vector.broadcast %cst_70 : f32 to vector<16x1xf32>
    %c0_71 = arith.constant 0 : index
    %c0_72 = arith.constant 0 : index
    %112 = vector.load %arg10[%c0_71, %c0_72] : memref<160x24xf32, #tpu.memory_space<vmem>>, vector<16x24xf32>
    %113 = arith.truncf %112 : vector<16x24xf32> to vector<16x24xbf16>
    %c0_73 = arith.constant 0 : index
    %c0_74 = arith.constant 0 : index
    %c0_75 = arith.constant 0 : index
    %114 = vector.load %arg7[%c0_73, %c0_74, %c0_75] : memref<3x24x1xbf16, #tpu.memory_space<vmem>>, vector<1x24x1xbf16>
    %115 = vector.shape_cast %114 : vector<1x24x1xbf16> to vector<24x1xbf16>
    %cst_76 = arith.constant dense<0.000000e+00> : vector<16x1xf32>
    %116 = tpu.matmul %113, %115, %cst_76 {dimension_numbers = #tpu.dot_dimension_numbers<[1], [0], [0], [1], [0, 0, 1, 1], [], []>} : vector<16x24xbf16>, vector<24x1xbf16>, vector<16x1xf32> -> vector<16x1xf32>
    %117 = arith.addf %111, %116 : vector<16x1xf32>
    %c8_77 = arith.constant 8 : index
    %c0_78 = arith.constant 0 : index
    %118 = vector.load %arg10[%c8_77, %c0_78] : memref<160x24xf32, #tpu.memory_space<vmem>>, vector<16x24xf32>
    %119 = arith.truncf %118 : vector<16x24xf32> to vector<16x24xbf16>
    %c1_79 = arith.constant 1 : index
    %c0_80 = arith.constant 0 : index
    %c0_81 = arith.constant 0 : index
    %120 = vector.load %arg7[%c1_79, %c0_80, %c0_81] : memref<3x24x1xbf16, #tpu.memory_space<vmem>>, vector<1x24x1xbf16>
    %121 = vector.shape_cast %120 : vector<1x24x1xbf16> to vector<24x1xbf16>
    %cst_82 = arith.constant dense<0.000000e+00> : vector<16x1xf32>
    %122 = tpu.matmul %119, %121, %cst_82 {dimension_numbers = #tpu.dot_dimension_numbers<[1], [0], [0], [1], [0, 0, 1, 1], [], []>} : vector<16x24xbf16>, vector<24x1xbf16>, vector<16x1xf32> -> vector<16x1xf32>
    %123 = arith.addf %117, %122 : vector<16x1xf32>
    %c16_83 = arith.constant 16 : index
    %c0_84 = arith.constant 0 : index
    %124 = vector.load %arg10[%c16_83, %c0_84] : memref<160x24xf32, #tpu.memory_space<vmem>>, vector<16x24xf32>
    %125 = arith.truncf %124 : vector<16x24xf32> to vector<16x24xbf16>
    %c2_85 = arith.constant 2 : index
    %c0_86 = arith.constant 0 : index
    %c0_87 = arith.constant 0 : index
    %126 = vector.load %arg7[%c2_85, %c0_86, %c0_87] : memref<3x24x1xbf16, #tpu.memory_space<vmem>>, vector<1x24x1xbf16>
    %127 = vector.shape_cast %126 : vector<1x24x1xbf16> to vector<24x1xbf16>
    %cst_88 = arith.constant dense<0.000000e+00> : vector<16x1xf32>
    %128 = tpu.matmul %125, %127, %cst_88 {dimension_numbers = #tpu.dot_dimension_numbers<[1], [0], [0], [1], [0, 0, 1, 1], [], []>} : vector<16x24xbf16>, vector<24x1xbf16>, vector<16x1xf32> -> vector<16x1xf32>
    %129 = arith.addf %123, %128 : vector<16x1xf32>
    %c0_89 = arith.constant 0 : index
    %130 = memref.load %arg8[%c0_89] : memref<1xf32, #tpu.memory_space<smem>>
    %131 = vector.broadcast %130 : f32 to vector<16x1xf32>
    %132 = arith.addf %129, %131 : vector<16x1xf32>
    %c0_90 = arith.constant 0 : index
    %c0_91 = arith.constant 0 : index
    %c0_92 = arith.constant 0 : index
    %133 = vector.load %arg9[%c0_90, %c0_91, %c0_92] : memref<1x16x1xf32, #tpu.memory_space<vmem>>, vector<1x16x1xf32>
    %134 = vector.shape_cast %133 : vector<1x16x1xf32> to vector<16x1xf32>
    %135 = vector.shape_cast %132 : vector<16x1xf32> to vector<1x16x1xf32>
    tpu.vector_store %arg9[%c0_90, %c0_91, %c0_92], %135 {strides = array<i32>} : memref<1x16x1xf32, #tpu.memory_space<vmem>>, vector<1x16x1xf32>,
    return
  }
  func.func @transform_0(%arg0: i32) -> (i32, i32, i32) {
    %c0_i32 = arith.constant 0 : i32
    %c0_i32_0 = arith.constant 0 : i32
    %c0_i32_1 = arith.constant 0 : i32
    return %arg0, %c0_i32, %c0_i32_0 : i32, i32, i32
  }
  func.func @transform_1(%arg0: i32) -> (i32, i32) {
    %c0_i32 = arith.constant 0 : i32
    %c0_i32_0 = arith.constant 0 : i32
    %c0_i32_1 = arith.constant 0 : i32
    return %c0_i32, %c0_i32_0 : i32, i32
  }
  func.func @transform_2(%arg0: i32) -> (i32, i32, i32) {
    %c0_i32 = arith.constant 0 : i32
    %c0_i32_0 = arith.constant 0 : i32
    %c0_i32_1 = arith.constant 0 : i32
    %c0_i32_2 = arith.constant 0 : i32
    return %c0_i32, %c0_i32_0, %c0_i32_1 : i32, i32, i32
  }
  func.func @transform_3(%arg0: i32) -> (i32, i32, i32) {
    %c0_i32 = arith.constant 0 : i32
    %c0_i32_0 = arith.constant 0 : i32
    %c0_i32_1 = arith.constant 0 : i32
    %c0_i32_2 = arith.constant 0 : i32
    return %c0_i32, %c0_i32_0, %c0_i32_1 : i32, i32, i32
  }
  func.func @transform_4(%arg0: i32) -> (i32, i32) {
    %c0_i32 = arith.constant 0 : i32
    %c0_i32_0 = arith.constant 0 : i32
    %c0_i32_1 = arith.constant 0 : i32
    return %c0_i32, %c0_i32_0 : i32, i32
  }
  func.func @transform_5(%arg0: i32) -> (i32, i32) {
    %c0_i32 = arith.constant 0 : i32
    %c0_i32_0 = arith.constant 0 : i32
    %c0_i32_1 = arith.constant 0 : i32
    return %c0_i32, %c0_i32_0 : i32, i32
  }
  func.func @transform_6(%arg0: i32) -> (i32, i32, i32) {
    %c0_i32 = arith.constant 0 : i32
    %c0_i32_0 = arith.constant 0 : i32
    %c0_i32_1 = arith.constant 0 : i32
    %c0_i32_2 = arith.constant 0 : i32
    return %c0_i32, %c0_i32_0, %c0_i32_1 : i32, i32, i32
  }
  func.func @transform_7(%arg0: i32) -> i32 {
    %c0_i32 = arith.constant 0 : i32
    %c0_i32_0 = arith.constant 0 : i32
    return %c0_i32 : i32
  }
  func.func @transform_8(%arg0: i32) -> (i32, i32, i32) {
    %c0_i32 = arith.constant 0 : i32
    %c0_i32_0 = arith.constant 0 : i32
    %c0_i32_1 = arith.constant 0 : i32
    return %arg0, %c0_i32, %c0_i32_0 : i32, i32, i32
  }
}

</mosaic_0001>

<llo_original>
// kernel: _lambda_.3
$region0: #{_lambda_.3}
  #allocation0 [shape = 'u32[]', space=smem, size = 0x4, offset = 0x4, fixed_abs, tag = 'smem constant byte address 0x4 - core index']
  #allocation1 [shape = 'u32[144,128]{1,0:T(1,128)}', space=vmem, size = 0x12000, scoped, tag = 'internal scratch']
  #allocation2 [shape = 'f32[160,24]{1,0:T(8,128)}', space=vmem, size = 0x14000, scoped, tag = 'scratch operand']
  #allocation3 [shape = 'f32[1]{0:T(128)S(6)}', space=smem, size = 0x200, scoped, tag = 'scoped memory for _lambda_.3']
  %s0 = inlined_call_operand.vmem [shape: f32[2,448,4], index: 0, kind: input, shape index: {}]
  %s1 = inlined_call_operand.vmem [shape: f32[16,24], index: 1, kind: input, shape index: {}]
  %s2 = inlined_call_operand.vmem [shape: bf16[3,12,4], index: 2, kind: input, shape index: {}]
  %s3 = inlined_call_operand.vmem [shape: bf16[3,12,8], index: 3, kind: input, shape index: {}]
  %s4 = inlined_call_operand.vmem [shape: f32[8,16], index: 4, kind: input, shape index: {}]
  %s5 = inlined_call_operand.vmem [shape: f32[8,8], index: 5, kind: input, shape index: {}]
  %s6 = inlined_call_operand.vmem [shape: bf16[3,24,1], index: 6, kind: input, shape index: {}]
  %s7 = inlined_call_operand.<no memory space> [shape: f32[1], index: 7, kind: input, shape index: {}]
  %s8 = inlined_call_operand.vmem [shape: f32[2,16,1], index: 8, kind: output, shape index: {}]
  %s9 = sld [smem:[#allocation0]]
  $region65: #{_lambda_.3} parent=0
    _
  %s11 = ssub.s32 1, %s9
  %s12 = scalar_select 0, %s11, %s9
  %13 = sst [smem:[#allocation3]] %s7
  loop: start=0, step=1, limit=4
  $region2: #{_lambda_.3} parent=0 // loop_pre_header
    _
  $region3: #{_lambda_.3} parent=0 // loop_header
    %s15 = sphi 0, %s19
    %p16 = scmp.ge.s32.totalorder %s15, 4
    %s25 = sphi 0, %s27
    %s28 = sphi 0, %s25
    %s29 = sphi 0, %s28
    %s45 = sphi 0, %s29
    %s49 = sphi 0, %s49
    %s51 = sphi 0, %s49
    %s52 = sphi 0, %s51
    %s66 = sphi 0, %s52
    %s70 = sphi 0, %s70
    %s72 = sphi 0, %s70
    %s73 = sphi 0, %s72
    %s87 = sphi 0, %s73
    %s91 = sphi 0, %s91
    %s93 = sphi 0, %s91
    %s94 = sphi 0, %s93
    %s108 = sphi 0, %s94
    %s112 = sphi 0, %s112
    %s114 = sphi 0, %s112
    %s115 = sphi 0, %s114
    %s129 = sphi 0, %s115
    %s133 = sphi 0, %s133
    %s135 = sphi 0, %s133
    %s136 = sphi 0, %s135
    %s150 = sphi 0, %s136
    %s154 = sphi 0, %s154
    %s156 = sphi 0, %s154
    %s157 = sphi 0, %s156
    %s171 = sphi 0, %s157
    %s175 = sphi 0, %s175
    %s177 = sphi 0, %s175
    %s178 = sphi 0, %s177
    %s192 = sphi 0, %s178
    %s198 = sphi 0, %s200
    %s201 = sphi 0, %s198
    %s202 = sphi 0, %s201
    %s218 = sphi 0, %s202
  $region4: #{_lambda_.3} parent=0 // loop_header_branch
    %18 = sbr.rel (%p16) target = $region8
  $region5: #{_lambda_.3} parent=0 // loop_body
    %s20 = ssub.s32 %s15, 1
    %s21 = ssub.s32 %s15, 2
    %s22 = sadd.s32 %s15, 1
    %s23 = ssub.s32 %s15, %s22
    %p24 = scmp.eq.s32.totalorder %s23, 0
    %s26 = sadd.s32 %s25, 1
    %s27 = scalar_select %p24, %s25, %s26
    %p30 = pneg %p24
    %p31 = scmp.eq.s32.totalorder %s15, 1
    %p32 = por %p30, %p31
    %p33 = scmp.ne.s32.totalorder %s25, %s28
    %p34 = scmp.eq.s32.totalorder %s15, 0
    %p35 = por %p33, %p34
    %p36 = scmp.ne.s32.totalorder %s25, %s28
    %p37 = scmp.eq.s32.totalorder %s20, 1
    %p38 = por %p36, %p37
    %p39 = scmp.ne.s32.totalorder %s28, %s29
    %p40 = scmp.eq.s32.totalorder %s20, 0
    %p41 = por %p39, %p40
    %p42 = scmp.ne.s32.totalorder %s28, %s29
    %p43 = scmp.eq.s32.totalorder %s21, 1
    %p44 = por %p42, %p43
    %p46 = scmp.ne.s32.totalorder %s29, %s45
    %p47 = scmp.eq.s32.totalorder %s21, 0
    %p48 = por %p46, %p47
    %s50 = sadd.s32 %s49, 1
    %p53 = scmp.eq.s32.totalorder %s15, 1
    %p54 = scmp.ne.s32.totalorder %s49, %s51
    %p55 = scmp.eq.s32.totalorder %s15, 0
    %p56 = por %p54, %p55
    %p57 = scmp.ne.s32.totalorder %s49, %s51
    %p58 = scmp.eq.s32.totalorder %s20, 1
    %p59 = por %p57, %p58
    %p60 = scmp.ne.s32.totalorder %s51, %s52
    %p61 = scmp.eq.s32.totalorder %s20, 0
    %p62 = por %p60, %p61
    %p63 = scmp.ne.s32.totalorder %s51, %s52
    %p64 = scmp.eq.s32.totalorder %s21, 1
    %p65 = por %p63, %p64
    %p67 = scmp.ne.s32.totalorder %s52, %s66
    %p68 = scmp.eq.s32.totalorder %s21, 0
    %p69 = por %p67, %p68
    %s71 = sadd.s32 %s70, 1
    %p74 = scmp.eq.s32.totalorder %s15, 1
    %p75 = scmp.ne.s32.totalorder %s70, %s72
    %p76 = scmp.eq.s32.totalorder %s15, 0
    %p77 = por %p75, %p76
    %p78 = scmp.ne.s32.totalorder %s70, %s72
    %p79 = scmp.eq.s32.totalorder %s20, 1
    %p80 = por %p78, %p79
    %p81 = scmp.ne.s32.totalorder %s72, %s73
    %p82 = scmp.eq.s32.totalorder %s20, 0
    %p83 = por %p81, %p82
    %p84 = scmp.ne.s32.totalorder %s72, %s73
    %p85 = scmp.eq.s32.totalorder %s21, 1
    %p86 = por %p84, %p85
    %p88 = scmp.ne.s32.totalorder %s73, %s87
    %p89 = scmp.eq.s32.totalorder %s21, 0
    %p90 = por %p88, %p89
    %s92 = sadd.s32 %s91, 1
    %p95 = scmp.eq.s32.totalorder %s15, 1
    %p96 = scmp.ne.s32.totalorder %s91, %s93
    %p97 = scmp.eq.s32.totalorder %s15, 0
    %p98 = por %p96, %p97
    %p99 = scmp.ne.s32.totalorder %s91, %s93
    %p100 = scmp.eq.s32.totalorder %s20, 1
    %p101 = por %p99, %p100
    %p102 = scmp.ne.s32.totalorder %s93, %s94
    %p103 = scmp.eq.s32.totalorder %s20, 0
    %p104 = por %p102, %p103
    %p105 = scmp.ne.s32.totalorder %s93, %s94
    %p106 = scmp.eq.s32.totalorder %s21, 1
    %p107 = por %p105, %p106
    %p109 = scmp.ne.s32.totalorder %s94, %s108
    %p110 = scmp.eq.s32.totalorder %s21, 0
    %p111 = por %p109, %p110
    %s113 = sadd.s32 %s112, 1
    %p116 = scmp.eq.s32.totalorder %s15, 1
    %p117 = scmp.ne.s32.totalorder %s112, %s114
    %p118 = scmp.eq.s32.totalorder %s15, 0
    %p119 = por %p117, %p118
    %p120 = scmp.ne.s32.totalorder %s112, %s114
    %p121 = scmp.eq.s32.totalorder %s20, 1
    %p122 = por %p120, %p121
    %p123 = scmp.ne.s32.totalorder %s114, %s115
    %p124 = scmp.eq.s32.totalorder %s20, 0
    %p125 = por %p123, %p124
    %p126 = scmp.ne.s32.totalorder %s114, %s115
    %p127 = scmp.eq.s32.totalorder %s21, 1
    %p128 = por %p126, %p127
    %p130 = scmp.ne.s32.totalorder %s115, %s129
    %p131 = scmp.eq.s32.totalorder %s21, 0
    %p132 = por %p130, %p131
    %s134 = sadd.s32 %s133, 1
    %p137 = scmp.eq.s32.totalorder %s15, 1
    %p138 = scmp.ne.s32.totalorder %s133, %s135
    %p139 = scmp.eq.s32.totalorder %s15, 0
    %p140 = por %p138, %p139
    %p141 = scmp.ne.s32.totalorder %s133, %s135
    %p142 = scmp.eq.s32.totalorder %s20, 1
    %p143 = por %p141, %p142
    %p144 = scmp.ne.s32.totalorder %s135, %s136
    %p145 = scmp.eq.s32.totalorder %s20, 0
    %p146 = por %p144, %p145
    %p147 = scmp.ne.s32.totalorder %s135, %s136
    %p148 = scmp.eq.s32.totalorder %s21, 1
    %p149 = por %p147, %p148
    %p151 = scmp.ne.s32.totalorder %s136, %s150
    %p152 = scmp.eq.s32.totalorder %s21, 0
    %p153 = por %p151, %p152
    %s155 = sadd.s32 %s154, 1
    %p158 = scmp.eq.s32.totalorder %s15, 1
    %p159 = scmp.ne.s32.totalorder %s154, %s156
    %p160 = scmp.eq.s32.totalorder %s15, 0
    %p161 = por %p159, %p160
    %p162 = scmp.ne.s32.totalorder %s154, %s156
    %p163 = scmp.eq.s32.totalorder %s20, 1
    %p164 = por %p162, %p163
    %p165 = scmp.ne.s32.totalorder %s156, %s157
    %p166 = scmp.eq.s32.totalorder %s20, 0
    %p167 = por %p165, %p166
    %p168 = scmp.ne.s32.totalorder %s156, %s157
    %p169 = scmp.eq.s32.totalorder %s21, 1
    %p170 = por %p168, %p169
    %p172 = scmp.ne.s32.totalorder %s157, %s171
    %p173 = scmp.eq.s32.totalorder %s21, 0
    %p174 = por %p172, %p173
    %s176 = sadd.s32 %s175, 1
    %p179 = scmp.eq.s32.totalorder %s15, 1
    %p180 = scmp.ne.s32.totalorder %s175, %s177
    %p181 = scmp.eq.s32.totalorder %s15, 0
    %p182 = por %p180, %p181
    %p183 = scmp.ne.s32.totalorder %s175, %s177
    %p184 = scmp.eq.s32.totalorder %s20, 1
    %p185 = por %p183, %p184
    %p186 = scmp.ne.s32.totalorder %s177, %s178
    %p187 = scmp.eq.s32.totalorder %s20, 0
    %p188 = por %p186, %p187
    %p189 = scmp.ne.s32.totalorder %s177, %s178
    %p190 = scmp.eq.s32.totalorder %s21, 1
    %p191 = por %p189, %p190
    %p193 = scmp.ne.s32.totalorder %s178, %s192
    %p194 = scmp.eq.s32.totalorder %s21, 0
    %p195 = por %p193, %p194
    %s196 = ssub.s32 %s15, %s22
    %p197 = scmp.eq.s32.totalorder %s196, 0
    %s199 = sadd.s32 %s198, 1
    %s200 = scalar_select %p197, %s198, %s199
    %p203 = pneg %p197
    %p204 = scmp.eq.s32.totalorder %s15, 1
    %p205 = por %p203, %p204
    %p206 = scmp.ne.s32.totalorder %s198, %s201
    %p207 = scmp.eq.s32.totalorder %s15, 0
    %p208 = por %p206, %p207
    %p209 = scmp.ne.s32.totalorder %s198, %s201
    %p210 = scmp.eq.s32.totalorder %s20, 1
    %p211 = por %p209, %p210
    %p212 = scmp.ne.s32.totalorder %s201, %s202
    %p213 = scmp.eq.s32.totalorder %s20, 0
    %p214 = por %p212, %p213
    %p215 = scmp.ne.s32.totalorder %s201, %s202
    %p216 = scmp.eq.s32.totalorder %s21, 1
    %p217 = por %p215, %p216
    %p219 = scmp.ne.s32.totalorder %s202, %s218
    %p220 = scmp.eq.s32.totalorder %s21, 0
    %p221 = por %p219, %p220
    %p222 = scmp.le.s32.totalorder 1, %s15
    %p223 = scmp.lt.s32.totalorder %s15, 3
    %p224 = pnand %p222, %p223
    %p225 = pneg %p224
    // Predicated region
    $region9: #{_lambda_.3} parent=5 // pred_check
      _
    $region10: #{_lambda_.3} parent=5 // pred_check_branch
      %227 = sbr.rel (%p224) target = $region12
    $region11: #{_lambda_.3} parent=5 // pred_region
      %s228 = ssub.s32 %s15, 1
      // Predicated region
      $region13: #{_lambda_.3} parent=11 // pred_check
        %p229 = pneg %p62
      $region14: #{_lambda_.3} parent=11 // pred_check_branch
        %231 = sbr.rel (%p229) target = $region16
      $region15: #{_lambda_.3} parent=11 // pred_region
        _
      $region16: #{_lambda_.3} parent=11 // pred_fallthru
        _
      // Predicated region
      $region17: #{_lambda_.3} parent=11 // pred_check
        %p232 = pneg %p83
      $region18: #{_lambda_.3} parent=11 // pred_check_branch
        %234 = sbr.rel (%p232) target = $region20
      $region19: #{_lambda_.3} parent=11 // pred_region
        _
      $region20: #{_lambda_.3} parent=11 // pred_fallthru
        _
      // Predicated region
      $region21: #{_lambda_.3} parent=11 // pred_check
        %p235 = pneg %p104
      $region22: #{_lambda_.3} parent=11 // pred_check_branch
        %237 = sbr.rel (%p235) target = $region24
      $region23: #{_lambda_.3} parent=11 // pred_region
        _
      $region24: #{_lambda_.3} parent=11 // pred_fallthru
        _
      // Predicated region
      $region25: #{_lambda_.3} parent=11 // pred_check
        %p238 = pneg %p125
      $region26: #{_lambda_.3} parent=11 // pred_check_branch
        %240 = sbr.rel (%p238) target = $region28
      $region27: #{_lambda_.3} parent=11 // pred_region
        _
      $region28: #{_lambda_.3} parent=11 // pred_fallthru
        _
      // Predicated region
      $region29: #{_lambda_.3} parent=11 // pred_check
        %p241 = pneg %p146
      $region30: #{_lambda_.3} parent=11 // pred_check_branch
        %243 = sbr.rel (%p241) target = $region32
      $region31: #{_lambda_.3} parent=11 // pred_region
        _
      $region32: #{_lambda_.3} parent=11 // pred_fallthru
        _
      // Predicated region
      $region33: #{_lambda_.3} parent=11 // pred_check
        %p244 = pneg %p167
      $region34: #{_lambda_.3} parent=11 // pred_check_branch
        %246 = sbr.rel (%p244) target = $region36
      $region35: #{_lambda_.3} parent=11 // pred_region
        _
      $region36: #{_lambda_.3} parent=11 // pred_fallthru
        _
      // Predicated region
      $region37: #{_lambda_.3} parent=11 // pred_check
        %p247 = pneg %p188
      $region38: #{_lambda_.3} parent=11 // pred_check_branch
        %249 = sbr.rel (%p247) target = $region40
      $region39: #{_lambda_.3} parent=11 // pred_region
        _
      $region40: #{_lambda_.3} parent=11 // pred_fallthru
        _
    $region12: #{_lambda_.3} parent=5 // pred_fallthru
      _
    %p250 = scmp.lt.s32.totalorder %s15, 2
    // Predicated region
    $region41: #{_lambda_.3} parent=5 // pred_check
      %p251 = pneg %p250
    $region42: #{_lambda_.3} parent=5 // pred_check_branch
      %253 = sbr.rel (%p251) target = $region44
    $region43: #{_lambda_.3} parent=5 // pred_region
      // Predicated region
      $region45: #{_lambda_.3} parent=43 // pred_check
        %p254 = pneg %p35
      $region46: #{_lambda_.3} parent=43 // pred_check_branch
        %256 = sbr.rel (%p254) target = $region48
      $region47: #{_lambda_.3} parent=43 // pred_region
        %p257 = scmp.lt.s32.totalorder %s15, 1
        %s258 = scalar_select %p257, %s15, 1
        %s259 = smul.addr %s258, 56
        %s260 = smul.addr %s259, 8
        %s261 = scalar_lea.vmem %s0, %s260
      $region48: #{_lambda_.3} parent=43 // pred_fallthru
        _
    $region44: #{_lambda_.3} parent=5 // pred_fallthru
      _
    %p262 = scmp.le.s32.totalorder 1, %s15
    %p263 = scmp.lt.s32.totalorder %s15, 3
    %p264 = pnand %p262, %p263
    %p265 = pneg %p264
    // Predicated region
    $region49: #{_lambda_.3} parent=5 // pred_check
      _
    $region50: #{_lambda_.3} parent=5 // pred_check_branch
      %267 = sbr.rel (%p264) target = $region52
    $region51: #{_lambda_.3} parent=5 // pred_region
      %s268 = ssub.s32 %s15, 1
      %p269 = scmp.lt.s32.totalorder %s20, 1
      %s270 = scalar_select %p269, %s20, 1
      %s271 = smul.addr %s270, 56
      %s272 = smul.addr %s271, 8
      %s273 = scalar_lea.vmem %s0, %s272
      %p274 = pneg %p41
      %p275 = pneg %p38
      %p276 = pneg %p62
      %p277 = pneg %p59
      %p278 = pneg %p83
      %p279 = pneg %p80
      %p280 = pneg %p104
      %p281 = pneg %p101
      %p282 = pneg %p125
      %p283 = pneg %p122
      %p284 = pneg %p146
      %p285 = pneg %p143
      %p286 = pneg %p167
      %p287 = pneg %p164
      %p288 = pneg %p188
      %p289 = pneg %p185
      %p290 = pneg %p214
      %p291 = pneg %p211
      %p292 = scmp.lt.s32.totalorder %s20, 1
      %s293 = scalar_select %p292, %s20, 1
      %s294 = smul.addr %s293, 2
      %s295 = smul.addr %s294, 8
      %s296 = scalar_lea.vmem %s8, %s295
      %p297 = scmp.lt.s32.totalorder %s20, 1
      %s298 = scalar_select %p297, %s20, 1
      %s299 = smul.addr %s298, 56
      %s300 = smul.addr %s299, 8
      %s301 = scalar_lea.vmem %s0, %s300
      %p302 = scmp.lt.s32.totalorder %s20, 1
      %s303 = scalar_select %p302, %s20, 1
      %s304 = smul.addr %s303, 2
      %s305 = smul.addr %s304, 8
      %s306 = scalar_lea.vmem %s8, %s305
      %v308 = vld [vmem:[%s301 + $0x20] sm:$0xff]
      %v309 = vld [vmem:[%s301 + $0x28] sm:$0xff]
      %v310 = vld [vmem:[%s301 + $0x30] sm:$0xff]
      %v311 = vld [vmem:[%s301 + $0x38] sm:$0xff]
      %v312 = vld [vmem:[%s301 + $0x40] sm:$0xff]
      %v313 = vld [vmem:[%s301 + $0x48] sm:$0xff]
      %v314 = vld [vmem:[%s301 + $0x50] sm:$0xff]
      %v315 = vld [vmem:[%s301 + $0x58] sm:$0xff]
      %v316 = vld [vmem:[%s301 + $0x60] sm:$0xff]
      %v317 = vld [vmem:[%s301 + $0x68] sm:$0xff]
      %v318 = vld [vmem:[%s301 + $0x70] sm:$0xff]
      %v319 = vld [vmem:[%s301 + $0x78] sm:$0xff]
      %v320 = vld [vmem:[%s301 + $0x80] sm:$0xff]
      %v321 = vld [vmem:[%s301 + $0x88] sm:$0xff]
      %v322 = vld [vmem:[%s301 + $0x90] sm:$0xff]
      %v323 = vld [vmem:[%s301 + $0x98] sm:$0xff]
      %v324 = vld [vmem:[%s301 + $0xa0] sm:$0xff]
      %v325 = vld [vmem:[%s301 + $0xa8] sm:$0xff]
      %v326 = vld [vmem:[%s301 + $0xb0] sm:$0xff]
      %v327 = vld [vmem:[%s301 + $0xb8] sm:$0xff]
      %v328 = vld [vmem:[%s301 + $0xc0] sm:$0xff]
      %v329 = vld [vmem:[%s301 + $0xc8] sm:$0xff]
      %v330 = vld [vmem:[%s301 + $0xd0] sm:$0xff]
      %v331 = vld [vmem:[%s301 + $0xd8] sm:$0xff]
      %v332 = vld [vmem:[%s301 + $0xe0] sm:$0xff]
      %v333 = vld [vmem:[%s301 + $0xe8] sm:$0xff]
      %v334 = vld [vmem:[%s301 + $0xf0] sm:$0xff]
      %v335 = vld [vmem:[%s301 + $0xf8] sm:$0xff]
      %v336 = vld [vmem:[%s301 + $0x100] sm:$0xff]
      %v337 = vld [vmem:[%s301 + $0x108] sm:$0xff]
      %v338 = vld [vmem:[%s301 + $0x110] sm:$0xff]
      %v339 = vld [vmem:[%s301 + $0x118] sm:$0xff]
      %v340 = vld [vmem:[%s301 + $0x120] sm:$0xff]
      %v341 = vld [vmem:[%s301 + $0x128] sm:$0xff]
      %v342 = vld [vmem:[%s301 + $0x130] sm:$0xff]
      %v343 = vld [vmem:[%s301 + $0x138] sm:$0xff]
      %v344 = vld [vmem:[%s301 + $0x140] sm:$0xff]
      %v345 = vld [vmem:[%s301 + $0x148] sm:$0xff]
      %v346 = vld [vmem:[%s301 + $0x150] sm:$0xff]
      %v347 = vld [vmem:[%s301 + $0x158] sm:$0xff]
      %v348 = vld [vmem:[%s301 + $0x160] sm:$0xff]
      %v349 = vld [vmem:[%s301 + $0x168] sm:$0xff]
      %v350 = vld [vmem:[%s301 + $0x170] sm:$0xff]
      %v351 = vld [vmem:[%s301 + $0x178] sm:$0xff]
      %v352 = vld [vmem:[%s301 + $0x180] sm:$0xff]
      %v353 = vld [vmem:[%s301 + $0x188] sm:$0xff]
      %v354 = vld [vmem:[%s301 + $0x190] sm:$0xff]
      %v355 = vld [vmem:[%s301 + $0x198] sm:$0xff]
      %v356 = vadd.f32 %v308, %v311
      %v357 = vadd.f32 %v309, %v312
      %v358 = vadd.f32 %v310, %v313
      %v359 = vadd.f32 %v314, %v317
      %v360 = vadd.f32 %v315, %v318
      %v361 = vadd.f32 %v316, %v319
      %v362 = vadd.f32 %v320, %v323
      %v363 = vadd.f32 %v321, %v324
      %v364 = vadd.f32 %v322, %v325
      %v365 = vadd.f32 %v326, %v329
      %v366 = vadd.f32 %v327, %v330
      %v367 = vadd.f32 %v328, %v331
      %v368 = vadd.f32 %v332, %v335
      %v369 = vadd.f32 %v333, %v336
      %v370 = vadd.f32 %v334, %v337
      %v371 = vadd.f32 %v338, %v341
      %v372 = vadd.f32 %v339, %v342
      %v373 = vadd.f32 %v340, %v343
      %v374 = vadd.f32 %v344, %v347
      %v375 = vadd.f32 %v345, %v348
      %v376 = vadd.f32 %v346, %v349
      %v377 = vadd.f32 %v350, %v353
      %v378 = vadd.f32 %v351, %v354
      %v379 = vadd.f32 %v352, %v355
      %v380 = vld [vmem:[%s1] sm:$0xff]
      %v381 = vld [vmem:[%s1 + $0x8] sm:$0xff]
      %vm382 = vcmask 195584
      %v384 = vsel %vm382, %v380, 0
      %v387 = vsel %vm382, %v381, 0
      %389 = vmatprep.subr.mxu0 0.0
      %390 = vmatpush1.msra.mxu0 %v356
      %391 = vmatprep.subr.mxu0 0.0
      %392 = vmatpush1.msra.mxu0 %v357
      %393 = vmatprep.subr.mxu0 0.0
      %394 = vmatpush1.msra.mxu0 %v358
      %395 = vmatprep.subr.mxu0 0.0
      %396 = vmatpush1.msra.mxu0 0.0
      %397 = vmatprep.subr.mxu0 0.0
      %398 = vmatpush1.msra.mxu0 0.0
      %399 = vmatprep.subr.mxu0 0.0
      %400 = vmatpush1.msra.mxu0 0.0
      %401 = vmatprep.subr.mxu0 0.0
      %402 = vmatpush1.msra.mxu0 0.0
      %403 = vmatprep.subr.mxu0 0.0
      %404 = vmatpush1.msra.mxu0 0.0
      %405 = vmatprep.subr.mxu0 0.0
      %406 = vmatpush1.msra.mxu0 0.0
      %407 = vmatprep.subr.mxu0 0.0
      %408 = vmatpush1.msra.mxu0 0.0
      %409 = vmatprep.subr.mxu0 0.0
      %410 = vmatpush1.msra.mxu0 0.0
      %411 = vmatprep.subr.mxu0 0.0
      %412 = vmatpush1.msra.mxu0 0.0
      %413 = vmatprep.subr.mxu0 0.0
      %414 = vmatpush1.msra.mxu0 0.0
      %415 = vmatprep.subr.mxu0 0.0
      %416 = vmatpush1.msra.mxu0 0.0
      %417 = vmatprep.subr.mxu0 0.0
      %418 = vmatpush1.msra.mxu0 0.0
      %419 = vmatprep.subr.mxu0 0.0
      %420 = vmatpush1.msra.mxu0 0.0
      %421 = vmatprep.subr.mxu0 0.0
      %422 = vmatpush1.msra.mxu0 0.0
      %423 = vmatprep.subr.mxu0 0.0
      %424 = vmatpush1.msra.mxu0 0.0
      %425 = vmatprep.subr.mxu0 0.0
      %426 = vmatpush1.msra.mxu0 0.0
      %427 = vmatprep.subr.mxu0 0.0
      %428 = vmatpush1.msra.mxu0 0.0
      %429 = vmatprep.subr.mxu0 0.0
      %430 = vmatpush1.msra.mxu0 0.0
      %431 = vmatprep.subr.mxu0 0.0
      %432 = vmatpush1.msra.mxu0 0.0
      %433 = vmatprep.subr.mxu0 0.0
      %434 = vmatpush1.msra.mxu0 0.0
      %435 = vmatprep.subr.mxu0 0.0
      %436 = vmatpush1.msra.mxu0 0.0
      %437 = vmatprep.subr.mxu0 0.0
      %438 = vmatpush1.msra.mxu0 0.0
      %439 = vmatprep.subr.mxu0 0.0
      %440 = vmatpush1.msra.mxu0 0.0
      %441 = vmatprep.subr.mxu0 0.0
      %442 = vmatpush1.msra.mxu0 0.0
      %443 = vmatprep.subr.mxu0 0.0
      %444 = vmatpush1.msra.mxu0 0.0
      %445 = vmatprep.subr.mxu0 0.0
      %446 = vmatpush1.msra.mxu0 0.0
      %447 = vmatprep.subr.mxu0 0.0
      %448 = vmatpush1.msra.mxu0 0.0
      %449 = vmatprep.subr.mxu0 0.0
      %450 = vmatpush1.msra.mxu0 0.0
      %451 = vmatprep.subr.mxu0 0.0
      %452 = vmatpush1.msra.mxu0 0.0
      %453 = vmatprep.mubr.f32.mxu0 0.0
      %454 = vmatmul.mubr.f32.gmra.mrb[0].mxu0 %v384
      %v455 = vpop.f32.mrb[0].mxu0
      %v456 = vadd.f32 0.0, %v455
      %v457 = vpop.f32.mrb[0].mxu0
      %458 = vmatprep.mubr.f32.mxu0 0.0
      %459 = vmatmul.mubr.f32.gmra.mrb[0].mxu0 %v387
      %v460 = vpop.f32.mrb[0].mxu0
      %v461 = vadd.f32 0.0, %v460
      %v462 = vpop.f32.mrb[0].mxu0
      %463 = vdwg.mxu0
      %464 = vmatprep.subr.mxu0 0.0
      %465 = vmatpush1.msra.mxu0 %v359
      %466 = vmatprep.subr.mxu0 0.0
      %467 = vmatpush1.msra.mxu0 %v360
      %468 = vmatprep.subr.mxu0 0.0
      %469 = vmatpush1.msra.mxu0 %v361
      %470 = vmatprep.subr.mxu0 0.0
      %471 = vmatpush1.msra.mxu0 0.0
      %472 = vmatprep.subr.mxu0 0.0
      %473 = vmatpush1.msra.mxu0 0.0
      %474 = vmatprep.subr.mxu0 0.0
      %475 = vmatpush1.msra.mxu0 0.0
      %476 = vmatprep.subr.mxu0 0.0
      %477 = vmatpush1.msra.mxu0 0.0
      %478 = vmatprep.subr.mxu0 0.0
      %479 = vmatpush1.msra.mxu0 0.0
      %480 = vmatprep.subr.mxu0 0.0
      %481 = vmatpush1.msra.mxu0 0.0
      %482 = vmatprep.subr.mxu0 0.0
      %483 = vmatpush1.msra.mxu0 0.0
      %484 = vmatprep.subr.mxu0 0.0
      %485 = vmatpush1.msra.mxu0 0.0
      %486 = vmatprep.subr.mxu0 0.0
      %487 = vmatpush1.msra.mxu0 0.0
      %488 = vmatprep.subr.mxu0 0.0
      %489 = vmatpush1.msra.mxu0 0.0
      %490 = vmatprep.subr.mxu0 0.0
      %491 = vmatpush1.msra.mxu0 0.0
      %492 = vmatprep.subr.mxu0 0.0
      %493 = vmatpush1.msra.mxu0 0.0
      %494 = vmatprep.subr.mxu0 0.0
      %495 = vmatpush1.msra.mxu0 0.0
      %496 = vmatprep.subr.mxu0 0.0
      %497 = vmatpush1.msra.mxu0 0.0
      %498 = vmatprep.subr.mxu0 0.0
      %499 = vmatpush1.msra.mxu0 0.0
      %500 = vmatprep.subr.mxu0 0.0
      %501 = vmatpush1.msra.mxu0 0.0
      %502 = vmatprep.subr.mxu0 0.0
      %503 = vmatpush1.msra.mxu0 0.0
      %504 = vmatprep.subr.mxu0 0.0
      %505 = vmatpush1.msra.mxu0 0.0
      %506 = vmatprep.subr.mxu0 0.0
      %507 = vmatpush1.msra.mxu0 0.0
      %508 = vmatprep.subr.mxu0 0.0
      %509 = vmatpush1.msra.mxu0 0.0
      %510 = vmatprep.subr.mxu0 0.0
      %511 = vmatpush1.msra.mxu0 0.0
      %512 = vmatprep.subr.mxu0 0.0
      %513 = vmatpush1.msra.mxu0 0.0
      %514 = vmatprep.subr.mxu0 0.0
      %515 = vmatpush1.msra.mxu0 0.0
      %516 = vmatprep.subr.mxu0 0.0
      %517 = vmatpush1.msra.mxu0 0.0
      %518 = vmatprep.subr.mxu0 0.0
      %519 = vmatpush1.msra.mxu0 0.0
      %520 = vmatprep.subr.mxu0 0.0
      %521 = vmatpush1.msra.mxu0 0.0
      %522 = vmatprep.subr.mxu0 0.0
      %523 = vmatpush1.msra.mxu0 0.0
      %524 = vmatprep.subr.mxu0 0.0
      %525 = vmatpush1.msra.mxu0 0.0
      %526 = vmatprep.subr.mxu0 0.0
      %527 = vmatpush1.msra.mxu0 0.0
      %528 = vmatprep.mubr.f32.mxu0 0.0
      %529 = vmatmul.mubr.f32.gmra.mrb[0].mxu0 %v384
      %v530 = vpop.f32.mrb[0].mxu0
      %v531 = vadd.f32 0.0, %v530
      %v532 = vpop.f32.mrb[0].mxu0
      %533 = vmatprep.mubr.f32.mxu0 0.0
      %534 = vmatmul.mubr.f32.gmra.mrb[0].mxu0 %v387
      %v535 = vpop.f32.mrb[0].mxu0
      %v536 = vadd.f32 0.0, %v535
      %v537 = vpop.f32.mrb[0].mxu0
      %538 = vdwg.mxu0
      %539 = vmatprep.subr.mxu0 0.0
      %540 = vmatpush1.msra.mxu0 %v362
      %541 = vmatprep.subr.mxu0 0.0
      %542 = vmatpush1.msra.mxu0 %v363
      %543 = vmatprep.subr.mxu0 0.0
      %544 = vmatpush1.msra.mxu0 %v364
      %545 = vmatprep.subr.mxu0 0.0
      %546 = vmatpush1.msra.mxu0 0.0
      %547 = vmatprep.subr.mxu0 0.0
      %548 = vmatpush1.msra.mxu0 0.0
      %549 = vmatprep.subr.mxu0 0.0
      %550 = vmatpush1.msra.mxu0 0.0
      %551 = vmatprep.subr.mxu0 0.0
      %552 = vmatpush1.msra.mxu0 0.0
      %553 = vmatprep.subr.mxu0 0.0
      %554 = vmatpush1.msra.mxu0 0.0
      %555 = vmatprep.subr.mxu0 0.0
      %556 = vmatpush1.msra.mxu0 0.0
      %557 = vmatprep.subr.mxu0 0.0
      %558 = vmatpush1.msra.mxu0 0.0
      %559 = vmatprep.subr.mxu0 0.0
      %560 = vmatpush1.msra.mxu0 0.0
      %561 = vmatprep.subr.mxu0 0.0
      %562 = vmatpush1.msra.mxu0 0.0
      %563 = vmatprep.subr.mxu0 0.0
      %564 = vmatpush1.msra.mxu0 0.0
      %565 = vmatprep.subr.mxu0 0.0
      %566 = vmatpush1.msra.mxu0 0.0
      %567 = vmatprep.subr.mxu0 0.0
      %568 = vmatpush1.msra.mxu0 0.0
      %569 = vmatprep.subr.mxu0 0.0
      %570 = vmatpush1.msra.mxu0 0.0
      %571 = vmatprep.subr.mxu0 0.0
      %572 = vmatpush1.msra.mxu0 0.0
      %573 = vmatprep.subr.mxu0 0.0
      %574 = vmatpush1.msra.mxu0 0.0
      %575 = vmatprep.subr.mxu0 0.0
      %576 = vmatpush1.msra.mxu0 0.0
      %577 = vmatprep.subr.mxu0 0.0
      %578 = vmatpush1.msra.mxu0 0.0
      %579 = vmatprep.subr.mxu0 0.0
      %580 = vmatpush1.msra.mxu0 0.0
      %581 = vmatprep.subr.mxu0 0.0
      %582 = vmatpush1.msra.mxu0 0.0
      %583 = vmatprep.subr.mxu0 0.0
      %584 = vmatpush1.msra.mxu0 0.0
      %585 = vmatprep.subr.mxu0 0.0
      %586 = vmatpush1.msra.mxu0 0.0
      %587 = vmatprep.subr.mxu0 0.0
      %588 = vmatpush1.msra.mxu0 0.0
      %589 = vmatprep.subr.mxu0 0.0
      %590 = vmatpush1.msra.mxu0 0.0
      %591 = vmatprep.subr.mxu0 0.0
      %592 = vmatpush1.msra.mxu0 0.0
      %593 = vmatprep.subr.mxu0 0.0
      %594 = vmatpush1.msra.mxu0 0.0
      %595 = vmatprep.subr.mxu0 0.0
      %596 = vmatpush1.msra.mxu0 0.0
      %597 = vmatprep.subr.mxu0 0.0
      %598 = vmatpush1.msra.mxu0 0.0
      %599 = vmatprep.subr.mxu0 0.0
      %600 = vmatpush1.msra.mxu0 0.0
      %601 = vmatprep.subr.mxu0 0.0
      %602 = vmatpush1.msra.mxu0 0.0
      %603 = vmatprep.mubr.f32.mxu0 0.0
      %604 = vmatmul.mubr.f32.gmra.mrb[0].mxu0 %v384
      %v605 = vpop.f32.mrb[0].mxu0
      %v606 = vadd.f32 0.0, %v605
      %v607 = vpop.f32.mrb[0].mxu0
      %608 = vmatprep.mubr.f32.mxu0 0.0
      %609 = vmatmul.mubr.f32.gmra.mrb[0].mxu0 %v387
      %v610 = vpop.f32.mrb[0].mxu0
      %v611 = vadd.f32 0.0, %v610
      %v612 = vpop.f32.mrb[0].mxu0
      %613 = vdwg.mxu0
      %614 = vmatprep.subr.mxu0 0.0
      %615 = vmatpush1.msra.mxu0 %v365
      %616 = vmatprep.subr.mxu0 0.0
      %617 = vmatpush1.msra.mxu0 %v366
      %618 = vmatprep.subr.mxu0 0.0
      %619 = vmatpush1.msra.mxu0 %v367
      %620 = vmatprep.subr.mxu0 0.0
      %621 = vmatpush1.msra.mxu0 0.0
      %622 = vmatprep.subr.mxu0 0.0
      %623 = vmatpush1.msra.mxu0 0.0
      %624 = vmatprep.subr.mxu0 0.0
      %625 = vmatpush1.msra.mxu0 0.0
      %626 = vmatprep.subr.mxu0 0.0
      %627 = vmatpush1.msra.mxu0 0.0
      %628 = vmatprep.subr.mxu0 0.0
      %629 = vmatpush1.msra.mxu0 0.0
      %630 = vmatprep.subr.mxu0 0.0
      %631 = vmatpush1.msra.mxu0 0.0
      %632 = vmatprep.subr.mxu0 0.0
      %633 = vmatpush1.msra.mxu0 0.0
      %634 = vmatprep.subr.mxu0 0.0
      %635 = vmatpush1.msra.mxu0 0.0
      %636 = vmatprep.subr.mxu0 0.0
      %637 = vmatpush1.msra.mxu0 0.0
      %638 = vmatprep.subr.mxu0 0.0
      %639 = vmatpush1.msra.mxu0 0.0
      %640 = vmatprep.subr.mxu0 0.0
      %641 = vmatpush1.msra.mxu0 0.0
      %642 = vmatprep.subr.mxu0 0.0
      %643 = vmatpush1.msra.mxu0 0.0
      %644 = vmatprep.subr.mxu0 0.0
      %645 = vmatpush1.msra.mxu0 0.0
      %646 = vmatprep.subr.mxu0 0.0
      %647 = vmatpush1.msra.mxu0 0.0
      %648 = vmatprep.subr.mxu0 0.0
      %649 = vmatpush1.msra.mxu0 0.0
      %650 = vmatprep.subr.mxu0 0.0
      %651 = vmatpush1.msra.mxu0 0.0
      %652 = vmatprep.subr.mxu0 0.0
      %653 = vmatpush1.msra.mxu0 0.0
      %654 = vmatprep.subr.mxu0 0.0
      %655 = vmatpush1.msra.mxu0 0.0
      %656 = vmatprep.subr.mxu0 0.0
      %657 = vmatpush1.msra.mxu0 0.0
      %658 = vmatprep.subr.mxu0 0.0
      %659 = vmatpush1.msra.mxu0 0.0
      %660 = vmatprep.subr.mxu0 0.0
      %661 = vmatpush1.msra.mxu0 0.0
      %662 = vmatprep.subr.mxu0 0.0
      %663 = vmatpush1.msra.mxu0 0.0
      %664 = vmatprep.subr.mxu0 0.0
      %665 = vmatpush1.msra.mxu0 0.0
      %666 = vmatprep.subr.mxu0 0.0
      %667 = vmatpush1.msra.mxu0 0.0
      %668 = vmatprep.subr.mxu0 0.0
      %669 = vmatpush1.msra.mxu0 0.0
      %670 = vmatprep.subr.mxu0 0.0
      %671 = vmatpush1.msra.mxu0 0.0
      %672 = vmatprep.subr.mxu0 0.0
      %673 = vmatpush1.msra.mxu0 0.0
      %674 = vmatprep.subr.mxu0 0.0
      %675 = vmatpush1.msra.mxu0 0.0
      %676 = vmatprep.subr.mxu0 0.0
      %677 = vmatpush1.msra.mxu0 0.0
      %678 = vmatprep.mubr.f32.mxu0 0.0
      %679 = vmatmul.mubr.f32.gmra.mrb[0].mxu0 %v384
      %v680 = vpop.f32.mrb[0].mxu0
      %v681 = vadd.f32 0.0, %v680
      %v682 = vpop.f32.mrb[0].mxu0
      %683 = vmatprep.mubr.f32.mxu0 0.0
      %684 = vmatmul.mubr.f32.gmra.mrb[0].mxu0 %v387
      %v685 = vpop.f32.mrb[0].mxu0
      %v686 = vadd.f32 0.0, %v685
      %v687 = vpop.f32.mrb[0].mxu0
      %688 = vdwg.mxu0
      %689 = vmatprep.subr.mxu0 0.0
      %690 = vmatpush1.msra.mxu0 %v368
      %691 = vmatprep.subr.mxu0 0.0
      %692 = vmatpush1.msra.mxu0 %v369
      %693 = vmatprep.subr.mxu0 0.0
      %694 = vmatpush1.msra.mxu0 %v370
      %695 = vmatprep.subr.mxu0 0.0
      %696 = vmatpush1.msra.mxu0 0.0
      %697 = vmatprep.subr.mxu0 0.0
      %698 = vmatpush1.msra.mxu0 0.0
      %699 = vmatprep.subr.mxu0 0.0
      %700 = vmatpush1.msra.mxu0 0.0
      %701 = vmatprep.subr.mxu0 0.0
      %702 = vmatpush1.msra.mxu0 0.0
      %703 = vmatprep.subr.mxu0 0.0
      %704 = vmatpush1.msra.mxu0 0.0
      %705 = vmatprep.subr.mxu0 0.0
      %706 = vmatpush1.msra.mxu0 0.0
      %707 = vmatprep.subr.mxu0 0.0
      %708 = vmatpush1.msra.mxu0 0.0
      %709 = vmatprep.subr.mxu0 0.0
      %710 = vmatpush1.msra.mxu0 0.0
      %711 = vmatprep.subr.mxu0 0.0
      %712 = vmatpush1.msra.mxu0 0.0
      %713 = vmatprep.subr.mxu0 0.0
      %714 = vmatpush1.msra.mxu0 0.0
      %715 = vmatprep.subr.mxu0 0.0
      %716 = vmatpush1.msra.mxu0 0.0
      %717 = vmatprep.subr.mxu0 0.0
      %718 = vmatpush1.msra.mxu0 0.0
      %719 = vmatprep.subr.mxu0 0.0
      %720 = vmatpush1.msra.mxu0 0.0
      %721 = vmatprep.subr.mxu0 0.0
      %722 = vmatpush1.msra.mxu0 0.0
      %723 = vmatprep.subr.mxu0 0.0
      %724 = vmatpush1.msra.mxu0 0.0
      %725 = vmatprep.subr.mxu0 0.0
      %726 = vmatpush1.msra.mxu0 0.0
      %727 = vmatprep.subr.mxu0 0.0
      %728 = vmatpush1.msra.mxu0 0.0
      %729 = vmatprep.subr.mxu0 0.0
      %730 = vmatpush1.msra.mxu0 0.0
      %731 = vmatprep.subr.mxu0 0.0
      %732 = vmatpush1.msra.mxu0 0.0
      %733 = vmatprep.subr.mxu0 0.0
      %734 = vmatpush1.msra.mxu0 0.0
      %735 = vmatprep.subr.mxu0 0.0
      %736 = vmatpush1.msra.mxu0 0.0
      %737 = vmatprep.subr.mxu0 0.0
      %738 = vmatpush1.msra.mxu0 0.0
      %739 = vmatprep.subr.mxu0 0.0
      %740 = vmatpush1.msra.mxu0 0.0
      %741 = vmatprep.subr.mxu0 0.0
      %742 = vmatpush1.msra.mxu0 0.0
      %743 = vmatprep.subr.mxu0 0.0
      %744 = vmatpush1.msra.mxu0 0.0
      %745 = vmatprep.subr.mxu0 0.0
      %746 = vmatpush1.msra.mxu0 0.0
      %747 = vmatprep.subr.mxu0 0.0
      %748 = vmatpush1.msra.mxu0 0.0
      %749 = vmatprep.subr.mxu0 0.0
      %750 = vmatpush1.msra.mxu0 0.0
      %751 = vmatprep.subr.mxu0 0.0
      %752 = vmatpush1.msra.mxu0 0.0
      %753 = vmatprep.mubr.f32.mxu0 0.0
      %754 = vmatmul.mubr.f32.gmra.mrb[0].mxu0 %v384
      %v755 = vpop.f32.mrb[0].mxu0
      %v756 = vadd.f32 0.0, %v755
      %v757 = vpop.f32.mrb[0].mxu0
      %758 = vmatprep.mubr.f32.mxu0 0.0
      %759 = vmatmul.mubr.f32.gmra.mrb[0].mxu0 %v387
      %v760 = vpop.f32.mrb[0].mxu0
      %v761 = vadd.f32 0.0, %v760
      %v762 = vpop.f32.mrb[0].mxu0
      %763 = vdwg.mxu0
      %764 = vmatprep.subr.mxu0 0.0
      %765 = vmatpush1.msra.mxu0 %v371
      %766 = vmatprep.subr.mxu0 0.0
      %767 = vmatpush1.msra.mxu0 %v372
      %768 = vmatprep.subr.mxu0 0.0
      %769 = vmatpush1.msra.mxu0 %v373
      %770 = vmatprep.subr.mxu0 0.0
      %771 = vmatpush1.msra.mxu0 0.0
      %772 = vmatprep.subr.mxu0 0.0
      %773 = vmatpush1.msra.mxu0 0.0
      %774 = vmatprep.subr.mxu0 0.0
      %775 = vmatpush1.msra.mxu0 0.0
      %776 = vmatprep.subr.mxu0 0.0
      %777 = vmatpush1.msra.mxu0 0.0
      %778 = vmatprep.subr.mxu0 0.0
      %779 = vmatpush1.msra.mxu0 0.0
      %780 = vmatprep.subr.mxu0 0.0
      %781 = vmatpush1.msra.mxu0 0.0
      %782 = vmatprep.subr.mxu0 0.0
      %783 = vmatpush1.msra.mxu0 0.0
      %784 = vmatprep.subr.mxu0 0.0
      %785 = vmatpush1.msra.mxu0 0.0
      %786 = vmatprep.subr.mxu0 0.0
      %787 = vmatpush1.msra.mxu0 0.0
      %788 = vmatprep.subr.mxu0 0.0
      %789 = vmatpush1.msra.mxu0 0.0
      %790 = vmatprep.subr.mxu0 0.0
      %791 = vmatpush1.msra.mxu0 0.0
      %792 = vmatprep.subr.mxu0 0.0
      %793 = vmatpush1.msra.mxu0 0.0
      %794 = vmatprep.subr.mxu0 0.0
      %795 = vmatpush1.msra.mxu0 0.0
      %796 = vmatprep.subr.mxu0 0.0
      %797 = vmatpush1.msra.mxu0 0.0
      %798 = vmatprep.subr.mxu0 0.0
      %799 = vmatpush1.msra.mxu0 0.0
      %800 = vmatprep.subr.mxu0 0.0
      %801 = vmatpush1.msra.mxu0 0.0
      %802 = vmatprep.subr.mxu0 0.0
      %803 = vmatpush1.msra.mxu0 0.0
      %804 = vmatprep.subr.mxu0 0.0
      %805 = vmatpush1.msra.mxu0 0.0
      %806 = vmatprep.subr.mxu0 0.0
      %807 = vmatpush1.msra.mxu0 0.0
      %808 = vmatprep.subr.mxu0 0.0
      %809 = vmatpush1.msra.mxu0 0.0
      %810 = vmatprep.subr.mxu0 0.0
      %811 = vmatpush1.msra.mxu0 0.0
      %812 = vmatprep.subr.mxu0 0.0
      %813 = vmatpush1.msra.mxu0 0.0
      %814 = vmatprep.subr.mxu0 0.0
      %815 = vmatpush1.msra.mxu0 0.0
      %816 = vmatprep.subr.mxu0 0.0
      %817 = vmatpush1.msra.mxu0 0.0
      %818 = vmatprep.subr.mxu0 0.0
      %819 = vmatpush1.msra.mxu0 0.0
      %820 = vmatprep.subr.mxu0 0.0
      %821 = vmatpush1.msra.mxu0 0.0
      %822 = vmatprep.subr.mxu0 0.0
      %823 = vmatpush1.msra.mxu0 0.0
      %824 = vmatprep.subr.mxu0 0.0
      %825 = vmatpush1.msra.mxu0 0.0
      %826 = vmatprep.subr.mxu0 0.0
      %827 = vmatpush1.msra.mxu0 0.0
      %828 = vmatprep.mubr.f32.mxu0 0.0
      %829 = vmatmul.mubr.f32.gmra.mrb[0].mxu0 %v384
      %v830 = vpop.f32.mrb[0].mxu0
      %v831 = vadd.f32 0.0, %v830
      %v832 = vpop.f32.mrb[0].mxu0
      %833 = vmatprep.mubr.f32.mxu0 0.0
      %834 = vmatmul.mubr.f32.gmra.mrb[0].mxu0 %v387
      %v835 = vpop.f32.mrb[0].mxu0
      %v836 = vadd.f32 0.0, %v835
      %v837 = vpop.f32.mrb[0].mxu0
      %838 = vdwg.mxu0
      %839 = vmatprep.subr.mxu0 0.0
      %840 = vmatpush1.msra.mxu0 %v374
      %841 = vmatprep.subr.mxu0 0.0
      %842 = vmatpush1.msra.mxu0 %v375
      %843 = vmatprep.subr.mxu0 0.0
      %844 = vmatpush1.msra.mxu0 %v376
      %845 = vmatprep.subr.mxu0 0.0
      %846 = vmatpush1.msra.mxu0 0.0
      %847 = vmatprep.subr.mxu0 0.0
      %848 = vmatpush1.msra.mxu0 0.0
      %849 = vmatprep.subr.mxu0 0.0
      %850 = vmatpush1.msra.mxu0 0.0
      %851 = vmatprep.subr.mxu0 0.0
      %852 = vmatpush1.msra.mxu0 0.0
      %853 = vmatprep.subr.mxu0 0.0
      %854 = vmatpush1.msra.mxu0 0.0
      %855 = vmatprep.subr.mxu0 0.0
      %856 = vmatpush1.msra.mxu0 0.0
      %857 = vmatprep.subr.mxu0 0.0
      %858 = vmatpush1.msra.mxu0 0.0
      %859 = vmatprep.subr.mxu0 0.0
      %860 = vmatpush1.msra.mxu0 0.0
      %861 = vmatprep.subr.mxu0 0.0
      %862 = vmatpush1.msra.mxu0 0.0
      %863 = vmatprep.subr.mxu0 0.0
      %864 = vmatpush1.msra.mxu0 0.0
      %865 = vmatprep.subr.mxu0 0.0
      %866 = vmatpush1.msra.mxu0 0.0
      %867 = vmatprep.subr.mxu0 0.0
      %868 = vmatpush1.msra.mxu0 0.0
      %869 = vmatprep.subr.mxu0 0.0
      %870 = vmatpush1.msra.mxu0 0.0
      %871 = vmatprep.subr.mxu0 0.0
      %872 = vmatpush1.msra.mxu0 0.0
      %873 = vmatprep.subr.mxu0 0.0
      %874 = vmatpush1.msra.mxu0 0.0
      %875 = vmatprep.subr.mxu0 0.0
      %876 = vmatpush1.msra.mxu0 0.0
      %877 = vmatprep.subr.mxu0 0.0
      %878 = vmatpush1.msra.mxu0 0.0
      %879 = vmatprep.subr.mxu0 0.0
      %880 = vmatpush1.msra.mxu0 0.0
      %881 = vmatprep.subr.mxu0 0.0
      %882 = vmatpush1.msra.mxu0 0.0
      %883 = vmatprep.subr.mxu0 0.0
      %884 = vmatpush1.msra.mxu0 0.0
      %885 = vmatprep.subr.mxu0 0.0
      %886 = vmatpush1.msra.mxu0 0.0
      %887 = vmatprep.subr.mxu0 0.0
      %888 = vmatpush1.msra.mxu0 0.0
      %889 = vmatprep.subr.mxu0 0.0
      %890 = vmatpush1.msra.mxu0 0.0
      %891 = vmatprep.subr.mxu0 0.0
      %892 = vmatpush1.msra.mxu0 0.0
      %893 = vmatprep.subr.mxu0 0.0
      %894 = vmatpush1.msra.mxu0 0.0
      %895 = vmatprep.subr.mxu0 0.0
      %896 = vmatpush1.msra.mxu0 0.0
      %897 = vmatprep.subr.mxu0 0.0
      %898 = vmatpush1.msra.mxu0 0.0
      %899 = vmatprep.subr.mxu0 0.0
      %900 = vmatpush1.msra.mxu0 0.0
      %901 = vmatprep.subr.mxu0 0.0
      %902 = vmatpush1.msra.mxu0 0.0
      %903 = vmatprep.mubr.f32.mxu0 0.0
      %904 = vmatmul.mubr.f32.gmra.mrb[0].mxu0 %v384
      %v905 = vpop.f32.mrb[0].mxu0
      %v906 = vadd.f32 0.0, %v905
      %v907 = vpop.f32.mrb[0].mxu0
      %908 = vmatprep.mubr.f32.mxu0 0.0
      %909 = vmatmul.mubr.f32.gmra.mrb[0].mxu0 %v387
      %v910 = vpop.f32.mrb[0].mxu0
      %v911 = vadd.f32 0.0, %v910
      %v912 = vpop.f32.mrb[0].mxu0
      %913 = vdwg.mxu0
      %914 = vmatprep.subr.mxu0 0.0
      %915 = vmatpush1.msra.mxu0 %v377
      %916 = vmatprep.subr.mxu0 0.0
      %917 = vmatpush1.msra.mxu0 %v378
      %918 = vmatprep.subr.mxu0 0.0
      %919 = vmatpush1.msra.mxu0 %v379
      %920 = vmatprep.subr.mxu0 0.0
      %921 = vmatpush1.msra.mxu0 0.0
      %922 = vmatprep.subr.mxu0 0.0
      %923 = vmatpush1.msra.mxu0 0.0
      %924 = vmatprep.subr.mxu0 0.0
      %925 = vmatpush1.msra.mxu0 0.0
      %926 = vmatprep.subr.mxu0 0.0
      %927 = vmatpush1.msra.mxu0 0.0
      %928 = vmatprep.subr.mxu0 0.0
      %929 = vmatpush1.msra.mxu0 0.0
      %930 = vmatprep.subr.mxu0 0.0
      %931 = vmatpush1.msra.mxu0 0.0
      %932 = vmatprep.subr.mxu0 0.0
      %933 = vmatpush1.msra.mxu0 0.0
      %934 = vmatprep.subr.mxu0 0.0
      %935 = vmatpush1.msra.mxu0 0.0
      %936 = vmatprep.subr.mxu0 0.0
      %937 = vmatpush1.msra.mxu0 0.0
      %938 = vmatprep.subr.mxu0 0.0
      %939 = vmatpush1.msra.mxu0 0.0
      %940 = vmatprep.subr.mxu0 0.0
      %941 = vmatpush1.msra.mxu0 0.0
      %942 = vmatprep.subr.mxu0 0.0
      %943 = vmatpush1.msra.mxu0 0.0
      %944 = vmatprep.subr.mxu0 0.0
      %945 = vmatpush1.msra.mxu0 0.0
      %946 = vmatprep.subr.mxu0 0.0
      %947 = vmatpush1.msra.mxu0 0.0
      %948 = vmatprep.subr.mxu0 0.0
      %949 = vmatpush1.msra.mxu0 0.0
      %950 = vmatprep.subr.mxu0 0.0
      %951 = vmatpush1.msra.mxu0 0.0
      %952 = vmatprep.subr.mxu0 0.0
      %953 = vmatpush1.msra.mxu0 0.0
      %954 = vmatprep.subr.mxu0 0.0
      %955 = vmatpush1.msra.mxu0 0.0
      %956 = vmatprep.subr.mxu0 0.0
      %957 = vmatpush1.msra.mxu0 0.0
      %958 = vmatprep.subr.mxu0 0.0
      %959 = vmatpush1.msra.mxu0 0.0
      %960 = vmatprep.subr.mxu0 0.0
      %961 = vmatpush1.msra.mxu0 0.0
      %962 = vmatprep.subr.mxu0 0.0
      %963 = vmatpush1.msra.mxu0 0.0
      %964 = vmatprep.subr.mxu0 0.0
      %965 = vmatpush1.msra.mxu0 0.0
      %966 = vmatprep.subr.mxu0 0.0
      %967 = vmatpush1.msra.mxu0 0.0
      %968 = vmatprep.subr.mxu0 0.0
      %969 = vmatpush1.msra.mxu0 0.0
      %970 = vmatprep.subr.mxu0 0.0
      %971 = vmatpush1.msra.mxu0 0.0
      %972 = vmatprep.subr.mxu0 0.0
      %973 = vmatpush1.msra.mxu0 0.0
      %974 = vmatprep.subr.mxu0 0.0
      %975 = vmatpush1.msra.mxu0 0.0
      %976 = vmatprep.subr.mxu0 0.0
      %977 = vmatpush1.msra.mxu0 0.0
      %978 = vmatprep.mubr.f32.mxu0 0.0
      %979 = vmatmul.mubr.f32.gmra.mrb[0].mxu0 %v384
      %v980 = vpop.f32.mrb[0].mxu0
      %v981 = vadd.f32 0.0, %v980
      %v982 = vpop.f32.mrb[0].mxu0
      %983 = vmatprep.mubr.f32.mxu0 0.0
      %984 = vmatmul.mubr.f32.gmra.mrb[0].mxu0 %v387
      %v985 = vpop.f32.mrb[0].mxu0
      %v986 = vadd.f32 0.0, %v985
      %v987 = vpop.f32.mrb[0].mxu0
      %988 = vdwg.mxu0
      %vm989 = vcmask 31751
      %990 = vst.msk [vmem:[#allocation2 - $0x7] sm:$0x80] %vm989, 0.0
      %vm991 = vcmask 31744
      %992 = vst.msk [vmem:[#allocation2 + $0x1] sm:$0xff] %vm991, 0.0
      %993 = vst.msk [vmem:[#allocation2 + $0x9] sm:$0xff] %vm991, 0.0
      %994 = vst.msk [vmem:[#allocation2 + $0x11] sm:$0xff] %vm991, %v456
      %995 = vst.msk [vmem:[#allocation2 + $0x19] sm:$0xff] %vm991, %v461
      %996 = vst.msk [vmem:[#allocation2 + $0x21] sm:$0xff] %vm991, %v531
      %997 = vst.msk [vmem:[#allocation2 + $0x29] sm:$0xff] %vm991, %v536
      %998 = vst.msk [vmem:[#allocation2 + $0x31] sm:$0xff] %vm991, %v606
      %999 = vst.msk [vmem:[#allocation2 + $0x39] sm:$0xff] %vm991, %v611
      %1000 = vst.msk [vmem:[#allocation2 + $0x41] sm:$0xff] %vm991, %v681
      %1001 = vst.msk [vmem:[#allocation2 + $0x49] sm:$0xff] %vm991, %v686
      %1002 = vst.msk [vmem:[#allocation2 + $0x51] sm:$0xff] %vm991, %v756
      %1003 = vst.msk [vmem:[#allocation2 + $0x59] sm:$0xff] %vm991, %v761
      %1004 = vst.msk [vmem:[#allocation2 + $0x61] sm:$0xff] %vm991, %v831
      %1005 = vst.msk [vmem:[#allocation2 + $0x69] sm:$0xff] %vm991, %v836
      %1006 = vst.msk [vmem:[#allocation2 + $0x71] sm:$0xff] %vm991, %v906
      %1007 = vst.msk [vmem:[#allocation2 + $0x79] sm:$0xff] %vm991, %v911
      %1008 = vst.msk [vmem:[#allocation2 + $0x81] sm:$0xff] %vm991, %v981
      %1009 = vst.msk [vmem:[#allocation2 + $0x89] sm:$0xff] %vm991, %v986
      %1010 = vst.msk [vmem:[#allocation2 + $0x91] sm:$0xff] %vm991, 0.0
      %vm1011 = vcmask 30720
      %1012 = vst.msk [vmem:[#allocation2 + $0x99] sm:$0x7f] %vm1011, 0.0
      %1030 = vrot.lane.b32.xlu0 0.0, 4
      %v1031 = vpop.permute.xlu0 %1030
      %1032 = vrot.lane.b32.xlu0 %v456, 4
      %v1033 = vpop.permute.xlu0 %1032
      %1034 = vrot.lane.b32.xlu0 %v461, 4
      %v1035 = vpop.permute.xlu0 %1034
      %1036 = vrot.lane.b32.xlu0 %v531, 4
      %v1037 = vpop.permute.xlu0 %1036
      %1038 = vrot.lane.b32.xlu0 %v536, 4
      %v1039 = vpop.permute.xlu0 %1038
      %1040 = vrot.lane.b32.xlu0 %v606, 4
      %v1041 = vpop.permute.xlu0 %1040
      %1042 = vrot.lane.b32.xlu0 %v611, 4
      %v1043 = vpop.permute.xlu0 %1042
      %1044 = vrot.lane.b32.xlu0 %v681, 4
      %v1045 = vpop.permute.xlu0 %1044
      %1046 = vrot.lane.b32.xlu0 %v686, 4
      %v1047 = vpop.permute.xlu0 %1046
      %1048 = vrot.lane.b32.xlu0 %v756, 4
      %v1049 = vpop.permute.xlu0 %1048
      %1050 = vrot.lane.b32.xlu0 %v761, 4
      %v1051 = vpop.permute.xlu0 %1050
      %1052 = vrot.lane.b32.xlu0 %v831, 4
      %v1053 = vpop.permute.xlu0 %1052
      %1054 = vrot.lane.b32.xlu0 %v836, 4
      %v1055 = vpop.permute.xlu0 %1054
      %1056 = vrot.lane.b32.xlu0 %v906, 4
      %v1057 = vpop.permute.xlu0 %1056
      %1058 = vrot.lane.b32.xlu0 %v911, 4
      %v1059 = vpop.permute.xlu0 %1058
      %1060 = vrot.lane.b32.xlu0 %v981, 4
      %v1061 = vpop.permute.xlu0 %1060
      %1062 = vrot.lane.b32.xlu0 %v986, 4
      %v1063 = vpop.permute.xlu0 %1062
      %vm1081 = vcmask 64544
      %1082 = vst.msk [vmem:[#allocation2] sm:$0xff] %vm1081, %v1031
      %1083 = vst.msk [vmem:[#allocation2 + $0x8] sm:$0xff] %vm1081, %v1031
      %1084 = vst.msk [vmem:[#allocation2 + $0x10] sm:$0xff] %vm1081, %v1033
      %1085 = vst.msk [vmem:[#allocation2 + $0x18] sm:$0xff] %vm1081, %v1035
      %1086 = vst.msk [vmem:[#allocation2 + $0x20] sm:$0xff] %vm1081, %v1037
      %1087 = vst.msk [vmem:[#allocation2 + $0x28] sm:$0xff] %vm1081, %v1039
      %1088 = vst.msk [vmem:[#allocation2 + $0x30] sm:$0xff] %vm1081, %v1041
      %1089 = vst.msk [vmem:[#allocation2 + $0x38] sm:$0xff] %vm1081, %v1043
      %1090 = vst.msk [vmem:[#allocation2 + $0x40] sm:$0xff] %vm1081, %v1045
      %1091 = vst.msk [vmem:[#allocation2 + $0x48] sm:$0xff] %vm1081, %v1047
      %1092 = vst.msk [vmem:[#allocation2 + $0x50] sm:$0xff] %vm1081, %v1049
      %1093 = vst.msk [vmem:[#allocation2 + $0x58] sm:$0xff] %vm1081, %v1051
      %1094 = vst.msk [vmem:[#allocation2 + $0x60] sm:$0xff] %vm1081, %v1053
      %1095 = vst.msk [vmem:[#allocation2 + $0x68] sm:$0xff] %vm1081, %v1055
      %1096 = vst.msk [vmem:[#allocation2 + $0x70] sm:$0xff] %vm1081, %v1057
      %1097 = vst.msk [vmem:[#allocation2 + $0x78] sm:$0xff] %vm1081, %v1059
      %1098 = vst.msk [vmem:[#allocation2 + $0x80] sm:$0xff] %vm1081, %v1061
      %1099 = vst.msk [vmem:[#allocation2 + $0x88] sm:$0xff] %vm1081, %v1063
      %1100 = vst.msk [vmem:[#allocation2 + $0x90] sm:$0xff] %vm1081, %v1031
      %1101 = vst.msk [vmem:[#allocation2 + $0x98] sm:$0xff] %vm1081, %v1031
      %1102 = vrot.lane.b32.xlu0 0.0, 8
      %v1103 = vpop.permute.xlu0 %1102
      %1104 = vrot.lane.b32.xlu0 %v456, 8
      %v1105 = vpop.permute.xlu0 %1104
      %1106 = vrot.lane.b32.xlu0 %v461, 8
      %v1107 = vpop.permute.xlu0 %1106
      %1108 = vrot.lane.b32.xlu0 %v531, 8
      %v1109 = vpop.permute.xlu0 %1108
      %1110 = vrot.lane.b32.xlu0 %v536, 8
      %v1111 = vpop.permute.xlu0 %1110
      %1112 = vrot.lane.b32.xlu0 %v606, 8
      %v1113 = vpop.permute.xlu0 %1112
      %1114 = vrot.lane.b32.xlu0 %v611, 8
      %v1115 = vpop.permute.xlu0 %1114
      %1116 = vrot.lane.b32.xlu0 %v681, 8
      %v1117 = vpop.permute.xlu0 %1116
      %1118 = vrot.lane.b32.xlu0 %v686, 8
      %v1119 = vpop.permute.xlu0 %1118
      %1120 = vrot.lane.b32.xlu0 %v756, 8
      %v1121 = vpop.permute.xlu0 %1120
      %1122 = vrot.lane.b32.xlu0 %v761, 8
      %v1123 = vpop.permute.xlu0 %1122
      %1124 = vrot.lane.b32.xlu0 %v831, 8
      %v1125 = vpop.permute.xlu0 %1124
      %1126 = vrot.lane.b32.xlu0 %v836, 8
      %v1127 = vpop.permute.xlu0 %1126
      %1128 = vrot.lane.b32.xlu0 %v906, 8
      %v1129 = vpop.permute.xlu0 %1128
      %1130 = vrot.lane.b32.xlu0 %v911, 8
      %v1131 = vpop.permute.xlu0 %1130
      %1132 = vrot.lane.b32.xlu0 %v981, 8
      %v1133 = vpop.permute.xlu0 %1132
      %1134 = vrot.lane.b32.xlu0 %v986, 8
      %v1135 = vpop.permute.xlu0 %1134
      %vm1153 = vcmask 97345
      %1154 = vst.msk [vmem:[#allocation2 - $0x1] sm:$0xfe] %vm1153, %v1103
      %vm1155 = vcmask 97344
      %1156 = vst.msk [vmem:[#allocation2 + $0x7] sm:$0xff] %vm1155, %v1103
      %1157 = vst.msk [vmem:[#allocation2 + $0xf] sm:$0xff] %vm1155, %v1105
      %1158 = vst.msk [vmem:[#allocation2 + $0x17] sm:$0xff] %vm1155, %v1107
      %1159 = vst.msk [vmem:[#allocation2 + $0x1f] sm:$0xff] %vm1155, %v1109
      %1160 = vst.msk [vmem:[#allocation2 + $0x27] sm:$0xff] %vm1155, %v1111
      %1161 = vst.msk [vmem:[#allocation2 + $0x2f] sm:$0xff] %vm1155, %v1113
      %1162 = vst.msk [vmem:[#allocation2 + $0x37] sm:$0xff] %vm1155, %v1115
      %1163 = vst.msk [vmem:[#allocation2 + $0x3f] sm:$0xff] %vm1155, %v1117
      %1164 = vst.msk [vmem:[#allocation2 + $0x47] sm:$0xff] %vm1155, %v1119
      %1165 = vst.msk [vmem:[#allocation2 + $0x4f] sm:$0xff] %vm1155, %v1121
      %1166 = vst.msk [vmem:[#allocation2 + $0x57] sm:$0xff] %vm1155, %v1123
      %1167 = vst.msk [vmem:[#allocation2 + $0x5f] sm:$0xff] %vm1155, %v1125
      %1168 = vst.msk [vmem:[#allocation2 + $0x67] sm:$0xff] %vm1155, %v1127
      %1169 = vst.msk [vmem:[#allocation2 + $0x6f] sm:$0xff] %vm1155, %v1129
      %1170 = vst.msk [vmem:[#allocation2 + $0x77] sm:$0xff] %vm1155, %v1131
      %1171 = vst.msk [vmem:[#allocation2 + $0x7f] sm:$0xff] %vm1155, %v1133
      %1172 = vst.msk [vmem:[#allocation2 + $0x87] sm:$0xff] %vm1155, %v1135
      %1173 = vst.msk [vmem:[#allocation2 + $0x8f] sm:$0xff] %vm1155, %v1103
      %1174 = vst.msk [vmem:[#allocation2 + $0x97] sm:$0xff] %vm1155, %v1103
      %vm1175 = vcmask 90176
      %1176 = vst.msk [vmem:[#allocation2 + $0x9f] sm:$0x1] %vm1175, %v1103
      %v1177 = vld [vmem:[#allocation2] sm:$0xff]
      %v1178 = vld [vmem:[#allocation2 + $0x8] sm:$0xff]
      %v1179 = vld [vmem:[#allocation2 + $0x10] sm:$0xff]
      %v1180 = vld [vmem:[#allocation2 + $0x18] sm:$0xff]
      %v1181 = vld [vmem:[#allocation2 + $0x20] sm:$0xff]
      %v1182 = vld [vmem:[#allocation2 + $0x28] sm:$0xff]
      %v1183 = vld [vmem:[#allocation2 + $0x30] sm:$0xff]
      %v1184 = vld [vmem:[#allocation2 + $0x38] sm:$0xff]
      %v1185 = vld [vmem:[#allocation2 + $0x40] sm:$0xff]
      %v1186 = vld [vmem:[#allocation2 + $0x48] sm:$0xff]
      %v1187 = vld [vmem:[#allocation2 + $0x50] sm:$0xff]
      %v1188 = vld [vmem:[#allocation2 + $0x58] sm:$0xff]
      %v1189 = vld [vmem:[#allocation2 + $0x60] sm:$0xff]
      %v1190 = vld [vmem:[#allocation2 + $0x68] sm:$0xff]
      %v1191 = vld [vmem:[#allocation2 + $0x70] sm:$0xff]
      %v1192 = vld [vmem:[#allocation2 + $0x78] sm:$0xff]
      %v1193 = vpack.c.bf16 %v1178, %v1177
      %v1194 = vpack.c.bf16 %v1180, %v1179
      %v1195 = vpack.c.bf16 %v1182, %v1181
      %v1196 = vpack.c.bf16 %v1184, %v1183
      %v1197 = vpack.c.bf16 %v1186, %v1185
      %v1198 = vpack.c.bf16 %v1188, %v1187
      %v1199 = vpack.c.bf16 %v1190, %v1189
      %v1200 = vpack.c.bf16 %v1192, %v1191
      %v1201 = vld [vmem:[%s2] sm:$0xf]
      %v1202 = vld [vmem:[%s2 + $0x4] sm:$0x3]
      %v1203 = vld [vmem:[#allocation2 + $0x80] sm:$0xff]
      %v1204 = vld [vmem:[#allocation2 + $0x88] sm:$0xff]
      %v1205 = vpack.c.bf16 %v1204, %v1203
      %s1206 = scalar_lea.vmem %s2, 8
      %v1207 = vld [vmem:[%s1206] sm:$0xf]
      %v1208 = vld [vmem:[%s1206 + $0x4] sm:$0x3]
      %v1211 = vunpack.c.l.b16 %v1207
      %v1212 = vunpack.c.l.b16 %v1208
      %v1213 = vpack.c.b16 %v1212, %v1211
      %vm1214 = vcmask 97280
      %v1216 = vsel %vm1214, %v1194, 0
      %v1219 = vsel %vm1214, %v1195, 0
      %v1222 = vsel %vm1214, %v1196, 0
      %v1225 = vsel %vm1214, %v1197, 0
      %v1228 = vsel %vm1214, %v1198, 0
      %v1231 = vsel %vm1214, %v1199, 0
      %v1234 = vsel %vm1214, %v1200, 0
      %v1237 = vsel %vm1214, %v1205, 0
      %vm1239 = vcmask 1045504
      %v1241 = vsel %vm1239, %v1213, 0
      %1243 = vmatprep.subr.bf16.mxu0 0
      %1244 = vmatpush1.bf16.msra.mxu0 %v1241
      %1245 = vmatprep.subr.bf16.mxu0 0
      %1246 = vmatpush1.bf16.msra.mxu0 0
      %1247 = vmatprep.subr.bf16.mxu0 0
      %1248 = vmatpush1.bf16.msra.mxu0 0
      %1249 = vmatprep.subr.bf16.mxu0 0
      %1250 = vmatpush1.bf16.msra.mxu0 0
      %1251 = vmatprep.subr.bf16.mxu0 0
      %1252 = vmatpush1.bf16.msra.mxu0 0
      %1253 = vmatprep.subr.bf16.mxu0 0
      %1254 = vmatpush1.bf16.msra.mxu0 0
      %1255 = vmatprep.subr.bf16.mxu0 0
      %1256 = vmatpush1.bf16.msra.mxu0 0
      %1257 = vmatprep.subr.bf16.mxu0 0
      %1258 = vmatpush1.bf16.msra.mxu0 0
      %1259 = vmatprep.subr.bf16.mxu0 0
      %1260 = vmatpush1.bf16.msra.mxu0 0
      %1261 = vmatprep.subr.bf16.mxu0 0
      %1262 = vmatpush1.bf16.msra.mxu0 0
      %1263 = vmatprep.subr.bf16.mxu0 0
      %1264 = vmatpush1.bf16.msra.mxu0 0
      %1265 = vmatprep.subr.bf16.mxu0 0
      %1266 = vmatpush1.bf16.msra.mxu0 0
      %1267 = vmatprep.subr.bf16.mxu0 0
      %1268 = vmatpush1.bf16.msra.mxu0 0
      %1269 = vmatprep.subr.bf16.mxu0 0
      %1270 = vmatpush1.bf16.msra.mxu0 0
      %1271 = vmatprep.subr.bf16.mxu0 0
      %1272 = vmatpush1.bf16.msra.mxu0 0
      %1273 = vmatprep.subr.bf16.mxu0 0
      %1274 = vmatpush1.bf16.msra.mxu0 0
      %1275 = vmatprep.mubr.bf16.mxu0 0
      %1276 = vmatmul.mubr.bf16.gmra.mrb[0].mxu0 %v1216
      %v1277 = vpop.f32.mrb[0].mxu0
      %v1278 = vadd.f32 0.0, %v1277
      %v1279 = vpop.f32.mrb[0].mxu0
      %v1280 = vpop.f32.mrb[0].mxu0
      %v1281 = vadd.f32 0.0, %v1280
      %v1282 = vpop.f32.mrb[0].mxu0
      %1283 = vmatprep.mubr.bf16.mxu0 0
      %1284 = vmatmul.mubr.bf16.gmra.mrb[0].mxu0 %v1219
      %v1285 = vpop.f32.mrb[0].mxu0
      %v1286 = vadd.f32 0.0, %v1285
      %v1287 = vpop.f32.mrb[0].mxu0
      %v1288 = vpop.f32.mrb[0].mxu0
      %v1289 = vadd.f32 0.0, %v1288
      %v1290 = vpop.f32.mrb[0].mxu0
      %1291 = vmatprep.mubr.bf16.mxu0 0
      %1292 = vmatmul.mubr.bf16.gmra.mrb[0].mxu0 %v1222
      %v1293 = vpop.f32.mrb[0].mxu0
      %v1294 = vadd.f32 0.0, %v1293
      %v1295 = vpop.f32.mrb[0].mxu0
      %v1296 = vpop.f32.mrb[0].mxu0
      %v1297 = vadd.f32 0.0, %v1296
      %v1298 = vpop.f32.mrb[0].mxu0
      %1299 = vmatprep.mubr.bf16.mxu0 0
      %1300 = vmatmul.mubr.bf16.gmra.mrb[0].mxu0 %v1225
      %v1301 = vpop.f32.mrb[0].mxu0
      %v1302 = vadd.f32 0.0, %v1301
      %v1303 = vpop.f32.mrb[0].mxu0
      %v1304 = vpop.f32.mrb[0].mxu0
      %v1305 = vadd.f32 0.0, %v1304
      %v1306 = vpop.f32.mrb[0].mxu0
      %1307 = vmatprep.mubr.bf16.mxu0 0
      %1308 = vmatmul.mubr.bf16.gmra.mrb[0].mxu0 %v1228
      %v1309 = vpop.f32.mrb[0].mxu0
      %v1310 = vadd.f32 0.0, %v1309
      %v1311 = vpop.f32.mrb[0].mxu0
      %v1312 = vpop.f32.mrb[0].mxu0
      %v1313 = vadd.f32 0.0, %v1312
      %v1314 = vpop.f32.mrb[0].mxu0
      %1315 = vmatprep.mubr.bf16.mxu0 0
      %1316 = vmatmul.mubr.bf16.gmra.mrb[0].mxu0 %v1231
      %v1317 = vpop.f32.mrb[0].mxu0
      %v1318 = vadd.f32 0.0, %v1317
      %v1319 = vpop.f32.mrb[0].mxu0
      %v1320 = vpop.f32.mrb[0].mxu0
      %v1321 = vadd.f32 0.0, %v1320
      %v1322 = vpop.f32.mrb[0].mxu0
      %1323 = vmatprep.mubr.bf16.mxu0 0
      %1324 = vmatmul.mubr.bf16.gmra.mrb[0].mxu0 %v1234
      %v1325 = vpop.f32.mrb[0].mxu0
      %v1326 = vadd.f32 0.0, %v1325
      %v1327 = vpop.f32.mrb[0].mxu0
      %v1328 = vpop.f32.mrb[0].mxu0
      %v1329 = vadd.f32 0.0, %v1328
      %v1330 = vpop.f32.mrb[0].mxu0
      %1331 = vmatprep.mubr.bf16.mxu0 0
      %1332 = vmatmul.mubr.bf16.gmra.mrb[0].mxu0 %v1237
      %v1333 = vpop.f32.mrb[0].mxu0
      %v1334 = vadd.f32 0.0, %v1333
      %v1335 = vpop.f32.mrb[0].mxu0
      %v1336 = vpop.f32.mrb[0].mxu0
      %v1337 = vadd.f32 0.0, %v1336
      %v1338 = vpop.f32.mrb[0].mxu0
      %1339 = vdwg.mxu0
      %v1342 = vunpack.c.l.b16 %v1201
      %v1343 = vunpack.c.l.b16 %v1202
      %v1344 = vpack.c.b16 %v1343, %v1342
      %v1346 = vsel %vm1214, %v1193, 0
      %v1349 = vsel %vm1239, %v1344, 0
      %1351 = vmatprep.subr.bf16.mxu0 0
      %1352 = vmatpush1.bf16.msra.mxu0 %v1349
      %1353 = vmatprep.subr.bf16.mxu0 0
      %1354 = vmatpush1.bf16.msra.mxu0 0
      %1355 = vmatprep.subr.bf16.mxu0 0
      %1356 = vmatpush1.bf16.msra.mxu0 0
      %1357 = vmatprep.subr.bf16.mxu0 0
      %1358 = vmatpush1.bf16.msra.mxu0 0
      %1359 = vmatprep.subr.bf16.mxu0 0
      %1360 = vmatpush1.bf16.msra.mxu0 0
      %1361 = vmatprep.subr.bf16.mxu0 0
      %1362 = vmatpush1.bf16.msra.mxu0 0
      %1363 = vmatprep.subr.bf16.mxu0 0
      %1364 = vmatpush1.bf16.msra.mxu0 0
      %1365 = vmatprep.subr.bf16.mxu0 0
      %1366 = vmatpush1.bf16.msra.mxu0 0
      %1367 = vmatprep.subr.bf16.mxu0 0
      %1368 = vmatpush1.bf16.msra.mxu0 0
      %1369 = vmatprep.subr.bf16.mxu0 0
      %1370 = vmatpush1.bf16.msra.mxu0 0
      %1371 = vmatprep.subr.bf16.mxu0 0
      %1372 = vmatpush1.bf16.msra.mxu0 0
      %1373 = vmatprep.subr.bf16.mxu0 0
      %1374 = vmatpush1.bf16.msra.mxu0 0
      %1375 = vmatprep.subr.bf16.mxu0 0
      %1376 = vmatpush1.bf16.msra.mxu0 0
      %1377 = vmatprep.subr.bf16.mxu0 0
      %1378 = vmatpush1.bf16.msra.mxu0 0
      %1379 = vmatprep.subr.bf16.mxu0 0
      %1380 = vmatpush1.bf16.msra.mxu0 0
      %1381 = vmatprep.subr.bf16.mxu0 0
      %1382 = vmatpush1.bf16.msra.mxu0 0
      %1383 = vmatprep.mubr.bf16.mxu0 0
      %1384 = vmatmul.mubr.bf16.gmra.mrb[0].mxu0 %v1346
      %v1385 = vpop.f32.mrb[0].mxu0
      %v1386 = vadd.f32 %v1278, %v1385
      %v1387 = vpop.f32.mrb[0].mxu0
      %v1388 = vpop.f32.mrb[0].mxu0
      %v1389 = vadd.f32 %v1281, %v1388
      %v1390 = vpop.f32.mrb[0].mxu0
      %1391 = vmatprep.mubr.bf16.mxu0 0
      %1392 = vmatmul.mubr.bf16.gmra.mrb[0].mxu0 %v1216
      %v1393 = vpop.f32.mrb[0].mxu0
      %v1394 = vadd.f32 %v1286, %v1393
      %v1395 = vpop.f32.mrb[0].mxu0
      %v1396 = vpop.f32.mrb[0].mxu0
      %v1397 = vadd.f32 %v1289, %v1396
      %v1398 = vpop.f32.mrb[0].mxu0
      %1399 = vmatprep.mubr.bf16.mxu0 0
      %1400 = vmatmul.mubr.bf16.gmra.mrb[0].mxu0 %v1219
      %v1401 = vpop.f32.mrb[0].mxu0
      %v1402 = vadd.f32 %v1294, %v1401
      %v1403 = vpop.f32.mrb[0].mxu0
      %v1404 = vpop.f32.mrb[0].mxu0
      %v1405 = vadd.f32 %v1297, %v1404
      %v1406 = vpop.f32.mrb[0].mxu0
      %1407 = vmatprep.mubr.bf16.mxu0 0
      %1408 = vmatmul.mubr.bf16.gmra.mrb[0].mxu0 %v1222
      %v1409 = vpop.f32.mrb[0].mxu0
      %v1410 = vadd.f32 %v1302, %v1409
      %v1411 = vpop.f32.mrb[0].mxu0
      %v1412 = vpop.f32.mrb[0].mxu0
      %v1413 = vadd.f32 %v1305, %v1412
      %v1414 = vpop.f32.mrb[0].mxu0
      %1415 = vmatprep.mubr.bf16.mxu0 0
      %1416 = vmatmul.mubr.bf16.gmra.mrb[0].mxu0 %v1225
      %v1417 = vpop.f32.mrb[0].mxu0
      %v1418 = vadd.f32 %v1310, %v1417
      %v1419 = vpop.f32.mrb[0].mxu0
      %v1420 = vpop.f32.mrb[0].mxu0
      %v1421 = vadd.f32 %v1313, %v1420
      %v1422 = vpop.f32.mrb[0].mxu0
      %1423 = vmatprep.mubr.bf16.mxu0 0
      %1424 = vmatmul.mubr.bf16.gmra.mrb[0].mxu0 %v1228
      %v1425 = vpop.f32.mrb[0].mxu0
      %v1426 = vadd.f32 %v1318, %v1425
      %v1427 = vpop.f32.mrb[0].mxu0
      %v1428 = vpop.f32.mrb[0].mxu0
      %v1429 = vadd.f32 %v1321, %v1428
      %v1430 = vpop.f32.mrb[0].mxu0
      %1431 = vmatprep.mubr.bf16.mxu0 0
      %1432 = vmatmul.mubr.bf16.gmra.mrb[0].mxu0 %v1231
      %v1433 = vpop.f32.mrb[0].mxu0
      %v1434 = vadd.f32 %v1326, %v1433
      %v1435 = vpop.f32.mrb[0].mxu0
      %v1436 = vpop.f32.mrb[0].mxu0
      %v1437 = vadd.f32 %v1329, %v1436
      %v1438 = vpop.f32.mrb[0].mxu0
      %1439 = vmatprep.mubr.bf16.mxu0 0
      %1440 = vmatmul.mubr.bf16.gmra.mrb[0].mxu0 %v1234
      %v1441 = vpop.f32.mrb[0].mxu0
      %v1442 = vadd.f32 %v1334, %v1441
      %v1443 = vpop.f32.mrb[0].mxu0
      %v1444 = vpop.f32.mrb[0].mxu0
      %v1445 = vadd.f32 %v1337, %v1444
      %v1446 = vpop.f32.mrb[0].mxu0
      %1447 = vdwg.mxu0
      %v1448 = vld [vmem:[#allocation2 + $0x20] sm:$0xff]
      %v1449 = vld [vmem:[#allocation2 + $0x28] sm:$0xff]
      %v1450 = vld [vmem:[#allocation2 + $0x30] sm:$0xff]
      %v1451 = vld [vmem:[#allocation2 + $0x38] sm:$0xff]
      %v1452 = vld [vmem:[#allocation2 + $0x40] sm:$0xff]
      %v1453 = vld [vmem:[#allocation2 + $0x48] sm:$0xff]
      %v1454 = vld [vmem:[#allocation2 + $0x50] sm:$0xff]
      %v1455 = vld [vmem:[#allocation2 + $0x58] sm:$0xff]
      %v1456 = vld [vmem:[#allocation2 + $0x60] sm:$0xff]
      %v1457 = vld [vmem:[#allocation2 + $0x68] sm:$0xff]
      %v1458 = vld [vmem:[#allocation2 + $0x70] sm:$0xff]
      %v1459 = vld [vmem:[#allocation2 + $0x78] sm:$0xff]
      %v1460 = vld [vmem:[#allocation2 + $0x80] sm:$0xff]
      %v1461 = vld [vmem:[#allocation2 + $0x88] sm:$0xff]
      %v1462 = vld [vmem:[#allocation2 + $0x90] sm:$0xff]
      %v1463 = vld [vmem:[#allocation2 + $0x98] sm:$0xff]
      %v1464 = vpack.c.bf16 %v1449, %v1448
      %v1465 = vpack.c.bf16 %v1451, %v1450
      %v1466 = vpack.c.bf16 %v1453, %v1452
      %v1467 = vpack.c.bf16 %v1455, %v1454
      %v1468 = vpack.c.bf16 %v1457, %v1456
      %v1469 = vpack.c.bf16 %v1459, %v1458
      %v1470 = vpack.c.bf16 %v1461, %v1460
      %v1471 = vpack.c.bf16 %v1463, %v1462
      %s1472 = scalar_lea.vmem %s2, 16
      %v1473 = vld [vmem:[%s1472] sm:$0xf]
      %v1474 = vld [vmem:[%s1472 + $0x4] sm:$0x3]
      %v1477 = vunpack.c.l.b16 %v1473
      %v1478 = vunpack.c.l.b16 %v1474
      %v1479 = vpack.c.b16 %v1478, %v1477
      %v1481 = vsel %vm1214, %v1464, 0
      %v1484 = vsel %vm1214, %v1465, 0
      %v1487 = vsel %vm1214, %v1466, 0
      %v1490 = vsel %vm1214, %v1467, 0
      %v1493 = vsel %vm1214, %v1468, 0
      %v1496 = vsel %vm1214, %v1469, 0
      %v1499 = vsel %vm1214, %v1470, 0
      %v1502 = vsel %vm1214, %v1471, 0
      %v1505 = vsel %vm1239, %v1479, 0
      %1507 = vmatprep.subr.bf16.mxu0 0
      %1508 = vmatpush1.bf16.msra.mxu0 %v1505
      %1509 = vmatprep.subr.bf16.mxu0 0
      %1510 = vmatpush1.bf16.msra.mxu0 0
      %1511 = vmatprep.subr.bf16.mxu0 0
      %1512 = vmatpush1.bf16.msra.mxu0 0
      %1513 = vmatprep.subr.bf16.mxu0 0
      %1514 = vmatpush1.bf16.msra.mxu0 0
      %1515 = vmatprep.subr.bf16.mxu0 0
      %1516 = vmatpush1.bf16.msra.mxu0 0
      %1517 = vmatprep.subr.bf16.mxu0 0
      %1518 = vmatpush1.bf16.msra.mxu0 0
      %1519 = vmatprep.subr.bf16.mxu0 0
      %1520 = vmatpush1.bf16.msra.mxu0 0
      %1521 = vmatprep.subr.bf16.mxu0 0
      %1522 = vmatpush1.bf16.msra.mxu0 0
      %1523 = vmatprep.subr.bf16.mxu0 0
      %1524 = vmatpush1.bf16.msra.mxu0 0
      %1525 = vmatprep.subr.bf16.mxu0 0
      %1526 = vmatpush1.bf16.msra.mxu0 0
      %1527 = vmatprep.subr.bf16.mxu0 0
      %1528 = vmatpush1.bf16.msra.mxu0 0
      %1529 = vmatprep.subr.bf16.mxu0 0
      %1530 = vmatpush1.bf16.msra.mxu0 0
      %1531 = vmatprep.subr.bf16.mxu0 0
      %1532 = vmatpush1.bf16.msra.mxu0 0
      %1533 = vmatprep.subr.bf16.mxu0 0
      %1534 = vmatpush1.bf16.msra.mxu0 0
      %1535 = vmatprep.subr.bf16.mxu0 0
      %1536 = vmatpush1.bf16.msra.mxu0 0
      %1537 = vmatprep.subr.bf16.mxu0 0
      %1538 = vmatpush1.bf16.msra.mxu0 0
      %1539 = vmatprep.mubr.bf16.mxu0 0
      %1540 = vmatmul.mubr.bf16.gmra.mrb[0].mxu0 %v1481
      %v1541 = vpop.f32.mrb[0].mxu0
      %v1542 = vadd.f32 0.0, %v1541
      %v1543 = vpop.f32.mrb[0].mxu0
      %v1544 = vpop.f32.mrb[0].mxu0
      %v1545 = vadd.f32 0.0, %v1544
      %v1546 = vpop.f32.mrb[0].mxu0
      %1547 = vmatprep.mubr.bf16.mxu0 0
      %1548 = vmatmul.mubr.bf16.gmra.mrb[0].mxu0 %v1484
      %v1549 = vpop.f32.mrb[0].mxu0
      %v1550 = vadd.f32 0.0, %v1549
      %v1551 = vpop.f32.mrb[0].mxu0
      %v1552 = vpop.f32.mrb[0].mxu0
      %v1553 = vadd.f32 0.0, %v1552
      %v1554 = vpop.f32.mrb[0].mxu0
      %1555 = vmatprep.mubr.bf16.mxu0 0
      %1556 = vmatmul.mubr.bf16.gmra.mrb[0].mxu0 %v1487
      %v1557 = vpop.f32.mrb[0].mxu0
      %v1558 = vadd.f32 0.0, %v1557
      %v1559 = vpop.f32.mrb[0].mxu0
      %v1560 = vpop.f32.mrb[0].mxu0
      %v1561 = vadd.f32 0.0, %v1560
      %v1562 = vpop.f32.mrb[0].mxu0
      %1563 = vmatprep.mubr.bf16.mxu0 0
      %1564 = vmatmul.mubr.bf16.gmra.mrb[0].mxu0 %v1490
      %v1565 = vpop.f32.mrb[0].mxu0
      %v1566 = vadd.f32 0.0, %v1565
      %v1567 = vpop.f32.mrb[0].mxu0
      %v1568 = vpop.f32.mrb[0].mxu0
      %v1569 = vadd.f32 0.0, %v1568
      %v1570 = vpop.f32.mrb[0].mxu0
      %1571 = vmatprep.mubr.bf16.mxu0 0
      %1572 = vmatmul.mubr.bf16.gmra.mrb[0].mxu0 %v1493
      %v1573 = vpop.f32.mrb[0].mxu0
      %v1574 = vadd.f32 0.0, %v1573
      %v1575 = vpop.f32.mrb[0].mxu0
      %v1576 = vpop.f32.mrb[0].mxu0
      %v1577 = vadd.f32 0.0, %v1576
      %v1578 = vpop.f32.mrb[0].mxu0
      %1579 = vmatprep.mubr.bf16.mxu0 0
      %1580 = vmatmul.mubr.bf16.gmra.mrb[0].mxu0 %v1496
      %v1581 = vpop.f32.mrb[0].mxu0
      %v1582 = vadd.f32 0.0, %v1581
      %v1583 = vpop.f32.mrb[0].mxu0
      %v1584 = vpop.f32.mrb[0].mxu0
      %v1585 = vadd.f32 0.0, %v1584
      %v1586 = vpop.f32.mrb[0].mxu0
      %1587 = vmatprep.mubr.bf16.mxu0 0
      %1588 = vmatmul.mubr.bf16.gmra.mrb[0].mxu0 %v1499
      %v1589 = vpop.f32.mrb[0].mxu0
      %v1590 = vadd.f32 0.0, %v1589
      %v1591 = vpop.f32.mrb[0].mxu0
      %v1592 = vpop.f32.mrb[0].mxu0
      %v1593 = vadd.f32 0.0, %v1592
      %v1594 = vpop.f32.mrb[0].mxu0
      %1595 = vmatprep.mubr.bf16.mxu0 0
      %1596 = vmatmul.mubr.bf16.gmra.mrb[0].mxu0 %v1502
      %v1597 = vpop.f32.mrb[0].mxu0
      %v1598 = vadd.f32 0.0, %v1597
      %v1599 = vpop.f32.mrb[0].mxu0
      %v1600 = vpop.f32.mrb[0].mxu0
      %v1601 = vadd.f32 0.0, %v1600
      %v1602 = vpop.f32.mrb[0].mxu0
      %1603 = vdwg.mxu0
      %v1604 = vadd.f32 %v1386, %v1542
      %v1605 = vadd.f32 %v1389, %v1545
      %v1606 = vadd.f32 %v1394, %v1550
      %v1607 = vadd.f32 %v1397, %v1553
      %v1608 = vadd.f32 %v1402, %v1558
      %v1609 = vadd.f32 %v1405, %v1561
      %v1610 = vadd.f32 %v1410, %v1566
      %v1611 = vadd.f32 %v1413, %v1569
      %v1612 = vadd.f32 %v1418, %v1574
      %v1613 = vadd.f32 %v1421, %v1577
      %v1614 = vadd.f32 %v1426, %v1582
      %v1615 = vadd.f32 %v1429, %v1585
      %v1616 = vadd.f32 %v1434, %v1590
      %v1617 = vadd.f32 %v1437, %v1593
      %v1618 = vadd.f32 %v1442, %v1598
      %v1619 = vadd.f32 %v1445, %v1601
      %vm1620 = vcmp.ge.f32.partialorder %v1604, 0.0
      %vm1621 = vcmp.ge.f32.partialorder %v1605, 0.0
      %vm1622 = vcmp.ge.f32.partialorder %v1606, 0.0
      %vm1623 = vcmp.ge.f32.partialorder %v1607, 0.0
      %vm1624 = vcmp.ge.f32.partialorder %v1608, 0.0
      %vm1625 = vcmp.ge.f32.partialorder %v1609, 0.0
      %vm1626 = vcmp.ge.f32.partialorder %v1610, 0.0
      %vm1627 = vcmp.ge.f32.partialorder %v1611, 0.0
      %vm1628 = vcmp.ge.f32.partialorder %v1612, 0.0
      %vm1629 = vcmp.ge.f32.partialorder %v1613, 0.0
      %vm1630 = vcmp.ge.f32.partialorder %v1614, 0.0
      %vm1631 = vcmp.ge.f32.partialorder %v1615, 0.0
      %vm1632 = vcmp.ge.f32.partialorder %v1616, 0.0
      %vm1633 = vcmp.ge.f32.partialorder %v1617, 0.0
      %vm1634 = vcmp.ge.f32.partialorder %v1618, 0.0
      %vm1635 = vcmp.ge.f32.partialorder %v1619, 0.0
      %v1636 = vmul.f32 %v1604, 0.2
      %v1637 = vmul.f32 %v1605, 0.2
      %v1638 = vmul.f32 %v1606, 0.2
      %v1639 = vmul.f32 %v1607, 0.2
      %v1640 = vmul.f32 %v1608, 0.2
      %v1641 = vmul.f32 %v1609, 0.2
      %v1642 = vmul.f32 %v1610, 0.2
      %v1643 = vmul.f32 %v1611, 0.2
      %v1644 = vmul.f32 %v1612, 0.2
      %v1645 = vmul.f32 %v1613, 0.2
      %v1646 = vmul.f32 %v1614, 0.2
      %v1647 = vmul.f32 %v1615, 0.2
      %v1648 = vmul.f32 %v1616, 0.2
      %v1649 = vmul.f32 %v1617, 0.2
      %v1650 = vmul.f32 %v1618, 0.2
      %v1651 = vmul.f32 %v1619, 0.2
      %v1652 = vsel %vm1620, %v1604, %v1636
      %v1653 = vsel %vm1621, %v1605, %v1637
      %v1654 = vsel %vm1622, %v1606, %v1638
      %v1655 = vsel %vm1623, %v1607, %v1639
      %v1656 = vsel %vm1624, %v1608, %v1640
      %v1657 = vsel %vm1625, %v1609, %v1641
      %v1658 = vsel %vm1626, %v1610, %v1642
      %v1659 = vsel %vm1627, %v1611, %v1643
      %v1660 = vsel %vm1628, %v1612, %v1644
      %v1661 = vsel %vm1629, %v1613, %v1645
      %v1662 = vsel %vm1630, %v1614, %v1646
      %v1663 = vsel %vm1631, %v1615, %v1647
      %v1664 = vsel %vm1632, %v1616, %v1648
      %v1665 = vsel %vm1633, %v1617, %v1649
      %v1666 = vsel %vm1634, %v1618, %v1650
      %v1667 = vsel %vm1635, %v1619, %v1651
      %v1668 = vadd.f32 %v1652, %v1654
      %v1669 = vadd.f32 %v1653, %v1655
      %v1670 = vadd.f32 %v1656, %v1658
      %v1671 = vadd.f32 %v1657, %v1659
      %v1672 = vadd.f32 %v1660, %v1662
      %v1673 = vadd.f32 %v1661, %v1663
      %v1674 = vadd.f32 %v1664, %v1666
      %v1675 = vadd.f32 %v1665, %v1667
      %v1676 = vld [vmem:[%s4] sm:$0xff]
      %vm1677 = vcmask 130048
      %v1679 = vsel %vm1677, %v1676, 0
      %1681 = vmatprep.subr.mxu0 0.0
      %1682 = vmatpush1.msra.mxu0 %v1668
      %1683 = vmatprep.subr.mxu0 0.0
      %1684 = vmatpush1.msra.mxu0 %v1669
      %1685 = vmatprep.subr.mxu0 0.0
      %1686 = vmatpush1.msra.mxu0 0.0
      %1687 = vmatprep.subr.mxu0 0.0
      %1688 = vmatpush1.msra.mxu0 0.0
      %1689 = vmatprep.subr.mxu0 0.0
      %1690 = vmatpush1.msra.mxu0 0.0
      %1691 = vmatprep.subr.mxu0 0.0
      %1692 = vmatpush1.msra.mxu0 0.0
      %1693 = vmatprep.subr.mxu0 0.0
      %1694 = vmatpush1.msra.mxu0 0.0
      %1695 = vmatprep.subr.mxu0 0.0
      %1696 = vmatpush1.msra.mxu0 0.0
      %1697 = vmatprep.subr.mxu0 0.0
      %1698 = vmatpush1.msra.mxu0 0.0
      %1699 = vmatprep.subr.mxu0 0.0
      %1700 = vmatpush1.msra.mxu0 0.0
      %1701 = vmatprep.subr.mxu0 0.0
      %1702 = vmatpush1.msra.mxu0 0.0
      %1703 = vmatprep.subr.mxu0 0.0
      %1704 = vmatpush1.msra.mxu0 0.0
      %1705 = vmatprep.subr.mxu0 0.0
      %1706 = vmatpush1.msra.mxu0 0.0
      %1707 = vmatprep.subr.mxu0 0.0
      %1708 = vmatpush1.msra.mxu0 0.0
      %1709 = vmatprep.subr.mxu0 0.0
      %1710 = vmatpush1.msra.mxu0 0.0
      %1711 = vmatprep.subr.mxu0 0.0
      %1712 = vmatpush1.msra.mxu0 0.0
      %1713 = vmatprep.subr.mxu0 0.0
      %1714 = vmatpush1.msra.mxu0 0.0
      %1715 = vmatprep.subr.mxu0 0.0
      %1716 = vmatpush1.msra.mxu0 0.0
      %1717 = vmatprep.subr.mxu0 0.0
      %1718 = vmatpush1.msra.mxu0 0.0
      %1719 = vmatprep.subr.mxu0 0.0
      %1720 = vmatpush1.msra.mxu0 0.0
      %1721 = vmatprep.subr.mxu0 0.0
      %1722 = vmatpush1.msra.mxu0 0.0
      %1723 = vmatprep.subr.mxu0 0.0
      %1724 = vmatpush1.msra.mxu0 0.0
      %1725 = vmatprep.subr.mxu0 0.0
      %1726 = vmatpush1.msra.mxu0 0.0
      %1727 = vmatprep.subr.mxu0 0.0
      %1728 = vmatpush1.msra.mxu0 0.0
      %1729 = vmatprep.subr.mxu0 0.0
      %1730 = vmatpush1.msra.mxu0 0.0
      %1731 = vmatprep.subr.mxu0 0.0
      %1732 = vmatpush1.msra.mxu0 0.0
      %1733 = vmatprep.subr.mxu0 0.0
      %1734 = vmatpush1.msra.mxu0 0.0
      %1735 = vmatprep.subr.mxu0 0.0
      %1736 = vmatpush1.msra.mxu0 0.0
      %1737 = vmatprep.subr.mxu0 0.0
      %1738 = vmatpush1.msra.mxu0 0.0
      %1739 = vmatprep.subr.mxu0 0.0
      %1740 = vmatpush1.msra.mxu0 0.0
      %1741 = vmatprep.subr.mxu0 0.0
      %1742 = vmatpush1.msra.mxu0 0.0
      %1743 = vmatprep.subr.mxu0 0.0
      %1744 = vmatpush1.msra.mxu0 0.0
      %1745 = vmatprep.mubr.f32.mxu0 0.0
      %1746 = vmatmul.mubr.f32.gmra.mrb[0].mxu0 %v1679
      %v1747 = vpop.f32.mrb[0].mxu0
      %v1748 = vadd.f32 0.0, %v1747
      %v1749 = vpop.f32.mrb[0].mxu0
      %1750 = vdwg.mxu0
      %1751 = vmatprep.subr.mxu0 0.0
      %1752 = vmatpush1.msra.mxu0 %v1670
      %1753 = vmatprep.subr.mxu0 0.0
      %1754 = vmatpush1.msra.mxu0 %v1671
      %1755 = vmatprep.subr.mxu0 0.0
      %1756 = vmatpush1.msra.mxu0 0.0
      %1757 = vmatprep.subr.mxu0 0.0
      %1758 = vmatpush1.msra.mxu0 0.0
      %1759 = vmatprep.subr.mxu0 0.0
      %1760 = vmatpush1.msra.mxu0 0.0
      %1761 = vmatprep.subr.mxu0 0.0
      %1762 = vmatpush1.msra.mxu0 0.0
      %1763 = vmatprep.subr.mxu0 0.0
      %1764 = vmatpush1.msra.mxu0 0.0
      %1765 = vmatprep.subr.mxu0 0.0
      %1766 = vmatpush1.msra.mxu0 0.0
      %1767 = vmatprep.subr.mxu0 0.0
      %1768 = vmatpush1.msra.mxu0 0.0
      %1769 = vmatprep.subr.mxu0 0.0
      %1770 = vmatpush1.msra.mxu0 0.0
      %1771 = vmatprep.subr.mxu0 0.0
      %1772 = vmatpush1.msra.mxu0 0.0
      %1773 = vmatprep.subr.mxu0 0.0
      %1774 = vmatpush1.msra.mxu0 0.0
      %1775 = vmatprep.subr.mxu0 0.0
      %1776 = vmatpush1.msra.mxu0 0.0
      %1777 = vmatprep.subr.mxu0 0.0
      %1778 = vmatpush1.msra.mxu0 0.0
      %1779 = vmatprep.subr.mxu0 0.0
      %1780 = vmatpush1.msra.mxu0 0.0
      %1781 = vmatprep.subr.mxu0 0.0
      %1782 = vmatpush1.msra.mxu0 0.0
      %1783 = vmatprep.subr.mxu0 0.0
      %1784 = vmatpush1.msra.mxu0 0.0
      %1785 = vmatprep.subr.mxu0 0.0
      %1786 = vmatpush1.msra.mxu0 0.0
      %1787 = vmatprep.subr.mxu0 0.0
      %1788 = vmatpush1.msra.mxu0 0.0
      %1789 = vmatprep.subr.mxu0 0.0
      %1790 = vmatpush1.msra.mxu0 0.0
      %1791 = vmatprep.subr.mxu0 0.0
      %1792 = vmatpush1.msra.mxu0 0.0
      %1793 = vmatprep.subr.mxu0 0.0
      %1794 = vmatpush1.msra.mxu0 0.0
      %1795 = vmatprep.subr.mxu0 0.0
      %1796 = vmatpush1.msra.mxu0 0.0
      %1797 = vmatprep.subr.mxu0 0.0
      %1798 = vmatpush1.msra.mxu0 0.0
      %1799 = vmatprep.subr.mxu0 0.0
      %1800 = vmatpush1.msra.mxu0 0.0
      %1801 = vmatprep.subr.mxu0 0.0
      %1802 = vmatpush1.msra.mxu0 0.0
      %1803 = vmatprep.subr.mxu0 0.0
      %1804 = vmatpush1.msra.mxu0 0.0
      %1805 = vmatprep.subr.mxu0 0.0
      %1806 = vmatpush1.msra.mxu0 0.0
      %1807 = vmatprep.subr.mxu0 0.0
      %1808 = vmatpush1.msra.mxu0 0.0
      %1809 = vmatprep.subr.mxu0 0.0
      %1810 = vmatpush1.msra.mxu0 0.0
      %1811 = vmatprep.subr.mxu0 0.0
      %1812 = vmatpush1.msra.mxu0 0.0
      %1813 = vmatprep.subr.mxu0 0.0
      %1814 = vmatpush1.msra.mxu0 0.0
      %1815 = vmatprep.mubr.f32.mxu0 0.0
      %1816 = vmatmul.mubr.f32.gmra.mrb[0].mxu0 %v1679
      %v1817 = vpop.f32.mrb[0].mxu0
      %v1818 = vadd.f32 0.0, %v1817
      %v1819 = vpop.f32.mrb[0].mxu0
      %1820 = vdwg.mxu0
      %1821 = vmatprep.subr.mxu0 0.0
      %1822 = vmatpush1.msra.mxu0 %v1672
      %1823 = vmatprep.subr.mxu0 0.0
      %1824 = vmatpush1.msra.mxu0 %v1673
      %1825 = vmatprep.subr.mxu0 0.0
      %1826 = vmatpush1.msra.mxu0 0.0
      %1827 = vmatprep.subr.mxu0 0.0
      %1828 = vmatpush1.msra.mxu0 0.0
      %1829 = vmatprep.subr.mxu0 0.0
      %1830 = vmatpush1.msra.mxu0 0.0
      %1831 = vmatprep.subr.mxu0 0.0
      %1832 = vmatpush1.msra.mxu0 0.0
      %1833 = vmatprep.subr.mxu0 0.0
      %1834 = vmatpush1.msra.mxu0 0.0
      %1835 = vmatprep.subr.mxu0 0.0
      %1836 = vmatpush1.msra.mxu0 0.0
      %1837 = vmatprep.subr.mxu0 0.0
      %1838 = vmatpush1.msra.mxu0 0.0
      %1839 = vmatprep.subr.mxu0 0.0
      %1840 = vmatpush1.msra.mxu0 0.0
      %1841 = vmatprep.subr.mxu0 0.0
      %1842 = vmatpush1.msra.mxu0 0.0
      %1843 = vmatprep.subr.mxu0 0.0
      %1844 = vmatpush1.msra.mxu0 0.0
      %1845 = vmatprep.subr.mxu0 0.0
      %1846 = vmatpush1.msra.mxu0 0.0
      %1847 = vmatprep.subr.mxu0 0.0
      %1848 = vmatpush1.msra.mxu0 0.0
      %1849 = vmatprep.subr.mxu0 0.0
      %1850 = vmatpush1.msra.mxu0 0.0
      %1851 = vmatprep.subr.mxu0 0.0
      %1852 = vmatpush1.msra.mxu0 0.0
      %1853 = vmatprep.subr.mxu0 0.0
      %1854 = vmatpush1.msra.mxu0 0.0
      %1855 = vmatprep.subr.mxu0 0.0
      %1856 = vmatpush1.msra.mxu0 0.0
      %1857 = vmatprep.subr.mxu0 0.0
      %1858 = vmatpush1.msra.mxu0 0.0
      %1859 = vmatprep.subr.mxu0 0.0
      %1860 = vmatpush1.msra.mxu0 0.0
      %1861 = vmatprep.subr.mxu0 0.0
      %1862 = vmatpush1.msra.mxu0 0.0
      %1863 = vmatprep.subr.mxu0 0.0
      %1864 = vmatpush1.msra.mxu0 0.0
      %1865 = vmatprep.subr.mxu0 0.0
      %1866 = vmatpush1.msra.mxu0 0.0
      %1867 = vmatprep.subr.mxu0 0.0
      %1868 = vmatpush1.msra.mxu0 0.0
      %1869 = vmatprep.subr.mxu0 0.0
      %1870 = vmatpush1.msra.mxu0 0.0
      %1871 = vmatprep.subr.mxu0 0.0
      %1872 = vmatpush1.msra.mxu0 0.0
      %1873 = vmatprep.subr.mxu0 0.0
      %1874 = vmatpush1.msra.mxu0 0.0
      %1875 = vmatprep.subr.mxu0 0.0
      %1876 = vmatpush1.msra.mxu0 0.0
      %1877 = vmatprep.subr.mxu0 0.0
      %1878 = vmatpush1.msra.mxu0 0.0
      %1879 = vmatprep.subr.mxu0 0.0
      %1880 = vmatpush1.msra.mxu0 0.0
      %1881 = vmatprep.subr.mxu0 0.0
      %1882 = vmatpush1.msra.mxu0 0.0
      %1883 = vmatprep.subr.mxu0 0.0
      %1884 = vmatpush1.msra.mxu0 0.0
      %1885 = vmatprep.mubr.f32.mxu0 0.0
      %1886 = vmatmul.mubr.f32.gmra.mrb[0].mxu0 %v1679
      %v1887 = vpop.f32.mrb[0].mxu0
      %v1888 = vadd.f32 0.0, %v1887
      %v1889 = vpop.f32.mrb[0].mxu0
      %1890 = vdwg.mxu0
      %1891 = vmatprep.subr.mxu0 0.0
      %1892 = vmatpush1.msra.mxu0 %v1674
      %1893 = vmatprep.subr.mxu0 0.0
      %1894 = vmatpush1.msra.mxu0 %v1675
      %1895 = vmatprep.subr.mxu0 0.0
      %1896 = vmatpush1.msra.mxu0 0.0
      %1897 = vmatprep.subr.mxu0 0.0
      %1898 = vmatpush1.msra.mxu0 0.0
      %1899 = vmatprep.subr.mxu0 0.0
      %1900 = vmatpush1.msra.mxu0 0.0
      %1901 = vmatprep.subr.mxu0 0.0
      %1902 = vmatpush1.msra.mxu0 0.0
      %1903 = vmatprep.subr.mxu0 0.0
      %1904 = vmatpush1.msra.mxu0 0.0
      %1905 = vmatprep.subr.mxu0 0.0
      %1906 = vmatpush1.msra.mxu0 0.0
      %1907 = vmatprep.subr.mxu0 0.0
      %1908 = vmatpush1.msra.mxu0 0.0
      %1909 = vmatprep.subr.mxu0 0.0
      %1910 = vmatpush1.msra.mxu0 0.0
      %1911 = vmatprep.subr.mxu0 0.0
      %1912 = vmatpush1.msra.mxu0 0.0
      %1913 = vmatprep.subr.mxu0 0.0
      %1914 = vmatpush1.msra.mxu0 0.0
      %1915 = vmatprep.subr.mxu0 0.0
      %1916 = vmatpush1.msra.mxu0 0.0
      %1917 = vmatprep.subr.mxu0 0.0
      %1918 = vmatpush1.msra.mxu0 0.0
      %1919 = vmatprep.subr.mxu0 0.0
      %1920 = vmatpush1.msra.mxu0 0.0
      %1921 = vmatprep.subr.mxu0 0.0
      %1922 = vmatpush1.msra.mxu0 0.0
      %1923 = vmatprep.subr.mxu0 0.0
      %1924 = vmatpush1.msra.mxu0 0.0
      %1925 = vmatprep.subr.mxu0 0.0
      %1926 = vmatpush1.msra.mxu0 0.0
      %1927 = vmatprep.subr.mxu0 0.0
      %1928 = vmatpush1.msra.mxu0 0.0
      %1929 = vmatprep.subr.mxu0 0.0
      %1930 = vmatpush1.msra.mxu0 0.0
      %1931 = vmatprep.subr.mxu0 0.0
      %1932 = vmatpush1.msra.mxu0 0.0
      %1933 = vmatprep.subr.mxu0 0.0
      %1934 = vmatpush1.msra.mxu0 0.0
      %1935 = vmatprep.subr.mxu0 0.0
      %1936 = vmatpush1.msra.mxu0 0.0
      %1937 = vmatprep.subr.mxu0 0.0
      %1938 = vmatpush1.msra.mxu0 0.0
      %1939 = vmatprep.subr.mxu0 0.0
      %1940 = vmatpush1.msra.mxu0 0.0
      %1941 = vmatprep.subr.mxu0 0.0
      %1942 = vmatpush1.msra.mxu0 0.0
      %1943 = vmatprep.subr.mxu0 0.0
      %1944 = vmatpush1.msra.mxu0 0.0
      %1945 = vmatprep.subr.mxu0 0.0
      %1946 = vmatpush1.msra.mxu0 0.0
      %1947 = vmatprep.subr.mxu0 0.0
      %1948 = vmatpush1.msra.mxu0 0.0
      %1949 = vmatprep.subr.mxu0 0.0
      %1950 = vmatpush1.msra.mxu0 0.0
      %1951 = vmatprep.subr.mxu0 0.0
      %1952 = vmatpush1.msra.mxu0 0.0
      %1953 = vmatprep.subr.mxu0 0.0
      %1954 = vmatpush1.msra.mxu0 0.0
      %1955 = vmatprep.mubr.f32.mxu0 0.0
      %1956 = vmatmul.mubr.f32.gmra.mrb[0].mxu0 %v1679
      %v1957 = vpop.f32.mrb[0].mxu0
      %v1958 = vadd.f32 0.0, %v1957
      %v1959 = vpop.f32.mrb[0].mxu0
      %1960 = vdwg.mxu0
      %1961 = vst.msk [vmem:[#allocation2 - $0x7] sm:$0x80] %vm989, 0.0
      %1962 = vst.msk [vmem:[#allocation2 + $0x1] sm:$0xff] %vm991, 0.0
      %1963 = vst.msk [vmem:[#allocation2 + $0x9] sm:$0xff] %vm991, %v1748
      %1964 = vst.msk [vmem:[#allocation2 + $0x11] sm:$0xff] %vm991, %v1818
      %1965 = vst.msk [vmem:[#allocation2 + $0x19] sm:$0xff] %vm991, %v1888
      %1966 = vst.msk [vmem:[#allocation2 + $0x21] sm:$0xff] %vm991, %v1958
      %1967 = vst.msk [vmem:[#allocation2 + $0x29] sm:$0x7f] %vm1011, 0.0
      %1972 = vrot.lane.b32.xlu0 %v1748, 4
      %v1973 = vpop.permute.xlu0 %1972
      %1974 = vrot.lane.b32.xlu0 %v1818, 4
      %v1975 = vpop.permute.xlu0 %1974
      %1976 = vrot.lane.b32.xlu0 %v1888, 4
      %v1977 = vpop.permute.xlu0 %1976
      %1978 = vrot.lane.b32.xlu0 %v1958, 4
      %v1979 = vpop.permute.xlu0 %1978
      %1984 = vst.msk [vmem:[#allocation2] sm:$0xff] %vm1081, %v1031
      %1985 = vst.msk [vmem:[#allocation2 + $0x8] sm:$0xff] %vm1081, %v1973
      %1986 = vst.msk [vmem:[#allocation2 + $0x10] sm:$0xff] %vm1081, %v1975
      %1987 = vst.msk [vmem:[#allocation2 + $0x18] sm:$0xff] %vm1081, %v1977
      %1988 = vst.msk [vmem:[#allocation2 + $0x20] sm:$0xff] %vm1081, %v1979
      %1989 = vst.msk [vmem:[#allocation2 + $0x28] sm:$0xff] %vm1081, %v1031
      %1990 = vrot.lane.b32.xlu0 %v1748, 8
      %v1991 = vpop.permute.xlu0 %1990
      %1992 = vrot.lane.b32.xlu0 %v1818, 8
      %v1993 = vpop.permute.xlu0 %1992
      %1994 = vrot.lane.b32.xlu0 %v1888, 8
      %v1995 = vpop.permute.xlu0 %1994
      %1996 = vrot.lane.b32.xlu0 %v1958, 8
      %v1997 = vpop.permute.xlu0 %1996
      %2002 = vst.msk [vmem:[#allocation2 - $0x1] sm:$0xfe] %vm1153, %v1103
      %2003 = vst.msk [vmem:[#allocation2 + $0x7] sm:$0xff] %vm1155, %v1991
      %2004 = vst.msk [vmem:[#allocation2 + $0xf] sm:$0xff] %vm1155, %v1993
      %2005 = vst.msk [vmem:[#allocation2 + $0x17] sm:$0xff] %vm1155, %v1995
      %2006 = vst.msk [vmem:[#allocation2 + $0x1f] sm:$0xff] %vm1155, %v1997
      %2007 = vst.msk [vmem:[#allocation2 + $0x27] sm:$0xff] %vm1155, %v1103
      %2008 = vst.msk [vmem:[#allocation2 + $0x2f] sm:$0x1] %vm1175, %v1103
      %v2009 = vld [vmem:[#allocation2] sm:$0xff]
      %v2010 = vld [vmem:[#allocation2 + $0x8] sm:$0xff]
      %v2011 = vld [vmem:[#allocation2 + $0x10] sm:$0xff]
      %v2012 = vld [vmem:[#allocation2 + $0x18] sm:$0xff]
      %v2013 = vpack.c.bf16 %v2010, %v2009
      %v2014 = vpack.c.bf16 %v2012, %v2011
      %v2015 = vld [vmem:[%s3] sm:$0xf]
      %v2016 = vld [vmem:[%s3 + $0x4] sm:$0x3]
      %v2017 = vld [vmem:[#allocation2 + $0x20] sm:$0xff]
      %v2018 = vpack.c.bf16 %v2011, %v2010
      %v2019 = vpack.c.bf16 %v2017, %v2012
      %s2020 = scalar_lea.vmem %s3, 8
      %v2021 = vld [vmem:[%s2020] sm:$0xf]
      %v2022 = vld [vmem:[%s2020 + $0x4] sm:$0x3]
      %v2025 = vunpack.c.l.b16 %v2021
      %v2026 = vunpack.c.l.b16 %v2022
      %v2027 = vpack.c.b16 %v2026, %v2025
      %v2029 = vsel %vm1214, %v2018, 0
      %v2032 = vsel %vm1214, %v2019, 0
      %v2035 = vsel %vm1239, %v2027, 0
      %2037 = vmatprep.subr.bf16.mxu0 0
      %2038 = vmatpush1.bf16.msra.mxu0 %v2035
      %2039 = vmatprep.subr.bf16.mxu0 0
      %2040 = vmatpush1.bf16.msra.mxu0 0
      %2041 = vmatprep.subr.bf16.mxu0 0
      %2042 = vmatpush1.bf16.msra.mxu0 0
      %2043 = vmatprep.subr.bf16.mxu0 0
      %2044 = vmatpush1.bf16.msra.mxu0 0
      %2045 = vmatprep.subr.bf16.mxu0 0
      %2046 = vmatpush1.bf16.msra.mxu0 0
      %2047 = vmatprep.subr.bf16.mxu0 0
      %2048 = vmatpush1.bf16.msra.mxu0 0
      %2049 = vmatprep.subr.bf16.mxu0 0
      %2050 = vmatpush1.bf16.msra.mxu0 0
      %2051 = vmatprep.subr.bf16.mxu0 0
      %2052 = vmatpush1.bf16.msra.mxu0 0
      %2053 = vmatprep.subr.bf16.mxu0 0
      %2054 = vmatpush1.bf16.msra.mxu0 0
      %2055 = vmatprep.subr.bf16.mxu0 0
      %2056 = vmatpush1.bf16.msra.mxu0 0
      %2057 = vmatprep.subr.bf16.mxu0 0
      %2058 = vmatpush1.bf16.msra.mxu0 0
      %2059 = vmatprep.subr.bf16.mxu0 0
      %2060 = vmatpush1.bf16.msra.mxu0 0
      %2061 = vmatprep.subr.bf16.mxu0 0
      %2062 = vmatpush1.bf16.msra.mxu0 0
      %2063 = vmatprep.subr.bf16.mxu0 0
      %2064 = vmatpush1.bf16.msra.mxu0 0
      %2065 = vmatprep.subr.bf16.mxu0 0
      %2066 = vmatpush1.bf16.msra.mxu0 0
      %2067 = vmatprep.subr.bf16.mxu0 0
      %2068 = vmatpush1.bf16.msra.mxu0 0
      %2069 = vmatprep.mubr.bf16.mxu0 0
      %2070 = vmatmul.mubr.bf16.gmra.mrb[0].mxu0 %v2029
      %v2071 = vpop.f32.mrb[0].mxu0
      %v2072 = vadd.f32 0.0, %v2071
      %v2073 = vpop.f32.mrb[0].mxu0
      %v2074 = vpop.f32.mrb[0].mxu0
      %v2075 = vadd.f32 0.0, %v2074
      %v2076 = vpop.f32.mrb[0].mxu0
      %2077 = vmatprep.mubr.bf16.mxu0 0
      %2078 = vmatmul.mubr.bf16.gmra.mrb[0].mxu0 %v2032
      %v2079 = vpop.f32.mrb[0].mxu0
      %v2080 = vadd.f32 0.0, %v2079
      %v2081 = vpop.f32.mrb[0].mxu0
      %v2082 = vpop.f32.mrb[0].mxu0
      %v2083 = vadd.f32 0.0, %v2082
      %v2084 = vpop.f32.mrb[0].mxu0
      %2085 = vdwg.mxu0
      %v2088 = vunpack.c.l.b16 %v2015
      %v2089 = vunpack.c.l.b16 %v2016
      %v2090 = vpack.c.b16 %v2089, %v2088
      %v2092 = vsel %vm1214, %v2013, 0
      %v2095 = vsel %vm1214, %v2014, 0
      %v2098 = vsel %vm1239, %v2090, 0
      %2100 = vmatprep.subr.bf16.mxu0 0
      %2101 = vmatpush1.bf16.msra.mxu0 %v2098
      %2102 = vmatprep.subr.bf16.mxu0 0
      %2103 = vmatpush1.bf16.msra.mxu0 0
      %2104 = vmatprep.subr.bf16.mxu0 0
      %2105 = vmatpush1.bf16.msra.mxu0 0
      %2106 = vmatprep.subr.bf16.mxu0 0
      %2107 = vmatpush1.bf16.msra.mxu0 0
      %2108 = vmatprep.subr.bf16.mxu0 0
      %2109 = vmatpush1.bf16.msra.mxu0 0
      %2110 = vmatprep.subr.bf16.mxu0 0
      %2111 = vmatpush1.bf16.msra.mxu0 0
      %2112 = vmatprep.subr.bf16.mxu0 0
      %2113 = vmatpush1.bf16.msra.mxu0 0
      %2114 = vmatprep.subr.bf16.mxu0 0
      %2115 = vmatpush1.bf16.msra.mxu0 0
      %2116 = vmatprep.subr.bf16.mxu0 0
      %2117 = vmatpush1.bf16.msra.mxu0 0
      %2118 = vmatprep.subr.bf16.mxu0 0
      %2119 = vmatpush1.bf16.msra.mxu0 0
      %2120 = vmatprep.subr.bf16.mxu0 0
      %2121 = vmatpush1.bf16.msra.mxu0 0
      %2122 = vmatprep.subr.bf16.mxu0 0
      %2123 = vmatpush1.bf16.msra.mxu0 0
      %2124 = vmatprep.subr.bf16.mxu0 0
      %2125 = vmatpush1.bf16.msra.mxu0 0
      %2126 = vmatprep.subr.bf16.mxu0 0
      %2127 = vmatpush1.bf16.msra.mxu0 0
      %2128 = vmatprep.subr.bf16.mxu0 0
      %2129 = vmatpush1.bf16.msra.mxu0 0
      %2130 = vmatprep.subr.bf16.mxu0 0
      %2131 = vmatpush1.bf16.msra.mxu0 0
      %2132 = vmatprep.mubr.bf16.mxu0 0
      %2133 = vmatmul.mubr.bf16.gmra.mrb[0].mxu0 %v2092
      %v2134 = vpop.f32.mrb[0].mxu0
      %v2135 = vadd.f32 %v2072, %v2134
      %v2136 = vpop.f32.mrb[0].mxu0
      %v2137 = vpop.f32.mrb[0].mxu0
      %v2138 = vadd.f32 %v2075, %v2137
      %v2139 = vpop.f32.mrb[0].mxu0
      %2140 = vmatprep.mubr.bf16.mxu0 0
      %2141 = vmatmul.mubr.bf16.gmra.mrb[0].mxu0 %v2095
      %v2142 = vpop.f32.mrb[0].mxu0
      %v2143 = vadd.f32 %v2080, %v2142
      %v2144 = vpop.f32.mrb[0].mxu0
      %v2145 = vpop.f32.mrb[0].mxu0
      %v2146 = vadd.f32 %v2083, %v2145
      %v2147 = vpop.f32.mrb[0].mxu0
      %2148 = vdwg.mxu0
      %v2149 = vld [vmem:[#allocation2 + $0x10] sm:$0xff]
      %v2150 = vld [vmem:[#allocation2 + $0x18] sm:$0xff]
      %v2151 = vld [vmem:[#allocation2 + $0x20] sm:$0xff]
      %v2152 = vld [vmem:[#allocation2 + $0x28] sm:$0xff]
      %v2153 = vpack.c.bf16 %v2150, %v2149
      %v2154 = vpack.c.bf16 %v2152, %v2151
      %s2155 = scalar_lea.vmem %s3, 16
      %v2156 = vld [vmem:[%s2155] sm:$0xf]
      %v2157 = vld [vmem:[%s2155 + $0x4] sm:$0x3]
      %v2160 = vunpack.c.l.b16 %v2156
      %v2161 = vunpack.c.l.b16 %v2157
      %v2162 = vpack.c.b16 %v2161, %v2160
      %v2164 = vsel %vm1214, %v2153, 0
      %v2167 = vsel %vm1214, %v2154, 0
      %v2170 = vsel %vm1239, %v2162, 0
      %2172 = vmatprep.subr.bf16.mxu0 0
      %2173 = vmatpush1.bf16.msra.mxu0 %v2170
      %2174 = vmatprep.subr.bf16.mxu0 0
      %2175 = vmatpush1.bf16.msra.mxu0 0
      %2176 = vmatprep.subr.bf16.mxu0 0
      %2177 = vmatpush1.bf16.msra.mxu0 0
      %2178 = vmatprep.subr.bf16.mxu0 0
      %2179 = vmatpush1.bf16.msra.mxu0 0
      %2180 = vmatprep.subr.bf16.mxu0 0
      %2181 = vmatpush1.bf16.msra.mxu0 0
      %2182 = vmatprep.subr.bf16.mxu0 0
      %2183 = vmatpush1.bf16.msra.mxu0 0
      %2184 = vmatprep.subr.bf16.mxu0 0
      %2185 = vmatpush1.bf16.msra.mxu0 0
      %2186 = vmatprep.subr.bf16.mxu0 0
      %2187 = vmatpush1.bf16.msra.mxu0 0
      %2188 = vmatprep.subr.bf16.mxu0 0
      %2189 = vmatpush1.bf16.msra.mxu0 0
      %2190 = vmatprep.subr.bf16.mxu0 0
      %2191 = vmatpush1.bf16.msra.mxu0 0
      %2192 = vmatprep.subr.bf16.mxu0 0
      %2193 = vmatpush1.bf16.msra.mxu0 0
      %2194 = vmatprep.subr.bf16.mxu0 0
      %2195 = vmatpush1.bf16.msra.mxu0 0
      %2196 = vmatprep.subr.bf16.mxu0 0
      %2197 = vmatpush1.bf16.msra.mxu0 0
      %2198 = vmatprep.subr.bf16.mxu0 0
      %2199 = vmatpush1.bf16.msra.mxu0 0
      %2200 = vmatprep.subr.bf16.mxu0 0
      %2201 = vmatpush1.bf16.msra.mxu0 0
      %2202 = vmatprep.subr.bf16.mxu0 0
      %2203 = vmatpush1.bf16.msra.mxu0 0
      %2204 = vmatprep.mubr.bf16.mxu0 0
      %2205 = vmatmul.mubr.bf16.gmra.mrb[0].mxu0 %v2164
      %v2206 = vpop.f32.mrb[0].mxu0
      %v2207 = vadd.f32 0.0, %v2206
      %v2208 = vpop.f32.mrb[0].mxu0
      %v2209 = vpop.f32.mrb[0].mxu0
      %v2210 = vadd.f32 0.0, %v2209
      %v2211 = vpop.f32.mrb[0].mxu0
      %2212 = vmatprep.mubr.bf16.mxu0 0
      %2213 = vmatmul.mubr.bf16.gmra.mrb[0].mxu0 %v2167
      %v2214 = vpop.f32.mrb[0].mxu0
      %v2215 = vadd.f32 0.0, %v2214
      %v2216 = vpop.f32.mrb[0].mxu0
      %v2217 = vpop.f32.mrb[0].mxu0
      %v2218 = vadd.f32 0.0, %v2217
      %v2219 = vpop.f32.mrb[0].mxu0
      %2220 = vdwg.mxu0
      %v2221 = vadd.f32 %v2135, %v2207
      %v2222 = vadd.f32 %v2138, %v2210
      %v2223 = vadd.f32 %v2143, %v2215
      %v2224 = vadd.f32 %v2146, %v2218
      %vm2225 = vcmp.ge.f32.partialorder %v2221, 0.0
      %vm2226 = vcmp.ge.f32.partialorder %v2222, 0.0
      %vm2227 = vcmp.ge.f32.partialorder %v2223, 0.0
      %vm2228 = vcmp.ge.f32.partialorder %v2224, 0.0
      %v2229 = vmul.f32 %v2221, 0.2
      %v2230 = vmul.f32 %v2222, 0.2
      %v2231 = vmul.f32 %v2223, 0.2
      %v2232 = vmul.f32 %v2224, 0.2
      %v2233 = vsel %vm2225, %v2221, %v2229
      %v2234 = vsel %vm2226, %v2222, %v2230
      %v2235 = vsel %vm2227, %v2223, %v2231
      %v2236 = vsel %vm2228, %v2224, %v2232
      %v2237 = vadd.f32 %v2233, %v2234
      %v2238 = vadd.f32 %v2235, %v2236
      %v2239 = vld [vmem:[%s5] sm:$0xff]
      %vm2240 = vcmask 64512
      %v2242 = vsel %vm2240, %v2239, 0
      %2244 = vmatprep.subr.mxu0 0.0
      %2245 = vmatpush1.msra.mxu0 %v2237
      %2246 = vmatprep.subr.mxu0 0.0
      %2247 = vmatpush1.msra.mxu0 0.0
      %2248 = vmatprep.subr.mxu0 0.0
      %2249 = vmatpush1.msra.mxu0 0.0
      %2250 = vmatprep.subr.mxu0 0.0
      %2251 = vmatpush1.msra.mxu0 0.0
      %2252 = vmatprep.subr.mxu0 0.0
      %2253 = vmatpush1.msra.mxu0 0.0
      %2254 = vmatprep.subr.mxu0 0.0
      %2255 = vmatpush1.msra.mxu0 0.0
      %2256 = vmatprep.subr.mxu0 0.0
      %2257 = vmatpush1.msra.mxu0 0.0
      %2258 = vmatprep.subr.mxu0 0.0
      %2259 = vmatpush1.msra.mxu0 0.0
      %2260 = vmatprep.subr.mxu0 0.0
      %2261 = vmatpush1.msra.mxu0 0.0
      %2262 = vmatprep.subr.mxu0 0.0
      %2263 = vmatpush1.msra.mxu0 0.0
      %2264 = vmatprep.subr.mxu0 0.0
      %2265 = vmatpush1.msra.mxu0 0.0
      %2266 = vmatprep.subr.mxu0 0.0
      %2267 = vmatpush1.msra.mxu0 0.0
      %2268 = vmatprep.subr.mxu0 0.0
      %2269 = vmatpush1.msra.mxu0 0.0
      %2270 = vmatprep.subr.mxu0 0.0
      %2271 = vmatpush1.msra.mxu0 0.0
      %2272 = vmatprep.subr.mxu0 0.0
      %2273 = vmatpush1.msra.mxu0 0.0
      %2274 = vmatprep.subr.mxu0 0.0
      %2275 = vmatpush1.msra.mxu0 0.0
      %2276 = vmatprep.subr.mxu0 0.0
      %2277 = vmatpush1.msra.mxu0 0.0
      %2278 = vmatprep.subr.mxu0 0.0
      %2279 = vmatpush1.msra.mxu0 0.0
      %2280 = vmatprep.subr.mxu0 0.0
      %2281 = vmatpush1.msra.mxu0 0.0
      %2282 = vmatprep.subr.mxu0 0.0
      %2283 = vmatpush1.msra.mxu0 0.0
      %2284 = vmatprep.subr.mxu0 0.0
      %2285 = vmatpush1.msra.mxu0 0.0
      %2286 = vmatprep.subr.mxu0 0.0
      %2287 = vmatpush1.msra.mxu0 0.0
      %2288 = vmatprep.subr.mxu0 0.0
      %2289 = vmatpush1.msra.mxu0 0.0
      %2290 = vmatprep.subr.mxu0 0.0
      %2291 = vmatpush1.msra.mxu0 0.0
      %2292 = vmatprep.subr.mxu0 0.0
      %2293 = vmatpush1.msra.mxu0 0.0
      %2294 = vmatprep.subr.mxu0 0.0
      %2295 = vmatpush1.msra.mxu0 0.0
      %2296 = vmatprep.subr.mxu0 0.0
      %2297 = vmatpush1.msra.mxu0 0.0
      %2298 = vmatprep.subr.mxu0 0.0
      %2299 = vmatpush1.msra.mxu0 0.0
      %2300 = vmatprep.subr.mxu0 0.0
      %2301 = vmatpush1.msra.mxu0 0.0
      %2302 = vmatprep.subr.mxu0 0.0
      %2303 = vmatpush1.msra.mxu0 0.0
      %2304 = vmatprep.subr.mxu0 0.0
      %2305 = vmatpush1.msra.mxu0 0.0
      %2306 = vmatprep.subr.mxu0 0.0
      %2307 = vmatpush1.msra.mxu0 0.0
      %2308 = vmatprep.mubr.f32.mxu0 0.0
      %2309 = vmatmul.mubr.f32.gmra.mrb[0].mxu0 %v2242
      %v2310 = vpop.f32.mrb[0].mxu0
      %v2311 = vadd.f32 0.0, %v2310
      %v2312 = vpop.f32.mrb[0].mxu0
      %2313 = vdwg.mxu0
      %2314 = vmatprep.subr.mxu0 0.0
      %2315 = vmatpush1.msra.mxu0 %v2238
      %2316 = vmatprep.subr.mxu0 0.0
      %2317 = vmatpush1.msra.mxu0 0.0
      %2318 = vmatprep.subr.mxu0 0.0
      %2319 = vmatpush1.msra.mxu0 0.0
      %2320 = vmatprep.subr.mxu0 0.0
      %2321 = vmatpush1.msra.mxu0 0.0
      %2322 = vmatprep.subr.mxu0 0.0
      %2323 = vmatpush1.msra.mxu0 0.0
      %2324 = vmatprep.subr.mxu0 0.0
      %2325 = vmatpush1.msra.mxu0 0.0
      %2326 = vmatprep.subr.mxu0 0.0
      %2327 = vmatpush1.msra.mxu0 0.0
      %2328 = vmatprep.subr.mxu0 0.0
      %2329 = vmatpush1.msra.mxu0 0.0
      %2330 = vmatprep.subr.mxu0 0.0
      %2331 = vmatpush1.msra.mxu0 0.0
      %2332 = vmatprep.subr.mxu0 0.0
      %2333 = vmatpush1.msra.mxu0 0.0
      %2334 = vmatprep.subr.mxu0 0.0
      %2335 = vmatpush1.msra.mxu0 0.0
      %2336 = vmatprep.subr.mxu0 0.0
      %2337 = vmatpush1.msra.mxu0 0.0
      %2338 = vmatprep.subr.mxu0 0.0
      %2339 = vmatpush1.msra.mxu0 0.0
      %2340 = vmatprep.subr.mxu0 0.0
      %2341 = vmatpush1.msra.mxu0 0.0
      %2342 = vmatprep.subr.mxu0 0.0
      %2343 = vmatpush1.msra.mxu0 0.0
      %2344 = vmatprep.subr.mxu0 0.0
      %2345 = vmatpush1.msra.mxu0 0.0
      %2346 = vmatprep.subr.mxu0 0.0
      %2347 = vmatpush1.msra.mxu0 0.0
      %2348 = vmatprep.subr.mxu0 0.0
      %2349 = vmatpush1.msra.mxu0 0.0
      %2350 = vmatprep.subr.mxu0 0.0
      %2351 = vmatpush1.msra.mxu0 0.0
      %2352 = vmatprep.subr.mxu0 0.0
      %2353 = vmatpush1.msra.mxu0 0.0
      %2354 = vmatprep.subr.mxu0 0.0
      %2355 = vmatpush1.msra.mxu0 0.0
      %2356 = vmatprep.subr.mxu0 0.0
      %2357 = vmatpush1.msra.mxu0 0.0
      %2358 = vmatprep.subr.mxu0 0.0
      %2359 = vmatpush1.msra.mxu0 0.0
      %2360 = vmatprep.subr.mxu0 0.0
      %2361 = vmatpush1.msra.mxu0 0.0
      %2362 = vmatprep.subr.mxu0 0.0
      %2363 = vmatpush1.msra.mxu0 0.0
      %2364 = vmatprep.subr.mxu0 0.0
      %2365 = vmatpush1.msra.mxu0 0.0
      %2366 = vmatprep.subr.mxu0 0.0
      %2367 = vmatpush1.msra.mxu0 0.0
      %2368 = vmatprep.subr.mxu0 0.0
      %2369 = vmatpush1.msra.mxu0 0.0
      %2370 = vmatprep.subr.mxu0 0.0
      %2371 = vmatpush1.msra.mxu0 0.0
      %2372 = vmatprep.subr.mxu0 0.0
      %2373 = vmatpush1.msra.mxu0 0.0
      %2374 = vmatprep.subr.mxu0 0.0
      %2375 = vmatpush1.msra.mxu0 0.0
      %2376 = vmatprep.subr.mxu0 0.0
      %2377 = vmatpush1.msra.mxu0 0.0
      %2378 = vmatprep.mubr.f32.mxu0 0.0
      %2379 = vmatmul.mubr.f32.gmra.mrb[0].mxu0 %v2242
      %v2380 = vpop.f32.mrb[0].mxu0
      %v2381 = vadd.f32 0.0, %v2380
      %v2382 = vpop.f32.mrb[0].mxu0
      %2383 = vdwg.mxu0
      %vm2384 = vcmask 64519
      %2385 = vst.msk [vmem:[#allocation2 - $0x7] sm:$0x80] %vm2384, 0.0
      %2386 = vst.msk [vmem:[#allocation2 + $0x1] sm:$0xff] %vm2240, 0.0
      %2387 = vst.msk [vmem:[#allocation2 + $0x9] sm:$0xff] %vm2240, %v2311
      %2388 = vst.msk [vmem:[#allocation2 + $0x11] sm:$0xff] %vm2240, %v2381
      %vm2389 = vcmask 63488
      %2390 = vst.msk [vmem:[#allocation2 + $0x19] sm:$0x7f] %vm2389, 0.0
      %2393 = vrot.lane.b32.xlu0 %v2311, 8
      %v2394 = vpop.permute.xlu0 %2393
      %2395 = vrot.lane.b32.xlu0 %v2381, 8
      %v2396 = vpop.permute.xlu0 %2395
      %vm2399 = vcmask 130112
      %2400 = vst.msk [vmem:[#allocation2] sm:$0xff] %vm2399, %v1103
      %2401 = vst.msk [vmem:[#allocation2 + $0x8] sm:$0xff] %vm2399, %v2394
      %2402 = vst.msk [vmem:[#allocation2 + $0x10] sm:$0xff] %vm2399, %v2396
      %2403 = vst.msk [vmem:[#allocation2 + $0x18] sm:$0xff] %vm2399, %v1103
      %2404 = vrot.lane.b32.xlu0 0.0, 16
      %v2405 = vpop.permute.xlu0 %2404
      %2406 = vrot.lane.b32.xlu0 %v2311, 16
      %v2407 = vpop.permute.xlu0 %2406
      %2408 = vrot.lane.b32.xlu0 %v2381, 16
      %v2409 = vpop.permute.xlu0 %2408
      %vm2413 = vcmask 195713
      %2414 = vst.msk [vmem:[#allocation2 - $0x1] sm:$0xfe] %vm2413, %v2405
      %vm2415 = vcmask 195712
      %2416 = vst.msk [vmem:[#allocation2 + $0x7] sm:$0xff] %vm2415, %v2407
      %2417 = vst.msk [vmem:[#allocation2 + $0xf] sm:$0xff] %vm2415, %v2409
      %2418 = vst.msk [vmem:[#allocation2 + $0x17] sm:$0xff] %vm2415, %v2405
      %vm2419 = vcmask 188544
      %2420 = vst.msk [vmem:[#allocation2 + $0x1f] sm:$0x1] %vm2419, %v2405
      %v2421 = vld [vmem:[#allocation2] sm:$0xff]
      %v2422 = vld [vmem:[#allocation2 + $0x8] sm:$0xff]
      %v2423 = vpack.c.bf16 %v2422, %v2421
      %v2424 = vld [vmem:[%s6] sm:$0xf]
      %v2425 = vld [vmem:[%s6 + $0x4] sm:$0xf]
      %v2426 = vld [vmem:[%s6 + $0x8] sm:$0xf]
      %v2427 = vld [vmem:[#allocation2 + $0x10] sm:$0xff]
      %v2428 = vpack.c.bf16 %v2427, %v2422
      %s2429 = scalar_lea.vmem %s6, 12
      %v2430 = vld [vmem:[%s2429] sm:$0xf]
      %v2431 = vld [vmem:[%s2429 + $0x4] sm:$0xf]
      %v2432 = vld [vmem:[%s2429 + $0x8] sm:$0xf]
      %v2436 = vunpack.c.l.b16 %v2430
      %v2437 = vunpack.c.l.b16 %v2431
      %v2438 = vunpack.c.l.b16 %v2432
      %v2439 = vpack.c.b16 %v2437, %v2436
      %v2440 = vpack.c.b16 %v2438, %v2438
      %v2443 = vsel %vm382, %v2428, 0
      %vm2445 = vcmask 1043456
      %v2447 = vsel %vm2445, %v2440, 0
      %2449 = vmatprep.subr.bf16.mxu0 0
      %2450 = vmatpush1.bf16.msra.mxu0 %v2439
      %2451 = vmatprep.subr.bf16.mxu0 0
      %2452 = vmatpush1.bf16.msra.mxu0 %v2447
      %2453 = vmatprep.subr.bf16.mxu0 0
      %2454 = vmatpush1.bf16.msra.mxu0 0
      %2455 = vmatprep.subr.bf16.mxu0 0
      %2456 = vmatpush1.bf16.msra.mxu0 0
      %2457 = vmatprep.subr.bf16.mxu0 0
      %2458 = vmatpush1.bf16.msra.mxu0 0
      %2459 = vmatprep.subr.bf16.mxu0 0
      %2460 = vmatpush1.bf16.msra.mxu0 0
      %2461 = vmatprep.subr.bf16.mxu0 0
      %2462 = vmatpush1.bf16.msra.mxu0 0
      %2463 = vmatprep.subr.bf16.mxu0 0
      %2464 = vmatpush1.bf16.msra.mxu0 0
      %2465 = vmatprep.subr.bf16.mxu0 0
      %2466 = vmatpush1.bf16.msra.mxu0 0
      %2467 = vmatprep.subr.bf16.mxu0 0
      %2468 = vmatpush1.bf16.msra.mxu0 0
      %2469 = vmatprep.subr.bf16.mxu0 0
      %2470 = vmatpush1.bf16.msra.mxu0 0
      %2471 = vmatprep.subr.bf16.mxu0 0
      %2472 = vmatpush1.bf16.msra.mxu0 0
      %2473 = vmatprep.subr.bf16.mxu0 0
      %2474 = vmatpush1.bf16.msra.mxu0 0
      %2475 = vmatprep.subr.bf16.mxu0 0
      %2476 = vmatpush1.bf16.msra.mxu0 0
      %2477 = vmatprep.subr.bf16.mxu0 0
      %2478 = vmatpush1.bf16.msra.mxu0 0
      %2479 = vmatprep.subr.bf16.mxu0 0
      %2480 = vmatpush1.bf16.msra.mxu0 0
      %2481 = vmatprep.mubr.bf16.mxu0 0
      %2482 = vmatmul.mubr.bf16.gmra.mrb[0].mxu0 %v2443
      %v2483 = vpop.f32.mrb[0].mxu0
      %v2484 = vadd.f32 0.0, %v2483
      %v2485 = vpop.f32.mrb[0].mxu0
      %v2486 = vpop.f32.mrb[0].mxu0
      %v2487 = vadd.f32 0.0, %v2486
      %v2488 = vpop.f32.mrb[0].mxu0
      %2489 = vdwg.mxu0
      %v2493 = vunpack.c.l.b16 %v2424
      %v2494 = vunpack.c.l.b16 %v2425
      %v2495 = vunpack.c.l.b16 %v2426
      %v2496 = vpack.c.b16 %v2494, %v2493
      %v2497 = vpack.c.b16 %v2495, %v2495
      %v2500 = vsel %vm382, %v2423, 0
      %v2503 = vsel %vm2445, %v2497, 0
      %2505 = vmatprep.subr.bf16.mxu0 0
      %2506 = vmatpush1.bf16.msra.mxu0 %v2496
      %2507 = vmatprep.subr.bf16.mxu0 0
      %2508 = vmatpush1.bf16.msra.mxu0 %v2503
      %2509 = vmatprep.subr.bf16.mxu0 0
      %2510 = vmatpush1.bf16.msra.mxu0 0
      %2511 = vmatprep.subr.bf16.mxu0 0
      %2512 = vmatpush1.bf16.msra.mxu0 0
      %2513 = vmatprep.subr.bf16.mxu0 0
      %2514 = vmatpush1.bf16.msra.mxu0 0
      %2515 = vmatprep.subr.bf16.mxu0 0
      %2516 = vmatpush1.bf16.msra.mxu0 0
      %2517 = vmatprep.subr.bf16.mxu0 0
      %2518 = vmatpush1.bf16.msra.mxu0 0
      %2519 = vmatprep.subr.bf16.mxu0 0
      %2520 = vmatpush1.bf16.msra.mxu0 0
      %2521 = vmatprep.subr.bf16.mxu0 0
      %2522 = vmatpush1.bf16.msra.mxu0 0
      %2523 = vmatprep.subr.bf16.mxu0 0
      %2524 = vmatpush1.bf16.msra.mxu0 0
      %2525 = vmatprep.subr.bf16.mxu0 0
      %2526 = vmatpush1.bf16.msra.mxu0 0
      %2527 = vmatprep.subr.bf16.mxu0 0
      %2528 = vmatpush1.bf16.msra.mxu0 0
      %2529 = vmatprep.subr.bf16.mxu0 0
      %2530 = vmatpush1.bf16.msra.mxu0 0
      %2531 = vmatprep.subr.bf16.mxu0 0
      %2532 = vmatpush1.bf16.msra.mxu0 0
      %2533 = vmatprep.subr.bf16.mxu0 0
      %2534 = vmatpush1.bf16.msra.mxu0 0
      %2535 = vmatprep.subr.bf16.mxu0 0
      %2536 = vmatpush1.bf16.msra.mxu0 0
      %2537 = vmatprep.mubr.bf16.mxu0 0
      %2538 = vmatmul.mubr.bf16.gmra.mrb[0].mxu0 %v2500
      %v2539 = vpop.f32.mrb[0].mxu0
      %v2540 = vadd.f32 %v2484, %v2539
      %v2541 = vpop.f32.mrb[0].mxu0
      %v2542 = vpop.f32.mrb[0].mxu0
      %v2543 = vadd.f32 %v2487, %v2542
      %v2544 = vpop.f32.mrb[0].mxu0
      %2545 = vdwg.mxu0
      %v2546 = vld [vmem:[#allocation2 + $0x10] sm:$0xff]
      %v2547 = vld [vmem:[#allocation2 + $0x18] sm:$0xff]
      %v2548 = vpack.c.bf16 %v2547, %v2546
      %s2549 = scalar_lea.vmem %s6, 24
      %v2550 = vld [vmem:[%s2549] sm:$0xf]
      %v2551 = vld [vmem:[%s2549 + $0x4] sm:$0xf]
      %v2552 = vld [vmem:[%s2549 + $0x8] sm:$0xf]
      %v2556 = vunpack.c.l.b16 %v2550
      %v2557 = vunpack.c.l.b16 %v2551
      %v2558 = vunpack.c.l.b16 %v2552
      %v2559 = vpack.c.b16 %v2557, %v2556
      %v2560 = vpack.c.b16 %v2558, %v2558
      %v2563 = vsel %vm382, %v2548, 0
      %v2566 = vsel %vm2445, %v2560, 0
      %2568 = vmatprep.subr.bf16.mxu0 0
      %2569 = vmatpush1.bf16.msra.mxu0 %v2559
      %2570 = vmatprep.subr.bf16.mxu0 0
      %2571 = vmatpush1.bf16.msra.mxu0 %v2566
      %2572 = vmatprep.subr.bf16.mxu0 0
      %2573 = vmatpush1.bf16.msra.mxu0 0
      %2574 = vmatprep.subr.bf16.mxu0 0
      %2575 = vmatpush1.bf16.msra.mxu0 0
      %2576 = vmatprep.subr.bf16.mxu0 0
      %2577 = vmatpush1.bf16.msra.mxu0 0
      %2578 = vmatprep.subr.bf16.mxu0 0
      %2579 = vmatpush1.bf16.msra.mxu0 0
      %2580 = vmatprep.subr.bf16.mxu0 0
      %2581 = vmatpush1.bf16.msra.mxu0 0
      %2582 = vmatprep.subr.bf16.mxu0 0
      %2583 = vmatpush1.bf16.msra.mxu0 0
      %2584 = vmatprep.subr.bf16.mxu0 0
      %2585 = vmatpush1.bf16.msra.mxu0 0
      %2586 = vmatprep.subr.bf16.mxu0 0
      %2587 = vmatpush1.bf16.msra.mxu0 0
      %2588 = vmatprep.subr.bf16.mxu0 0
      %2589 = vmatpush1.bf16.msra.mxu0 0
      %2590 = vmatprep.subr.bf16.mxu0 0
      %2591 = vmatpush1.bf16.msra.mxu0 0
      %2592 = vmatprep.subr.bf16.mxu0 0
      %2593 = vmatpush1.bf16.msra.mxu0 0
      %2594 = vmatprep.subr.bf16.mxu0 0
      %2595 = vmatpush1.bf16.msra.mxu0 0
      %2596 = vmatprep.subr.bf16.mxu0 0
      %2597 = vmatpush1.bf16.msra.mxu0 0
      %2598 = vmatprep.subr.bf16.mxu0 0
      %2599 = vmatpush1.bf16.msra.mxu0 0
      %2600 = vmatprep.mubr.bf16.mxu0 0
      %2601 = vmatmul.mubr.bf16.gmra.mrb[0].mxu0 %v2563
      %v2602 = vpop.f32.mrb[0].mxu0
      %v2603 = vadd.f32 0.0, %v2602
      %v2604 = vpop.f32.mrb[0].mxu0
      %v2605 = vpop.f32.mrb[0].mxu0
      %v2606 = vadd.f32 0.0, %v2605
      %v2607 = vpop.f32.mrb[0].mxu0
      %2608 = vdwg.mxu0
      %v2609 = vadd.f32 %v2540, %v2603
      %v2610 = vadd.f32 %v2543, %v2606
      %s2611 = sld [smem:[#allocation3]]
      %v2612 = vstv %s2611
      %v2613 = vadd.f32 %v2609, %v2612
      %v2614 = vadd.f32 %v2610, %v2612
      %vm2615 = vcmask 7168
      %2616 = vst.msk [vmem:[%s306] sm:$0xff] %vm2615, %v2613
      %2617 = vst.msk [vmem:[%s306 + $0x8] sm:$0xff] %vm2615, %v2614
      %p2618 = scmp.lt.s32.totalorder %s20, 1
      %s2619 = scalar_select %p2618, %s20, 1
      %s2620 = smul.addr %s2619, 2
      %s2621 = smul.addr %s2620, 8
      %s2622 = scalar_lea.vmem %s8, %s2621
      // Predicated region
      $region53: #{_lambda_.3} parent=51 // pred_check
        %p2623 = pneg %p211
      $region54: #{_lambda_.3} parent=51 // pred_check_branch
        %2625 = sbr.rel (%p2623) target = $region56
      $region55: #{_lambda_.3} parent=51 // pred_region
        _
      $region56: #{_lambda_.3} parent=51 // pred_fallthru
        _
    $region52: #{_lambda_.3} parent=5 // pred_fallthru
      _
    %p2626 = scmp.le.s32.totalorder 2, %s15
    // Predicated region
    $region57: #{_lambda_.3} parent=5 // pred_check
      %p2627 = pneg %p2626
    $region58: #{_lambda_.3} parent=5 // pred_check_branch
      %2629 = sbr.rel (%p2627) target = $region60
    $region59: #{_lambda_.3} parent=5 // pred_region
      %s2630 = ssub.s32 %s15, 2
      // Predicated region
      $region61: #{_lambda_.3} parent=59 // pred_check
        %p2631 = pneg %p217
      $region62: #{_lambda_.3} parent=59 // pred_check_branch
        %2633 = sbr.rel (%p2631) target = $region64
      $region63: #{_lambda_.3} parent=59 // pred_region
        %p2634 = scmp.lt.s32.totalorder %s21, 1
        %s2635 = scalar_select %p2634, %s21, 1
        %s2636 = smul.addr %s2635, 2
        %s2637 = smul.addr %s2636, 8
        %s2638 = scalar_lea.vmem %s8, %s2637
      $region64: #{_lambda_.3} parent=59 // pred_fallthru
        _
    $region60: #{_lambda_.3} parent=5 // pred_fallthru
      _
  $region6: #{_lambda_.3} parent=0 // loop_footer
    %s19 = sadd.s32 1, %s15
  $region7: #{_lambda_.3} parent=0 // loop_footer_branch
    %14 = sbr.rel target = $region3
  $region8: #{_lambda_.3} parent=0 // loop_exit
    _

// kernel: _lambda_.2
$region0: #{_lambda_.2}
  #allocation0 [shape = 'u32[]', space=smem, size = 0x4, offset = 0x4, fixed_abs, tag = 'smem constant byte address 0x4 - core index']
  #allocation1 [shape = 'u32[144,128]{1,0:T(1,128)}', space=vmem, size = 0x12000, scoped, tag = 'internal scratch']
  #allocation2 [shape = 'f32[432,96]{1,0:T(8,128)}', space=vmem, size = 0x36000, scoped, tag = 'scratch operand']
  #allocation3 [shape = 'f32[1]{0:T(128)S(6)}', space=smem, size = 0x200, scoped, tag = 'scoped memory for _lambda_.2']
  %s0 = inlined_call_operand.vmem [shape: f32[2,448,4], index: 0, kind: input, shape index: {}]
  %s1 = inlined_call_operand.vmem [shape: bf16[3,12,8], index: 1, kind: input, shape index: {}]
  %s2 = inlined_call_operand.vmem [shape: bf16[3,24,16], index: 2, kind: input, shape index: {}]
  %s3 = inlined_call_operand.vmem [shape: bf16[3,48,32], index: 3, kind: input, shape index: {}]
  %s4 = inlined_call_operand.vmem [shape: f32[16,24], index: 4, kind: input, shape index: {}]
  %s5 = inlined_call_operand.vmem [shape: f32[8,16], index: 5, kind: input, shape index: {}]
  %s6 = inlined_call_operand.vmem [shape: f32[8,8], index: 6, kind: input, shape index: {}]
  %s7 = inlined_call_operand.vmem [shape: bf16[3,96,1], index: 7, kind: input, shape index: {}]
  %s8 = inlined_call_operand.<no memory space> [shape: f32[1], index: 8, kind: input, shape index: {}]
  %s9 = inlined_call_operand.vmem [shape: f32[2,16,1], index: 9, kind: output, shape index: {}]
  %s10 = sld [smem:[#allocation0]]
  $region69: #{_lambda_.2} parent=0
    _
  %s12 = ssub.s32 1, %s10
  %s13 = scalar_select 0, %s12, %s10
  %14 = sst [smem:[#allocation3]] %s8
  loop: start=0, step=1, limit=4
  $region2: #{_lambda_.2} parent=0 // loop_pre_header
    _
  $region3: #{_lambda_.2} parent=0 // loop_header
    %s16 = sphi 0, %s20
    %p17 = scmp.ge.s32.totalorder %s16, 4
    %s26 = sphi 0, %s28
    %s29 = sphi 0, %s26
    %s30 = sphi 0, %s29
    %s46 = sphi 0, %s30
    %s50 = sphi 0, %s50
    %s52 = sphi 0, %s50
    %s53 = sphi 0, %s52
    %s67 = sphi 0, %s53
    %s71 = sphi 0, %s71
    %s73 = sphi 0, %s71
    %s74 = sphi 0, %s73
    %s88 = sphi 0, %s74
    %s92 = sphi 0, %s92
    %s94 = sphi 0, %s92
    %s95 = sphi 0, %s94
    %s109 = sphi 0, %s95
    %s113 = sphi 0, %s113
    %s115 = sphi 0, %s113
    %s116 = sphi 0, %s115
    %s130 = sphi 0, %s116
    %s134 = sphi 0, %s134
    %s136 = sphi 0, %s134
    %s137 = sphi 0, %s136
    %s151 = sphi 0, %s137
    %s155 = sphi 0, %s155
    %s157 = sphi 0, %s155
    %s158 = sphi 0, %s157
    %s172 = sphi 0, %s158
    %s176 = sphi 0, %s176
    %s178 = sphi 0, %s176
    %s179 = sphi 0, %s178
    %s193 = sphi 0, %s179
    %s197 = sphi 0, %s197
    %s199 = sphi 0, %s197
    %s200 = sphi 0, %s199
    %s214 = sphi 0, %s200
    %s220 = sphi 0, %s222
    %s223 = sphi 0, %s220
    %s224 = sphi 0, %s223
    %s240 = sphi 0, %s224
  $region4: #{_lambda_.2} parent=0 // loop_header_branch
    %19 = sbr.rel (%p17) target = $region8
  $region5: #{_lambda_.2} parent=0 // loop_body
    %s21 = ssub.s32 %s16, 1
    %s22 = ssub.s32 %s16, 2
    %s23 = sadd.s32 %s16, 1
    %s24 = ssub.s32 %s16, %s23
    %p25 = scmp.eq.s32.totalorder %s24, 0
    %s27 = sadd.s32 %s26, 1
    %s28 = scalar_select %p25, %s26, %s27
    %p31 = pneg %p25
    %p32 = scmp.eq.s32.totalorder %s16, 1
    %p33 = por %p31, %p32
    %p34 = scmp.ne.s32.totalorder %s26, %s29
    %p35 = scmp.eq.s32.totalorder %s16, 0
    %p36 = por %p34, %p35
    %p37 = scmp.ne.s32.totalorder %s26, %s29
    %p38 = scmp.eq.s32.totalorder %s21, 1
    %p39 = por %p37, %p38
    %p40 = scmp.ne.s32.totalorder %s29, %s30
    %p41 = scmp.eq.s32.totalorder %s21, 0
    %p42 = por %p40, %p41
    %p43 = scmp.ne.s32.totalorder %s29, %s30
    %p44 = scmp.eq.s32.totalorder %s22, 1
    %p45 = por %p43, %p44
    %p47 = scmp.ne.s32.totalorder %s30, %s46
    %p48 = scmp.eq.s32.totalorder %s22, 0
    %p49 = por %p47, %p48
    %s51 = sadd.s32 %s50, 1
    %p54 = scmp.eq.s32.totalorder %s16, 1
    %p55 = scmp.ne.s32.totalorder %s50, %s52
    %p56 = scmp.eq.s32.totalorder %s16, 0
    %p57 = por %p55, %p56
    %p58 = scmp.ne.s32.totalorder %s50, %s52
    %p59 = scmp.eq.s32.totalorder %s21, 1
    %p60 = por %p58, %p59
    %p61 = scmp.ne.s32.totalorder %s52, %s53
    %p62 = scmp.eq.s32.totalorder %s21, 0
    %p63 = por %p61, %p62
    %p64 = scmp.ne.s32.totalorder %s52, %s53
    %p65 = scmp.eq.s32.totalorder %s22, 1
    %p66 = por %p64, %p65
    %p68 = scmp.ne.s32.totalorder %s53, %s67
    %p69 = scmp.eq.s32.totalorder %s22, 0
    %p70 = por %p68, %p69
    %s72 = sadd.s32 %s71, 1
    %p75 = scmp.eq.s32.totalorder %s16, 1
    %p76 = scmp.ne.s32.totalorder %s71, %s73
    %p77 = scmp.eq.s32.totalorder %s16, 0
    %p78 = por %p76, %p77
    %p79 = scmp.ne.s32.totalorder %s71, %s73
    %p80 = scmp.eq.s32.totalorder %s21, 1
    %p81 = por %p79, %p80
    %p82 = scmp.ne.s32.totalorder %s73, %s74
    %p83 = scmp.eq.s32.totalorder %s21, 0
    %p84 = por %p82, %p83
    %p85 = scmp.ne.s32.totalorder %s73, %s74
    %p86 = scmp.eq.s32.totalorder %s22, 1
    %p87 = por %p85, %p86
    %p89 = scmp.ne.s32.totalorder %s74, %s88
    %p90 = scmp.eq.s32.totalorder %s22, 0
    %p91 = por %p89, %p90
    %s93 = sadd.s32 %s92, 1
    %p96 = scmp.eq.s32.totalorder %s16, 1
    %p97 = scmp.ne.s32.totalorder %s92, %s94
    %p98 = scmp.eq.s32.totalorder %s16, 0
    %p99 = por %p97, %p98
    %p100 = scmp.ne.s32.totalorder %s92, %s94
    %p101 = scmp.eq.s32.totalorder %s21, 1
    %p102 = por %p100, %p101
    %p103 = scmp.ne.s32.totalorder %s94, %s95
    %p104 = scmp.eq.s32.totalorder %s21, 0
    %p105 = por %p103, %p104
    %p106 = scmp.ne.s32.totalorder %s94, %s95
    %p107 = scmp.eq.s32.totalorder %s22, 1
    %p108 = por %p106, %p107
    %p110 = scmp.ne.s32.totalorder %s95, %s109
    %p111 = scmp.eq.s32.totalorder %s22, 0
    %p112 = por %p110, %p111
    %s114 = sadd.s32 %s113, 1
    %p117 = scmp.eq.s32.totalorder %s16, 1
    %p118 = scmp.ne.s32.totalorder %s113, %s115
    %p119 = scmp.eq.s32.totalorder %s16, 0
    %p120 = por %p118, %p119
    %p121 = scmp.ne.s32.totalorder %s113, %s115
    %p122 = scmp.eq.s32.totalorder %s21, 1
    %p123 = por %p121, %p122
    %p124 = scmp.ne.s32.totalorder %s115, %s116
    %p125 = scmp.eq.s32.totalorder %s21, 0
    %p126 = por %p124, %p125
    %p127 = scmp.ne.s32.totalorder %s115, %s116
    %p128 = scmp.eq.s32.totalorder %s22, 1
    %p129 = por %p127, %p128
    %p131 = scmp.ne.s32.totalorder %s116, %s130
    %p132 = scmp.eq.s32.totalorder %s22, 0
    %p133 = por %p131, %p132
    %s135 = sadd.s32 %s134, 1
    %p138 = scmp.eq.s32.totalorder %s16, 1
    %p139 = scmp.ne.s32.totalorder %s134, %s136
    %p140 = scmp.eq.s32.totalorder %s16, 0
    %p141 = por %p139, %p140
    %p142 = scmp.ne.s32.totalorder %s134, %s136
    %p143 = scmp.eq.s32.totalorder %s21, 1
    %p144 = por %p142, %p143
    %p145 = scmp.ne.s32.totalorder %s136, %s137
    %p146 = scmp.eq.s32.totalorder %s21, 0
    %p147 = por %p145, %p146
    %p148 = scmp.ne.s32.totalorder %s136, %s137
    %p149 = scmp.eq.s32.totalorder %s22, 1
    %p150 = por %p148, %p149
    %p152 = scmp.ne.s32.totalorder %s137, %s151
    %p153 = scmp.eq.s32.totalorder %s22, 0
    %p154 = por %p152, %p153
    %s156 = sadd.s32 %s155, 1
    %p159 = scmp.eq.s32.totalorder %s16, 1
    %p160 = scmp.ne.s32.totalorder %s155, %s157
    %p161 = scmp.eq.s32.totalorder %s16, 0
    %p162 = por %p160, %p161
    %p163 = scmp.ne.s32.totalorder %s155, %s157
    %p164 = scmp.eq.s32.totalorder %s21, 1
    %p165 = por %p163, %p164
    %p166 = scmp.ne.s32.totalorder %s157, %s158
    %p167 = scmp.eq.s32.totalorder %s21, 0
    %p168 = por %p166, %p167
    %p169 = scmp.ne.s32.totalorder %s157, %s158
    %p170 = scmp.eq.s32.totalorder %s22, 1
    %p171 = por %p169, %p170
    %p173 = scmp.ne.s32.totalorder %s158, %s172
    %p174 = scmp.eq.s32.totalorder %s22, 0
    %p175 = por %p173, %p174
    %s177 = sadd.s32 %s176, 1
    %p180 = scmp.eq.s32.totalorder %s16, 1
    %p181 = scmp.ne.s32.totalorder %s176, %s178
    %p182 = scmp.eq.s32.totalorder %s16, 0
    %p183 = por %p181, %p182
    %p184 = scmp.ne.s32.totalorder %s176, %s178
    %p185 = scmp.eq.s32.totalorder %s21, 1
    %p186 = por %p184, %p185
    %p187 = scmp.ne.s32.totalorder %s178, %s179
    %p188 = scmp.eq.s32.totalorder %s21, 0
    %p189 = por %p187, %p188
    %p190 = scmp.ne.s32.totalorder %s178, %s179
    %p191 = scmp.eq.s32.totalorder %s22, 1
    %p192 = por %p190, %p191
    %p194 = scmp.ne.s32.totalorder %s179, %s193
    %p195 = scmp.eq.s32.totalorder %s22, 0
    %p196 = por %p194, %p195
    %s198 = sadd.s32 %s197, 1
    %p201 = scmp.eq.s32.totalorder %s16, 1
    %p202 = scmp.ne.s32.totalorder %s197, %s199
    %p203 = scmp.eq.s32.totalorder %s16, 0
    %p204 = por %p202, %p203
    %p205 = scmp.ne.s32.totalorder %s197, %s199
    %p206 = scmp.eq.s32.totalorder %s21, 1
    %p207 = por %p205, %p206
    %p208 = scmp.ne.s32.totalorder %s199, %s200
    %p209 = scmp.eq.s32.totalorder %s21, 0
    %p210 = por %p208, %p209
    %p211 = scmp.ne.s32.totalorder %s199, %s200
    %p212 = scmp.eq.s32.totalorder %s22, 1
    %p213 = por %p211, %p212
    %p215 = scmp.ne.s32.totalorder %s200, %s214
    %p216 = scmp.eq.s32.totalorder %s22, 0
    %p217 = por %p215, %p216
    %s218 = ssub.s32 %s16, %s23
    %p219 = scmp.eq.s32.totalorder %s218, 0
    %s221 = sadd.s32 %s220, 1
    %s222 = scalar_select %p219, %s220, %s221
    %p225 = pneg %p219
    %p226 = scmp.eq.s32.totalorder %s16, 1
    %p227 = por %p225, %p226
    %p228 = scmp.ne.s32.totalorder %s220, %s223
    %p229 = scmp.eq.s32.totalorder %s16, 0
    %p230 = por %p228, %p229
    %p231 = scmp.ne.s32.totalorder %s220, %s223
    %p232 = scmp.eq.s32.totalorder %s21, 1
    %p233 = por %p231, %p232
    %p234 = scmp.ne.s32.totalorder %s223, %s224
    %p235 = scmp.eq.s32.totalorder %s21, 0
    %p236 = por %p234, %p235
    %p237 = scmp.ne.s32.totalorder %s223, %s224
    %p238 = scmp.eq.s32.totalorder %s22, 1
    %p239 = por %p237, %p238
    %p241 = scmp.ne.s32.totalorder %s224, %s240
    %p242 = scmp.eq.s32.totalorder %s22, 0
    %p243 = por %p241, %p242
    %p244 = scmp.le.s32.totalorder 1, %s16
    %p245 = scmp.lt.s32.totalorder %s16, 3
    %p246 = pnand %p244, %p245
    %p247 = pneg %p246
    // Predicated region
    $region9: #{_lambda_.2} parent=5 // pred_check
      _
    $region10: #{_lambda_.2} parent=5 // pred_check_branch
      %249 = sbr.rel (%p246) target = $region12
    $region11: #{_lambda_.2} parent=5 // pred_region
      %s250 = ssub.s32 %s16, 1
      // Predicated region
      $region13: #{_lambda_.2} parent=11 // pred_check
        %p251 = pneg %p63
      $region14: #{_lambda_.2} parent=11 // pred_check_branch
        %253 = sbr.rel (%p251) target = $region16
      $region15: #{_lambda_.2} parent=11 // pred_region
        _
      $region16: #{_lambda_.2} parent=11 // pred_fallthru
        _
      // Predicated region
      $region17: #{_lambda_.2} parent=11 // pred_check
        %p254 = pneg %p84
      $region18: #{_lambda_.2} parent=11 // pred_check_branch
        %256 = sbr.rel (%p254) target = $region20
      $region19: #{_lambda_.2} parent=11 // pred_region
        _
      $region20: #{_lambda_.2} parent=11 // pred_fallthru
        _
      // Predicated region
      $region21: #{_lambda_.2} parent=11 // pred_check
        %p257 = pneg %p105
      $region22: #{_lambda_.2} parent=11 // pred_check_branch
        %259 = sbr.rel (%p257) target = $region24
      $region23: #{_lambda_.2} parent=11 // pred_region
        _
      $region24: #{_lambda_.2} parent=11 // pred_fallthru
        _
      // Predicated region
      $region25: #{_lambda_.2} parent=11 // pred_check
        %p260 = pneg %p126
      $region26: #{_lambda_.2} parent=11 // pred_check_branch
        %262 = sbr.rel (%p260) target = $region28
      $region27: #{_lambda_.2} parent=11 // pred_region
        _
      $region28: #{_lambda_.2} parent=11 // pred_fallthru
        _
      // Predicated region
      $region29: #{_lambda_.2} parent=11 // pred_check
        %p263 = pneg %p147
      $region30: #{_lambda_.2} parent=11 // pred_check_branch
        %265 = sbr.rel (%p263) target = $region32
      $region31: #{_lambda_.2} parent=11 // pred_region
        _
      $region32: #{_lambda_.2} parent=11 // pred_fallthru
        _
      // Predicated region
      $region33: #{_lambda_.2} parent=11 // pred_check
        %p266 = pneg %p168
      $region34: #{_lambda_.2} parent=11 // pred_check_branch
        %268 = sbr.rel (%p266) target = $region36
      $region35: #{_lambda_.2} parent=11 // pred_region
        _
      $region36: #{_lambda_.2} parent=11 // pred_fallthru
        _
      // Predicated region
      $region37: #{_lambda_.2} parent=11 // pred_check
        %p269 = pneg %p189
      $region38: #{_lambda_.2} parent=11 // pred_check_branch
        %271 = sbr.rel (%p269) target = $region40
      $region39: #{_lambda_.2} parent=11 // pred_region
        _
      $region40: #{_lambda_.2} parent=11 // pred_fallthru
        _
      // Predicated region
      $region41: #{_lambda_.2} parent=11 // pred_check
        %p272 = pneg %p210
      $region42: #{_lambda_.2} parent=11 // pred_check_branch
        %274 = sbr.rel (%p272) target = $region44
      $region43: #{_lambda_.2} parent=11 // pred_region
        _
      $region44: #{_lambda_.2} parent=11 // pred_fallthru
        _
    $region12: #{_lambda_.2} parent=5 // pred_fallthru
      _
    %p275 = scmp.lt.s32.totalorder %s16, 2
    // Predicated region
    $region45: #{_lambda_.2} parent=5 // pred_check
      %p276 = pneg %p275
    $region46: #{_lambda_.2} parent=5 // pred_check_branch
      %278 = sbr.rel (%p276) target = $region48
    $region47: #{_lambda_.2} parent=5 // pred_region
      // Predicated region
      $region49: #{_lambda_.2} parent=47 // pred_check
        %p279 = pneg %p36
      $region50: #{_lambda_.2} parent=47 // pred_check_branch
        %281 = sbr.rel (%p279) target = $region52
      $region51: #{_lambda_.2} parent=47 // pred_region
        %p282 = scmp.lt.s32.totalorder %s16, 1
        %s283 = scalar_select %p282, %s16, 1
        %s284 = smul.addr %s283, 56
        %s285 = smul.addr %s284, 8
        %s286 = scalar_lea.vmem %s0, %s285
      $region52: #{_lambda_.2} parent=47 // pred_fallthru
        _
    $region48: #{_lambda_.2} parent=5 // pred_fallthru
      _
    %p287 = scmp.le.s32.totalorder 1, %s16
    %p288 = scmp.lt.s32.totalorder %s16, 3
    %p289 = pnand %p287, %p288
    %p290 = pneg %p289
    // Predicated region
    $region53: #{_lambda_.2} parent=5 // pred_check
      _
    $region54: #{_lambda_.2} parent=5 // pred_check_branch
      %292 = sbr.rel (%p289) target = $region56
    $region55: #{_lambda_.2} parent=5 // pred_region
      %s293 = ssub.s32 %s16, 1
      %p294 = scmp.lt.s32.totalorder %s21, 1
      %s295 = scalar_select %p294, %s21, 1
      %s296 = smul.addr %s295, 56
      %s297 = smul.addr %s296, 8
      %s298 = scalar_lea.vmem %s0, %s297
      %p299 = pneg %p42
      %p300 = pneg %p39
      %p301 = pneg %p63
      %p302 = pneg %p60
      %p303 = pneg %p84
      %p304 = pneg %p81
      %p305 = pneg %p105
      %p306 = pneg %p102
      %p307 = pneg %p126
      %p308 = pneg %p123
      %p309 = pneg %p147
      %p310 = pneg %p144
      %p311 = pneg %p168
      %p312 = pneg %p165
      %p313 = pneg %p189
      %p314 = pneg %p186
      %p315 = pneg %p210
      %p316 = pneg %p207
      %p317 = pneg %p236
      %p318 = pneg %p233
      %p319 = scmp.lt.s32.totalorder %s21, 1
      %s320 = scalar_select %p319, %s21, 1
      %s321 = smul.addr %s320, 2
      %s322 = smul.addr %s321, 8
      %s323 = scalar_lea.vmem %s9, %s322
      %p324 = scmp.lt.s32.totalorder %s21, 1
      %s325 = scalar_select %p324, %s21, 1
      %s326 = smul.addr %s325, 56
      %s327 = smul.addr %s326, 8
      %s328 = scalar_lea.vmem %s0, %s327
      %p329 = scmp.lt.s32.totalorder %s21, 1
      %s330 = scalar_select %p329, %s21, 1
      %s331 = smul.addr %s330, 2
      %s332 = smul.addr %s331, 8
      %s333 = scalar_lea.vmem %s9, %s332
      %v335 = vld [vmem:[%s328] sm:$0xff]
      %v336 = vld [vmem:[%s328 + $0x8] sm:$0xff]
      %v337 = vld [vmem:[%s328 + $0x10] sm:$0xff]
      %v338 = vld [vmem:[%s328 + $0x18] sm:$0xff]
      %v339 = vld [vmem:[%s328 + $0x20] sm:$0xff]
      %v340 = vld [vmem:[%s328 + $0x28] sm:$0xff]
      %v341 = vld [vmem:[%s328 + $0x30] sm:$0xff]
      %v342 = vld [vmem:[%s328 + $0x38] sm:$0xff]
      %v343 = vld [vmem:[%s328 + $0x40] sm:$0xff]
      %v344 = vld [vmem:[%s328 + $0x48] sm:$0xff]
      %v345 = vld [vmem:[%s328 + $0x50] sm:$0xff]
      %v346 = vld [vmem:[%s328 + $0x58] sm:$0xff]
      %v347 = vld [vmem:[%s328 + $0x60] sm:$0xff]
      %v348 = vld [vmem:[%s328 + $0x68] sm:$0xff]
      %v349 = vld [vmem:[%s328 + $0x70] sm:$0xff]
      %v350 = vld [vmem:[%s328 + $0x78] sm:$0xff]
      %v351 = vld [vmem:[%s328 + $0x80] sm:$0xff]
      %v352 = vld [vmem:[%s328 + $0x88] sm:$0xff]
      %v353 = vld [vmem:[%s328 + $0x90] sm:$0xff]
      %v354 = vld [vmem:[%s328 + $0x98] sm:$0xff]
      %v355 = vld [vmem:[%s328 + $0xa0] sm:$0xff]
      %v356 = vld [vmem:[%s328 + $0xa8] sm:$0xff]
      %v357 = vld [vmem:[%s328 + $0xb0] sm:$0xff]
      %v358 = vld [vmem:[%s328 + $0xb8] sm:$0xff]
      %v359 = vld [vmem:[%s328 + $0xc0] sm:$0xff]
      %v360 = vld [vmem:[%s328 + $0xc8] sm:$0xff]
      %v361 = vld [vmem:[%s328 + $0xd0] sm:$0xff]
      %v362 = vld [vmem:[%s328 + $0xd8] sm:$0xff]
      %v363 = vld [vmem:[%s328 + $0xe0] sm:$0xff]
      %v364 = vld [vmem:[%s328 + $0xe8] sm:$0xff]
      %v365 = vld [vmem:[%s328 + $0xf0] sm:$0xff]
      %v366 = vld [vmem:[%s328 + $0xf8] sm:$0xff]
      %v367 = vld [vmem:[%s328 + $0x100] sm:$0xff]
      %v368 = vld [vmem:[%s328 + $0x108] sm:$0xff]
      %v369 = vld [vmem:[%s328 + $0x110] sm:$0xff]
      %v370 = vld [vmem:[%s328 + $0x118] sm:$0xff]
      %v371 = vld [vmem:[%s328 + $0x120] sm:$0xff]
      %v372 = vld [vmem:[%s328 + $0x128] sm:$0xff]
      %v373 = vld [vmem:[%s328 + $0x130] sm:$0xff]
      %v374 = vld [vmem:[%s328 + $0x138] sm:$0xff]
      %v375 = vld [vmem:[%s328 + $0x140] sm:$0xff]
      %v376 = vld [vmem:[%s328 + $0x148] sm:$0xff]
      %v377 = vld [vmem:[%s328 + $0x150] sm:$0xff]
      %v378 = vld [vmem:[%s328 + $0x158] sm:$0xff]
      %v379 = vld [vmem:[%s328 + $0x160] sm:$0xff]
      %v380 = vld [vmem:[%s328 + $0x168] sm:$0xff]
      %v381 = vld [vmem:[%s328 + $0x170] sm:$0xff]
      %v382 = vld [vmem:[%s328 + $0x178] sm:$0xff]
      %v383 = vld [vmem:[%s328 + $0x180] sm:$0xff]
      %v384 = vld [vmem:[%s328 + $0x188] sm:$0xff]
      %v385 = vld [vmem:[%s328 + $0x190] sm:$0xff]
      %v386 = vld [vmem:[%s328 + $0x198] sm:$0xff]
      %v387 = vld [vmem:[%s328 + $0x1a0] sm:$0xff]
      %v388 = vld [vmem:[%s328 + $0x1a8] sm:$0xff]
      %v389 = vld [vmem:[%s328 + $0x1b0] sm:$0xff]
      %v390 = vld [vmem:[%s328 + $0x1b8] sm:$0xff]
      %vm391 = vcmask 31751
      %392 = vst.msk [vmem:[#allocation2 - $0x7] sm:$0x80] %vm391, %v335
      %vm393 = vcmask 31744
      %394 = vst.msk [vmem:[#allocation2 + $0x1] sm:$0xff] %vm393, %v336
      %395 = vst.msk [vmem:[#allocation2 + $0x9] sm:$0xff] %vm393, %v337
      %396 = vst.msk [vmem:[#allocation2 + $0x11] sm:$0xff] %vm393, %v338
      %397 = vst.msk [vmem:[#allocation2 + $0x19] sm:$0xff] %vm393, %v339
      %398 = vst.msk [vmem:[#allocation2 + $0x21] sm:$0xff] %vm393, %v340
      %399 = vst.msk [vmem:[#allocation2 + $0x29] sm:$0xff] %vm393, %v341
      %400 = vst.msk [vmem:[#allocation2 + $0x31] sm:$0xff] %vm393, %v342
      %401 = vst.msk [vmem:[#allocation2 + $0x39] sm:$0xff] %vm393, %v343
      %402 = vst.msk [vmem:[#allocation2 + $0x41] sm:$0xff] %vm393, %v344
      %403 = vst.msk [vmem:[#allocation2 + $0x49] sm:$0xff] %vm393, %v345
      %404 = vst.msk [vmem:[#allocation2 + $0x51] sm:$0xff] %vm393, %v346
      %405 = vst.msk [vmem:[#allocation2 + $0x59] sm:$0xff] %vm393, %v347
      %406 = vst.msk [vmem:[#allocation2 + $0x61] sm:$0xff] %vm393, %v348
      %407 = vst.msk [vmem:[#allocation2 + $0x69] sm:$0xff] %vm393, %v349
      %408 = vst.msk [vmem:[#allocation2 + $0x71] sm:$0xff] %vm393, %v350
      %409 = vst.msk [vmem:[#allocation2 + $0x79] sm:$0xff] %vm393, %v351
      %410 = vst.msk [vmem:[#allocation2 + $0x81] sm:$0xff] %vm393, %v352
      %411 = vst.msk [vmem:[#allocation2 + $0x89] sm:$0xff] %vm393, %v353
      %412 = vst.msk [vmem:[#allocation2 + $0x91] sm:$0xff] %vm393, %v354
      %413 = vst.msk [vmem:[#allocation2 + $0x99] sm:$0xff] %vm393, %v355
      %414 = vst.msk [vmem:[#allocation2 + $0xa1] sm:$0xff] %vm393, %v356
      %415 = vst.msk [vmem:[#allocation2 + $0xa9] sm:$0xff] %vm393, %v357
      %416 = vst.msk [vmem:[#allocation2 + $0xb1] sm:$0xff] %vm393, %v358
      %417 = vst.msk [vmem:[#allocation2 + $0xb9] sm:$0xff] %vm393, %v359
      %418 = vst.msk [vmem:[#allocation2 + $0xc1] sm:$0xff] %vm393, %v360
      %419 = vst.msk [vmem:[#allocation2 + $0xc9] sm:$0xff] %vm393, %v361
      %420 = vst.msk [vmem:[#allocation2 + $0xd1] sm:$0xff] %vm393, %v362
      %421 = vst.msk [vmem:[#allocation2 + $0xd9] sm:$0xff] %vm393, %v363
      %422 = vst.msk [vmem:[#allocation2 + $0xe1] sm:$0xff] %vm393, %v364
      %423 = vst.msk [vmem:[#allocation2 + $0xe9] sm:$0xff] %vm393, %v365
      %424 = vst.msk [vmem:[#allocation2 + $0xf1] sm:$0xff] %vm393, %v366
      %425 = vst.msk [vmem:[#allocation2 + $0xf9] sm:$0xff] %vm393, %v367
      %426 = vst.msk [vmem:[#allocation2 + $0x101] sm:$0xff] %vm393, %v368
      %427 = vst.msk [vmem:[#allocation2 + $0x109] sm:$0xff] %vm393, %v369
      %428 = vst.msk [vmem:[#allocation2 + $0x111] sm:$0xff] %vm393, %v370
      %429 = vst.msk [vmem:[#allocation2 + $0x119] sm:$0xff] %vm393, %v371
      %430 = vst.msk [vmem:[#allocation2 + $0x121] sm:$0xff] %vm393, %v372
      %431 = vst.msk [vmem:[#allocation2 + $0x129] sm:$0xff] %vm393, %v373
      %432 = vst.msk [vmem:[#allocation2 + $0x131] sm:$0xff] %vm393, %v374
      %433 = vst.msk [vmem:[#allocation2 + $0x139] sm:$0xff] %vm393, %v375
      %434 = vst.msk [vmem:[#allocation2 + $0x141] sm:$0xff] %vm393, %v376
      %435 = vst.msk [vmem:[#allocation2 + $0x149] sm:$0xff] %vm393, %v377
      %436 = vst.msk [vmem:[#allocation2 + $0x151] sm:$0xff] %vm393, %v378
      %437 = vst.msk [vmem:[#allocation2 + $0x159] sm:$0xff] %vm393, %v379
      %438 = vst.msk [vmem:[#allocation2 + $0x161] sm:$0xff] %vm393, %v380
      %439 = vst.msk [vmem:[#allocation2 + $0x169] sm:$0xff] %vm393, %v381
      %440 = vst.msk [vmem:[#allocation2 + $0x171] sm:$0xff] %vm393, %v382
      %441 = vst.msk [vmem:[#allocation2 + $0x179] sm:$0xff] %vm393, %v383
      %442 = vst.msk [vmem:[#allocation2 + $0x181] sm:$0xff] %vm393, %v384
      %443 = vst.msk [vmem:[#allocation2 + $0x189] sm:$0xff] %vm393, %v385
      %444 = vst.msk [vmem:[#allocation2 + $0x191] sm:$0xff] %vm393, %v386
      %445 = vst.msk [vmem:[#allocation2 + $0x199] sm:$0xff] %vm393, %v387
      %446 = vst.msk [vmem:[#allocation2 + $0x1a1] sm:$0xff] %vm393, %v388
      %vm447 = vcmask 30720
      %448 = vst.msk [vmem:[#allocation2 + $0x1a9] sm:$0x7f] %vm447, %v389
      %503 = vrot.lane.b32.xlu0 %v336, 4
      %v504 = vpop.permute.xlu0 %503
      %505 = vrot.lane.b32.xlu0 %v337, 4
      %v506 = vpop.permute.xlu0 %505
      %507 = vrot.lane.b32.xlu0 %v338, 4
      %v508 = vpop.permute.xlu0 %507
      %509 = vrot.lane.b32.xlu0 %v339, 4
      %v510 = vpop.permute.xlu0 %509
      %511 = vrot.lane.b32.xlu0 %v340, 4
      %v512 = vpop.permute.xlu0 %511
      %513 = vrot.lane.b32.xlu0 %v341, 4
      %v514 = vpop.permute.xlu0 %513
      %515 = vrot.lane.b32.xlu0 %v342, 4
      %v516 = vpop.permute.xlu0 %515
      %517 = vrot.lane.b32.xlu0 %v343, 4
      %v518 = vpop.permute.xlu0 %517
      %519 = vrot.lane.b32.xlu0 %v344, 4
      %v520 = vpop.permute.xlu0 %519
      %521 = vrot.lane.b32.xlu0 %v345, 4
      %v522 = vpop.permute.xlu0 %521
      %523 = vrot.lane.b32.xlu0 %v346, 4
      %v524 = vpop.permute.xlu0 %523
      %525 = vrot.lane.b32.xlu0 %v347, 4
      %v526 = vpop.permute.xlu0 %525
      %527 = vrot.lane.b32.xlu0 %v348, 4
      %v528 = vpop.permute.xlu0 %527
      %529 = vrot.lane.b32.xlu0 %v349, 4
      %v530 = vpop.permute.xlu0 %529
      %531 = vrot.lane.b32.xlu0 %v350, 4
      %v532 = vpop.permute.xlu0 %531
      %533 = vrot.lane.b32.xlu0 %v351, 4
      %v534 = vpop.permute.xlu0 %533
      %535 = vrot.lane.b32.xlu0 %v352, 4
      %v536 = vpop.permute.xlu0 %535
      %537 = vrot.lane.b32.xlu0 %v353, 4
      %v538 = vpop.permute.xlu0 %537
      %539 = vrot.lane.b32.xlu0 %v354, 4
      %v540 = vpop.permute.xlu0 %539
      %541 = vrot.lane.b32.xlu0 %v355, 4
      %v542 = vpop.permute.xlu0 %541
      %543 = vrot.lane.b32.xlu0 %v356, 4
      %v544 = vpop.permute.xlu0 %543
      %545 = vrot.lane.b32.xlu0 %v357, 4
      %v546 = vpop.permute.xlu0 %545
      %547 = vrot.lane.b32.xlu0 %v358, 4
      %v548 = vpop.permute.xlu0 %547
      %549 = vrot.lane.b32.xlu0 %v359, 4
      %v550 = vpop.permute.xlu0 %549
      %551 = vrot.lane.b32.xlu0 %v360, 4
      %v552 = vpop.permute.xlu0 %551
      %553 = vrot.lane.b32.xlu0 %v361, 4
      %v554 = vpop.permute.xlu0 %553
      %555 = vrot.lane.b32.xlu0 %v362, 4
      %v556 = vpop.permute.xlu0 %555
      %557 = vrot.lane.b32.xlu0 %v363, 4
      %v558 = vpop.permute.xlu0 %557
      %559 = vrot.lane.b32.xlu0 %v364, 4
      %v560 = vpop.permute.xlu0 %559
      %561 = vrot.lane.b32.xlu0 %v365, 4
      %v562 = vpop.permute.xlu0 %561
      %563 = vrot.lane.b32.xlu0 %v366, 4
      %v564 = vpop.permute.xlu0 %563
      %565 = vrot.lane.b32.xlu0 %v367, 4
      %v566 = vpop.permute.xlu0 %565
      %567 = vrot.lane.b32.xlu0 %v368, 4
      %v568 = vpop.permute.xlu0 %567
      %569 = vrot.lane.b32.xlu0 %v369, 4
      %v570 = vpop.permute.xlu0 %569
      %571 = vrot.lane.b32.xlu0 %v370, 4
      %v572 = vpop.permute.xlu0 %571
      %573 = vrot.lane.b32.xlu0 %v371, 4
      %v574 = vpop.permute.xlu0 %573
      %575 = vrot.lane.b32.xlu0 %v372, 4
      %v576 = vpop.permute.xlu0 %575
      %577 = vrot.lane.b32.xlu0 %v373, 4
      %v578 = vpop.permute.xlu0 %577
      %579 = vrot.lane.b32.xlu0 %v374, 4
      %v580 = vpop.permute.xlu0 %579
      %581 = vrot.lane.b32.xlu0 %v375, 4
      %v582 = vpop.permute.xlu0 %581
      %583 = vrot.lane.b32.xlu0 %v376, 4
      %v584 = vpop.permute.xlu0 %583
      %585 = vrot.lane.b32.xlu0 %v377, 4
      %v586 = vpop.permute.xlu0 %585
      %587 = vrot.lane.b32.xlu0 %v378, 4
      %v588 = vpop.permute.xlu0 %587
      %589 = vrot.lane.b32.xlu0 %v379, 4
      %v590 = vpop.permute.xlu0 %589
      %591 = vrot.lane.b32.xlu0 %v380, 4
      %v592 = vpop.permute.xlu0 %591
      %593 = vrot.lane.b32.xlu0 %v381, 4
      %v594 = vpop.permute.xlu0 %593
      %595 = vrot.lane.b32.xlu0 %v382, 4
      %v596 = vpop.permute.xlu0 %595
      %597 = vrot.lane.b32.xlu0 %v383, 4
      %v598 = vpop.permute.xlu0 %597
      %599 = vrot.lane.b32.xlu0 %v384, 4
      %v600 = vpop.permute.xlu0 %599
      %601 = vrot.lane.b32.xlu0 %v385, 4
      %v602 = vpop.permute.xlu0 %601
      %603 = vrot.lane.b32.xlu0 %v386, 4
      %v604 = vpop.permute.xlu0 %603
      %605 = vrot.lane.b32.xlu0 %v387, 4
      %v606 = vpop.permute.xlu0 %605
      %607 = vrot.lane.b32.xlu0 %v388, 4
      %v608 = vpop.permute.xlu0 %607
      %609 = vrot.lane.b32.xlu0 %v389, 4
      %v610 = vpop.permute.xlu0 %609
      %vm665 = vcmask 64544
      %666 = vst.msk [vmem:[#allocation2] sm:$0xff] %vm665, %v504
      %667 = vst.msk [vmem:[#allocation2 + $0x8] sm:$0xff] %vm665, %v506
      %668 = vst.msk [vmem:[#allocation2 + $0x10] sm:$0xff] %vm665, %v508
      %669 = vst.msk [vmem:[#allocation2 + $0x18] sm:$0xff] %vm665, %v510
      %670 = vst.msk [vmem:[#allocation2 + $0x20] sm:$0xff] %vm665, %v512
      %671 = vst.msk [vmem:[#allocation2 + $0x28] sm:$0xff] %vm665, %v514
      %672 = vst.msk [vmem:[#allocation2 + $0x30] sm:$0xff] %vm665, %v516
      %673 = vst.msk [vmem:[#allocation2 + $0x38] sm:$0xff] %vm665, %v518
      %674 = vst.msk [vmem:[#allocation2 + $0x40] sm:$0xff] %vm665, %v520
      %675 = vst.msk [vmem:[#allocation2 + $0x48] sm:$0xff] %vm665, %v522
      %676 = vst.msk [vmem:[#allocation2 + $0x50] sm:$0xff] %vm665, %v524
      %677 = vst.msk [vmem:[#allocation2 + $0x58] sm:$0xff] %vm665, %v526
      %678 = vst.msk [vmem:[#allocation2 + $0x60] sm:$0xff] %vm665, %v528
      %679 = vst.msk [vmem:[#allocation2 + $0x68] sm:$0xff] %vm665, %v530
      %680 = vst.msk [vmem:[#allocation2 + $0x70] sm:$0xff] %vm665, %v532
      %681 = vst.msk [vmem:[#allocation2 + $0x78] sm:$0xff] %vm665, %v534
      %682 = vst.msk [vmem:[#allocation2 + $0x80] sm:$0xff] %vm665, %v536
      %683 = vst.msk [vmem:[#allocation2 + $0x88] sm:$0xff] %vm665, %v538
      %684 = vst.msk [vmem:[#allocation2 + $0x90] sm:$0xff] %vm665, %v540
      %685 = vst.msk [vmem:[#allocation2 + $0x98] sm:$0xff] %vm665, %v542
      %686 = vst.msk [vmem:[#allocation2 + $0xa0] sm:$0xff] %vm665, %v544
      %687 = vst.msk [vmem:[#allocation2 + $0xa8] sm:$0xff] %vm665, %v546
      %688 = vst.msk [vmem:[#allocation2 + $0xb0] sm:$0xff] %vm665, %v548
      %689 = vst.msk [vmem:[#allocation2 + $0xb8] sm:$0xff] %vm665, %v550
      %690 = vst.msk [vmem:[#allocation2 + $0xc0] sm:$0xff] %vm665, %v552
      %691 = vst.msk [vmem:[#allocation2 + $0xc8] sm:$0xff] %vm665, %v554
      %692 = vst.msk [vmem:[#allocation2 + $0xd0] sm:$0xff] %vm665, %v556
      %693 = vst.msk [vmem:[#allocation2 + $0xd8] sm:$0xff] %vm665, %v558
      %694 = vst.msk [vmem:[#allocation2 + $0xe0] sm:$0xff] %vm665, %v560
      %695 = vst.msk [vmem:[#allocation2 + $0xe8] sm:$0xff] %vm665, %v562
      %696 = vst.msk [vmem:[#allocation2 + $0xf0] sm:$0xff] %vm665, %v564
      %697 = vst.msk [vmem:[#allocation2 + $0xf8] sm:$0xff] %vm665, %v566
      %698 = vst.msk [vmem:[#allocation2 + $0x100] sm:$0xff] %vm665, %v568
      %699 = vst.msk [vmem:[#allocation2 + $0x108] sm:$0xff] %vm665, %v570
      %700 = vst.msk [vmem:[#allocation2 + $0x110] sm:$0xff] %vm665, %v572
      %701 = vst.msk [vmem:[#allocation2 + $0x118] sm:$0xff] %vm665, %v574
      %702 = vst.msk [vmem:[#allocation2 + $0x120] sm:$0xff] %vm665, %v576
      %703 = vst.msk [vmem:[#allocation2 + $0x128] sm:$0xff] %vm665, %v578
      %704 = vst.msk [vmem:[#allocation2 + $0x130] sm:$0xff] %vm665, %v580
      %705 = vst.msk [vmem:[#allocation2 + $0x138] sm:$0xff] %vm665, %v582
      %706 = vst.msk [vmem:[#allocation2 + $0x140] sm:$0xff] %vm665, %v584
      %707 = vst.msk [vmem:[#allocation2 + $0x148] sm:$0xff] %vm665, %v586
      %708 = vst.msk [vmem:[#allocation2 + $0x150] sm:$0xff] %vm665, %v588
      %709 = vst.msk [vmem:[#allocation2 + $0x158] sm:$0xff] %vm665, %v590
      %710 = vst.msk [vmem:[#allocation2 + $0x160] sm:$0xff] %vm665, %v592
      %711 = vst.msk [vmem:[#allocation2 + $0x168] sm:$0xff] %vm665, %v594
      %712 = vst.msk [vmem:[#allocation2 + $0x170] sm:$0xff] %vm665, %v596
      %713 = vst.msk [vmem:[#allocation2 + $0x178] sm:$0xff] %vm665, %v598
      %714 = vst.msk [vmem:[#allocation2 + $0x180] sm:$0xff] %vm665, %v600
      %715 = vst.msk [vmem:[#allocation2 + $0x188] sm:$0xff] %vm665, %v602
      %716 = vst.msk [vmem:[#allocation2 + $0x190] sm:$0xff] %vm665, %v604
      %717 = vst.msk [vmem:[#allocation2 + $0x198] sm:$0xff] %vm665, %v606
      %718 = vst.msk [vmem:[#allocation2 + $0x1a0] sm:$0xff] %vm665, %v608
      %719 = vst.msk [vmem:[#allocation2 + $0x1a8] sm:$0xff] %vm665, %v610
      %721 = vrot.lane.b32.xlu0 %v336, 8
      %v722 = vpop.permute.xlu0 %721
      %723 = vrot.lane.b32.xlu0 %v337, 8
      %v724 = vpop.permute.xlu0 %723
      %725 = vrot.lane.b32.xlu0 %v338, 8
      %v726 = vpop.permute.xlu0 %725
      %727 = vrot.lane.b32.xlu0 %v339, 8
      %v728 = vpop.permute.xlu0 %727
      %729 = vrot.lane.b32.xlu0 %v340, 8
      %v730 = vpop.permute.xlu0 %729
      %731 = vrot.lane.b32.xlu0 %v341, 8
      %v732 = vpop.permute.xlu0 %731
      %733 = vrot.lane.b32.xlu0 %v342, 8
      %v734 = vpop.permute.xlu0 %733
      %735 = vrot.lane.b32.xlu0 %v343, 8
      %v736 = vpop.permute.xlu0 %735
      %737 = vrot.lane.b32.xlu0 %v344, 8
      %v738 = vpop.permute.xlu0 %737
      %739 = vrot.lane.b32.xlu0 %v345, 8
      %v740 = vpop.permute.xlu0 %739
      %741 = vrot.lane.b32.xlu0 %v346, 8
      %v742 = vpop.permute.xlu0 %741
      %743 = vrot.lane.b32.xlu0 %v347, 8
      %v744 = vpop.permute.xlu0 %743
      %745 = vrot.lane.b32.xlu0 %v348, 8
      %v746 = vpop.permute.xlu0 %745
      %747 = vrot.lane.b32.xlu0 %v349, 8
      %v748 = vpop.permute.xlu0 %747
      %749 = vrot.lane.b32.xlu0 %v350, 8
      %v750 = vpop.permute.xlu0 %749
      %751 = vrot.lane.b32.xlu0 %v351, 8
      %v752 = vpop.permute.xlu0 %751
      %753 = vrot.lane.b32.xlu0 %v352, 8
      %v754 = vpop.permute.xlu0 %753
      %755 = vrot.lane.b32.xlu0 %v353, 8
      %v756 = vpop.permute.xlu0 %755
      %757 = vrot.lane.b32.xlu0 %v354, 8
      %v758 = vpop.permute.xlu0 %757
      %759 = vrot.lane.b32.xlu0 %v355, 8
      %v760 = vpop.permute.xlu0 %759
      %761 = vrot.lane.b32.xlu0 %v356, 8
      %v762 = vpop.permute.xlu0 %761
      %763 = vrot.lane.b32.xlu0 %v357, 8
      %v764 = vpop.permute.xlu0 %763
      %765 = vrot.lane.b32.xlu0 %v358, 8
      %v766 = vpop.permute.xlu0 %765
      %767 = vrot.lane.b32.xlu0 %v359, 8
      %v768 = vpop.permute.xlu0 %767
      %769 = vrot.lane.b32.xlu0 %v360, 8
      %v770 = vpop.permute.xlu0 %769
      %771 = vrot.lane.b32.xlu0 %v361, 8
      %v772 = vpop.permute.xlu0 %771
      %773 = vrot.lane.b32.xlu0 %v362, 8
      %v774 = vpop.permute.xlu0 %773
      %775 = vrot.lane.b32.xlu0 %v363, 8
      %v776 = vpop.permute.xlu0 %775
      %777 = vrot.lane.b32.xlu0 %v364, 8
      %v778 = vpop.permute.xlu0 %777
      %779 = vrot.lane.b32.xlu0 %v365, 8
      %v780 = vpop.permute.xlu0 %779
      %781 = vrot.lane.b32.xlu0 %v366, 8
      %v782 = vpop.permute.xlu0 %781
      %783 = vrot.lane.b32.xlu0 %v367, 8
      %v784 = vpop.permute.xlu0 %783
      %785 = vrot.lane.b32.xlu0 %v368, 8
      %v786 = vpop.permute.xlu0 %785
      %787 = vrot.lane.b32.xlu0 %v369, 8
      %v788 = vpop.permute.xlu0 %787
      %789 = vrot.lane.b32.xlu0 %v370, 8
      %v790 = vpop.permute.xlu0 %789
      %791 = vrot.lane.b32.xlu0 %v371, 8
      %v792 = vpop.permute.xlu0 %791
      %793 = vrot.lane.b32.xlu0 %v372, 8
      %v794 = vpop.permute.xlu0 %793
      %795 = vrot.lane.b32.xlu0 %v373, 8
      %v796 = vpop.permute.xlu0 %795
      %797 = vrot.lane.b32.xlu0 %v374, 8
      %v798 = vpop.permute.xlu0 %797
      %799 = vrot.lane.b32.xlu0 %v375, 8
      %v800 = vpop.permute.xlu0 %799
      %801 = vrot.lane.b32.xlu0 %v376, 8
      %v802 = vpop.permute.xlu0 %801
      %803 = vrot.lane.b32.xlu0 %v377, 8
      %v804 = vpop.permute.xlu0 %803
      %805 = vrot.lane.b32.xlu0 %v378, 8
      %v806 = vpop.permute.xlu0 %805
      %807 = vrot.lane.b32.xlu0 %v379, 8
      %v808 = vpop.permute.xlu0 %807
      %809 = vrot.lane.b32.xlu0 %v380, 8
      %v810 = vpop.permute.xlu0 %809
      %811 = vrot.lane.b32.xlu0 %v381, 8
      %v812 = vpop.permute.xlu0 %811
      %813 = vrot.lane.b32.xlu0 %v382, 8
      %v814 = vpop.permute.xlu0 %813
      %815 = vrot.lane.b32.xlu0 %v383, 8
      %v816 = vpop.permute.xlu0 %815
      %817 = vrot.lane.b32.xlu0 %v384, 8
      %v818 = vpop.permute.xlu0 %817
      %819 = vrot.lane.b32.xlu0 %v385, 8
      %v820 = vpop.permute.xlu0 %819
      %821 = vrot.lane.b32.xlu0 %v386, 8
      %v822 = vpop.permute.xlu0 %821
      %823 = vrot.lane.b32.xlu0 %v387, 8
      %v824 = vpop.permute.xlu0 %823
      %825 = vrot.lane.b32.xlu0 %v388, 8
      %v826 = vpop.permute.xlu0 %825
      %827 = vrot.lane.b32.xlu0 %v389, 8
      %v828 = vpop.permute.xlu0 %827
      %829 = vrot.lane.b32.xlu0 %v390, 8
      %v830 = vpop.permute.xlu0 %829
      %vm886 = vcmask 97345
      %887 = vst.msk [vmem:[#allocation2 - $0x1] sm:$0xfe] %vm886, %v722
      %vm888 = vcmask 97344
      %889 = vst.msk [vmem:[#allocation2 + $0x7] sm:$0xff] %vm888, %v724
      %890 = vst.msk [vmem:[#allocation2 + $0xf] sm:$0xff] %vm888, %v726
      %891 = vst.msk [vmem:[#allocation2 + $0x17] sm:$0xff] %vm888, %v728
      %892 = vst.msk [vmem:[#allocation2 + $0x1f] sm:$0xff] %vm888, %v730
      %893 = vst.msk [vmem:[#allocation2 + $0x27] sm:$0xff] %vm888, %v732
      %894 = vst.msk [vmem:[#allocation2 + $0x2f] sm:$0xff] %vm888, %v734
      %895 = vst.msk [vmem:[#allocation2 + $0x37] sm:$0xff] %vm888, %v736
      %896 = vst.msk [vmem:[#allocation2 + $0x3f] sm:$0xff] %vm888, %v738
      %897 = vst.msk [vmem:[#allocation2 + $0x47] sm:$0xff] %vm888, %v740
      %898 = vst.msk [vmem:[#allocation2 + $0x4f] sm:$0xff] %vm888, %v742
      %899 = vst.msk [vmem:[#allocation2 + $0x57] sm:$0xff] %vm888, %v744
      %900 = vst.msk [vmem:[#allocation2 + $0x5f] sm:$0xff] %vm888, %v746
      %901 = vst.msk [vmem:[#allocation2 + $0x67] sm:$0xff] %vm888, %v748
      %902 = vst.msk [vmem:[#allocation2 + $0x6f] sm:$0xff] %vm888, %v750
      %903 = vst.msk [vmem:[#allocation2 + $0x77] sm:$0xff] %vm888, %v752
      %904 = vst.msk [vmem:[#allocation2 + $0x7f] sm:$0xff] %vm888, %v754
      %905 = vst.msk [vmem:[#allocation2 + $0x87] sm:$0xff] %vm888, %v756
      %906 = vst.msk [vmem:[#allocation2 + $0x8f] sm:$0xff] %vm888, %v758
      %907 = vst.msk [vmem:[#allocation2 + $0x97] sm:$0xff] %vm888, %v760
      %908 = vst.msk [vmem:[#allocation2 + $0x9f] sm:$0xff] %vm888, %v762
      %909 = vst.msk [vmem:[#allocation2 + $0xa7] sm:$0xff] %vm888, %v764
      %910 = vst.msk [vmem:[#allocation2 + $0xaf] sm:$0xff] %vm888, %v766
      %911 = vst.msk [vmem:[#allocation2 + $0xb7] sm:$0xff] %vm888, %v768
      %912 = vst.msk [vmem:[#allocation2 + $0xbf] sm:$0xff] %vm888, %v770
      %913 = vst.msk [vmem:[#allocation2 + $0xc7] sm:$0xff] %vm888, %v772
      %914 = vst.msk [vmem:[#allocation2 + $0xcf] sm:$0xff] %vm888, %v774
      %915 = vst.msk [vmem:[#allocation2 + $0xd7] sm:$0xff] %vm888, %v776
      %916 = vst.msk [vmem:[#allocation2 + $0xdf] sm:$0xff] %vm888, %v778
      %917 = vst.msk [vmem:[#allocation2 + $0xe7] sm:$0xff] %vm888, %v780
      %918 = vst.msk [vmem:[#allocation2 + $0xef] sm:$0xff] %vm888, %v782
      %919 = vst.msk [vmem:[#allocation2 + $0xf7] sm:$0xff] %vm888, %v784
      %920 = vst.msk [vmem:[#allocation2 + $0xff] sm:$0xff] %vm888, %v786
      %921 = vst.msk [vmem:[#allocation2 + $0x107] sm:$0xff] %vm888, %v788
      %922 = vst.msk [vmem:[#allocation2 + $0x10f] sm:$0xff] %vm888, %v790
      %923 = vst.msk [vmem:[#allocation2 + $0x117] sm:$0xff] %vm888, %v792
      %924 = vst.msk [vmem:[#allocation2 + $0x11f] sm:$0xff] %vm888, %v794
      %925 = vst.msk [vmem:[#allocation2 + $0x127] sm:$0xff] %vm888, %v796
      %926 = vst.msk [vmem:[#allocation2 + $0x12f] sm:$0xff] %vm888, %v798
      %927 = vst.msk [vmem:[#allocation2 + $0x137] sm:$0xff] %vm888, %v800
      %928 = vst.msk [vmem:[#allocation2 + $0x13f] sm:$0xff] %vm888, %v802
      %929 = vst.msk [vmem:[#allocation2 + $0x147] sm:$0xff] %vm888, %v804
      %930 = vst.msk [vmem:[#allocation2 + $0x14f] sm:$0xff] %vm888, %v806
      %931 = vst.msk [vmem:[#allocation2 + $0x157] sm:$0xff] %vm888, %v808
      %932 = vst.msk [vmem:[#allocation2 + $0x15f] sm:$0xff] %vm888, %v810
      %933 = vst.msk [vmem:[#allocation2 + $0x167] sm:$0xff] %vm888, %v812
      %934 = vst.msk [vmem:[#allocation2 + $0x16f] sm:$0xff] %vm888, %v814
      %935 = vst.msk [vmem:[#allocation2 + $0x177] sm:$0xff] %vm888, %v816
      %936 = vst.msk [vmem:[#allocation2 + $0x17f] sm:$0xff] %vm888, %v818
      %937 = vst.msk [vmem:[#allocation2 + $0x187] sm:$0xff] %vm888, %v820
      %938 = vst.msk [vmem:[#allocation2 + $0x18f] sm:$0xff] %vm888, %v822
      %939 = vst.msk [vmem:[#allocation2 + $0x197] sm:$0xff] %vm888, %v824
      %940 = vst.msk [vmem:[#allocation2 + $0x19f] sm:$0xff] %vm888, %v826
      %941 = vst.msk [vmem:[#allocation2 + $0x1a7] sm:$0xff] %vm888, %v828
      %vm942 = vcmask 90176
      %943 = vst.msk [vmem:[#allocation2 + $0x1af] sm:$0x1] %vm942, %v830
      %v944 = vld [vmem:[#allocation2] sm:$0xff]
      %v945 = vld [vmem:[#allocation2 + $0x8] sm:$0xff]
      %v946 = vld [vmem:[#allocation2 + $0x10] sm:$0xff]
      %v947 = vld [vmem:[#allocation2 + $0x18] sm:$0xff]
      %v948 = vld [vmem:[#allocation2 + $0x20] sm:$0xff]
      %v949 = vld [vmem:[#allocation2 + $0x28] sm:$0xff]
      %v950 = vld [vmem:[#allocation2 + $0x30] sm:$0xff]
      %v951 = vld [vmem:[#allocation2 + $0x38] sm:$0xff]
      %v952 = vld [vmem:[#allocation2 + $0x40] sm:$0xff]
      %v953 = vld [vmem:[#allocation2 + $0x48] sm:$0xff]
      %v954 = vld [vmem:[#allocation2 + $0x50] sm:$0xff]
      %v955 = vld [vmem:[#allocation2 + $0x58] sm:$0xff]
      %v956 = vld [vmem:[#allocation2 + $0x60] sm:$0xff]
      %v957 = vld [vmem:[#allocation2 + $0x68] sm:$0xff]
      %v958 = vld [vmem:[#allocation2 + $0x70] sm:$0xff]
      %v959 = vld [vmem:[#allocation2 + $0x78] sm:$0xff]
      %v960 = vld [vmem:[#allocation2 + $0x80] sm:$0xff]
      %v961 = vld [vmem:[#allocation2 + $0x88] sm:$0xff]
      %v962 = vld [vmem:[#allocation2 + $0x90] sm:$0xff]
      %v963 = vld [vmem:[#allocation2 + $0x98] sm:$0xff]
      %v964 = vld [vmem:[#allocation2 + $0xa0] sm:$0xff]
      %v965 = vld [vmem:[#allocation2 + $0xa8] sm:$0xff]
      %v966 = vld [vmem:[#allocation2 + $0xb0] sm:$0xff]
      %v967 = vld [vmem:[#allocation2 + $0xb8] sm:$0xff]
      %v968 = vld [vmem:[#allocation2 + $0xc0] sm:$0xff]
      %v969 = vld [vmem:[#allocation2 + $0xc8] sm:$0xff]
      %v970 = vld [vmem:[#allocation2 + $0xd0] sm:$0xff]
      %v971 = vld [vmem:[#allocation2 + $0xd8] sm:$0xff]
      %v972 = vld [vmem:[#allocation2 + $0xe0] sm:$0xff]
      %v973 = vld [vmem:[#allocation2 + $0xe8] sm:$0xff]
      %v974 = vld [vmem:[#allocation2 + $0xf0] sm:$0xff]
      %v975 = vld [vmem:[#allocation2 + $0xf8] sm:$0xff]
      %v976 = vld [vmem:[#allocation2 + $0x100] sm:$0xff]
      %v977 = vld [vmem:[#allocation2 + $0x108] sm:$0xff]
      %v978 = vld [vmem:[#allocation2 + $0x110] sm:$0xff]
      %v979 = vld [vmem:[#allocation2 + $0x118] sm:$0xff]
      %v980 = vld [vmem:[#allocation2 + $0x120] sm:$0xff]
      %v981 = vld [vmem:[#allocation2 + $0x128] sm:$0xff]
      %v982 = vld [vmem:[#allocation2 + $0x130] sm:$0xff]
      %v983 = vld [vmem:[#allocation2 + $0x138] sm:$0xff]
      %v984 = vld [vmem:[#allocation2 + $0x140] sm:$0xff]
      %v985 = vld [vmem:[#allocation2 + $0x148] sm:$0xff]
      %v986 = vld [vmem:[#allocation2 + $0x150] sm:$0xff]
      %v987 = vld [vmem:[#allocation2 + $0x158] sm:$0xff]
      %v988 = vld [vmem:[#allocation2 + $0x160] sm:$0xff]
      %v989 = vld [vmem:[#allocation2 + $0x168] sm:$0xff]
      %v990 = vld [vmem:[#allocation2 + $0x170] sm:$0xff]
      %v991 = vld [vmem:[#allocation2 + $0x178] sm:$0xff]
      %v992 = vpack.c.bf16 %v945, %v944
      %v993 = vpack.c.bf16 %v947, %v946
      %v994 = vpack.c.bf16 %v949, %v948
      %v995 = vpack.c.bf16 %v951, %v950
      %v996 = vpack.c.bf16 %v953, %v952
      %v997 = vpack.c.bf16 %v955, %v954
      %v998 = vpack.c.bf16 %v957, %v956
      %v999 = vpack.c.bf16 %v959, %v958
      %v1000 = vpack.c.bf16 %v961, %v960
      %v1001 = vpack.c.bf16 %v963, %v962
      %v1002 = vpack.c.bf16 %v965, %v964
      %v1003 = vpack.c.bf16 %v967, %v966
      %v1004 = vpack.c.bf16 %v969, %v968
      %v1005 = vpack.c.bf16 %v971, %v970
      %v1006 = vpack.c.bf16 %v973, %v972
      %v1007 = vpack.c.bf16 %v975, %v974
      %v1008 = vpack.c.bf16 %v977, %v976
      %v1009 = vpack.c.bf16 %v979, %v978
      %v1010 = vpack.c.bf16 %v981, %v980
      %v1011 = vpack.c.bf16 %v983, %v982
      %v1012 = vpack.c.bf16 %v985, %v984
      %v1013 = vpack.c.bf16 %v987, %v986
      %v1014 = vpack.c.bf16 %v989, %v988
      %v1015 = vpack.c.bf16 %v991, %v990
      %v1016 = vld [vmem:[%s1] sm:$0xf]
      %v1017 = vld [vmem:[%s1 + $0x4] sm:$0x3]
      %v1018 = vld [vmem:[#allocation2 + $0x180] sm:$0xff]
      %v1019 = vld [vmem:[#allocation2 + $0x188] sm:$0xff]
      %v1020 = vld [vmem:[#allocation2 + $0x190] sm:$0xff]
      %v1021 = vpack.c.bf16 %v948, %v947
      %v1022 = vpack.c.bf16 %v950, %v949
      %v1023 = vpack.c.bf16 %v952, %v951
      %v1024 = vpack.c.bf16 %v954, %v953
      %v1025 = vpack.c.bf16 %v956, %v955
      %v1026 = vpack.c.bf16 %v958, %v957
      %v1027 = vpack.c.bf16 %v960, %v959
      %v1028 = vpack.c.bf16 %v962, %v961
      %v1029 = vpack.c.bf16 %v964, %v963
      %v1030 = vpack.c.bf16 %v966, %v965
      %v1031 = vpack.c.bf16 %v968, %v967
      %v1032 = vpack.c.bf16 %v970, %v969
      %v1033 = vpack.c.bf16 %v972, %v971
      %v1034 = vpack.c.bf16 %v974, %v973
      %v1035 = vpack.c.bf16 %v976, %v975
      %v1036 = vpack.c.bf16 %v978, %v977
      %v1037 = vpack.c.bf16 %v980, %v979
      %v1038 = vpack.c.bf16 %v982, %v981
      %v1039 = vpack.c.bf16 %v984, %v983
      %v1040 = vpack.c.bf16 %v986, %v985
      %v1041 = vpack.c.bf16 %v988, %v987
      %v1042 = vpack.c.bf16 %v990, %v989
      %v1043 = vpack.c.bf16 %v1018, %v991
      %v1044 = vpack.c.bf16 %v1020, %v1019
      %s1045 = scalar_lea.vmem %s1, 8
      %v1046 = vld [vmem:[%s1045] sm:$0xf]
      %v1047 = vld [vmem:[%s1045 + $0x4] sm:$0x3]
      %v1050 = vunpack.c.l.b16 %v1046
      %v1051 = vunpack.c.l.b16 %v1047
      %v1052 = vpack.c.b16 %v1051, %v1050
      %vm1053 = vcmask 97280
      %v1055 = vsel %vm1053, %v1021, 0
      %v1058 = vsel %vm1053, %v1022, 0
      %v1061 = vsel %vm1053, %v1023, 0
      %v1064 = vsel %vm1053, %v1024, 0
      %v1067 = vsel %vm1053, %v1025, 0
      %v1070 = vsel %vm1053, %v1026, 0
      %v1073 = vsel %vm1053, %v1027, 0
      %v1076 = vsel %vm1053, %v1028, 0
      %v1079 = vsel %vm1053, %v1029, 0
      %v1082 = vsel %vm1053, %v1030, 0
      %v1085 = vsel %vm1053, %v1031, 0
      %v1088 = vsel %vm1053, %v1032, 0
      %v1091 = vsel %vm1053, %v1033, 0
      %v1094 = vsel %vm1053, %v1034, 0
      %v1097 = vsel %vm1053, %v1035, 0
      %v1100 = vsel %vm1053, %v1036, 0
      %v1103 = vsel %vm1053, %v1037, 0
      %v1106 = vsel %vm1053, %v1038, 0
      %v1109 = vsel %vm1053, %v1039, 0
      %v1112 = vsel %vm1053, %v1040, 0
      %v1115 = vsel %vm1053, %v1041, 0
      %v1118 = vsel %vm1053, %v1042, 0
      %v1121 = vsel %vm1053, %v1043, 0
      %v1124 = vsel %vm1053, %v1044, 0
      %vm1126 = vcmask 1045504
      %v1128 = vsel %vm1126, %v1052, 0
      %1130 = vmatprep.subr.bf16.mxu0 0
      %1131 = vmatpush1.bf16.msra.mxu0 %v1128
      %1132 = vmatprep.subr.bf16.mxu0 0
      %1133 = vmatpush1.bf16.msra.mxu0 0
      %1134 = vmatprep.subr.bf16.mxu0 0
      %1135 = vmatpush1.bf16.msra.mxu0 0
      %1136 = vmatprep.subr.bf16.mxu0 0
      %1137 = vmatpush1.bf16.msra.mxu0 0
      %1138 = vmatprep.subr.bf16.mxu0 0
      %1139 = vmatpush1.bf16.msra.mxu0 0
      %1140 = vmatprep.subr.bf16.mxu0 0
      %1141 = vmatpush1.bf16.msra.mxu0 0
      %1142 = vmatprep.subr.bf16.mxu0 0
      %1143 = vmatpush1.bf16.msra.mxu0 0
      %1144 = vmatprep.subr.bf16.mxu0 0
      %1145 = vmatpush1.bf16.msra.mxu0 0
      %1146 = vmatprep.subr.bf16.mxu0 0
      %1147 = vmatpush1.bf16.msra.mxu0 0
      %1148 = vmatprep.subr.bf16.mxu0 0
      %1149 = vmatpush1.bf16.msra.mxu0 0
      %1150 = vmatprep.subr.bf16.mxu0 0
      %1151 = vmatpush1.bf16.msra.mxu0 0
      %1152 = vmatprep.subr.bf16.mxu0 0
      %1153 = vmatpush1.bf16.msra.mxu0 0
      %1154 = vmatprep.subr.bf16.mxu0 0
      %1155 = vmatpush1.bf16.msra.mxu0 0
      %1156 = vmatprep.subr.bf16.mxu0 0
      %1157 = vmatpush1.bf16.msra.mxu0 0
      %1158 = vmatprep.subr.bf16.mxu0 0
      %1159 = vmatpush1.bf16.msra.mxu0 0
      %1160 = vmatprep.subr.bf16.mxu0 0
      %1161 = vmatpush1.bf16.msra.mxu0 0
      %1162 = vmatprep.mubr.bf16.mxu0 0
      %1163 = vmatmul.mubr.bf16.gmra.mrb[0].mxu0 %v1055
      %v1164 = vpop.f32.mrb[0].mxu0
      %v1165 = vadd.f32 0.0, %v1164
      %v1166 = vpop.f32.mrb[0].mxu0
      %v1167 = vpop.f32.mrb[0].mxu0
      %v1168 = vadd.f32 0.0, %v1167
      %v1169 = vpop.f32.mrb[0].mxu0
      %1170 = vmatprep.mubr.bf16.mxu0 0
      %1171 = vmatmul.mubr.bf16.gmra.mrb[0].mxu0 %v1058
      %v1172 = vpop.f32.mrb[0].mxu0
      %v1173 = vadd.f32 0.0, %v1172
      %v1174 = vpop.f32.mrb[0].mxu0
      %v1175 = vpop.f32.mrb[0].mxu0
      %v1176 = vadd.f32 0.0, %v1175
      %v1177 = vpop.f32.mrb[0].mxu0
      %1178 = vmatprep.mubr.bf16.mxu0 0
      %1179 = vmatmul.mubr.bf16.gmra.mrb[0].mxu0 %v1061
      %v1180 = vpop.f32.mrb[0].mxu0
      %v1181 = vadd.f32 0.0, %v1180
      %v1182 = vpop.f32.mrb[0].mxu0
      %v1183 = vpop.f32.mrb[0].mxu0
      %v1184 = vadd.f32 0.0, %v1183
      %v1185 = vpop.f32.mrb[0].mxu0
      %1186 = vmatprep.mubr.bf16.mxu0 0
      %1187 = vmatmul.mubr.bf16.gmra.mrb[0].mxu0 %v1064
      %v1188 = vpop.f32.mrb[0].mxu0
      %v1189 = vadd.f32 0.0, %v1188
      %v1190 = vpop.f32.mrb[0].mxu0
      %v1191 = vpop.f32.mrb[0].mxu0
      %v1192 = vadd.f32 0.0, %v1191
      %v1193 = vpop.f32.mrb[0].mxu0
      %1194 = vmatprep.mubr.bf16.mxu0 0
      %1195 = vmatmul.mubr.bf16.gmra.mrb[0].mxu0 %v1067
      %v1196 = vpop.f32.mrb[0].mxu0
      %v1197 = vadd.f32 0.0, %v1196
      %v1198 = vpop.f32.mrb[0].mxu0
      %v1199 = vpop.f32.mrb[0].mxu0
      %v1200 = vadd.f32 0.0, %v1199
      %v1201 = vpop.f32.mrb[0].mxu0
      %1202 = vmatprep.mubr.bf16.mxu0 0
      %1203 = vmatmul.mubr.bf16.gmra.mrb[0].mxu0 %v1070
      %v1204 = vpop.f32.mrb[0].mxu0
      %v1205 = vadd.f32 0.0, %v1204
      %v1206 = vpop.f32.mrb[0].mxu0
      %v1207 = vpop.f32.mrb[0].mxu0
      %v1208 = vadd.f32 0.0, %v1207
      %v1209 = vpop.f32.mrb[0].mxu0
      %1210 = vmatprep.mubr.bf16.mxu0 0
      %1211 = vmatmul.mubr.bf16.gmra.mrb[0].mxu0 %v1073
      %v1212 = vpop.f32.mrb[0].mxu0
      %v1213 = vadd.f32 0.0, %v1212
      %v1214 = vpop.f32.mrb[0].mxu0
      %v1215 = vpop.f32.mrb[0].mxu0
      %v1216 = vadd.f32 0.0, %v1215
      %v1217 = vpop.f32.mrb[0].mxu0
      %1218 = vmatprep.mubr.bf16.mxu0 0
      %1219 = vmatmul.mubr.bf16.gmra.mrb[0].mxu0 %v1076
      %v1220 = vpop.f32.mrb[0].mxu0
      %v1221 = vadd.f32 0.0, %v1220
      %v1222 = vpop.f32.mrb[0].mxu0
      %v1223 = vpop.f32.mrb[0].mxu0
      %v1224 = vadd.f32 0.0, %v1223
      %v1225 = vpop.f32.mrb[0].mxu0
      %1226 = vmatprep.mubr.bf16.mxu0 0
      %1227 = vmatmul.mubr.bf16.gmra.mrb[0].mxu0 %v1079
      %v1228 = vpop.f32.mrb[0].mxu0
      %v1229 = vadd.f32 0.0, %v1228
      %v1230 = vpop.f32.mrb[0].mxu0
      %v1231 = vpop.f32.mrb[0].mxu0
      %v1232 = vadd.f32 0.0, %v1231
      %v1233 = vpop.f32.mrb[0].mxu0
      %1234 = vmatprep.mubr.bf16.mxu0 0
      %1235 = vmatmul.mubr.bf16.gmra.mrb[0].mxu0 %v1082
      %v1236 = vpop.f32.mrb[0].mxu0
      %v1237 = vadd.f32 0.0, %v1236
      %v1238 = vpop.f32.mrb[0].mxu0
      %v1239 = vpop.f32.mrb[0].mxu0
      %v1240 = vadd.f32 0.0, %v1239
      %v1241 = vpop.f32.mrb[0].mxu0
      %1242 = vmatprep.mubr.bf16.mxu0 0
      %1243 = vmatmul.mubr.bf16.gmra.mrb[0].mxu0 %v1085
      %v1244 = vpop.f32.mrb[0].mxu0
      %v1245 = vadd.f32 0.0, %v1244
      %v1246 = vpop.f32.mrb[0].mxu0
      %v1247 = vpop.f32.mrb[0].mxu0
      %v1248 = vadd.f32 0.0, %v1247
      %v1249 = vpop.f32.mrb[0].mxu0
      %1250 = vmatprep.mubr.bf16.mxu0 0
      %1251 = vmatmul.mubr.bf16.gmra.mrb[0].mxu0 %v1088
      %v1252 = vpop.f32.mrb[0].mxu0
      %v1253 = vadd.f32 0.0, %v1252
      %v1254 = vpop.f32.mrb[0].mxu0
      %v1255 = vpop.f32.mrb[0].mxu0
      %v1256 = vadd.f32 0.0, %v1255
      %v1257 = vpop.f32.mrb[0].mxu0
      %1258 = vmatprep.mubr.bf16.mxu0 0
      %1259 = vmatmul.mubr.bf16.gmra.mrb[0].mxu0 %v1091
      %v1260 = vpop.f32.mrb[0].mxu0
      %v1261 = vadd.f32 0.0, %v1260
      %v1262 = vpop.f32.mrb[0].mxu0
      %v1263 = vpop.f32.mrb[0].mxu0
      %v1264 = vadd.f32 0.0, %v1263
      %v1265 = vpop.f32.mrb[0].mxu0
      %1266 = vmatprep.mubr.bf16.mxu0 0
      %1267 = vmatmul.mubr.bf16.gmra.mrb[0].mxu0 %v1094
      %v1268 = vpop.f32.mrb[0].mxu0
      %v1269 = vadd.f32 0.0, %v1268
      %v1270 = vpop.f32.mrb[0].mxu0
      %v1271 = vpop.f32.mrb[0].mxu0
      %v1272 = vadd.f32 0.0, %v1271
      %v1273 = vpop.f32.mrb[0].mxu0
      %1274 = vmatprep.mubr.bf16.mxu0 0
      %1275 = vmatmul.mubr.bf16.gmra.mrb[0].mxu0 %v1097
      %v1276 = vpop.f32.mrb[0].mxu0
      %v1277 = vadd.f32 0.0, %v1276
      %v1278 = vpop.f32.mrb[0].mxu0
      %v1279 = vpop.f32.mrb[0].mxu0
      %v1280 = vadd.f32 0.0, %v1279
      %v1281 = vpop.f32.mrb[0].mxu0
      %1282 = vmatprep.mubr.bf16.mxu0 0
      %1283 = vmatmul.mubr.bf16.gmra.mrb[0].mxu0 %v1100
      %v1284 = vpop.f32.mrb[0].mxu0
      %v1285 = vadd.f32 0.0, %v1284
      %v1286 = vpop.f32.mrb[0].mxu0
      %v1287 = vpop.f32.mrb[0].mxu0
      %v1288 = vadd.f32 0.0, %v1287
      %v1289 = vpop.f32.mrb[0].mxu0
      %1290 = vmatprep.mubr.bf16.mxu0 0
      %1291 = vmatmul.mubr.bf16.gmra.mrb[0].mxu0 %v1103
      %v1292 = vpop.f32.mrb[0].mxu0
      %v1293 = vadd.f32 0.0, %v1292
      %v1294 = vpop.f32.mrb[0].mxu0
      %v1295 = vpop.f32.mrb[0].mxu0
      %v1296 = vadd.f32 0.0, %v1295
      %v1297 = vpop.f32.mrb[0].mxu0
      %1298 = vmatprep.mubr.bf16.mxu0 0
      %1299 = vmatmul.mubr.bf16.gmra.mrb[0].mxu0 %v1106
      %v1300 = vpop.f32.mrb[0].mxu0
      %v1301 = vadd.f32 0.0, %v1300
      %v1302 = vpop.f32.mrb[0].mxu0
      %v1303 = vpop.f32.mrb[0].mxu0
      %v1304 = vadd.f32 0.0, %v1303
      %v1305 = vpop.f32.mrb[0].mxu0
      %1306 = vmatprep.mubr.bf16.mxu0 0
      %1307 = vmatmul.mubr.bf16.gmra.mrb[0].mxu0 %v1109
      %v1308 = vpop.f32.mrb[0].mxu0
      %v1309 = vadd.f32 0.0, %v1308
      %v1310 = vpop.f32.mrb[0].mxu0
      %v1311 = vpop.f32.mrb[0].mxu0
      %v1312 = vadd.f32 0.0, %v1311
      %v1313 = vpop.f32.mrb[0].mxu0
      %1314 = vmatprep.mubr.bf16.mxu0 0
      %1315 = vmatmul.mubr.bf16.gmra.mrb[0].mxu0 %v1112
      %v1316 = vpop.f32.mrb[0].mxu0
      %v1317 = vadd.f32 0.0, %v1316
      %v1318 = vpop.f32.mrb[0].mxu0
      %v1319 = vpop.f32.mrb[0].mxu0
      %v1320 = vadd.f32 0.0, %v1319
      %v1321 = vpop.f32.mrb[0].mxu0
      %1322 = vmatprep.mubr.bf16.mxu0 0
      %1323 = vmatmul.mubr.bf16.gmra.mrb[0].mxu0 %v1115
      %v1324 = vpop.f32.mrb[0].mxu0
      %v1325 = vadd.f32 0.0, %v1324
      %v1326 = vpop.f32.mrb[0].mxu0
      %v1327 = vpop.f32.mrb[0].mxu0
      %v1328 = vadd.f32 0.0, %v1327
      %v1329 = vpop.f32.mrb[0].mxu0
      %1330 = vmatprep.mubr.bf16.mxu0 0
      %1331 = vmatmul.mubr.bf16.gmra.mrb[0].mxu0 %v1118
      %v1332 = vpop.f32.mrb[0].mxu0
      %v1333 = vadd.f32 0.0, %v1332
      %v1334 = vpop.f32.mrb[0].mxu0
      %v1335 = vpop.f32.mrb[0].mxu0
      %v1336 = vadd.f32 0.0, %v1335
      %v1337 = vpop.f32.mrb[0].mxu0
      %1338 = vmatprep.mubr.bf16.mxu0 0
      %1339 = vmatmul.mubr.bf16.gmra.mrb[0].mxu0 %v1121
      %v1340 = vpop.f32.mrb[0].mxu0
      %v1341 = vadd.f32 0.0, %v1340
      %v1342 = vpop.f32.mrb[0].mxu0
      %v1343 = vpop.f32.mrb[0].mxu0
      %v1344 = vadd.f32 0.0, %v1343
      %v1345 = vpop.f32.mrb[0].mxu0
      %1346 = vmatprep.mubr.bf16.mxu0 0
      %1347 = vmatmul.mubr.bf16.gmra.mrb[0].mxu0 %v1124
      %v1348 = vpop.f32.mrb[0].mxu0
      %v1349 = vadd.f32 0.0, %v1348
      %v1350 = vpop.f32.mrb[0].mxu0
      %v1351 = vpop.f32.mrb[0].mxu0
      %v1352 = vadd.f32 0.0, %v1351
      %v1353 = vpop.f32.mrb[0].mxu0
      %1354 = vdwg.mxu0
      %v1357 = vunpack.c.l.b16 %v1016
      %v1358 = vunpack.c.l.b16 %v1017
      %v1359 = vpack.c.b16 %v1358, %v1357
      %v1361 = vsel %vm1053, %v992, 0
      %v1364 = vsel %vm1053, %v993, 0
      %v1367 = vsel %vm1053, %v994, 0
      %v1370 = vsel %vm1053, %v995, 0
      %v1373 = vsel %vm1053, %v996, 0
      %v1376 = vsel %vm1053, %v997, 0
      %v1379 = vsel %vm1053, %v998, 0
      %v1382 = vsel %vm1053, %v999, 0
      %v1385 = vsel %vm1053, %v1000, 0
      %v1388 = vsel %vm1053, %v1001, 0
      %v1391 = vsel %vm1053, %v1002, 0
      %v1394 = vsel %vm1053, %v1003, 0
      %v1397 = vsel %vm1053, %v1004, 0
      %v1400 = vsel %vm1053, %v1005, 0
      %v1403 = vsel %vm1053, %v1006, 0
      %v1406 = vsel %vm1053, %v1007, 0
      %v1409 = vsel %vm1053, %v1008, 0
      %v1412 = vsel %vm1053, %v1009, 0
      %v1415 = vsel %vm1053, %v1010, 0
      %v1418 = vsel %vm1053, %v1011, 0
      %v1421 = vsel %vm1053, %v1012, 0
      %v1424 = vsel %vm1053, %v1013, 0
      %v1427 = vsel %vm1053, %v1014, 0
      %v1430 = vsel %vm1053, %v1015, 0
      %v1433 = vsel %vm1126, %v1359, 0
      %1435 = vmatprep.subr.bf16.mxu0 0
      %1436 = vmatpush1.bf16.msra.mxu0 %v1433
      %1437 = vmatprep.subr.bf16.mxu0 0
      %1438 = vmatpush1.bf16.msra.mxu0 0
      %1439 = vmatprep.subr.bf16.mxu0 0
      %1440 = vmatpush1.bf16.msra.mxu0 0
      %1441 = vmatprep.subr.bf16.mxu0 0
      %1442 = vmatpush1.bf16.msra.mxu0 0
      %1443 = vmatprep.subr.bf16.mxu0 0
      %1444 = vmatpush1.bf16.msra.mxu0 0
      %1445 = vmatprep.subr.bf16.mxu0 0
      %1446 = vmatpush1.bf16.msra.mxu0 0
      %1447 = vmatprep.subr.bf16.mxu0 0
      %1448 = vmatpush1.bf16.msra.mxu0 0
      %1449 = vmatprep.subr.bf16.mxu0 0
      %1450 = vmatpush1.bf16.msra.mxu0 0
      %1451 = vmatprep.subr.bf16.mxu0 0
      %1452 = vmatpush1.bf16.msra.mxu0 0
      %1453 = vmatprep.subr.bf16.mxu0 0
      %1454 = vmatpush1.bf16.msra.mxu0 0
      %1455 = vmatprep.subr.bf16.mxu0 0
      %1456 = vmatpush1.bf16.msra.mxu0 0
      %1457 = vmatprep.subr.bf16.mxu0 0
      %1458 = vmatpush1.bf16.msra.mxu0 0
      %1459 = vmatprep.subr.bf16.mxu0 0
      %1460 = vmatpush1.bf16.msra.mxu0 0
      %1461 = vmatprep.subr.bf16.mxu0 0
      %1462 = vmatpush1.bf16.msra.mxu0 0
      %1463 = vmatprep.subr.bf16.mxu0 0
      %1464 = vmatpush1.bf16.msra.mxu0 0
      %1465 = vmatprep.subr.bf16.mxu0 0
      %1466 = vmatpush1.bf16.msra.mxu0 0
      %1467 = vmatprep.mubr.bf16.mxu0 0
      %1468 = vmatmul.mubr.bf16.gmra.mrb[0].mxu0 %v1361
      %v1469 = vpop.f32.mrb[0].mxu0
      %v1470 = vadd.f32 %v1165, %v1469
      %v1471 = vpop.f32.mrb[0].mxu0
      %v1472 = vpop.f32.mrb[0].mxu0
      %v1473 = vadd.f32 %v1168, %v1472
      %v1474 = vpop.f32.mrb[0].mxu0
      %1475 = vmatprep.mubr.bf16.mxu0 0
      %1476 = vmatmul.mubr.bf16.gmra.mrb[0].mxu0 %v1364
      %v1477 = vpop.f32.mrb[0].mxu0
      %v1478 = vadd.f32 %v1173, %v1477
      %v1479 = vpop.f32.mrb[0].mxu0
      %v1480 = vpop.f32.mrb[0].mxu0
      %v1481 = vadd.f32 %v1176, %v1480
      %v1482 = vpop.f32.mrb[0].mxu0
      %1483 = vmatprep.mubr.bf16.mxu0 0
      %1484 = vmatmul.mubr.bf16.gmra.mrb[0].mxu0 %v1367
      %v1485 = vpop.f32.mrb[0].mxu0
      %v1486 = vadd.f32 %v1181, %v1485
      %v1487 = vpop.f32.mrb[0].mxu0
      %v1488 = vpop.f32.mrb[0].mxu0
      %v1489 = vadd.f32 %v1184, %v1488
      %v1490 = vpop.f32.mrb[0].mxu0
      %1491 = vmatprep.mubr.bf16.mxu0 0
      %1492 = vmatmul.mubr.bf16.gmra.mrb[0].mxu0 %v1370
      %v1493 = vpop.f32.mrb[0].mxu0
      %v1494 = vadd.f32 %v1189, %v1493
      %v1495 = vpop.f32.mrb[0].mxu0
      %v1496 = vpop.f32.mrb[0].mxu0
      %v1497 = vadd.f32 %v1192, %v1496
      %v1498 = vpop.f32.mrb[0].mxu0
      %1499 = vmatprep.mubr.bf16.mxu0 0
      %1500 = vmatmul.mubr.bf16.gmra.mrb[0].mxu0 %v1373
      %v1501 = vpop.f32.mrb[0].mxu0
      %v1502 = vadd.f32 %v1197, %v1501
      %v1503 = vpop.f32.mrb[0].mxu0
      %v1504 = vpop.f32.mrb[0].mxu0
      %v1505 = vadd.f32 %v1200, %v1504
      %v1506 = vpop.f32.mrb[0].mxu0
      %1507 = vmatprep.mubr.bf16.mxu0 0
      %1508 = vmatmul.mubr.bf16.gmra.mrb[0].mxu0 %v1376
      %v1509 = vpop.f32.mrb[0].mxu0
      %v1510 = vadd.f32 %v1205, %v1509
      %v1511 = vpop.f32.mrb[0].mxu0
      %v1512 = vpop.f32.mrb[0].mxu0
      %v1513 = vadd.f32 %v1208, %v1512
      %v1514 = vpop.f32.mrb[0].mxu0
      %1515 = vmatprep.mubr.bf16.mxu0 0
      %1516 = vmatmul.mubr.bf16.gmra.mrb[0].mxu0 %v1379
      %v1517 = vpop.f32.mrb[0].mxu0
      %v1518 = vadd.f32 %v1213, %v1517
      %v1519 = vpop.f32.mrb[0].mxu0
      %v1520 = vpop.f32.mrb[0].mxu0
      %v1521 = vadd.f32 %v1216, %v1520
      %v1522 = vpop.f32.mrb[0].mxu0
      %1523 = vmatprep.mubr.bf16.mxu0 0
      %1524 = vmatmul.mubr.bf16.gmra.mrb[0].mxu0 %v1382
      %v1525 = vpop.f32.mrb[0].mxu0
      %v1526 = vadd.f32 %v1221, %v1525
      %v1527 = vpop.f32.mrb[0].mxu0
      %v1528 = vpop.f32.mrb[0].mxu0
      %v1529 = vadd.f32 %v1224, %v1528
      %v1530 = vpop.f32.mrb[0].mxu0
      %1531 = vmatprep.mubr.bf16.mxu0 0
      %1532 = vmatmul.mubr.bf16.gmra.mrb[0].mxu0 %v1385
      %v1533 = vpop.f32.mrb[0].mxu0
      %v1534 = vadd.f32 %v1229, %v1533
      %v1535 = vpop.f32.mrb[0].mxu0
      %v1536 = vpop.f32.mrb[0].mxu0
      %v1537 = vadd.f32 %v1232, %v1536
      %v1538 = vpop.f32.mrb[0].mxu0
      %1539 = vmatprep.mubr.bf16.mxu0 0
      %1540 = vmatmul.mubr.bf16.gmra.mrb[0].mxu0 %v1388
      %v1541 = vpop.f32.mrb[0].mxu0
      %v1542 = vadd.f32 %v1237, %v1541
      %v1543 = vpop.f32.mrb[0].mxu0
      %v1544 = vpop.f32.mrb[0].mxu0
      %v1545 = vadd.f32 %v1240, %v1544
      %v1546 = vpop.f32.mrb[0].mxu0
      %1547 = vmatprep.mubr.bf16.mxu0 0
      %1548 = vmatmul.mubr.bf16.gmra.mrb[0].mxu0 %v1391
      %v1549 = vpop.f32.mrb[0].mxu0
      %v1550 = vadd.f32 %v1245, %v1549
      %v1551 = vpop.f32.mrb[0].mxu0
      %v1552 = vpop.f32.mrb[0].mxu0
      %v1553 = vadd.f32 %v1248, %v1552
      %v1554 = vpop.f32.mrb[0].mxu0
      %1555 = vmatprep.mubr.bf16.mxu0 0
      %1556 = vmatmul.mubr.bf16.gmra.mrb[0].mxu0 %v1394
      %v1557 = vpop.f32.mrb[0].mxu0
      %v1558 = vadd.f32 %v1253, %v1557
      %v1559 = vpop.f32.mrb[0].mxu0
      %v1560 = vpop.f32.mrb[0].mxu0
      %v1561 = vadd.f32 %v1256, %v1560
      %v1562 = vpop.f32.mrb[0].mxu0
      %1563 = vmatprep.mubr.bf16.mxu0 0
      %1564 = vmatmul.mubr.bf16.gmra.mrb[0].mxu0 %v1397
      %v1565 = vpop.f32.mrb[0].mxu0
      %v1566 = vadd.f32 %v1261, %v1565
      %v1567 = vpop.f32.mrb[0].mxu0
      %v1568 = vpop.f32.mrb[0].mxu0
      %v1569 = vadd.f32 %v1264, %v1568
      %v1570 = vpop.f32.mrb[0].mxu0
      %1571 = vmatprep.mubr.bf16.mxu0 0
      %1572 = vmatmul.mubr.bf16.gmra.mrb[0].mxu0 %v1400
      %v1573 = vpop.f32.mrb[0].mxu0
      %v1574 = vadd.f32 %v1269, %v1573
      %v1575 = vpop.f32.mrb[0].mxu0
      %v1576 = vpop.f32.mrb[0].mxu0
      %v1577 = vadd.f32 %v1272, %v1576
      %v1578 = vpop.f32.mrb[0].mxu0
      %1579 = vmatprep.mubr.bf16.mxu0 0
      %1580 = vmatmul.mubr.bf16.gmra.mrb[0].mxu0 %v1403
      %v1581 = vpop.f32.mrb[0].mxu0
      %v1582 = vadd.f32 %v1277, %v1581
      %v1583 = vpop.f32.mrb[0].mxu0
      %v1584 = vpop.f32.mrb[0].mxu0
      %v1585 = vadd.f32 %v1280, %v1584
      %v1586 = vpop.f32.mrb[0].mxu0
      %1587 = vmatprep.mubr.bf16.mxu0 0
      %1588 = vmatmul.mubr.bf16.gmra.mrb[0].mxu0 %v1406
      %v1589 = vpop.f32.mrb[0].mxu0
      %v1590 = vadd.f32 %v1285, %v1589
      %v1591 = vpop.f32.mrb[0].mxu0
      %v1592 = vpop.f32.mrb[0].mxu0
      %v1593 = vadd.f32 %v1288, %v1592
      %v1594 = vpop.f32.mrb[0].mxu0
      %1595 = vmatprep.mubr.bf16.mxu0 0
      %1596 = vmatmul.mubr.bf16.gmra.mrb[0].mxu0 %v1409
      %v1597 = vpop.f32.mrb[0].mxu0
      %v1598 = vadd.f32 %v1293, %v1597
      %v1599 = vpop.f32.mrb[0].mxu0
      %v1600 = vpop.f32.mrb[0].mxu0
      %v1601 = vadd.f32 %v1296, %v1600
      %v1602 = vpop.f32.mrb[0].mxu0
      %1603 = vmatprep.mubr.bf16.mxu0 0
      %1604 = vmatmul.mubr.bf16.gmra.mrb[0].mxu0 %v1412
      %v1605 = vpop.f32.mrb[0].mxu0
      %v1606 = vadd.f32 %v1301, %v1605
      %v1607 = vpop.f32.mrb[0].mxu0
      %v1608 = vpop.f32.mrb[0].mxu0
      %v1609 = vadd.f32 %v1304, %v1608
      %v1610 = vpop.f32.mrb[0].mxu0
      %1611 = vmatprep.mubr.bf16.mxu0 0
      %1612 = vmatmul.mubr.bf16.gmra.mrb[0].mxu0 %v1415
      %v1613 = vpop.f32.mrb[0].mxu0
      %v1614 = vadd.f32 %v1309, %v1613
      %v1615 = vpop.f32.mrb[0].mxu0
      %v1616 = vpop.f32.mrb[0].mxu0
      %v1617 = vadd.f32 %v1312, %v1616
      %v1618 = vpop.f32.mrb[0].mxu0
      %1619 = vmatprep.mubr.bf16.mxu0 0
      %1620 = vmatmul.mubr.bf16.gmra.mrb[0].mxu0 %v1418
      %v1621 = vpop.f32.mrb[0].mxu0
      %v1622 = vadd.f32 %v1317, %v1621
      %v1623 = vpop.f32.mrb[0].mxu0
      %v1624 = vpop.f32.mrb[0].mxu0
      %v1625 = vadd.f32 %v1320, %v1624
      %v1626 = vpop.f32.mrb[0].mxu0
      %1627 = vmatprep.mubr.bf16.mxu0 0
      %1628 = vmatmul.mubr.bf16.gmra.mrb[0].mxu0 %v1421
      %v1629 = vpop.f32.mrb[0].mxu0
      %v1630 = vadd.f32 %v1325, %v1629
      %v1631 = vpop.f32.mrb[0].mxu0
      %v1632 = vpop.f32.mrb[0].mxu0
      %v1633 = vadd.f32 %v1328, %v1632
      %v1634 = vpop.f32.mrb[0].mxu0
      %1635 = vmatprep.mubr.bf16.mxu0 0
      %1636 = vmatmul.mubr.bf16.gmra.mrb[0].mxu0 %v1424
      %v1637 = vpop.f32.mrb[0].mxu0
      %v1638 = vadd.f32 %v1333, %v1637
      %v1639 = vpop.f32.mrb[0].mxu0
      %v1640 = vpop.f32.mrb[0].mxu0
      %v1641 = vadd.f32 %v1336, %v1640
      %v1642 = vpop.f32.mrb[0].mxu0
      %1643 = vmatprep.mubr.bf16.mxu0 0
      %1644 = vmatmul.mubr.bf16.gmra.mrb[0].mxu0 %v1427
      %v1645 = vpop.f32.mrb[0].mxu0
      %v1646 = vadd.f32 %v1341, %v1645
      %v1647 = vpop.f32.mrb[0].mxu0
      %v1648 = vpop.f32.mrb[0].mxu0
      %v1649 = vadd.f32 %v1344, %v1648
      %v1650 = vpop.f32.mrb[0].mxu0
      %1651 = vmatprep.mubr.bf16.mxu0 0
      %1652 = vmatmul.mubr.bf16.gmra.mrb[0].mxu0 %v1430
      %v1653 = vpop.f32.mrb[0].mxu0
      %v1654 = vadd.f32 %v1349, %v1653
      %v1655 = vpop.f32.mrb[0].mxu0
      %v1656 = vpop.f32.mrb[0].mxu0
      %v1657 = vadd.f32 %v1352, %v1656
      %v1658 = vpop.f32.mrb[0].mxu0
      %1659 = vdwg.mxu0
      %v1660 = vld [vmem:[#allocation2 + $0x30] sm:$0xff]
      %v1661 = vld [vmem:[#allocation2 + $0x38] sm:$0xff]
      %v1662 = vld [vmem:[#allocation2 + $0x40] sm:$0xff]
      %v1663 = vld [vmem:[#allocation2 + $0x48] sm:$0xff]
      %v1664 = vld [vmem:[#allocation2 + $0x50] sm:$0xff]
      %v1665 = vld [vmem:[#allocation2 + $0x58] sm:$0xff]
      %v1666 = vld [vmem:[#allocation2 + $0x60] sm:$0xff]
      %v1667 = vld [vmem:[#allocation2 + $0x68] sm:$0xff]
      %v1668 = vld [vmem:[#allocation2 + $0x70] sm:$0xff]
      %v1669 = vld [vmem:[#allocation2 + $0x78] sm:$0xff]
      %v1670 = vld [vmem:[#allocation2 + $0x80] sm:$0xff]
      %v1671 = vld [vmem:[#allocation2 + $0x88] sm:$0xff]
      %v1672 = vld [vmem:[#allocation2 + $0x90] sm:$0xff]
      %v1673 = vld [vmem:[#allocation2 + $0x98] sm:$0xff]
      %v1674 = vld [vmem:[#allocation2 + $0xa0] sm:$0xff]
      %v1675 = vld [vmem:[#allocation2 + $0xa8] sm:$0xff]
      %v1676 = vld [vmem:[#allocation2 + $0xb0] sm:$0xff]
      %v1677 = vld [vmem:[#allocation2 + $0xb8] sm:$0xff]
      %v1678 = vld [vmem:[#allocation2 + $0xc0] sm:$0xff]
      %v1679 = vld [vmem:[#allocation2 + $0xc8] sm:$0xff]
      %v1680 = vld [vmem:[#allocation2 + $0xd0] sm:$0xff]
      %v1681 = vld [vmem:[#allocation2 + $0xd8] sm:$0xff]
      %v1682 = vld [vmem:[#allocation2 + $0xe0] sm:$0xff]
      %v1683 = vld [vmem:[#allocation2 + $0xe8] sm:$0xff]
      %v1684 = vld [vmem:[#allocation2 + $0xf0] sm:$0xff]
      %v1685 = vld [vmem:[#allocation2 + $0xf8] sm:$0xff]
      %v1686 = vld [vmem:[#allocation2 + $0x100] sm:$0xff]
      %v1687 = vld [vmem:[#allocation2 + $0x108] sm:$0xff]
      %v1688 = vld [vmem:[#allocation2 + $0x110] sm:$0xff]
      %v1689 = vld [vmem:[#allocation2 + $0x118] sm:$0xff]
      %v1690 = vld [vmem:[#allocation2 + $0x120] sm:$0xff]
      %v1691 = vld [vmem:[#allocation2 + $0x128] sm:$0xff]
      %v1692 = vld [vmem:[#allocation2 + $0x130] sm:$0xff]
      %v1693 = vld [vmem:[#allocation2 + $0x138] sm:$0xff]
      %v1694 = vld [vmem:[#allocation2 + $0x140] sm:$0xff]
      %v1695 = vld [vmem:[#allocation2 + $0x148] sm:$0xff]
      %v1696 = vld [vmem:[#allocation2 + $0x150] sm:$0xff]
      %v1697 = vld [vmem:[#allocation2 + $0x158] sm:$0xff]
      %v1698 = vld [vmem:[#allocation2 + $0x160] sm:$0xff]
      %v1699 = vld [vmem:[#allocation2 + $0x168] sm:$0xff]
      %v1700 = vld [vmem:[#allocation2 + $0x170] sm:$0xff]
      %v1701 = vld [vmem:[#allocation2 + $0x178] sm:$0xff]
      %v1702 = vld [vmem:[#allocation2 + $0x180] sm:$0xff]
      %v1703 = vld [vmem:[#allocation2 + $0x188] sm:$0xff]
      %v1704 = vld [vmem:[#allocation2 + $0x190] sm:$0xff]
      %v1705 = vld [vmem:[#allocation2 + $0x198] sm:$0xff]
      %v1706 = vld [vmem:[#allocation2 + $0x1a0] sm:$0xff]
      %v1707 = vld [vmem:[#allocation2 + $0x1a8] sm:$0xff]
      %v1708 = vpack.c.bf16 %v1661, %v1660
      %v1709 = vpack.c.bf16 %v1663, %v1662
      %v1710 = vpack.c.bf16 %v1665, %v1664
      %v1711 = vpack.c.bf16 %v1667, %v1666
      %v1712 = vpack.c.bf16 %v1669, %v1668
      %v1713 = vpack.c.bf16 %v1671, %v1670
      %v1714 = vpack.c.bf16 %v1673, %v1672
      %v1715 = vpack.c.bf16 %v1675, %v1674
      %v1716 = vpack.c.bf16 %v1677, %v1676
      %v1717 = vpack.c.bf16 %v1679, %v1678
      %v1718 = vpack.c.bf16 %v1681, %v1680
      %v1719 = vpack.c.bf16 %v1683, %v1682
      %v1720 = vpack.c.bf16 %v1685, %v1684
      %v1721 = vpack.c.bf16 %v1687, %v1686
      %v1722 = vpack.c.bf16 %v1689, %v1688
      %v1723 = vpack.c.bf16 %v1691, %v1690
      %v1724 = vpack.c.bf16 %v1693, %v1692
      %v1725 = vpack.c.bf16 %v1695, %v1694
      %v1726 = vpack.c.bf16 %v1697, %v1696
      %v1727 = vpack.c.bf16 %v1699, %v1698
      %v1728 = vpack.c.bf16 %v1701, %v1700
      %v1729 = vpack.c.bf16 %v1703, %v1702
      %v1730 = vpack.c.bf16 %v1705, %v1704
      %v1731 = vpack.c.bf16 %v1707, %v1706
      %s1732 = scalar_lea.vmem %s1, 16
      %v1733 = vld [vmem:[%s1732] sm:$0xf]
      %v1734 = vld [vmem:[%s1732 + $0x4] sm:$0x3]
      %v1737 = vunpack.c.l.b16 %v1733
      %v1738 = vunpack.c.l.b16 %v1734
      %v1739 = vpack.c.b16 %v1738, %v1737
      %v1741 = vsel %vm1053, %v1708, 0
      %v1744 = vsel %vm1053, %v1709, 0
      %v1747 = vsel %vm1053, %v1710, 0
      %v1750 = vsel %vm1053, %v1711, 0
      %v1753 = vsel %vm1053, %v1712, 0
      %v1756 = vsel %vm1053, %v1713, 0
      %v1759 = vsel %vm1053, %v1714, 0
      %v1762 = vsel %vm1053, %v1715, 0
      %v1765 = vsel %vm1053, %v1716, 0
      %v1768 = vsel %vm1053, %v1717, 0
      %v1771 = vsel %vm1053, %v1718, 0
      %v1774 = vsel %vm1053, %v1719, 0
      %v1777 = vsel %vm1053, %v1720, 0
      %v1780 = vsel %vm1053, %v1721, 0
      %v1783 = vsel %vm1053, %v1722, 0
      %v1786 = vsel %vm1053, %v1723, 0
      %v1789 = vsel %vm1053, %v1724, 0
      %v1792 = vsel %vm1053, %v1725, 0
      %v1795 = vsel %vm1053, %v1726, 0
      %v1798 = vsel %vm1053, %v1727, 0
      %v1801 = vsel %vm1053, %v1728, 0
      %v1804 = vsel %vm1053, %v1729, 0
      %v1807 = vsel %vm1053, %v1730, 0
      %v1810 = vsel %vm1053, %v1731, 0
      %v1813 = vsel %vm1126, %v1739, 0
      %1815 = vmatprep.subr.bf16.mxu0 0
      %1816 = vmatpush1.bf16.msra.mxu0 %v1813
      %1817 = vmatprep.subr.bf16.mxu0 0
      %1818 = vmatpush1.bf16.msra.mxu0 0
      %1819 = vmatprep.subr.bf16.mxu0 0
      %1820 = vmatpush1.bf16.msra.mxu0 0
      %1821 = vmatprep.subr.bf16.mxu0 0
      %1822 = vmatpush1.bf16.msra.mxu0 0
      %1823 = vmatprep.subr.bf16.mxu0 0
      %1824 = vmatpush1.bf16.msra.mxu0 0
      %1825 = vmatprep.subr.bf16.mxu0 0
      %1826 = vmatpush1.bf16.msra.mxu0 0
      %1827 = vmatprep.subr.bf16.mxu0 0
      %1828 = vmatpush1.bf16.msra.mxu0 0
      %1829 = vmatprep.subr.bf16.mxu0 0
      %1830 = vmatpush1.bf16.msra.mxu0 0
      %1831 = vmatprep.subr.bf16.mxu0 0
      %1832 = vmatpush1.bf16.msra.mxu0 0
      %1833 = vmatprep.subr.bf16.mxu0 0
      %1834 = vmatpush1.bf16.msra.mxu0 0
      %1835 = vmatprep.subr.bf16.mxu0 0
      %1836 = vmatpush1.bf16.msra.mxu0 0
      %1837 = vmatprep.subr.bf16.mxu0 0
      %1838 = vmatpush1.bf16.msra.mxu0 0
      %1839 = vmatprep.subr.bf16.mxu0 0
      %1840 = vmatpush1.bf16.msra.mxu0 0
      %1841 = vmatprep.subr.bf16.mxu0 0
      %1842 = vmatpush1.bf16.msra.mxu0 0
      %1843 = vmatprep.subr.bf16.mxu0 0
      %1844 = vmatpush1.bf16.msra.mxu0 0
      %1845 = vmatprep.subr.bf16.mxu0 0
      %1846 = vmatpush1.bf16.msra.mxu0 0
      %1847 = vmatprep.mubr.bf16.mxu0 0
      %1848 = vmatmul.mubr.bf16.gmra.mrb[0].mxu0 %v1741
      %v1849 = vpop.f32.mrb[0].mxu0
      %v1850 = vadd.f32 0.0, %v1849
      %v1851 = vpop.f32.mrb[0].mxu0
      %v1852 = vpop.f32.mrb[0].mxu0
      %v1853 = vadd.f32 0.0, %v1852
      %v1854 = vpop.f32.mrb[0].mxu0
      %1855 = vmatprep.mubr.bf16.mxu0 0
      %1856 = vmatmul.mubr.bf16.gmra.mrb[0].mxu0 %v1744
      %v1857 = vpop.f32.mrb[0].mxu0
      %v1858 = vadd.f32 0.0, %v1857
      %v1859 = vpop.f32.mrb[0].mxu0
      %v1860 = vpop.f32.mrb[0].mxu0
      %v1861 = vadd.f32 0.0, %v1860
      %v1862 = vpop.f32.mrb[0].mxu0
      %1863 = vmatprep.mubr.bf16.mxu0 0
      %1864 = vmatmul.mubr.bf16.gmra.mrb[0].mxu0 %v1747
      %v1865 = vpop.f32.mrb[0].mxu0
      %v1866 = vadd.f32 0.0, %v1865
      %v1867 = vpop.f32.mrb[0].mxu0
      %v1868 = vpop.f32.mrb[0].mxu0
      %v1869 = vadd.f32 0.0, %v1868
      %v1870 = vpop.f32.mrb[0].mxu0
      %1871 = vmatprep.mubr.bf16.mxu0 0
      %1872 = vmatmul.mubr.bf16.gmra.mrb[0].mxu0 %v1750
      %v1873 = vpop.f32.mrb[0].mxu0
      %v1874 = vadd.f32 0.0, %v1873
      %v1875 = vpop.f32.mrb[0].mxu0
      %v1876 = vpop.f32.mrb[0].mxu0
      %v1877 = vadd.f32 0.0, %v1876
      %v1878 = vpop.f32.mrb[0].mxu0
      %1879 = vmatprep.mubr.bf16.mxu0 0
      %1880 = vmatmul.mubr.bf16.gmra.mrb[0].mxu0 %v1753
      %v1881 = vpop.f32.mrb[0].mxu0
      %v1882 = vadd.f32 0.0, %v1881
      %v1883 = vpop.f32.mrb[0].mxu0
      %v1884 = vpop.f32.mrb[0].mxu0
      %v1885 = vadd.f32 0.0, %v1884
      %v1886 = vpop.f32.mrb[0].mxu0
      %1887 = vmatprep.mubr.bf16.mxu0 0
      %1888 = vmatmul.mubr.bf16.gmra.mrb[0].mxu0 %v1756
      %v1889 = vpop.f32.mrb[0].mxu0
      %v1890 = vadd.f32 0.0, %v1889
      %v1891 = vpop.f32.mrb[0].mxu0
      %v1892 = vpop.f32.mrb[0].mxu0
      %v1893 = vadd.f32 0.0, %v1892
      %v1894 = vpop.f32.mrb[0].mxu0
      %1895 = vmatprep.mubr.bf16.mxu0 0
      %1896 = vmatmul.mubr.bf16.gmra.mrb[0].mxu0 %v1759
      %v1897 = vpop.f32.mrb[0].mxu0
      %v1898 = vadd.f32 0.0, %v1897
      %v1899 = vpop.f32.mrb[0].mxu0
      %v1900 = vpop.f32.mrb[0].mxu0
      %v1901 = vadd.f32 0.0, %v1900
      %v1902 = vpop.f32.mrb[0].mxu0
      %1903 = vmatprep.mubr.bf16.mxu0 0
      %1904 = vmatmul.mubr.bf16.gmra.mrb[0].mxu0 %v1762
      %v1905 = vpop.f32.mrb[0].mxu0
      %v1906 = vadd.f32 0.0, %v1905
      %v1907 = vpop.f32.mrb[0].mxu0
      %v1908 = vpop.f32.mrb[0].mxu0
      %v1909 = vadd.f32 0.0, %v1908
      %v1910 = vpop.f32.mrb[0].mxu0
      %1911 = vmatprep.mubr.bf16.mxu0 0
      %1912 = vmatmul.mubr.bf16.gmra.mrb[0].mxu0 %v1765
      %v1913 = vpop.f32.mrb[0].mxu0
      %v1914 = vadd.f32 0.0, %v1913
      %v1915 = vpop.f32.mrb[0].mxu0
      %v1916 = vpop.f32.mrb[0].mxu0
      %v1917 = vadd.f32 0.0, %v1916
      %v1918 = vpop.f32.mrb[0].mxu0
      %1919 = vmatprep.mubr.bf16.mxu0 0
      %1920 = vmatmul.mubr.bf16.gmra.mrb[0].mxu0 %v1768
      %v1921 = vpop.f32.mrb[0].mxu0
      %v1922 = vadd.f32 0.0, %v1921
      %v1923 = vpop.f32.mrb[0].mxu0
      %v1924 = vpop.f32.mrb[0].mxu0
      %v1925 = vadd.f32 0.0, %v1924
      %v1926 = vpop.f32.mrb[0].mxu0
      %1927 = vmatprep.mubr.bf16.mxu0 0
      %1928 = vmatmul.mubr.bf16.gmra.mrb[0].mxu0 %v1771
      %v1929 = vpop.f32.mrb[0].mxu0
      %v1930 = vadd.f32 0.0, %v1929
      %v1931 = vpop.f32.mrb[0].mxu0
      %v1932 = vpop.f32.mrb[0].mxu0
      %v1933 = vadd.f32 0.0, %v1932
      %v1934 = vpop.f32.mrb[0].mxu0
      %1935 = vmatprep.mubr.bf16.mxu0 0
      %1936 = vmatmul.mubr.bf16.gmra.mrb[0].mxu0 %v1774
      %v1937 = vpop.f32.mrb[0].mxu0
      %v1938 = vadd.f32 0.0, %v1937
      %v1939 = vpop.f32.mrb[0].mxu0
      %v1940 = vpop.f32.mrb[0].mxu0
      %v1941 = vadd.f32 0.0, %v1940
      %v1942 = vpop.f32.mrb[0].mxu0
      %1943 = vmatprep.mubr.bf16.mxu0 0
      %1944 = vmatmul.mubr.bf16.gmra.mrb[0].mxu0 %v1777
      %v1945 = vpop.f32.mrb[0].mxu0
      %v1946 = vadd.f32 0.0, %v1945
      %v1947 = vpop.f32.mrb[0].mxu0
      %v1948 = vpop.f32.mrb[0].mxu0
      %v1949 = vadd.f32 0.0, %v1948
      %v1950 = vpop.f32.mrb[0].mxu0
      %1951 = vmatprep.mubr.bf16.mxu0 0
      %1952 = vmatmul.mubr.bf16.gmra.mrb[0].mxu0 %v1780
      %v1953 = vpop.f32.mrb[0].mxu0
      %v1954 = vadd.f32 0.0, %v1953
      %v1955 = vpop.f32.mrb[0].mxu0
      %v1956 = vpop.f32.mrb[0].mxu0
      %v1957 = vadd.f32 0.0, %v1956
      %v1958 = vpop.f32.mrb[0].mxu0
      %1959 = vmatprep.mubr.bf16.mxu0 0
      %1960 = vmatmul.mubr.bf16.gmra.mrb[0].mxu0 %v1783
      %v1961 = vpop.f32.mrb[0].mxu0
      %v1962 = vadd.f32 0.0, %v1961
      %v1963 = vpop.f32.mrb[0].mxu0
      %v1964 = vpop.f32.mrb[0].mxu0
      %v1965 = vadd.f32 0.0, %v1964
      %v1966 = vpop.f32.mrb[0].mxu0
      %1967 = vmatprep.mubr.bf16.mxu0 0
      %1968 = vmatmul.mubr.bf16.gmra.mrb[0].mxu0 %v1786
      %v1969 = vpop.f32.mrb[0].mxu0
      %v1970 = vadd.f32 0.0, %v1969
      %v1971 = vpop.f32.mrb[0].mxu0
      %v1972 = vpop.f32.mrb[0].mxu0
      %v1973 = vadd.f32 0.0, %v1972
      %v1974 = vpop.f32.mrb[0].mxu0
      %1975 = vmatprep.mubr.bf16.mxu0 0
      %1976 = vmatmul.mubr.bf16.gmra.mrb[0].mxu0 %v1789
      %v1977 = vpop.f32.mrb[0].mxu0
      %v1978 = vadd.f32 0.0, %v1977
      %v1979 = vpop.f32.mrb[0].mxu0
      %v1980 = vpop.f32.mrb[0].mxu0
      %v1981 = vadd.f32 0.0, %v1980
      %v1982 = vpop.f32.mrb[0].mxu0
      %1983 = vmatprep.mubr.bf16.mxu0 0
      %1984 = vmatmul.mubr.bf16.gmra.mrb[0].mxu0 %v1792
      %v1985 = vpop.f32.mrb[0].mxu0
      %v1986 = vadd.f32 0.0, %v1985
      %v1987 = vpop.f32.mrb[0].mxu0
      %v1988 = vpop.f32.mrb[0].mxu0
      %v1989 = vadd.f32 0.0, %v1988
      %v1990 = vpop.f32.mrb[0].mxu0
      %1991 = vmatprep.mubr.bf16.mxu0 0
      %1992 = vmatmul.mubr.bf16.gmra.mrb[0].mxu0 %v1795
      %v1993 = vpop.f32.mrb[0].mxu0
      %v1994 = vadd.f32 0.0, %v1993
      %v1995 = vpop.f32.mrb[0].mxu0
      %v1996 = vpop.f32.mrb[0].mxu0
      %v1997 = vadd.f32 0.0, %v1996
      %v1998 = vpop.f32.mrb[0].mxu0
      %1999 = vmatprep.mubr.bf16.mxu0 0
      %2000 = vmatmul.mubr.bf16.gmra.mrb[0].mxu0 %v1798
      %v2001 = vpop.f32.mrb[0].mxu0
      %v2002 = vadd.f32 0.0, %v2001
      %v2003 = vpop.f32.mrb[0].mxu0
      %v2004 = vpop.f32.mrb[0].mxu0
      %v2005 = vadd.f32 0.0, %v2004
      %v2006 = vpop.f32.mrb[0].mxu0
      %2007 = vmatprep.mubr.bf16.mxu0 0
      %2008 = vmatmul.mubr.bf16.gmra.mrb[0].mxu0 %v1801
      %v2009 = vpop.f32.mrb[0].mxu0
      %v2010 = vadd.f32 0.0, %v2009
      %v2011 = vpop.f32.mrb[0].mxu0
      %v2012 = vpop.f32.mrb[0].mxu0
      %v2013 = vadd.f32 0.0, %v2012
      %v2014 = vpop.f32.mrb[0].mxu0
      %2015 = vmatprep.mubr.bf16.mxu0 0
      %2016 = vmatmul.mubr.bf16.gmra.mrb[0].mxu0 %v1804
      %v2017 = vpop.f32.mrb[0].mxu0
      %v2018 = vadd.f32 0.0, %v2017
      %v2019 = vpop.f32.mrb[0].mxu0
      %v2020 = vpop.f32.mrb[0].mxu0
      %v2021 = vadd.f32 0.0, %v2020
      %v2022 = vpop.f32.mrb[0].mxu0
      %2023 = vmatprep.mubr.bf16.mxu0 0
      %2024 = vmatmul.mubr.bf16.gmra.mrb[0].mxu0 %v1807
      %v2025 = vpop.f32.mrb[0].mxu0
      %v2026 = vadd.f32 0.0, %v2025
      %v2027 = vpop.f32.mrb[0].mxu0
      %v2028 = vpop.f32.mrb[0].mxu0
      %v2029 = vadd.f32 0.0, %v2028
      %v2030 = vpop.f32.mrb[0].mxu0
      %2031 = vmatprep.mubr.bf16.mxu0 0
      %2032 = vmatmul.mubr.bf16.gmra.mrb[0].mxu0 %v1810
      %v2033 = vpop.f32.mrb[0].mxu0
      %v2034 = vadd.f32 0.0, %v2033
      %v2035 = vpop.f32.mrb[0].mxu0
      %v2036 = vpop.f32.mrb[0].mxu0
      %v2037 = vadd.f32 0.0, %v2036
      %v2038 = vpop.f32.mrb[0].mxu0
      %2039 = vdwg.mxu0
      %v2040 = vadd.f32 %v1470, %v1850
      %v2041 = vadd.f32 %v1473, %v1853
      %v2042 = vadd.f32 %v1478, %v1858
      %v2043 = vadd.f32 %v1481, %v1861
      %v2044 = vadd.f32 %v1486, %v1866
      %v2045 = vadd.f32 %v1489, %v1869
      %v2046 = vadd.f32 %v1494, %v1874
      %v2047 = vadd.f32 %v1497, %v1877
      %v2048 = vadd.f32 %v1502, %v1882
      %v2049 = vadd.f32 %v1505, %v1885
      %v2050 = vadd.f32 %v1510, %v1890
      %v2051 = vadd.f32 %v1513, %v1893
      %v2052 = vadd.f32 %v1518, %v1898
      %v2053 = vadd.f32 %v1521, %v1901
      %v2054 = vadd.f32 %v1526, %v1906
      %v2055 = vadd.f32 %v1529, %v1909
      %v2056 = vadd.f32 %v1534, %v1914
      %v2057 = vadd.f32 %v1537, %v1917
      %v2058 = vadd.f32 %v1542, %v1922
      %v2059 = vadd.f32 %v1545, %v1925
      %v2060 = vadd.f32 %v1550, %v1930
      %v2061 = vadd.f32 %v1553, %v1933
      %v2062 = vadd.f32 %v1558, %v1938
      %v2063 = vadd.f32 %v1561, %v1941
      %v2064 = vadd.f32 %v1566, %v1946
      %v2065 = vadd.f32 %v1569, %v1949
      %v2066 = vadd.f32 %v1574, %v1954
      %v2067 = vadd.f32 %v1577, %v1957
      %v2068 = vadd.f32 %v1582, %v1962
      %v2069 = vadd.f32 %v1585, %v1965
      %v2070 = vadd.f32 %v1590, %v1970
      %v2071 = vadd.f32 %v1593, %v1973
      %v2072 = vadd.f32 %v1598, %v1978
      %v2073 = vadd.f32 %v1601, %v1981
      %v2074 = vadd.f32 %v1606, %v1986
      %v2075 = vadd.f32 %v1609, %v1989
      %v2076 = vadd.f32 %v1614, %v1994
      %v2077 = vadd.f32 %v1617, %v1997
      %v2078 = vadd.f32 %v1622, %v2002
      %v2079 = vadd.f32 %v1625, %v2005
      %v2080 = vadd.f32 %v1630, %v2010
      %v2081 = vadd.f32 %v1633, %v2013
      %v2082 = vadd.f32 %v1638, %v2018
      %v2083 = vadd.f32 %v1641, %v2021
      %v2084 = vadd.f32 %v1646, %v2026
      %v2085 = vadd.f32 %v1649, %v2029
      %v2086 = vadd.f32 %v1654, %v2034
      %v2087 = vadd.f32 %v1657, %v2037
      %vm2088 = vcmp.ge.f32.partialorder %v2040, 0.0
      %vm2089 = vcmp.ge.f32.partialorder %v2041, 0.0
      %vm2090 = vcmp.ge.f32.partialorder %v2042, 0.0
      %vm2091 = vcmp.ge.f32.partialorder %v2043, 0.0
      %vm2092 = vcmp.ge.f32.partialorder %v2044, 0.0
      %vm2093 = vcmp.ge.f32.partialorder %v2045, 0.0
      %vm2094 = vcmp.ge.f32.partialorder %v2046, 0.0
      %vm2095 = vcmp.ge.f32.partialorder %v2047, 0.0
      %vm2096 = vcmp.ge.f32.partialorder %v2048, 0.0
      %vm2097 = vcmp.ge.f32.partialorder %v2049, 0.0
      %vm2098 = vcmp.ge.f32.partialorder %v2050, 0.0
      %vm2099 = vcmp.ge.f32.partialorder %v2051, 0.0
      %vm2100 = vcmp.ge.f32.partialorder %v2052, 0.0
      %vm2101 = vcmp.ge.f32.partialorder %v2053, 0.0
      %vm2102 = vcmp.ge.f32.partialorder %v2054, 0.0
      %vm2103 = vcmp.ge.f32.partialorder %v2055, 0.0
      %vm2104 = vcmp.ge.f32.partialorder %v2056, 0.0
      %vm2105 = vcmp.ge.f32.partialorder %v2057, 0.0
      %vm2106 = vcmp.ge.f32.partialorder %v2058, 0.0
      %vm2107 = vcmp.ge.f32.partialorder %v2059, 0.0
      %vm2108 = vcmp.ge.f32.partialorder %v2060, 0.0
      %vm2109 = vcmp.ge.f32.partialorder %v2061, 0.0
      %vm2110 = vcmp.ge.f32.partialorder %v2062, 0.0
      %vm2111 = vcmp.ge.f32.partialorder %v2063, 0.0
      %vm2112 = vcmp.ge.f32.partialorder %v2064, 0.0
      %vm2113 = vcmp.ge.f32.partialorder %v2065, 0.0
      %vm2114 = vcmp.ge.f32.partialorder %v2066, 0.0
      %vm2115 = vcmp.ge.f32.partialorder %v2067, 0.0
      %vm2116 = vcmp.ge.f32.partialorder %v2068, 0.0
      %vm2117 = vcmp.ge.f32.partialorder %v2069, 0.0
      %vm2118 = vcmp.ge.f32.partialorder %v2070, 0.0
      %vm2119 = vcmp.ge.f32.partialorder %v2071, 0.0
      %vm2120 = vcmp.ge.f32.partialorder %v2072, 0.0
      %vm2121 = vcmp.ge.f32.partialorder %v2073, 0.0
      %vm2122 = vcmp.ge.f32.partialorder %v2074, 0.0
      %vm2123 = vcmp.ge.f32.partialorder %v2075, 0.0
      %vm2124 = vcmp.ge.f32.partialorder %v2076, 0.0
      %vm2125 = vcmp.ge.f32.partialorder %v2077, 0.0
      %vm2126 = vcmp.ge.f32.partialorder %v2078, 0.0
      %vm2127 = vcmp.ge.f32.partialorder %v2079, 0.0
      %vm2128 = vcmp.ge.f32.partialorder %v2080, 0.0
      %vm2129 = vcmp.ge.f32.partialorder %v2081, 0.0
      %vm2130 = vcmp.ge.f32.partialorder %v2082, 0.0
      %vm2131 = vcmp.ge.f32.partialorder %v2083, 0.0
      %vm2132 = vcmp.ge.f32.partialorder %v2084, 0.0
      %vm2133 = vcmp.ge.f32.partialorder %v2085, 0.0
      %vm2134 = vcmp.ge.f32.partialorder %v2086, 0.0
      %vm2135 = vcmp.ge.f32.partialorder %v2087, 0.0
      %v2136 = vmul.f32 %v2040, 0.2
      %v2137 = vmul.f32 %v2041, 0.2
      %v2138 = vmul.f32 %v2042, 0.2
      %v2139 = vmul.f32 %v2043, 0.2
      %v2140 = vmul.f32 %v2044, 0.2
      %v2141 = vmul.f32 %v2045, 0.2
      %v2142 = vmul.f32 %v2046, 0.2
      %v2143 = vmul.f32 %v2047, 0.2
      %v2144 = vmul.f32 %v2048, 0.2
      %v2145 = vmul.f32 %v2049, 0.2
      %v2146 = vmul.f32 %v2050, 0.2
      %v2147 = vmul.f32 %v2051, 0.2
      %v2148 = vmul.f32 %v2052, 0.2
      %v2149 = vmul.f32 %v2053, 0.2
      %v2150 = vmul.f32 %v2054, 0.2
      %v2151 = vmul.f32 %v2055, 0.2
      %v2152 = vmul.f32 %v2056, 0.2
      %v2153 = vmul.f32 %v2057, 0.2
      %v2154 = vmul.f32 %v2058, 0.2
      %v2155 = vmul.f32 %v2059, 0.2
      %v2156 = vmul.f32 %v2060, 0.2
      %v2157 = vmul.f32 %v2061, 0.2
      %v2158 = vmul.f32 %v2062, 0.2
      %v2159 = vmul.f32 %v2063, 0.2
      %v2160 = vmul.f32 %v2064, 0.2
      %v2161 = vmul.f32 %v2065, 0.2
      %v2162 = vmul.f32 %v2066, 0.2
      %v2163 = vmul.f32 %v2067, 0.2
      %v2164 = vmul.f32 %v2068, 0.2
      %v2165 = vmul.f32 %v2069, 0.2
      %v2166 = vmul.f32 %v2070, 0.2
      %v2167 = vmul.f32 %v2071, 0.2
      %v2168 = vmul.f32 %v2072, 0.2
      %v2169 = vmul.f32 %v2073, 0.2
      %v2170 = vmul.f32 %v2074, 0.2
      %v2171 = vmul.f32 %v2075, 0.2
      %v2172 = vmul.f32 %v2076, 0.2
      %v2173 = vmul.f32 %v2077, 0.2
      %v2174 = vmul.f32 %v2078, 0.2
      %v2175 = vmul.f32 %v2079, 0.2
      %v2176 = vmul.f32 %v2080, 0.2
      %v2177 = vmul.f32 %v2081, 0.2
      %v2178 = vmul.f32 %v2082, 0.2
      %v2179 = vmul.f32 %v2083, 0.2
      %v2180 = vmul.f32 %v2084, 0.2
      %v2181 = vmul.f32 %v2085, 0.2
      %v2182 = vmul.f32 %v2086, 0.2
      %v2183 = vmul.f32 %v2087, 0.2
      %v2184 = vsel %vm2088, %v2040, %v2136
      %v2185 = vsel %vm2089, %v2041, %v2137
      %v2186 = vsel %vm2090, %v2042, %v2138
      %v2187 = vsel %vm2091, %v2043, %v2139
      %v2188 = vsel %vm2092, %v2044, %v2140
      %v2189 = vsel %vm2093, %v2045, %v2141
      %v2190 = vsel %vm2094, %v2046, %v2142
      %v2191 = vsel %vm2095, %v2047, %v2143
      %v2192 = vsel %vm2096, %v2048, %v2144
      %v2193 = vsel %vm2097, %v2049, %v2145
      %v2194 = vsel %vm2098, %v2050, %v2146
      %v2195 = vsel %vm2099, %v2051, %v2147
      %v2196 = vsel %vm2100, %v2052, %v2148
      %v2197 = vsel %vm2101, %v2053, %v2149
      %v2198 = vsel %vm2102, %v2054, %v2150
      %v2199 = vsel %vm2103, %v2055, %v2151
      %v2200 = vsel %vm2104, %v2056, %v2152
      %v2201 = vsel %vm2105, %v2057, %v2153
      %v2202 = vsel %vm2106, %v2058, %v2154
      %v2203 = vsel %vm2107, %v2059, %v2155
      %v2204 = vsel %vm2108, %v2060, %v2156
      %v2205 = vsel %vm2109, %v2061, %v2157
      %v2206 = vsel %vm2110, %v2062, %v2158
      %v2207 = vsel %vm2111, %v2063, %v2159
      %v2208 = vsel %vm2112, %v2064, %v2160
      %v2209 = vsel %vm2113, %v2065, %v2161
      %v2210 = vsel %vm2114, %v2066, %v2162
      %v2211 = vsel %vm2115, %v2067, %v2163
      %v2212 = vsel %vm2116, %v2068, %v2164
      %v2213 = vsel %vm2117, %v2069, %v2165
      %v2214 = vsel %vm2118, %v2070, %v2166
      %v2215 = vsel %vm2119, %v2071, %v2167
      %v2216 = vsel %vm2120, %v2072, %v2168
      %v2217 = vsel %vm2121, %v2073, %v2169
      %v2218 = vsel %vm2122, %v2074, %v2170
      %v2219 = vsel %vm2123, %v2075, %v2171
      %v2220 = vsel %vm2124, %v2076, %v2172
      %v2221 = vsel %vm2125, %v2077, %v2173
      %v2222 = vsel %vm2126, %v2078, %v2174
      %v2223 = vsel %vm2127, %v2079, %v2175
      %v2224 = vsel %vm2128, %v2080, %v2176
      %v2225 = vsel %vm2129, %v2081, %v2177
      %v2226 = vsel %vm2130, %v2082, %v2178
      %v2227 = vsel %vm2131, %v2083, %v2179
      %v2228 = vsel %vm2132, %v2084, %v2180
      %v2229 = vsel %vm2133, %v2085, %v2181
      %v2230 = vsel %vm2134, %v2086, %v2182
      %v2231 = vsel %vm2135, %v2087, %v2183
      %v2232 = vadd.f32 %v2184, %v2187
      %v2233 = vadd.f32 %v2185, %v2188
      %v2234 = vadd.f32 %v2186, %v2189
      %v2235 = vadd.f32 %v2190, %v2193
      %v2236 = vadd.f32 %v2191, %v2194
      %v2237 = vadd.f32 %v2192, %v2195
      %v2238 = vadd.f32 %v2196, %v2199
      %v2239 = vadd.f32 %v2197, %v2200
      %v2240 = vadd.f32 %v2198, %v2201
      %v2241 = vadd.f32 %v2202, %v2205
      %v2242 = vadd.f32 %v2203, %v2206
      %v2243 = vadd.f32 %v2204, %v2207
      %v2244 = vadd.f32 %v2208, %v2211
      %v2245 = vadd.f32 %v2209, %v2212
      %v2246 = vadd.f32 %v2210, %v2213
      %v2247 = vadd.f32 %v2214, %v2217
      %v2248 = vadd.f32 %v2215, %v2218
      %v2249 = vadd.f32 %v2216, %v2219
      %v2250 = vadd.f32 %v2220, %v2223
      %v2251 = vadd.f32 %v2221, %v2224
      %v2252 = vadd.f32 %v2222, %v2225
      %v2253 = vadd.f32 %v2226, %v2229
      %v2254 = vadd.f32 %v2227, %v2230
      %v2255 = vadd.f32 %v2228, %v2231
      %v2256 = vld [vmem:[%s4] sm:$0xff]
      %v2257 = vld [vmem:[%s4 + $0x8] sm:$0xff]
      %vm2258 = vcmask 195584
      %v2260 = vsel %vm2258, %v2256, 0
      %v2263 = vsel %vm2258, %v2257, 0
      %2265 = vmatprep.subr.mxu0 0.0
      %2266 = vmatpush1.msra.mxu0 %v2232
      %2267 = vmatprep.subr.mxu0 0.0
      %2268 = vmatpush1.msra.mxu0 %v2233
      %2269 = vmatprep.subr.mxu0 0.0
      %2270 = vmatpush1.msra.mxu0 %v2234
      %2271 = vmatprep.subr.mxu0 0.0
      %2272 = vmatpush1.msra.mxu0 0.0
      %2273 = vmatprep.subr.mxu0 0.0
      %2274 = vmatpush1.msra.mxu0 0.0
      %2275 = vmatprep.subr.mxu0 0.0
      %2276 = vmatpush1.msra.mxu0 0.0
      %2277 = vmatprep.subr.mxu0 0.0
      %2278 = vmatpush1.msra.mxu0 0.0
      %2279 = vmatprep.subr.mxu0 0.0
      %2280 = vmatpush1.msra.mxu0 0.0
      %2281 = vmatprep.subr.mxu0 0.0
      %2282 = vmatpush1.msra.mxu0 0.0
      %2283 = vmatprep.subr.mxu0 0.0
      %2284 = vmatpush1.msra.mxu0 0.0
      %2285 = vmatprep.subr.mxu0 0.0
      %2286 = vmatpush1.msra.mxu0 0.0
      %2287 = vmatprep.subr.mxu0 0.0
      %2288 = vmatpush1.msra.mxu0 0.0
      %2289 = vmatprep.subr.mxu0 0.0
      %2290 = vmatpush1.msra.mxu0 0.0
      %2291 = vmatprep.subr.mxu0 0.0
      %2292 = vmatpush1.msra.mxu0 0.0
      %2293 = vmatprep.subr.mxu0 0.0
      %2294 = vmatpush1.msra.mxu0 0.0
      %2295 = vmatprep.subr.mxu0 0.0
      %2296 = vmatpush1.msra.mxu0 0.0
      %2297 = vmatprep.subr.mxu0 0.0
      %2298 = vmatpush1.msra.mxu0 0.0
      %2299 = vmatprep.subr.mxu0 0.0
      %2300 = vmatpush1.msra.mxu0 0.0
      %2301 = vmatprep.subr.mxu0 0.0
      %2302 = vmatpush1.msra.mxu0 0.0
      %2303 = vmatprep.subr.mxu0 0.0
      %2304 = vmatpush1.msra.mxu0 0.0
      %2305 = vmatprep.subr.mxu0 0.0
      %2306 = vmatpush1.msra.mxu0 0.0
      %2307 = vmatprep.subr.mxu0 0.0
      %2308 = vmatpush1.msra.mxu0 0.0
      %2309 = vmatprep.subr.mxu0 0.0
      %2310 = vmatpush1.msra.mxu0 0.0
      %2311 = vmatprep.subr.mxu0 0.0
      %2312 = vmatpush1.msra.mxu0 0.0
      %2313 = vmatprep.subr.mxu0 0.0
      %2314 = vmatpush1.msra.mxu0 0.0
      %2315 = vmatprep.subr.mxu0 0.0
      %2316 = vmatpush1.msra.mxu0 0.0
      %2317 = vmatprep.subr.mxu0 0.0
      %2318 = vmatpush1.msra.mxu0 0.0
      %2319 = vmatprep.subr.mxu0 0.0
      %2320 = vmatpush1.msra.mxu0 0.0
      %2321 = vmatprep.subr.mxu0 0.0
      %2322 = vmatpush1.msra.mxu0 0.0
      %2323 = vmatprep.subr.mxu0 0.0
      %2324 = vmatpush1.msra.mxu0 0.0
      %2325 = vmatprep.subr.mxu0 0.0
      %2326 = vmatpush1.msra.mxu0 0.0
      %2327 = vmatprep.subr.mxu0 0.0
      %2328 = vmatpush1.msra.mxu0 0.0
      %2329 = vmatprep.mubr.f32.mxu0 0.0
      %2330 = vmatmul.mubr.f32.gmra.mrb[0].mxu0 %v2260
      %v2331 = vpop.f32.mrb[0].mxu0
      %v2332 = vadd.f32 0.0, %v2331
      %v2333 = vpop.f32.mrb[0].mxu0
      %2334 = vmatprep.mubr.f32.mxu0 0.0
      %2335 = vmatmul.mubr.f32.gmra.mrb[0].mxu0 %v2263
      %v2336 = vpop.f32.mrb[0].mxu0
      %v2337 = vadd.f32 0.0, %v2336
      %v2338 = vpop.f32.mrb[0].mxu0
      %2339 = vdwg.mxu0
      %2340 = vmatprep.subr.mxu0 0.0
      %2341 = vmatpush1.msra.mxu0 %v2235
      %2342 = vmatprep.subr.mxu0 0.0
      %2343 = vmatpush1.msra.mxu0 %v2236
      %2344 = vmatprep.subr.mxu0 0.0
      %2345 = vmatpush1.msra.mxu0 %v2237
      %2346 = vmatprep.subr.mxu0 0.0
      %2347 = vmatpush1.msra.mxu0 0.0
      %2348 = vmatprep.subr.mxu0 0.0
      %2349 = vmatpush1.msra.mxu0 0.0
      %2350 = vmatprep.subr.mxu0 0.0
      %2351 = vmatpush1.msra.mxu0 0.0
      %2352 = vmatprep.subr.mxu0 0.0
      %2353 = vmatpush1.msra.mxu0 0.0
      %2354 = vmatprep.subr.mxu0 0.0
      %2355 = vmatpush1.msra.mxu0 0.0
      %2356 = vmatprep.subr.mxu0 0.0
      %2357 = vmatpush1.msra.mxu0 0.0
      %2358 = vmatprep.subr.mxu0 0.0
      %2359 = vmatpush1.msra.mxu0 0.0
      %2360 = vmatprep.subr.mxu0 0.0
      %2361 = vmatpush1.msra.mxu0 0.0
      %2362 = vmatprep.subr.mxu0 0.0
      %2363 = vmatpush1.msra.mxu0 0.0
      %2364 = vmatprep.subr.mxu0 0.0
      %2365 = vmatpush1.msra.mxu0 0.0
      %2366 = vmatprep.subr.mxu0 0.0
      %2367 = vmatpush1.msra.mxu0 0.0
      %2368 = vmatprep.subr.mxu0 0.0
      %2369 = vmatpush1.msra.mxu0 0.0
      %2370 = vmatprep.subr.mxu0 0.0
      %2371 = vmatpush1.msra.mxu0 0.0
      %2372 = vmatprep.subr.mxu0 0.0
      %2373 = vmatpush1.msra.mxu0 0.0
      %2374 = vmatprep.subr.mxu0 0.0
      %2375 = vmatpush1.msra.mxu0 0.0
      %2376 = vmatprep.subr.mxu0 0.0
      %2377 = vmatpush1.msra.mxu0 0.0
      %2378 = vmatprep.subr.mxu0 0.0
      %2379 = vmatpush1.msra.mxu0 0.0
      %2380 = vmatprep.subr.mxu0 0.0
      %2381 = vmatpush1.msra.mxu0 0.0
      %2382 = vmatprep.subr.mxu0 0.0
      %2383 = vmatpush1.msra.mxu0 0.0
      %2384 = vmatprep.subr.mxu0 0.0
      %2385 = vmatpush1.msra.mxu0 0.0
      %2386 = vmatprep.subr.mxu0 0.0
      %2387 = vmatpush1.msra.mxu0 0.0
      %2388 = vmatprep.subr.mxu0 0.0
      %2389 = vmatpush1.msra.mxu0 0.0
      %2390 = vmatprep.subr.mxu0 0.0
      %2391 = vmatpush1.msra.mxu0 0.0
      %2392 = vmatprep.subr.mxu0 0.0
      %2393 = vmatpush1.msra.mxu0 0.0
      %2394 = vmatprep.subr.mxu0 0.0
      %2395 = vmatpush1.msra.mxu0 0.0
      %2396 = vmatprep.subr.mxu0 0.0
      %2397 = vmatpush1.msra.mxu0 0.0
      %2398 = vmatprep.subr.mxu0 0.0
      %2399 = vmatpush1.msra.mxu0 0.0
      %2400 = vmatprep.subr.mxu0 0.0
      %2401 = vmatpush1.msra.mxu0 0.0
      %2402 = vmatprep.subr.mxu0 0.0
      %2403 = vmatpush1.msra.mxu0 0.0
      %2404 = vmatprep.mubr.f32.mxu0 0.0
      %2405 = vmatmul.mubr.f32.gmra.mrb[0].mxu0 %v2260
      %v2406 = vpop.f32.mrb[0].mxu0
      %v2407 = vadd.f32 0.0, %v2406
      %v2408 = vpop.f32.mrb[0].mxu0
      %2409 = vmatprep.mubr.f32.mxu0 0.0
      %2410 = vmatmul.mubr.f32.gmra.mrb[0].mxu0 %v2263
      %v2411 = vpop.f32.mrb[0].mxu0
      %v2412 = vadd.f32 0.0, %v2411
      %v2413 = vpop.f32.mrb[0].mxu0
      %2414 = vdwg.mxu0
      %2415 = vmatprep.subr.mxu0 0.0
      %2416 = vmatpush1.msra.mxu0 %v2238
      %2417 = vmatprep.subr.mxu0 0.0
      %2418 = vmatpush1.msra.mxu0 %v2239
      %2419 = vmatprep.subr.mxu0 0.0
      %2420 = vmatpush1.msra.mxu0 %v2240
      %2421 = vmatprep.subr.mxu0 0.0
      %2422 = vmatpush1.msra.mxu0 0.0
      %2423 = vmatprep.subr.mxu0 0.0
      %2424 = vmatpush1.msra.mxu0 0.0
      %2425 = vmatprep.subr.mxu0 0.0
      %2426 = vmatpush1.msra.mxu0 0.0
      %2427 = vmatprep.subr.mxu0 0.0
      %2428 = vmatpush1.msra.mxu0 0.0
      %2429 = vmatprep.subr.mxu0 0.0
      %2430 = vmatpush1.msra.mxu0 0.0
      %2431 = vmatprep.subr.mxu0 0.0
      %2432 = vmatpush1.msra.mxu0 0.0
      %2433 = vmatprep.subr.mxu0 0.0
      %2434 = vmatpush1.msra.mxu0 0.0
      %2435 = vmatprep.subr.mxu0 0.0
      %2436 = vmatpush1.msra.mxu0 0.0
      %2437 = vmatprep.subr.mxu0 0.0
      %2438 = vmatpush1.msra.mxu0 0.0
      %2439 = vmatprep.subr.mxu0 0.0
      %2440 = vmatpush1.msra.mxu0 0.0
      %2441 = vmatprep.subr.mxu0 0.0
      %2442 = vmatpush1.msra.mxu0 0.0
      %2443 = vmatprep.subr.mxu0 0.0
      %2444 = vmatpush1.msra.mxu0 0.0
      %2445 = vmatprep.subr.mxu0 0.0
      %2446 = vmatpush1.msra.mxu0 0.0
      %2447 = vmatprep.subr.mxu0 0.0
      %2448 = vmatpush1.msra.mxu0 0.0
      %2449 = vmatprep.subr.mxu0 0.0
      %2450 = vmatpush1.msra.mxu0 0.0
      %2451 = vmatprep.subr.mxu0 0.0
      %2452 = vmatpush1.msra.mxu0 0.0
      %2453 = vmatprep.subr.mxu0 0.0
      %2454 = vmatpush1.msra.mxu0 0.0
      %2455 = vmatprep.subr.mxu0 0.0
      %2456 = vmatpush1.msra.mxu0 0.0
      %2457 = vmatprep.subr.mxu0 0.0
      %2458 = vmatpush1.msra.mxu0 0.0
      %2459 = vmatprep.subr.mxu0 0.0
      %2460 = vmatpush1.msra.mxu0 0.0
      %2461 = vmatprep.subr.mxu0 0.0
      %2462 = vmatpush1.msra.mxu0 0.0
      %2463 = vmatprep.subr.mxu0 0.0
      %2464 = vmatpush1.msra.mxu0 0.0
      %2465 = vmatprep.subr.mxu0 0.0
      %2466 = vmatpush1.msra.mxu0 0.0
      %2467 = vmatprep.subr.mxu0 0.0
      %2468 = vmatpush1.msra.mxu0 0.0
      %2469 = vmatprep.subr.mxu0 0.0
      %2470 = vmatpush1.msra.mxu0 0.0
      %2471 = vmatprep.subr.mxu0 0.0
      %2472 = vmatpush1.msra.mxu0 0.0
      %2473 = vmatprep.subr.mxu0 0.0
      %2474 = vmatpush1.msra.mxu0 0.0
      %2475 = vmatprep.subr.mxu0 0.0
      %2476 = vmatpush1.msra.mxu0 0.0
      %2477 = vmatprep.subr.mxu0 0.0
      %2478 = vmatpush1.msra.mxu0 0.0
      %2479 = vmatprep.mubr.f32.mxu0 0.0
      %2480 = vmatmul.mubr.f32.gmra.mrb[0].mxu0 %v2260
      %v2481 = vpop.f32.mrb[0].mxu0
      %v2482 = vadd.f32 0.0, %v2481
      %v2483 = vpop.f32.mrb[0].mxu0
      %2484 = vmatprep.mubr.f32.mxu0 0.0
      %2485 = vmatmul.mubr.f32.gmra.mrb[0].mxu0 %v2263
      %v2486 = vpop.f32.mrb[0].mxu0
      %v2487 = vadd.f32 0.0, %v2486
      %v2488 = vpop.f32.mrb[0].mxu0
      %2489 = vdwg.mxu0
      %2490 = vmatprep.subr.mxu0 0.0
      %2491 = vmatpush1.msra.mxu0 %v2241
      %2492 = vmatprep.subr.mxu0 0.0
      %2493 = vmatpush1.msra.mxu0 %v2242
      %2494 = vmatprep.subr.mxu0 0.0
      %2495 = vmatpush1.msra.mxu0 %v2243
      %2496 = vmatprep.subr.mxu0 0.0
      %2497 = vmatpush1.msra.mxu0 0.0
      %2498 = vmatprep.subr.mxu0 0.0
      %2499 = vmatpush1.msra.mxu0 0.0
      %2500 = vmatprep.subr.mxu0 0.0
      %2501 = vmatpush1.msra.mxu0 0.0
      %2502 = vmatprep.subr.mxu0 0.0
      %2503 = vmatpush1.msra.mxu0 0.0
      %2504 = vmatprep.subr.mxu0 0.0
      %2505 = vmatpush1.msra.mxu0 0.0
      %2506 = vmatprep.subr.mxu0 0.0
      %2507 = vmatpush1.msra.mxu0 0.0
      %2508 = vmatprep.subr.mxu0 0.0
      %2509 = vmatpush1.msra.mxu0 0.0
      %2510 = vmatprep.subr.mxu0 0.0
      %2511 = vmatpush1.msra.mxu0 0.0
      %2512 = vmatprep.subr.mxu0 0.0
      %2513 = vmatpush1.msra.mxu0 0.0
      %2514 = vmatprep.subr.mxu0 0.0
      %2515 = vmatpush1.msra.mxu0 0.0
      %2516 = vmatprep.subr.mxu0 0.0
      %2517 = vmatpush1.msra.mxu0 0.0
      %2518 = vmatprep.subr.mxu0 0.0
      %2519 = vmatpush1.msra.mxu0 0.0
      %2520 = vmatprep.subr.mxu0 0.0
      %2521 = vmatpush1.msra.mxu0 0.0
      %2522 = vmatprep.subr.mxu0 0.0
      %2523 = vmatpush1.msra.mxu0 0.0
      %2524 = vmatprep.subr.mxu0 0.0
      %2525 = vmatpush1.msra.mxu0 0.0
      %2526 = vmatprep.subr.mxu0 0.0
      %2527 = vmatpush1.msra.mxu0 0.0
      %2528 = vmatprep.subr.mxu0 0.0
      %2529 = vmatpush1.msra.mxu0 0.0
      %2530 = vmatprep.subr.mxu0 0.0
      %2531 = vmatpush1.msra.mxu0 0.0
      %2532 = vmatprep.subr.mxu0 0.0
      %2533 = vmatpush1.msra.mxu0 0.0
      %2534 = vmatprep.subr.mxu0 0.0
      %2535 = vmatpush1.msra.mxu0 0.0
      %2536 = vmatprep.subr.mxu0 0.0
      %2537 = vmatpush1.msra.mxu0 0.0
      %2538 = vmatprep.subr.mxu0 0.0
      %2539 = vmatpush1.msra.mxu0 0.0
      %2540 = vmatprep.subr.mxu0 0.0
      %2541 = vmatpush1.msra.mxu0 0.0
      %2542 = vmatprep.subr.mxu0 0.0
      %2543 = vmatpush1.msra.mxu0 0.0
      %2544 = vmatprep.subr.mxu0 0.0
      %2545 = vmatpush1.msra.mxu0 0.0
      %2546 = vmatprep.subr.mxu0 0.0
      %2547 = vmatpush1.msra.mxu0 0.0
      %2548 = vmatprep.subr.mxu0 0.0
      %2549 = vmatpush1.msra.mxu0 0.0
      %2550 = vmatprep.subr.mxu0 0.0
      %2551 = vmatpush1.msra.mxu0 0.0
      %2552 = vmatprep.subr.mxu0 0.0
      %2553 = vmatpush1.msra.mxu0 0.0
      %2554 = vmatprep.mubr.f32.mxu0 0.0
      %2555 = vmatmul.mubr.f32.gmra.mrb[0].mxu0 %v2260
      %v2556 = vpop.f32.mrb[0].mxu0
      %v2557 = vadd.f32 0.0, %v2556
      %v2558 = vpop.f32.mrb[0].mxu0
      %2559 = vmatprep.mubr.f32.mxu0 0.0
      %2560 = vmatmul.mubr.f32.gmra.mrb[0].mxu0 %v2263
      %v2561 = vpop.f32.mrb[0].mxu0
      %v2562 = vadd.f32 0.0, %v2561
      %v2563 = vpop.f32.mrb[0].mxu0
      %2564 = vdwg.mxu0
      %2565 = vmatprep.subr.mxu0 0.0
      %2566 = vmatpush1.msra.mxu0 %v2244
      %2567 = vmatprep.subr.mxu0 0.0
      %2568 = vmatpush1.msra.mxu0 %v2245
      %2569 = vmatprep.subr.mxu0 0.0
      %2570 = vmatpush1.msra.mxu0 %v2246
      %2571 = vmatprep.subr.mxu0 0.0
      %2572 = vmatpush1.msra.mxu0 0.0
      %2573 = vmatprep.subr.mxu0 0.0
      %2574 = vmatpush1.msra.mxu0 0.0
      %2575 = vmatprep.subr.mxu0 0.0
      %2576 = vmatpush1.msra.mxu0 0.0
      %2577 = vmatprep.subr.mxu0 0.0
      %2578 = vmatpush1.msra.mxu0 0.0
      %2579 = vmatprep.subr.mxu0 0.0
      %2580 = vmatpush1.msra.mxu0 0.0
      %2581 = vmatprep.subr.mxu0 0.0
      %2582 = vmatpush1.msra.mxu0 0.0
      %2583 = vmatprep.subr.mxu0 0.0
      %2584 = vmatpush1.msra.mxu0 0.0
      %2585 = vmatprep.subr.mxu0 0.0
      %2586 = vmatpush1.msra.mxu0 0.0
      %2587 = vmatprep.subr.mxu0 0.0
      %2588 = vmatpush1.msra.mxu0 0.0
      %2589 = vmatprep.subr.mxu0 0.0
      %2590 = vmatpush1.msra.mxu0 0.0
      %2591 = vmatprep.subr.mxu0 0.0
      %2592 = vmatpush1.msra.mxu0 0.0
      %2593 = vmatprep.subr.mxu0 0.0
      %2594 = vmatpush1.msra.mxu0 0.0
      %2595 = vmatprep.subr.mxu0 0.0
      %2596 = vmatpush1.msra.mxu0 0.0
      %2597 = vmatprep.subr.mxu0 0.0
      %2598 = vmatpush1.msra.mxu0 0.0
      %2599 = vmatprep.subr.mxu0 0.0
      %2600 = vmatpush1.msra.mxu0 0.0
      %2601 = vmatprep.subr.mxu0 0.0
      %2602 = vmatpush1.msra.mxu0 0.0
      %2603 = vmatprep.subr.mxu0 0.0
      %2604 = vmatpush1.msra.mxu0 0.0
      %2605 = vmatprep.subr.mxu0 0.0
      %2606 = vmatpush1.msra.mxu0 0.0
      %2607 = vmatprep.subr.mxu0 0.0
      %2608 = vmatpush1.msra.mxu0 0.0
      %2609 = vmatprep.subr.mxu0 0.0
      %2610 = vmatpush1.msra.mxu0 0.0
      %2611 = vmatprep.subr.mxu0 0.0
      %2612 = vmatpush1.msra.mxu0 0.0
      %2613 = vmatprep.subr.mxu0 0.0
      %2614 = vmatpush1.msra.mxu0 0.0
      %2615 = vmatprep.subr.mxu0 0.0
      %2616 = vmatpush1.msra.mxu0 0.0
      %2617 = vmatprep.subr.mxu0 0.0
      %2618 = vmatpush1.msra.mxu0 0.0
      %2619 = vmatprep.subr.mxu0 0.0
      %2620 = vmatpush1.msra.mxu0 0.0
      %2621 = vmatprep.subr.mxu0 0.0
      %2622 = vmatpush1.msra.mxu0 0.0
      %2623 = vmatprep.subr.mxu0 0.0
      %2624 = vmatpush1.msra.mxu0 0.0
      %2625 = vmatprep.subr.mxu0 0.0
      %2626 = vmatpush1.msra.mxu0 0.0
      %2627 = vmatprep.subr.mxu0 0.0
      %2628 = vmatpush1.msra.mxu0 0.0
      %2629 = vmatprep.mubr.f32.mxu0 0.0
      %2630 = vmatmul.mubr.f32.gmra.mrb[0].mxu0 %v2260
      %v2631 = vpop.f32.mrb[0].mxu0
      %v2632 = vadd.f32 0.0, %v2631
      %v2633 = vpop.f32.mrb[0].mxu0
      %2634 = vmatprep.mubr.f32.mxu0 0.0
      %2635 = vmatmul.mubr.f32.gmra.mrb[0].mxu0 %v2263
      %v2636 = vpop.f32.mrb[0].mxu0
      %v2637 = vadd.f32 0.0, %v2636
      %v2638 = vpop.f32.mrb[0].mxu0
      %2639 = vdwg.mxu0
      %2640 = vmatprep.subr.mxu0 0.0
      %2641 = vmatpush1.msra.mxu0 %v2247
      %2642 = vmatprep.subr.mxu0 0.0
      %2643 = vmatpush1.msra.mxu0 %v2248
      %2644 = vmatprep.subr.mxu0 0.0
      %2645 = vmatpush1.msra.mxu0 %v2249
      %2646 = vmatprep.subr.mxu0 0.0
      %2647 = vmatpush1.msra.mxu0 0.0
      %2648 = vmatprep.subr.mxu0 0.0
      %2649 = vmatpush1.msra.mxu0 0.0
      %2650 = vmatprep.subr.mxu0 0.0
      %2651 = vmatpush1.msra.mxu0 0.0
      %2652 = vmatprep.subr.mxu0 0.0
      %2653 = vmatpush1.msra.mxu0 0.0
      %2654 = vmatprep.subr.mxu0 0.0
      %2655 = vmatpush1.msra.mxu0 0.0
      %2656 = vmatprep.subr.mxu0 0.0
      %2657 = vmatpush1.msra.mxu0 0.0
      %2658 = vmatprep.subr.mxu0 0.0
      %2659 = vmatpush1.msra.mxu0 0.0
      %2660 = vmatprep.subr.mxu0 0.0
      %2661 = vmatpush1.msra.mxu0 0.0
      %2662 = vmatprep.subr.mxu0 0.0
      %2663 = vmatpush1.msra.mxu0 0.0
      %2664 = vmatprep.subr.mxu0 0.0
      %2665 = vmatpush1.msra.mxu0 0.0
      %2666 = vmatprep.subr.mxu0 0.0
      %2667 = vmatpush1.msra.mxu0 0.0
      %2668 = vmatprep.subr.mxu0 0.0
      %2669 = vmatpush1.msra.mxu0 0.0
      %2670 = vmatprep.subr.mxu0 0.0
      %2671 = vmatpush1.msra.mxu0 0.0
      %2672 = vmatprep.subr.mxu0 0.0
      %2673 = vmatpush1.msra.mxu0 0.0
      %2674 = vmatprep.subr.mxu0 0.0
      %2675 = vmatpush1.msra.mxu0 0.0
      %2676 = vmatprep.subr.mxu0 0.0
      %2677 = vmatpush1.msra.mxu0 0.0
      %2678 = vmatprep.subr.mxu0 0.0
      %2679 = vmatpush1.msra.mxu0 0.0
      %2680 = vmatprep.subr.mxu0 0.0
      %2681 = vmatpush1.msra.mxu0 0.0
      %2682 = vmatprep.subr.mxu0 0.0
      %2683 = vmatpush1.msra.mxu0 0.0
      %2684 = vmatprep.subr.mxu0 0.0
      %2685 = vmatpush1.msra.mxu0 0.0
      %2686 = vmatprep.subr.mxu0 0.0
      %2687 = vmatpush1.msra.mxu0 0.0
      %2688 = vmatprep.subr.mxu0 0.0
      %2689 = vmatpush1.msra.mxu0 0.0
      %2690 = vmatprep.subr.mxu0 0.0
      %2691 = vmatpush1.msra.mxu0 0.0
      %2692 = vmatprep.subr.mxu0 0.0
      %2693 = vmatpush1.msra.mxu0 0.0
      %2694 = vmatprep.subr.mxu0 0.0
      %2695 = vmatpush1.msra.mxu0 0.0
      %2696 = vmatprep.subr.mxu0 0.0
      %2697 = vmatpush1.msra.mxu0 0.0
      %2698 = vmatprep.subr.mxu0 0.0
      %2699 = vmatpush1.msra.mxu0 0.0
      %2700 = vmatprep.subr.mxu0 0.0
      %2701 = vmatpush1.msra.mxu0 0.0
      %2702 = vmatprep.subr.mxu0 0.0
      %2703 = vmatpush1.msra.mxu0 0.0
      %2704 = vmatprep.mubr.f32.mxu0 0.0
      %2705 = vmatmul.mubr.f32.gmra.mrb[0].mxu0 %v2260
      %v2706 = vpop.f32.mrb[0].mxu0
      %v2707 = vadd.f32 0.0, %v2706
      %v2708 = vpop.f32.mrb[0].mxu0
      %2709 = vmatprep.mubr.f32.mxu0 0.0
      %2710 = vmatmul.mubr.f32.gmra.mrb[0].mxu0 %v2263
      %v2711 = vpop.f32.mrb[0].mxu0
      %v2712 = vadd.f32 0.0, %v2711
      %v2713 = vpop.f32.mrb[0].mxu0
      %2714 = vdwg.mxu0
      %2715 = vmatprep.subr.mxu0 0.0
      %2716 = vmatpush1.msra.mxu0 %v2250
      %2717 = vmatprep.subr.mxu0 0.0
      %2718 = vmatpush1.msra.mxu0 %v2251
      %2719 = vmatprep.subr.mxu0 0.0
      %2720 = vmatpush1.msra.mxu0 %v2252
      %2721 = vmatprep.subr.mxu0 0.0
      %2722 = vmatpush1.msra.mxu0 0.0
      %2723 = vmatprep.subr.mxu0 0.0
      %2724 = vmatpush1.msra.mxu0 0.0
      %2725 = vmatprep.subr.mxu0 0.0
      %2726 = vmatpush1.msra.mxu0 0.0
      %2727 = vmatprep.subr.mxu0 0.0
      %2728 = vmatpush1.msra.mxu0 0.0
      %2729 = vmatprep.subr.mxu0 0.0
      %2730 = vmatpush1.msra.mxu0 0.0
      %2731 = vmatprep.subr.mxu0 0.0
      %2732 = vmatpush1.msra.mxu0 0.0
      %2733 = vmatprep.subr.mxu0 0.0
      %2734 = vmatpush1.msra.mxu0 0.0
      %2735 = vmatprep.subr.mxu0 0.0
      %2736 = vmatpush1.msra.mxu0 0.0
      %2737 = vmatprep.subr.mxu0 0.0
      %2738 = vmatpush1.msra.mxu0 0.0
      %2739 = vmatprep.subr.mxu0 0.0
      %2740 = vmatpush1.msra.mxu0 0.0
      %2741 = vmatprep.subr.mxu0 0.0
      %2742 = vmatpush1.msra.mxu0 0.0
      %2743 = vmatprep.subr.mxu0 0.0
      %2744 = vmatpush1.msra.mxu0 0.0
      %2745 = vmatprep.subr.mxu0 0.0
      %2746 = vmatpush1.msra.mxu0 0.0
      %2747 = vmatprep.subr.mxu0 0.0
      %2748 = vmatpush1.msra.mxu0 0.0
      %2749 = vmatprep.subr.mxu0 0.0
      %2750 = vmatpush1.msra.mxu0 0.0
      %2751 = vmatprep.subr.mxu0 0.0
      %2752 = vmatpush1.msra.mxu0 0.0
      %2753 = vmatprep.subr.mxu0 0.0
      %2754 = vmatpush1.msra.mxu0 0.0
      %2755 = vmatprep.subr.mxu0 0.0
      %2756 = vmatpush1.msra.mxu0 0.0
      %2757 = vmatprep.subr.mxu0 0.0
      %2758 = vmatpush1.msra.mxu0 0.0
      %2759 = vmatprep.subr.mxu0 0.0
      %2760 = vmatpush1.msra.mxu0 0.0
      %2761 = vmatprep.subr.mxu0 0.0
      %2762 = vmatpush1.msra.mxu0 0.0
      %2763 = vmatprep.subr.mxu0 0.0
      %2764 = vmatpush1.msra.mxu0 0.0
      %2765 = vmatprep.subr.mxu0 0.0
      %2766 = vmatpush1.msra.mxu0 0.0
      %2767 = vmatprep.subr.mxu0 0.0
      %2768 = vmatpush1.msra.mxu0 0.0
      %2769 = vmatprep.subr.mxu0 0.0
      %2770 = vmatpush1.msra.mxu0 0.0
      %2771 = vmatprep.subr.mxu0 0.0
      %2772 = vmatpush1.msra.mxu0 0.0
      %2773 = vmatprep.subr.mxu0 0.0
      %2774 = vmatpush1.msra.mxu0 0.0
      %2775 = vmatprep.subr.mxu0 0.0
      %2776 = vmatpush1.msra.mxu0 0.0
      %2777 = vmatprep.subr.mxu0 0.0
      %2778 = vmatpush1.msra.mxu0 0.0
      %2779 = vmatprep.mubr.f32.mxu0 0.0
      %2780 = vmatmul.mubr.f32.gmra.mrb[0].mxu0 %v2260
      %v2781 = vpop.f32.mrb[0].mxu0
      %v2782 = vadd.f32 0.0, %v2781
      %v2783 = vpop.f32.mrb[0].mxu0
      %2784 = vmatprep.mubr.f32.mxu0 0.0
      %2785 = vmatmul.mubr.f32.gmra.mrb[0].mxu0 %v2263
      %v2786 = vpop.f32.mrb[0].mxu0
      %v2787 = vadd.f32 0.0, %v2786
      %v2788 = vpop.f32.mrb[0].mxu0
      %2789 = vdwg.mxu0
      %2790 = vmatprep.subr.mxu0 0.0
      %2791 = vmatpush1.msra.mxu0 %v2253
      %2792 = vmatprep.subr.mxu0 0.0
      %2793 = vmatpush1.msra.mxu0 %v2254
      %2794 = vmatprep.subr.mxu0 0.0
      %2795 = vmatpush1.msra.mxu0 %v2255
      %2796 = vmatprep.subr.mxu0 0.0
      %2797 = vmatpush1.msra.mxu0 0.0
      %2798 = vmatprep.subr.mxu0 0.0
      %2799 = vmatpush1.msra.mxu0 0.0
      %2800 = vmatprep.subr.mxu0 0.0
      %2801 = vmatpush1.msra.mxu0 0.0
      %2802 = vmatprep.subr.mxu0 0.0
      %2803 = vmatpush1.msra.mxu0 0.0
      %2804 = vmatprep.subr.mxu0 0.0
      %2805 = vmatpush1.msra.mxu0 0.0
      %2806 = vmatprep.subr.mxu0 0.0
      %2807 = vmatpush1.msra.mxu0 0.0
      %2808 = vmatprep.subr.mxu0 0.0
      %2809 = vmatpush1.msra.mxu0 0.0
      %2810 = vmatprep.subr.mxu0 0.0
      %2811 = vmatpush1.msra.mxu0 0.0
      %2812 = vmatprep.subr.mxu0 0.0
      %2813 = vmatpush1.msra.mxu0 0.0
      %2814 = vmatprep.subr.mxu0 0.0
      %2815 = vmatpush1.msra.mxu0 0.0
      %2816 = vmatprep.subr.mxu0 0.0
      %2817 = vmatpush1.msra.mxu0 0.0
      %2818 = vmatprep.subr.mxu0 0.0
      %2819 = vmatpush1.msra.mxu0 0.0
      %2820 = vmatprep.subr.mxu0 0.0
      %2821 = vmatpush1.msra.mxu0 0.0
      %2822 = vmatprep.subr.mxu0 0.0
      %2823 = vmatpush1.msra.mxu0 0.0
      %2824 = vmatprep.subr.mxu0 0.0
      %2825 = vmatpush1.msra.mxu0 0.0
      %2826 = vmatprep.subr.mxu0 0.0
      %2827 = vmatpush1.msra.mxu0 0.0
      %2828 = vmatprep.subr.mxu0 0.0
      %2829 = vmatpush1.msra.mxu0 0.0
      %2830 = vmatprep.subr.mxu0 0.0
      %2831 = vmatpush1.msra.mxu0 0.0
      %2832 = vmatprep.subr.mxu0 0.0
      %2833 = vmatpush1.msra.mxu0 0.0
      %2834 = vmatprep.subr.mxu0 0.0
      %2835 = vmatpush1.msra.mxu0 0.0
      %2836 = vmatprep.subr.mxu0 0.0
      %2837 = vmatpush1.msra.mxu0 0.0
      %2838 = vmatprep.subr.mxu0 0.0
      %2839 = vmatpush1.msra.mxu0 0.0
      %2840 = vmatprep.subr.mxu0 0.0
      %2841 = vmatpush1.msra.mxu0 0.0
      %2842 = vmatprep.subr.mxu0 0.0
      %2843 = vmatpush1.msra.mxu0 0.0
      %2844 = vmatprep.subr.mxu0 0.0
      %2845 = vmatpush1.msra.mxu0 0.0
      %2846 = vmatprep.subr.mxu0 0.0
      %2847 = vmatpush1.msra.mxu0 0.0
      %2848 = vmatprep.subr.mxu0 0.0
      %2849 = vmatpush1.msra.mxu0 0.0
      %2850 = vmatprep.subr.mxu0 0.0
      %2851 = vmatpush1.msra.mxu0 0.0
      %2852 = vmatprep.subr.mxu0 0.0
      %2853 = vmatpush1.msra.mxu0 0.0
      %2854 = vmatprep.mubr.f32.mxu0 0.0
      %2855 = vmatmul.mubr.f32.gmra.mrb[0].mxu0 %v2260
      %v2856 = vpop.f32.mrb[0].mxu0
      %v2857 = vadd.f32 0.0, %v2856
      %v2858 = vpop.f32.mrb[0].mxu0
      %2859 = vmatprep.mubr.f32.mxu0 0.0
      %2860 = vmatmul.mubr.f32.gmra.mrb[0].mxu0 %v2263
      %v2861 = vpop.f32.mrb[0].mxu0
      %v2862 = vadd.f32 0.0, %v2861
      %v2863 = vpop.f32.mrb[0].mxu0
      %2864 = vdwg.mxu0
      %vm2865 = vcmask 64519
      %2866 = vst.msk [vmem:[#allocation2 - $0x7] sm:$0x80] %vm2865, 0.0
      %vm2867 = vcmask 64512
      %2868 = vst.msk [vmem:[#allocation2 + $0x1] sm:$0xff] %vm2867, 0.0
      %2869 = vst.msk [vmem:[#allocation2 + $0x9] sm:$0xff] %vm2867, 0.0
      %2870 = vst.msk [vmem:[#allocation2 + $0x11] sm:$0xff] %vm2867, %v2332
      %2871 = vst.msk [vmem:[#allocation2 + $0x19] sm:$0xff] %vm2867, %v2337
      %2872 = vst.msk [vmem:[#allocation2 + $0x21] sm:$0xff] %vm2867, %v2407
      %2873 = vst.msk [vmem:[#allocation2 + $0x29] sm:$0xff] %vm2867, %v2412
      %2874 = vst.msk [vmem:[#allocation2 + $0x31] sm:$0xff] %vm2867, %v2482
      %2875 = vst.msk [vmem:[#allocation2 + $0x39] sm:$0xff] %vm2867, %v2487
      %2876 = vst.msk [vmem:[#allocation2 + $0x41] sm:$0xff] %vm2867, %v2557
      %2877 = vst.msk [vmem:[#allocation2 + $0x49] sm:$0xff] %vm2867, %v2562
      %2878 = vst.msk [vmem:[#allocation2 + $0x51] sm:$0xff] %vm2867, %v2632
      %2879 = vst.msk [vmem:[#allocation2 + $0x59] sm:$0xff] %vm2867, %v2637
      %2880 = vst.msk [vmem:[#allocation2 + $0x61] sm:$0xff] %vm2867, %v2707
      %2881 = vst.msk [vmem:[#allocation2 + $0x69] sm:$0xff] %vm2867, %v2712
      %2882 = vst.msk [vmem:[#allocation2 + $0x71] sm:$0xff] %vm2867, %v2782
      %2883 = vst.msk [vmem:[#allocation2 + $0x79] sm:$0xff] %vm2867, %v2787
      %2884 = vst.msk [vmem:[#allocation2 + $0x81] sm:$0xff] %vm2867, %v2857
      %2885 = vst.msk [vmem:[#allocation2 + $0x89] sm:$0xff] %vm2867, %v2862
      %2886 = vst.msk [vmem:[#allocation2 + $0x91] sm:$0xff] %vm2867, 0.0
      %vm2887 = vcmask 63488
      %2888 = vst.msk [vmem:[#allocation2 + $0x99] sm:$0x7f] %vm2887, 0.0
      %2906 = vrot.lane.b32.xlu0 0.0, 8
      %v2907 = vpop.permute.xlu0 %2906
      %2908 = vrot.lane.b32.xlu0 %v2332, 8
      %v2909 = vpop.permute.xlu0 %2908
      %2910 = vrot.lane.b32.xlu0 %v2337, 8
      %v2911 = vpop.permute.xlu0 %2910
      %2912 = vrot.lane.b32.xlu0 %v2407, 8
      %v2913 = vpop.permute.xlu0 %2912
      %2914 = vrot.lane.b32.xlu0 %v2412, 8
      %v2915 = vpop.permute.xlu0 %2914
      %2916 = vrot.lane.b32.xlu0 %v2482, 8
      %v2917 = vpop.permute.xlu0 %2916
      %2918 = vrot.lane.b32.xlu0 %v2487, 8
      %v2919 = vpop.permute.xlu0 %2918
      %2920 = vrot.lane.b32.xlu0 %v2557, 8
      %v2921 = vpop.permute.xlu0 %2920
      %2922 = vrot.lane.b32.xlu0 %v2562, 8
      %v2923 = vpop.permute.xlu0 %2922
      %2924 = vrot.lane.b32.xlu0 %v2632, 8
      %v2925 = vpop.permute.xlu0 %2924
      %2926 = vrot.lane.b32.xlu0 %v2637, 8
      %v2927 = vpop.permute.xlu0 %2926
      %2928 = vrot.lane.b32.xlu0 %v2707, 8
      %v2929 = vpop.permute.xlu0 %2928
      %2930 = vrot.lane.b32.xlu0 %v2712, 8
      %v2931 = vpop.permute.xlu0 %2930
      %2932 = vrot.lane.b32.xlu0 %v2782, 8
      %v2933 = vpop.permute.xlu0 %2932
      %2934 = vrot.lane.b32.xlu0 %v2787, 8
      %v2935 = vpop.permute.xlu0 %2934
      %2936 = vrot.lane.b32.xlu0 %v2857, 8
      %v2937 = vpop.permute.xlu0 %2936
      %2938 = vrot.lane.b32.xlu0 %v2862, 8
      %v2939 = vpop.permute.xlu0 %2938
      %vm2957 = vcmask 130112
      %2958 = vst.msk [vmem:[#allocation2] sm:$0xff] %vm2957, %v2907
      %2959 = vst.msk [vmem:[#allocation2 + $0x8] sm:$0xff] %vm2957, %v2907
      %2960 = vst.msk [vmem:[#allocation2 + $0x10] sm:$0xff] %vm2957, %v2909
      %2961 = vst.msk [vmem:[#allocation2 + $0x18] sm:$0xff] %vm2957, %v2911
      %2962 = vst.msk [vmem:[#allocation2 + $0x20] sm:$0xff] %vm2957, %v2913
      %2963 = vst.msk [vmem:[#allocation2 + $0x28] sm:$0xff] %vm2957, %v2915
      %2964 = vst.msk [vmem:[#allocation2 + $0x30] sm:$0xff] %vm2957, %v2917
      %2965 = vst.msk [vmem:[#allocation2 + $0x38] sm:$0xff] %vm2957, %v2919
      %2966 = vst.msk [vmem:[#allocation2 + $0x40] sm:$0xff] %vm2957, %v2921
      %2967 = vst.msk [vmem:[#allocation2 + $0x48] sm:$0xff] %vm2957, %v2923
      %2968 = vst.msk [vmem:[#allocation2 + $0x50] sm:$0xff] %vm2957, %v2925
      %2969 = vst.msk [vmem:[#allocation2 + $0x58] sm:$0xff] %vm2957, %v2927
      %2970 = vst.msk [vmem:[#allocation2 + $0x60] sm:$0xff] %vm2957, %v2929
      %2971 = vst.msk [vmem:[#allocation2 + $0x68] sm:$0xff] %vm2957, %v2931
      %2972 = vst.msk [vmem:[#allocation2 + $0x70] sm:$0xff] %vm2957, %v2933
      %2973 = vst.msk [vmem:[#allocation2 + $0x78] sm:$0xff] %vm2957, %v2935
      %2974 = vst.msk [vmem:[#allocation2 + $0x80] sm:$0xff] %vm2957, %v2937
      %2975 = vst.msk [vmem:[#allocation2 + $0x88] sm:$0xff] %vm2957, %v2939
      %2976 = vst.msk [vmem:[#allocation2 + $0x90] sm:$0xff] %vm2957, %v2907
      %2977 = vst.msk [vmem:[#allocation2 + $0x98] sm:$0xff] %vm2957, %v2907
      %2978 = vrot.lane.b32.xlu0 0.0, 16
      %v2979 = vpop.permute.xlu0 %2978
      %2980 = vrot.lane.b32.xlu0 %v2332, 16
      %v2981 = vpop.permute.xlu0 %2980
      %2982 = vrot.lane.b32.xlu0 %v2337, 16
      %v2983 = vpop.permute.xlu0 %2982
      %2984 = vrot.lane.b32.xlu0 %v2407, 16
      %v2985 = vpop.permute.xlu0 %2984
      %2986 = vrot.lane.b32.xlu0 %v2412, 16
      %v2987 = vpop.permute.xlu0 %2986
      %2988 = vrot.lane.b32.xlu0 %v2482, 16
      %v2989 = vpop.permute.xlu0 %2988
      %2990 = vrot.lane.b32.xlu0 %v2487, 16
      %v2991 = vpop.permute.xlu0 %2990
      %2992 = vrot.lane.b32.xlu0 %v2557, 16
      %v2993 = vpop.permute.xlu0 %2992
      %2994 = vrot.lane.b32.xlu0 %v2562, 16
      %v2995 = vpop.permute.xlu0 %2994
      %2996 = vrot.lane.b32.xlu0 %v2632, 16
      %v2997 = vpop.permute.xlu0 %2996
      %2998 = vrot.lane.b32.xlu0 %v2637, 16
      %v2999 = vpop.permute.xlu0 %2998
      %3000 = vrot.lane.b32.xlu0 %v2707, 16
      %v3001 = vpop.permute.xlu0 %3000
      %3002 = vrot.lane.b32.xlu0 %v2712, 16
      %v3003 = vpop.permute.xlu0 %3002
      %3004 = vrot.lane.b32.xlu0 %v2782, 16
      %v3005 = vpop.permute.xlu0 %3004
      %3006 = vrot.lane.b32.xlu0 %v2787, 16
      %v3007 = vpop.permute.xlu0 %3006
      %3008 = vrot.lane.b32.xlu0 %v2857, 16
      %v3009 = vpop.permute.xlu0 %3008
      %3010 = vrot.lane.b32.xlu0 %v2862, 16
      %v3011 = vpop.permute.xlu0 %3010
      %vm3029 = vcmask 195713
      %3030 = vst.msk [vmem:[#allocation2 - $0x1] sm:$0xfe] %vm3029, %v2979
      %vm3031 = vcmask 195712
      %3032 = vst.msk [vmem:[#allocation2 + $0x7] sm:$0xff] %vm3031, %v2979
      %3033 = vst.msk [vmem:[#allocation2 + $0xf] sm:$0xff] %vm3031, %v2981
      %3034 = vst.msk [vmem:[#allocation2 + $0x17] sm:$0xff] %vm3031, %v2983
      %3035 = vst.msk [vmem:[#allocation2 + $0x1f] sm:$0xff] %vm3031, %v2985
      %3036 = vst.msk [vmem:[#allocation2 + $0x27] sm:$0xff] %vm3031, %v2987
      %3037 = vst.msk [vmem:[#allocation2 + $0x2f] sm:$0xff] %vm3031, %v2989
      %3038 = vst.msk [vmem:[#allocation2 + $0x37] sm:$0xff] %vm3031, %v2991
      %3039 = vst.msk [vmem:[#allocation2 + $0x3f] sm:$0xff] %vm3031, %v2993
      %3040 = vst.msk [vmem:[#allocation2 + $0x47] sm:$0xff] %vm3031, %v2995
      %3041 = vst.msk [vmem:[#allocation2 + $0x4f] sm:$0xff] %vm3031, %v2997
      %3042 = vst.msk [vmem:[#allocation2 + $0x57] sm:$0xff] %vm3031, %v2999
      %3043 = vst.msk [vmem:[#allocation2 + $0x5f] sm:$0xff] %vm3031, %v3001
      %3044 = vst.msk [vmem:[#allocation2 + $0x67] sm:$0xff] %vm3031, %v3003
      %3045 = vst.msk [vmem:[#allocation2 + $0x6f] sm:$0xff] %vm3031, %v3005
      %3046 = vst.msk [vmem:[#allocation2 + $0x77] sm:$0xff] %vm3031, %v3007
      %3047 = vst.msk [vmem:[#allocation2 + $0x7f] sm:$0xff] %vm3031, %v3009
      %3048 = vst.msk [vmem:[#allocation2 + $0x87] sm:$0xff] %vm3031, %v3011
      %3049 = vst.msk [vmem:[#allocation2 + $0x8f] sm:$0xff] %vm3031, %v2979
      %3050 = vst.msk [vmem:[#allocation2 + $0x97] sm:$0xff] %vm3031, %v2979
      %vm3051 = vcmask 188544
      %3052 = vst.msk [vmem:[#allocation2 + $0x9f] sm:$0x1] %vm3051, %v2979
      %v3053 = vld [vmem:[#allocation2] sm:$0xff]
      %v3054 = vld [vmem:[#allocation2 + $0x8] sm:$0xff]
      %v3055 = vld [vmem:[#allocation2 + $0x10] sm:$0xff]
      %v3056 = vld [vmem:[#allocation2 + $0x18] sm:$0xff]
      %v3057 = vld [vmem:[#allocation2 + $0x20] sm:$0xff]
      %v3058 = vld [vmem:[#allocation2 + $0x28] sm:$0xff]
      %v3059 = vld [vmem:[#allocation2 + $0x30] sm:$0xff]
      %v3060 = vld [vmem:[#allocation2 + $0x38] sm:$0xff]
      %v3061 = vld [vmem:[#allocation2 + $0x40] sm:$0xff]
      %v3062 = vld [vmem:[#allocation2 + $0x48] sm:$0xff]
      %v3063 = vld [vmem:[#allocation2 + $0x50] sm:$0xff]
      %v3064 = vld [vmem:[#allocation2 + $0x58] sm:$0xff]
      %v3065 = vld [vmem:[#allocation2 + $0x60] sm:$0xff]
      %v3066 = vld [vmem:[#allocation2 + $0x68] sm:$0xff]
      %v3067 = vld [vmem:[#allocation2 + $0x70] sm:$0xff]
      %v3068 = vld [vmem:[#allocation2 + $0x78] sm:$0xff]
      %v3069 = vpack.c.bf16 %v3054, %v3053
      %v3070 = vpack.c.bf16 %v3056, %v3055
      %v3071 = vpack.c.bf16 %v3058, %v3057
      %v3072 = vpack.c.bf16 %v3060, %v3059
      %v3073 = vpack.c.bf16 %v3062, %v3061
      %v3074 = vpack.c.bf16 %v3064, %v3063
      %v3075 = vpack.c.bf16 %v3066, %v3065
      %v3076 = vpack.c.bf16 %v3068, %v3067
      %v3077 = vld [vmem:[%s2] sm:$0xf]
      %v3078 = vld [vmem:[%s2 + $0x4] sm:$0xf]
      %v3079 = vld [vmem:[%s2 + $0x8] sm:$0xf]
      %v3080 = vld [vmem:[#allocation2 + $0x80] sm:$0xff]
      %v3081 = vld [vmem:[#allocation2 + $0x88] sm:$0xff]
      %v3082 = vpack.c.bf16 %v3081, %v3080
      %s3083 = scalar_lea.vmem %s2, 12
      %v3084 = vld [vmem:[%s3083] sm:$0xf]
      %v3085 = vld [vmem:[%s3083 + $0x4] sm:$0xf]
      %v3086 = vld [vmem:[%s3083 + $0x8] sm:$0xf]
      %v3090 = vunpack.c.l.b16 %v3084
      %v3091 = vunpack.c.l.b16 %v3085
      %v3092 = vunpack.c.l.b16 %v3086
      %v3093 = vpack.c.b16 %v3091, %v3090
      %v3094 = vpack.c.b16 %v3092, %v3092
      %v3097 = vsel %vm2258, %v3070, 0
      %v3100 = vsel %vm2258, %v3071, 0
      %v3103 = vsel %vm2258, %v3072, 0
      %v3106 = vsel %vm2258, %v3073, 0
      %v3109 = vsel %vm2258, %v3074, 0
      %v3112 = vsel %vm2258, %v3075, 0
      %v3115 = vsel %vm2258, %v3076, 0
      %v3118 = vsel %vm2258, %v3082, 0
      %vm3120 = vcmask 1043456
      %v3122 = vsel %vm3120, %v3094, 0
      %3124 = vmatprep.subr.bf16.mxu0 0
      %3125 = vmatpush1.bf16.msra.mxu0 %v3093
      %3126 = vmatprep.subr.bf16.mxu0 0
      %3127 = vmatpush1.bf16.msra.mxu0 %v3122
      %3128 = vmatprep.subr.bf16.mxu0 0
      %3129 = vmatpush1.bf16.msra.mxu0 0
      %3130 = vmatprep.subr.bf16.mxu0 0
      %3131 = vmatpush1.bf16.msra.mxu0 0
      %3132 = vmatprep.subr.bf16.mxu0 0
      %3133 = vmatpush1.bf16.msra.mxu0 0
      %3134 = vmatprep.subr.bf16.mxu0 0
      %3135 = vmatpush1.bf16.msra.mxu0 0
      %3136 = vmatprep.subr.bf16.mxu0 0
      %3137 = vmatpush1.bf16.msra.mxu0 0
      %3138 = vmatprep.subr.bf16.mxu0 0
      %3139 = vmatpush1.bf16.msra.mxu0 0
      %3140 = vmatprep.subr.bf16.mxu0 0
      %3141 = vmatpush1.bf16.msra.mxu0 0
      %3142 = vmatprep.subr.bf16.mxu0 0
      %3143 = vmatpush1.bf16.msra.mxu0 0
      %3144 = vmatprep.subr.bf16.mxu0 0
      %3145 = vmatpush1.bf16.msra.mxu0 0
      %3146 = vmatprep.subr.bf16.mxu0 0
      %3147 = vmatpush1.bf16.msra.mxu0 0
      %3148 = vmatprep.subr.bf16.mxu0 0
      %3149 = vmatpush1.bf16.msra.mxu0 0
      %3150 = vmatprep.subr.bf16.mxu0 0
      %3151 = vmatpush1.bf16.msra.mxu0 0
      %3152 = vmatprep.subr.bf16.mxu0 0
      %3153 = vmatpush1.bf16.msra.mxu0 0
      %3154 = vmatprep.subr.bf16.mxu0 0
      %3155 = vmatpush1.bf16.msra.mxu0 0
      %3156 = vmatprep.mubr.bf16.mxu0 0
      %3157 = vmatmul.mubr.bf16.gmra.mrb[0].mxu0 %v3097
      %v3158 = vpop.f32.mrb[0].mxu0
      %v3159 = vadd.f32 0.0, %v3158
      %v3160 = vpop.f32.mrb[0].mxu0
      %v3161 = vpop.f32.mrb[0].mxu0
      %v3162 = vadd.f32 0.0, %v3161
      %v3163 = vpop.f32.mrb[0].mxu0
      %3164 = vmatprep.mubr.bf16.mxu0 0
      %3165 = vmatmul.mubr.bf16.gmra.mrb[0].mxu0 %v3100
      %v3166 = vpop.f32.mrb[0].mxu0
      %v3167 = vadd.f32 0.0, %v3166
      %v3168 = vpop.f32.mrb[0].mxu0
      %v3169 = vpop.f32.mrb[0].mxu0
      %v3170 = vadd.f32 0.0, %v3169
      %v3171 = vpop.f32.mrb[0].mxu0
      %3172 = vmatprep.mubr.bf16.mxu0 0
      %3173 = vmatmul.mubr.bf16.gmra.mrb[0].mxu0 %v3103
      %v3174 = vpop.f32.mrb[0].mxu0
      %v3175 = vadd.f32 0.0, %v3174
      %v3176 = vpop.f32.mrb[0].mxu0
      %v3177 = vpop.f32.mrb[0].mxu0
      %v3178 = vadd.f32 0.0, %v3177
      %v3179 = vpop.f32.mrb[0].mxu0
      %3180 = vmatprep.mubr.bf16.mxu0 0
      %3181 = vmatmul.mubr.bf16.gmra.mrb[0].mxu0 %v3106
      %v3182 = vpop.f32.mrb[0].mxu0
      %v3183 = vadd.f32 0.0, %v3182
      %v3184 = vpop.f32.mrb[0].mxu0
      %v3185 = vpop.f32.mrb[0].mxu0
      %v3186 = vadd.f32 0.0, %v3185
      %v3187 = vpop.f32.mrb[0].mxu0
      %3188 = vmatprep.mubr.bf16.mxu0 0
      %3189 = vmatmul.mubr.bf16.gmra.mrb[0].mxu0 %v3109
      %v3190 = vpop.f32.mrb[0].mxu0
      %v3191 = vadd.f32 0.0, %v3190
      %v3192 = vpop.f32.mrb[0].mxu0
      %v3193 = vpop.f32.mrb[0].mxu0
      %v3194 = vadd.f32 0.0, %v3193
      %v3195 = vpop.f32.mrb[0].mxu0
      %3196 = vmatprep.mubr.bf16.mxu0 0
      %3197 = vmatmul.mubr.bf16.gmra.mrb[0].mxu0 %v3112
      %v3198 = vpop.f32.mrb[0].mxu0
      %v3199 = vadd.f32 0.0, %v3198
      %v3200 = vpop.f32.mrb[0].mxu0
      %v3201 = vpop.f32.mrb[0].mxu0
      %v3202 = vadd.f32 0.0, %v3201
      %v3203 = vpop.f32.mrb[0].mxu0
      %3204 = vmatprep.mubr.bf16.mxu0 0
      %3205 = vmatmul.mubr.bf16.gmra.mrb[0].mxu0 %v3115
      %v3206 = vpop.f32.mrb[0].mxu0
      %v3207 = vadd.f32 0.0, %v3206
      %v3208 = vpop.f32.mrb[0].mxu0
      %v3209 = vpop.f32.mrb[0].mxu0
      %v3210 = vadd.f32 0.0, %v3209
      %v3211 = vpop.f32.mrb[0].mxu0
      %3212 = vmatprep.mubr.bf16.mxu0 0
      %3213 = vmatmul.mubr.bf16.gmra.mrb[0].mxu0 %v3118
      %v3214 = vpop.f32.mrb[0].mxu0
      %v3215 = vadd.f32 0.0, %v3214
      %v3216 = vpop.f32.mrb[0].mxu0
      %v3217 = vpop.f32.mrb[0].mxu0
      %v3218 = vadd.f32 0.0, %v3217
      %v3219 = vpop.f32.mrb[0].mxu0
      %3220 = vdwg.mxu0
      %v3224 = vunpack.c.l.b16 %v3077
      %v3225 = vunpack.c.l.b16 %v3078
      %v3226 = vunpack.c.l.b16 %v3079
      %v3227 = vpack.c.b16 %v3225, %v3224
      %v3228 = vpack.c.b16 %v3226, %v3226
      %v3231 = vsel %vm2258, %v3069, 0
      %v3234 = vsel %vm3120, %v3228, 0
      %3236 = vmatprep.subr.bf16.mxu0 0
      %3237 = vmatpush1.bf16.msra.mxu0 %v3227
      %3238 = vmatprep.subr.bf16.mxu0 0
      %3239 = vmatpush1.bf16.msra.mxu0 %v3234
      %3240 = vmatprep.subr.bf16.mxu0 0
      %3241 = vmatpush1.bf16.msra.mxu0 0
      %3242 = vmatprep.subr.bf16.mxu0 0
      %3243 = vmatpush1.bf16.msra.mxu0 0
      %3244 = vmatprep.subr.bf16.mxu0 0
      %3245 = vmatpush1.bf16.msra.mxu0 0
      %3246 = vmatprep.subr.bf16.mxu0 0
      %3247 = vmatpush1.bf16.msra.mxu0 0
      %3248 = vmatprep.subr.bf16.mxu0 0
      %3249 = vmatpush1.bf16.msra.mxu0 0
      %3250 = vmatprep.subr.bf16.mxu0 0
      %3251 = vmatpush1.bf16.msra.mxu0 0
      %3252 = vmatprep.subr.bf16.mxu0 0
      %3253 = vmatpush1.bf16.msra.mxu0 0
      %3254 = vmatprep.subr.bf16.mxu0 0
      %3255 = vmatpush1.bf16.msra.mxu0 0
      %3256 = vmatprep.subr.bf16.mxu0 0
      %3257 = vmatpush1.bf16.msra.mxu0 0
      %3258 = vmatprep.subr.bf16.mxu0 0
      %3259 = vmatpush1.bf16.msra.mxu0 0
      %3260 = vmatprep.subr.bf16.mxu0 0
      %3261 = vmatpush1.bf16.msra.mxu0 0
      %3262 = vmatprep.subr.bf16.mxu0 0
      %3263 = vmatpush1.bf16.msra.mxu0 0
      %3264 = vmatprep.subr.bf16.mxu0 0
      %3265 = vmatpush1.bf16.msra.mxu0 0
      %3266 = vmatprep.subr.bf16.mxu0 0
      %3267 = vmatpush1.bf16.msra.mxu0 0
      %3268 = vmatprep.mubr.bf16.mxu0 0
      %3269 = vmatmul.mubr.bf16.gmra.mrb[0].mxu0 %v3231
      %v3270 = vpop.f32.mrb[0].mxu0
      %v3271 = vadd.f32 %v3159, %v3270
      %v3272 = vpop.f32.mrb[0].mxu0
      %v3273 = vpop.f32.mrb[0].mxu0
      %v3274 = vadd.f32 %v3162, %v3273
      %v3275 = vpop.f32.mrb[0].mxu0
      %3276 = vmatprep.mubr.bf16.mxu0 0
      %3277 = vmatmul.mubr.bf16.gmra.mrb[0].mxu0 %v3097
      %v3278 = vpop.f32.mrb[0].mxu0
      %v3279 = vadd.f32 %v3167, %v3278
      %v3280 = vpop.f32.mrb[0].mxu0
      %v3281 = vpop.f32.mrb[0].mxu0
      %v3282 = vadd.f32 %v3170, %v3281
      %v3283 = vpop.f32.mrb[0].mxu0
      %3284 = vmatprep.mubr.bf16.mxu0 0
      %3285 = vmatmul.mubr.bf16.gmra.mrb[0].mxu0 %v3100
      %v3286 = vpop.f32.mrb[0].mxu0
      %v3287 = vadd.f32 %v3175, %v3286
      %v3288 = vpop.f32.mrb[0].mxu0
      %v3289 = vpop.f32.mrb[0].mxu0
      %v3290 = vadd.f32 %v3178, %v3289
      %v3291 = vpop.f32.mrb[0].mxu0
      %3292 = vmatprep.mubr.bf16.mxu0 0
      %3293 = vmatmul.mubr.bf16.gmra.mrb[0].mxu0 %v3103
      %v3294 = vpop.f32.mrb[0].mxu0
      %v3295 = vadd.f32 %v3183, %v3294
      %v3296 = vpop.f32.mrb[0].mxu0
      %v3297 = vpop.f32.mrb[0].mxu0
      %v3298 = vadd.f32 %v3186, %v3297
      %v3299 = vpop.f32.mrb[0].mxu0
      %3300 = vmatprep.mubr.bf16.mxu0 0
      %3301 = vmatmul.mubr.bf16.gmra.mrb[0].mxu0 %v3106
      %v3302 = vpop.f32.mrb[0].mxu0
      %v3303 = vadd.f32 %v3191, %v3302
      %v3304 = vpop.f32.mrb[0].mxu0
      %v3305 = vpop.f32.mrb[0].mxu0
      %v3306 = vadd.f32 %v3194, %v3305
      %v3307 = vpop.f32.mrb[0].mxu0
      %3308 = vmatprep.mubr.bf16.mxu0 0
      %3309 = vmatmul.mubr.bf16.gmra.mrb[0].mxu0 %v3109
      %v3310 = vpop.f32.mrb[0].mxu0
      %v3311 = vadd.f32 %v3199, %v3310
      %v3312 = vpop.f32.mrb[0].mxu0
      %v3313 = vpop.f32.mrb[0].mxu0
      %v3314 = vadd.f32 %v3202, %v3313
      %v3315 = vpop.f32.mrb[0].mxu0
      %3316 = vmatprep.mubr.bf16.mxu0 0
      %3317 = vmatmul.mubr.bf16.gmra.mrb[0].mxu0 %v3112
      %v3318 = vpop.f32.mrb[0].mxu0
      %v3319 = vadd.f32 %v3207, %v3318
      %v3320 = vpop.f32.mrb[0].mxu0
      %v3321 = vpop.f32.mrb[0].mxu0
      %v3322 = vadd.f32 %v3210, %v3321
      %v3323 = vpop.f32.mrb[0].mxu0
      %3324 = vmatprep.mubr.bf16.mxu0 0
      %3325 = vmatmul.mubr.bf16.gmra.mrb[0].mxu0 %v3115
      %v3326 = vpop.f32.mrb[0].mxu0
      %v3327 = vadd.f32 %v3215, %v3326
      %v3328 = vpop.f32.mrb[0].mxu0
      %v3329 = vpop.f32.mrb[0].mxu0
      %v3330 = vadd.f32 %v3218, %v3329
      %v3331 = vpop.f32.mrb[0].mxu0
      %3332 = vdwg.mxu0
      %v3333 = vld [vmem:[#allocation2 + $0x20] sm:$0xff]
      %v3334 = vld [vmem:[#allocation2 + $0x28] sm:$0xff]
      %v3335 = vld [vmem:[#allocation2 + $0x30] sm:$0xff]
      %v3336 = vld [vmem:[#allocation2 + $0x38] sm:$0xff]
      %v3337 = vld [vmem:[#allocation2 + $0x40] sm:$0xff]
      %v3338 = vld [vmem:[#allocation2 + $0x48] sm:$0xff]
      %v3339 = vld [vmem:[#allocation2 + $0x50] sm:$0xff]
      %v3340 = vld [vmem:[#allocation2 + $0x58] sm:$0xff]
      %v3341 = vld [vmem:[#allocation2 + $0x60] sm:$0xff]
      %v3342 = vld [vmem:[#allocation2 + $0x68] sm:$0xff]
      %v3343 = vld [vmem:[#allocation2 + $0x70] sm:$0xff]
      %v3344 = vld [vmem:[#allocation2 + $0x78] sm:$0xff]
      %v3345 = vld [vmem:[#allocation2 + $0x80] sm:$0xff]
      %v3346 = vld [vmem:[#allocation2 + $0x88] sm:$0xff]
      %v3347 = vld [vmem:[#allocation2 + $0x90] sm:$0xff]
      %v3348 = vld [vmem:[#allocation2 + $0x98] sm:$0xff]
      %v3349 = vpack.c.bf16 %v3334, %v3333
      %v3350 = vpack.c.bf16 %v3336, %v3335
      %v3351 = vpack.c.bf16 %v3338, %v3337
      %v3352 = vpack.c.bf16 %v3340, %v3339
      %v3353 = vpack.c.bf16 %v3342, %v3341
      %v3354 = vpack.c.bf16 %v3344, %v3343
      %v3355 = vpack.c.bf16 %v3346, %v3345
      %v3356 = vpack.c.bf16 %v3348, %v3347
      %s3357 = scalar_lea.vmem %s2, 24
      %v3358 = vld [vmem:[%s3357] sm:$0xf]
      %v3359 = vld [vmem:[%s3357 + $0x4] sm:$0xf]
      %v3360 = vld [vmem:[%s3357 + $0x8] sm:$0xf]
      %v3364 = vunpack.c.l.b16 %v3358
      %v3365 = vunpack.c.l.b16 %v3359
      %v3366 = vunpack.c.l.b16 %v3360
      %v3367 = vpack.c.b16 %v3365, %v3364
      %v3368 = vpack.c.b16 %v3366, %v3366
      %v3371 = vsel %vm2258, %v3349, 0
      %v3374 = vsel %vm2258, %v3350, 0
      %v3377 = vsel %vm2258, %v3351, 0
      %v3380 = vsel %vm2258, %v3352, 0
      %v3383 = vsel %vm2258, %v3353, 0
      %v3386 = vsel %vm2258, %v3354, 0
      %v3389 = vsel %vm2258, %v3355, 0
      %v3392 = vsel %vm2258, %v3356, 0
      %v3395 = vsel %vm3120, %v3368, 0
      %3397 = vmatprep.subr.bf16.mxu0 0
      %3398 = vmatpush1.bf16.msra.mxu0 %v3367
      %3399 = vmatprep.subr.bf16.mxu0 0
      %3400 = vmatpush1.bf16.msra.mxu0 %v3395
      %3401 = vmatprep.subr.bf16.mxu0 0
      %3402 = vmatpush1.bf16.msra.mxu0 0
      %3403 = vmatprep.subr.bf16.mxu0 0
      %3404 = vmatpush1.bf16.msra.mxu0 0
      %3405 = vmatprep.subr.bf16.mxu0 0
      %3406 = vmatpush1.bf16.msra.mxu0 0
      %3407 = vmatprep.subr.bf16.mxu0 0
      %3408 = vmatpush1.bf16.msra.mxu0 0
      %3409 = vmatprep.subr.bf16.mxu0 0
      %3410 = vmatpush1.bf16.msra.mxu0 0
      %3411 = vmatprep.subr.bf16.mxu0 0
      %3412 = vmatpush1.bf16.msra.mxu0 0
      %3413 = vmatprep.subr.bf16.mxu0 0
      %3414 = vmatpush1.bf16.msra.mxu0 0
      %3415 = vmatprep.subr.bf16.mxu0 0
      %3416 = vmatpush1.bf16.msra.mxu0 0
      %3417 = vmatprep.subr.bf16.mxu0 0
      %3418 = vmatpush1.bf16.msra.mxu0 0
      %3419 = vmatprep.subr.bf16.mxu0 0
      %3420 = vmatpush1.bf16.msra.mxu0 0
      %3421 = vmatprep.subr.bf16.mxu0 0
      %3422 = vmatpush1.bf16.msra.mxu0 0
      %3423 = vmatprep.subr.bf16.mxu0 0
      %3424 = vmatpush1.bf16.msra.mxu0 0
      %3425 = vmatprep.subr.bf16.mxu0 0
      %3426 = vmatpush1.bf16.msra.mxu0 0
      %3427 = vmatprep.subr.bf16.mxu0 0
      %3428 = vmatpush1.bf16.msra.mxu0 0
      %3429 = vmatprep.mubr.bf16.mxu0 0
      %3430 = vmatmul.mubr.bf16.gmra.mrb[0].mxu0 %v3371
      %v3431 = vpop.f32.mrb[0].mxu0
      %v3432 = vadd.f32 0.0, %v3431
      %v3433 = vpop.f32.mrb[0].mxu0
      %v3434 = vpop.f32.mrb[0].mxu0
      %v3435 = vadd.f32 0.0, %v3434
      %v3436 = vpop.f32.mrb[0].mxu0
      %3437 = vmatprep.mubr.bf16.mxu0 0
      %3438 = vmatmul.mubr.bf16.gmra.mrb[0].mxu0 %v3374
      %v3439 = vpop.f32.mrb[0].mxu0
      %v3440 = vadd.f32 0.0, %v3439
      %v3441 = vpop.f32.mrb[0].mxu0
      %v3442 = vpop.f32.mrb[0].mxu0
      %v3443 = vadd.f32 0.0, %v3442
      %v3444 = vpop.f32.mrb[0].mxu0
      %3445 = vmatprep.mubr.bf16.mxu0 0
      %3446 = vmatmul.mubr.bf16.gmra.mrb[0].mxu0 %v3377
      %v3447 = vpop.f32.mrb[0].mxu0
      %v3448 = vadd.f32 0.0, %v3447
      %v3449 = vpop.f32.mrb[0].mxu0
      %v3450 = vpop.f32.mrb[0].mxu0
      %v3451 = vadd.f32 0.0, %v3450
      %v3452 = vpop.f32.mrb[0].mxu0
      %3453 = vmatprep.mubr.bf16.mxu0 0
      %3454 = vmatmul.mubr.bf16.gmra.mrb[0].mxu0 %v3380
      %v3455 = vpop.f32.mrb[0].mxu0
      %v3456 = vadd.f32 0.0, %v3455
      %v3457 = vpop.f32.mrb[0].mxu0
      %v3458 = vpop.f32.mrb[0].mxu0
      %v3459 = vadd.f32 0.0, %v3458
      %v3460 = vpop.f32.mrb[0].mxu0
      %3461 = vmatprep.mubr.bf16.mxu0 0
      %3462 = vmatmul.mubr.bf16.gmra.mrb[0].mxu0 %v3383
      %v3463 = vpop.f32.mrb[0].mxu0
      %v3464 = vadd.f32 0.0, %v3463
      %v3465 = vpop.f32.mrb[0].mxu0
      %v3466 = vpop.f32.mrb[0].mxu0
      %v3467 = vadd.f32 0.0, %v3466
      %v3468 = vpop.f32.mrb[0].mxu0
      %3469 = vmatprep.mubr.bf16.mxu0 0
      %3470 = vmatmul.mubr.bf16.gmra.mrb[0].mxu0 %v3386
      %v3471 = vpop.f32.mrb[0].mxu0
      %v3472 = vadd.f32 0.0, %v3471
      %v3473 = vpop.f32.mrb[0].mxu0
      %v3474 = vpop.f32.mrb[0].mxu0
      %v3475 = vadd.f32 0.0, %v3474
      %v3476 = vpop.f32.mrb[0].mxu0
      %3477 = vmatprep.mubr.bf16.mxu0 0
      %3478 = vmatmul.mubr.bf16.gmra.mrb[0].mxu0 %v3389
      %v3479 = vpop.f32.mrb[0].mxu0
      %v3480 = vadd.f32 0.0, %v3479
      %v3481 = vpop.f32.mrb[0].mxu0
      %v3482 = vpop.f32.mrb[0].mxu0
      %v3483 = vadd.f32 0.0, %v3482
      %v3484 = vpop.f32.mrb[0].mxu0
      %3485 = vmatprep.mubr.bf16.mxu0 0
      %3486 = vmatmul.mubr.bf16.gmra.mrb[0].mxu0 %v3392
      %v3487 = vpop.f32.mrb[0].mxu0
      %v3488 = vadd.f32 0.0, %v3487
      %v3489 = vpop.f32.mrb[0].mxu0
      %v3490 = vpop.f32.mrb[0].mxu0
      %v3491 = vadd.f32 0.0, %v3490
      %v3492 = vpop.f32.mrb[0].mxu0
      %3493 = vdwg.mxu0
      %v3494 = vadd.f32 %v3271, %v3432
      %v3495 = vadd.f32 %v3274, %v3435
      %v3496 = vadd.f32 %v3279, %v3440
      %v3497 = vadd.f32 %v3282, %v3443
      %v3498 = vadd.f32 %v3287, %v3448
      %v3499 = vadd.f32 %v3290, %v3451
      %v3500 = vadd.f32 %v3295, %v3456
      %v3501 = vadd.f32 %v3298, %v3459
      %v3502 = vadd.f32 %v3303, %v3464
      %v3503 = vadd.f32 %v3306, %v3467
      %v3504 = vadd.f32 %v3311, %v3472
      %v3505 = vadd.f32 %v3314, %v3475
      %v3506 = vadd.f32 %v3319, %v3480
      %v3507 = vadd.f32 %v3322, %v3483
      %v3508 = vadd.f32 %v3327, %v3488
      %v3509 = vadd.f32 %v3330, %v3491
      %vm3510 = vcmp.ge.f32.partialorder %v3494, 0.0
      %vm3511 = vcmp.ge.f32.partialorder %v3495, 0.0
      %vm3512 = vcmp.ge.f32.partialorder %v3496, 0.0
      %vm3513 = vcmp.ge.f32.partialorder %v3497, 0.0
      %vm3514 = vcmp.ge.f32.partialorder %v3498, 0.0
      %vm3515 = vcmp.ge.f32.partialorder %v3499, 0.0
      %vm3516 = vcmp.ge.f32.partialorder %v3500, 0.0
      %vm3517 = vcmp.ge.f32.partialorder %v3501, 0.0
      %vm3518 = vcmp.ge.f32.partialorder %v3502, 0.0
      %vm3519 = vcmp.ge.f32.partialorder %v3503, 0.0
      %vm3520 = vcmp.ge.f32.partialorder %v3504, 0.0
      %vm3521 = vcmp.ge.f32.partialorder %v3505, 0.0
      %vm3522 = vcmp.ge.f32.partialorder %v3506, 0.0
      %vm3523 = vcmp.ge.f32.partialorder %v3507, 0.0
      %vm3524 = vcmp.ge.f32.partialorder %v3508, 0.0
      %vm3525 = vcmp.ge.f32.partialorder %v3509, 0.0
      %v3526 = vmul.f32 %v3494, 0.2
      %v3527 = vmul.f32 %v3495, 0.2
      %v3528 = vmul.f32 %v3496, 0.2
      %v3529 = vmul.f32 %v3497, 0.2
      %v3530 = vmul.f32 %v3498, 0.2
      %v3531 = vmul.f32 %v3499, 0.2
      %v3532 = vmul.f32 %v3500, 0.2
      %v3533 = vmul.f32 %v3501, 0.2
      %v3534 = vmul.f32 %v3502, 0.2
      %v3535 = vmul.f32 %v3503, 0.2
      %v3536 = vmul.f32 %v3504, 0.2
      %v3537 = vmul.f32 %v3505, 0.2
      %v3538 = vmul.f32 %v3506, 0.2
      %v3539 = vmul.f32 %v3507, 0.2
      %v3540 = vmul.f32 %v3508, 0.2
      %v3541 = vmul.f32 %v3509, 0.2
      %v3542 = vsel %vm3510, %v3494, %v3526
      %v3543 = vsel %vm3511, %v3495, %v3527
      %v3544 = vsel %vm3512, %v3496, %v3528
      %v3545 = vsel %vm3513, %v3497, %v3529
      %v3546 = vsel %vm3514, %v3498, %v3530
      %v3547 = vsel %vm3515, %v3499, %v3531
      %v3548 = vsel %vm3516, %v3500, %v3532
      %v3549 = vsel %vm3517, %v3501, %v3533
      %v3550 = vsel %vm3518, %v3502, %v3534
      %v3551 = vsel %vm3519, %v3503, %v3535
      %v3552 = vsel %vm3520, %v3504, %v3536
      %v3553 = vsel %vm3521, %v3505, %v3537
      %v3554 = vsel %vm3522, %v3506, %v3538
      %v3555 = vsel %vm3523, %v3507, %v3539
      %v3556 = vsel %vm3524, %v3508, %v3540
      %v3557 = vsel %vm3525, %v3509, %v3541
      %v3558 = vadd.f32 %v3542, %v3544
      %v3559 = vadd.f32 %v3543, %v3545
      %v3560 = vadd.f32 %v3546, %v3548
      %v3561 = vadd.f32 %v3547, %v3549
      %v3562 = vadd.f32 %v3550, %v3552
      %v3563 = vadd.f32 %v3551, %v3553
      %v3564 = vadd.f32 %v3554, %v3556
      %v3565 = vadd.f32 %v3555, %v3557
      %v3566 = vld [vmem:[%s5] sm:$0xff]
      %vm3567 = vcmask 130048
      %v3569 = vsel %vm3567, %v3566, 0
      %3571 = vmatprep.subr.mxu0 0.0
      %3572 = vmatpush1.msra.mxu0 %v3558
      %3573 = vmatprep.subr.mxu0 0.0
      %3574 = vmatpush1.msra.mxu0 %v3559
      %3575 = vmatprep.subr.mxu0 0.0
      %3576 = vmatpush1.msra.mxu0 0.0
      %3577 = vmatprep.subr.mxu0 0.0
      %3578 = vmatpush1.msra.mxu0 0.0
      %3579 = vmatprep.subr.mxu0 0.0
      %3580 = vmatpush1.msra.mxu0 0.0
      %3581 = vmatprep.subr.mxu0 0.0
      %3582 = vmatpush1.msra.mxu0 0.0
      %3583 = vmatprep.subr.mxu0 0.0
      %3584 = vmatpush1.msra.mxu0 0.0
      %3585 = vmatprep.subr.mxu0 0.0
      %3586 = vmatpush1.msra.mxu0 0.0
      %3587 = vmatprep.subr.mxu0 0.0
      %3588 = vmatpush1.msra.mxu0 0.0
      %3589 = vmatprep.subr.mxu0 0.0
      %3590 = vmatpush1.msra.mxu0 0.0
      %3591 = vmatprep.subr.mxu0 0.0
      %3592 = vmatpush1.msra.mxu0 0.0
      %3593 = vmatprep.subr.mxu0 0.0
      %3594 = vmatpush1.msra.mxu0 0.0
      %3595 = vmatprep.subr.mxu0 0.0
      %3596 = vmatpush1.msra.mxu0 0.0
      %3597 = vmatprep.subr.mxu0 0.0
      %3598 = vmatpush1.msra.mxu0 0.0
      %3599 = vmatprep.subr.mxu0 0.0
      %3600 = vmatpush1.msra.mxu0 0.0
      %3601 = vmatprep.subr.mxu0 0.0
      %3602 = vmatpush1.msra.mxu0 0.0
      %3603 = vmatprep.subr.mxu0 0.0
      %3604 = vmatpush1.msra.mxu0 0.0
      %3605 = vmatprep.subr.mxu0 0.0
      %3606 = vmatpush1.msra.mxu0 0.0
      %3607 = vmatprep.subr.mxu0 0.0
      %3608 = vmatpush1.msra.mxu0 0.0
      %3609 = vmatprep.subr.mxu0 0.0
      %3610 = vmatpush1.msra.mxu0 0.0
      %3611 = vmatprep.subr.mxu0 0.0
      %3612 = vmatpush1.msra.mxu0 0.0
      %3613 = vmatprep.subr.mxu0 0.0
      %3614 = vmatpush1.msra.mxu0 0.0
      %3615 = vmatprep.subr.mxu0 0.0
      %3616 = vmatpush1.msra.mxu0 0.0
      %3617 = vmatprep.subr.mxu0 0.0
      %3618 = vmatpush1.msra.mxu0 0.0
      %3619 = vmatprep.subr.mxu0 0.0
      %3620 = vmatpush1.msra.mxu0 0.0
      %3621 = vmatprep.subr.mxu0 0.0
      %3622 = vmatpush1.msra.mxu0 0.0
      %3623 = vmatprep.subr.mxu0 0.0
      %3624 = vmatpush1.msra.mxu0 0.0
      %3625 = vmatprep.subr.mxu0 0.0
      %3626 = vmatpush1.msra.mxu0 0.0
      %3627 = vmatprep.subr.mxu0 0.0
      %3628 = vmatpush1.msra.mxu0 0.0
      %3629 = vmatprep.subr.mxu0 0.0
      %3630 = vmatpush1.msra.mxu0 0.0
      %3631 = vmatprep.subr.mxu0 0.0
      %3632 = vmatpush1.msra.mxu0 0.0
      %3633 = vmatprep.subr.mxu0 0.0
      %3634 = vmatpush1.msra.mxu0 0.0
      %3635 = vmatprep.mubr.f32.mxu0 0.0
      %3636 = vmatmul.mubr.f32.gmra.mrb[0].mxu0 %v3569
      %v3637 = vpop.f32.mrb[0].mxu0
      %v3638 = vadd.f32 0.0, %v3637
      %v3639 = vpop.f32.mrb[0].mxu0
      %3640 = vdwg.mxu0
      %3641 = vmatprep.subr.mxu0 0.0
      %3642 = vmatpush1.msra.mxu0 %v3560
      %3643 = vmatprep.subr.mxu0 0.0
      %3644 = vmatpush1.msra.mxu0 %v3561
      %3645 = vmatprep.subr.mxu0 0.0
      %3646 = vmatpush1.msra.mxu0 0.0
      %3647 = vmatprep.subr.mxu0 0.0
      %3648 = vmatpush1.msra.mxu0 0.0
      %3649 = vmatprep.subr.mxu0 0.0
      %3650 = vmatpush1.msra.mxu0 0.0
      %3651 = vmatprep.subr.mxu0 0.0
      %3652 = vmatpush1.msra.mxu0 0.0
      %3653 = vmatprep.subr.mxu0 0.0
      %3654 = vmatpush1.msra.mxu0 0.0
      %3655 = vmatprep.subr.mxu0 0.0
      %3656 = vmatpush1.msra.mxu0 0.0
      %3657 = vmatprep.subr.mxu0 0.0
      %3658 = vmatpush1.msra.mxu0 0.0
      %3659 = vmatprep.subr.mxu0 0.0
      %3660 = vmatpush1.msra.mxu0 0.0
      %3661 = vmatprep.subr.mxu0 0.0
      %3662 = vmatpush1.msra.mxu0 0.0
      %3663 = vmatprep.subr.mxu0 0.0
      %3664 = vmatpush1.msra.mxu0 0.0
      %3665 = vmatprep.subr.mxu0 0.0
      %3666 = vmatpush1.msra.mxu0 0.0
      %3667 = vmatprep.subr.mxu0 0.0
      %3668 = vmatpush1.msra.mxu0 0.0
      %3669 = vmatprep.subr.mxu0 0.0
      %3670 = vmatpush1.msra.mxu0 0.0
      %3671 = vmatprep.subr.mxu0 0.0
      %3672 = vmatpush1.msra.mxu0 0.0
      %3673 = vmatprep.subr.mxu0 0.0
      %3674 = vmatpush1.msra.mxu0 0.0
      %3675 = vmatprep.subr.mxu0 0.0
      %3676 = vmatpush1.msra.mxu0 0.0
      %3677 = vmatprep.subr.mxu0 0.0
      %3678 = vmatpush1.msra.mxu0 0.0
      %3679 = vmatprep.subr.mxu0 0.0
      %3680 = vmatpush1.msra.mxu0 0.0
      %3681 = vmatprep.subr.mxu0 0.0
      %3682 = vmatpush1.msra.mxu0 0.0
      %3683 = vmatprep.subr.mxu0 0.0
      %3684 = vmatpush1.msra.mxu0 0.0
      %3685 = vmatprep.subr.mxu0 0.0
      %3686 = vmatpush1.msra.mxu0 0.0
      %3687 = vmatprep.subr.mxu0 0.0
      %3688 = vmatpush1.msra.mxu0 0.0
      %3689 = vmatprep.subr.mxu0 0.0
      %3690 = vmatpush1.msra.mxu0 0.0
      %3691 = vmatprep.subr.mxu0 0.0
      %3692 = vmatpush1.msra.mxu0 0.0
      %3693 = vmatprep.subr.mxu0 0.0
      %3694 = vmatpush1.msra.mxu0 0.0
      %3695 = vmatprep.subr.mxu0 0.0
      %3696 = vmatpush1.msra.mxu0 0.0
      %3697 = vmatprep.subr.mxu0 0.0
      %3698 = vmatpush1.msra.mxu0 0.0
      %3699 = vmatprep.subr.mxu0 0.0
      %3700 = vmatpush1.msra.mxu0 0.0
      %3701 = vmatprep.subr.mxu0 0.0
      %3702 = vmatpush1.msra.mxu0 0.0
      %3703 = vmatprep.subr.mxu0 0.0
      %3704 = vmatpush1.msra.mxu0 0.0
      %3705 = vmatprep.mubr.f32.mxu0 0.0
      %3706 = vmatmul.mubr.f32.gmra.mrb[0].mxu0 %v3569
      %v3707 = vpop.f32.mrb[0].mxu0
      %v3708 = vadd.f32 0.0, %v3707
      %v3709 = vpop.f32.mrb[0].mxu0
      %3710 = vdwg.mxu0
      %3711 = vmatprep.subr.mxu0 0.0
      %3712 = vmatpush1.msra.mxu0 %v3562
      %3713 = vmatprep.subr.mxu0 0.0
      %3714 = vmatpush1.msra.mxu0 %v3563
      %3715 = vmatprep.subr.mxu0 0.0
      %3716 = vmatpush1.msra.mxu0 0.0
      %3717 = vmatprep.subr.mxu0 0.0
      %3718 = vmatpush1.msra.mxu0 0.0
      %3719 = vmatprep.subr.mxu0 0.0
      %3720 = vmatpush1.msra.mxu0 0.0
      %3721 = vmatprep.subr.mxu0 0.0
      %3722 = vmatpush1.msra.mxu0 0.0
      %3723 = vmatprep.subr.mxu0 0.0
      %3724 = vmatpush1.msra.mxu0 0.0
      %3725 = vmatprep.subr.mxu0 0.0
      %3726 = vmatpush1.msra.mxu0 0.0
      %3727 = vmatprep.subr.mxu0 0.0
      %3728 = vmatpush1.msra.mxu0 0.0
      %3729 = vmatprep.subr.mxu0 0.0
      %3730 = vmatpush1.msra.mxu0 0.0
      %3731 = vmatprep.subr.mxu0 0.0
      %3732 = vmatpush1.msra.mxu0 0.0
      %3733 = vmatprep.subr.mxu0 0.0
      %3734 = vmatpush1.msra.mxu0 0.0
      %3735 = vmatprep.subr.mxu0 0.0
      %3736 = vmatpush1.msra.mxu0 0.0
      %3737 = vmatprep.subr.mxu0 0.0
      %3738 = vmatpush1.msra.mxu0 0.0
      %3739 = vmatprep.subr.mxu0 0.0
      %3740 = vmatpush1.msra.mxu0 0.0
      %3741 = vmatprep.subr.mxu0 0.0
      %3742 = vmatpush1.msra.mxu0 0.0
      %3743 = vmatprep.subr.mxu0 0.0
      %3744 = vmatpush1.msra.mxu0 0.0
      %3745 = vmatprep.subr.mxu0 0.0
      %3746 = vmatpush1.msra.mxu0 0.0
      %3747 = vmatprep.subr.mxu0 0.0
      %3748 = vmatpush1.msra.mxu0 0.0
      %3749 = vmatprep.subr.mxu0 0.0
      %3750 = vmatpush1.msra.mxu0 0.0
      %3751 = vmatprep.subr.mxu0 0.0
      %3752 = vmatpush1.msra.mxu0 0.0
      %3753 = vmatprep.subr.mxu0 0.0
      %3754 = vmatpush1.msra.mxu0 0.0
      %3755 = vmatprep.subr.mxu0 0.0
      %3756 = vmatpush1.msra.mxu0 0.0
      %3757 = vmatprep.subr.mxu0 0.0
      %3758 = vmatpush1.msra.mxu0 0.0
      %3759 = vmatprep.subr.mxu0 0.0
      %3760 = vmatpush1.msra.mxu0 0.0
      %3761 = vmatprep.subr.mxu0 0.0
      %3762 = vmatpush1.msra.mxu0 0.0
      %3763 = vmatprep.subr.mxu0 0.0
      %3764 = vmatpush1.msra.mxu0 0.0
      %3765 = vmatprep.subr.mxu0 0.0
      %3766 = vmatpush1.msra.mxu0 0.0
      %3767 = vmatprep.subr.mxu0 0.0
      %3768 = vmatpush1.msra.mxu0 0.0
      %3769 = vmatprep.subr.mxu0 0.0
      %3770 = vmatpush1.msra.mxu0 0.0
      %3771 = vmatprep.subr.mxu0 0.0
      %3772 = vmatpush1.msra.mxu0 0.0
      %3773 = vmatprep.subr.mxu0 0.0
      %3774 = vmatpush1.msra.mxu0 0.0
      %3775 = vmatprep.mubr.f32.mxu0 0.0
      %3776 = vmatmul.mubr.f32.gmra.mrb[0].mxu0 %v3569
      %v3777 = vpop.f32.mrb[0].mxu0
      %v3778 = vadd.f32 0.0, %v3777
      %v3779 = vpop.f32.mrb[0].mxu0
      %3780 = vdwg.mxu0
      %3781 = vmatprep.subr.mxu0 0.0
      %3782 = vmatpush1.msra.mxu0 %v3564
      %3783 = vmatprep.subr.mxu0 0.0
      %3784 = vmatpush1.msra.mxu0 %v3565
      %3785 = vmatprep.subr.mxu0 0.0
      %3786 = vmatpush1.msra.mxu0 0.0
      %3787 = vmatprep.subr.mxu0 0.0
      %3788 = vmatpush1.msra.mxu0 0.0
      %3789 = vmatprep.subr.mxu0 0.0
      %3790 = vmatpush1.msra.mxu0 0.0
      %3791 = vmatprep.subr.mxu0 0.0
      %3792 = vmatpush1.msra.mxu0 0.0
      %3793 = vmatprep.subr.mxu0 0.0
      %3794 = vmatpush1.msra.mxu0 0.0
      %3795 = vmatprep.subr.mxu0 0.0
      %3796 = vmatpush1.msra.mxu0 0.0
      %3797 = vmatprep.subr.mxu0 0.0
      %3798 = vmatpush1.msra.mxu0 0.0
      %3799 = vmatprep.subr.mxu0 0.0
      %3800 = vmatpush1.msra.mxu0 0.0
      %3801 = vmatprep.subr.mxu0 0.0
      %3802 = vmatpush1.msra.mxu0 0.0
      %3803 = vmatprep.subr.mxu0 0.0
      %3804 = vmatpush1.msra.mxu0 0.0
      %3805 = vmatprep.subr.mxu0 0.0
      %3806 = vmatpush1.msra.mxu0 0.0
      %3807 = vmatprep.subr.mxu0 0.0
      %3808 = vmatpush1.msra.mxu0 0.0
      %3809 = vmatprep.subr.mxu0 0.0
      %3810 = vmatpush1.msra.mxu0 0.0
      %3811 = vmatprep.subr.mxu0 0.0
      %3812 = vmatpush1.msra.mxu0 0.0
      %3813 = vmatprep.subr.mxu0 0.0
      %3814 = vmatpush1.msra.mxu0 0.0
      %3815 = vmatprep.subr.mxu0 0.0
      %3816 = vmatpush1.msra.mxu0 0.0
      %3817 = vmatprep.subr.mxu0 0.0
      %3818 = vmatpush1.msra.mxu0 0.0
      %3819 = vmatprep.subr.mxu0 0.0
      %3820 = vmatpush1.msra.mxu0 0.0
      %3821 = vmatprep.subr.mxu0 0.0
      %3822 = vmatpush1.msra.mxu0 0.0
      %3823 = vmatprep.subr.mxu0 0.0
      %3824 = vmatpush1.msra.mxu0 0.0
      %3825 = vmatprep.subr.mxu0 0.0
      %3826 = vmatpush1.msra.mxu0 0.0
      %3827 = vmatprep.subr.mxu0 0.0
      %3828 = vmatpush1.msra.mxu0 0.0
      %3829 = vmatprep.subr.mxu0 0.0
      %3830 = vmatpush1.msra.mxu0 0.0
      %3831 = vmatprep.subr.mxu0 0.0
      %3832 = vmatpush1.msra.mxu0 0.0
      %3833 = vmatprep.subr.mxu0 0.0
      %3834 = vmatpush1.msra.mxu0 0.0
      %3835 = vmatprep.subr.mxu0 0.0
      %3836 = vmatpush1.msra.mxu0 0.0
      %3837 = vmatprep.subr.mxu0 0.0
      %3838 = vmatpush1.msra.mxu0 0.0
      %3839 = vmatprep.subr.mxu0 0.0
      %3840 = vmatpush1.msra.mxu0 0.0
      %3841 = vmatprep.subr.mxu0 0.0
      %3842 = vmatpush1.msra.mxu0 0.0
      %3843 = vmatprep.subr.mxu0 0.0
      %3844 = vmatpush1.msra.mxu0 0.0
      %3845 = vmatprep.mubr.f32.mxu0 0.0
      %3846 = vmatmul.mubr.f32.gmra.mrb[0].mxu0 %v3569
      %v3847 = vpop.f32.mrb[0].mxu0
      %v3848 = vadd.f32 0.0, %v3847
      %v3849 = vpop.f32.mrb[0].mxu0
      %3850 = vdwg.mxu0
      %vm3851 = vcmask 130055
      %3852 = vst.msk [vmem:[#allocation2 - $0x7] sm:$0x80] %vm3851, 0.0
      %3853 = vst.msk [vmem:[#allocation2 + $0x1] sm:$0xff] %vm3567, 0.0
      %3854 = vst.msk [vmem:[#allocation2 + $0x9] sm:$0xff] %vm3567, %v3638
      %3855 = vst.msk [vmem:[#allocation2 + $0x11] sm:$0xff] %vm3567, %v3708
      %3856 = vst.msk [vmem:[#allocation2 + $0x19] sm:$0xff] %vm3567, %v3778
      %3857 = vst.msk [vmem:[#allocation2 + $0x21] sm:$0xff] %vm3567, %v3848
      %vm3858 = vcmask 129024
      %3859 = vst.msk [vmem:[#allocation2 + $0x29] sm:$0x7f] %vm3858, 0.0
      %3864 = vrot.lane.b32.xlu0 %v3638, 16
      %v3865 = vpop.permute.xlu0 %3864
      %3866 = vrot.lane.b32.xlu0 %v3708, 16
      %v3867 = vpop.permute.xlu0 %3866
      %3868 = vrot.lane.b32.xlu0 %v3778, 16
      %v3869 = vpop.permute.xlu0 %3868
      %3870 = vrot.lane.b32.xlu0 %v3848, 16
      %v3871 = vpop.permute.xlu0 %3870
      %vm3876 = vcmask 261248
      %3877 = vst.msk [vmem:[#allocation2] sm:$0xff] %vm3876, %v2979
      %3878 = vst.msk [vmem:[#allocation2 + $0x8] sm:$0xff] %vm3876, %v3865
      %3879 = vst.msk [vmem:[#allocation2 + $0x10] sm:$0xff] %vm3876, %v3867
      %3880 = vst.msk [vmem:[#allocation2 + $0x18] sm:$0xff] %vm3876, %v3869
      %3881 = vst.msk [vmem:[#allocation2 + $0x20] sm:$0xff] %vm3876, %v3871
      %3882 = vst.msk [vmem:[#allocation2 + $0x28] sm:$0xff] %vm3876, %v2979
      %3883 = vrot.lane.b32.xlu0 0.0, 32
      %v3884 = vpop.permute.xlu0 %3883
      %3885 = vrot.lane.b32.xlu0 %v3638, 32
      %v3886 = vpop.permute.xlu0 %3885
      %3887 = vrot.lane.b32.xlu0 %v3708, 32
      %v3888 = vpop.permute.xlu0 %3887
      %3889 = vrot.lane.b32.xlu0 %v3778, 32
      %v3890 = vpop.permute.xlu0 %3889
      %3891 = vrot.lane.b32.xlu0 %v3848, 32
      %v3892 = vpop.permute.xlu0 %3891
      %vm3898 = vcmask 392449
      %3899 = vst.msk [vmem:[#allocation2 - $0x1] sm:$0xfe] %vm3898, %v3884
      %vm3900 = vcmask 392448
      %3901 = vst.msk [vmem:[#allocation2 + $0x7] sm:$0xff] %vm3900, %v3886
      %3902 = vst.msk [vmem:[#allocation2 + $0xf] sm:$0xff] %vm3900, %v3888
      %3903 = vst.msk [vmem:[#allocation2 + $0x17] sm:$0xff] %vm3900, %v3890
      %3904 = vst.msk [vmem:[#allocation2 + $0x1f] sm:$0xff] %vm3900, %v3892
      %3905 = vst.msk [vmem:[#allocation2 + $0x27] sm:$0xff] %vm3900, %v3884
      %vm3906 = vcmask 385280
      %3907 = vst.msk [vmem:[#allocation2 + $0x2f] sm:$0x1] %vm3906, %v3884
      %v3908 = vld [vmem:[#allocation2] sm:$0xff]
      %v3909 = vld [vmem:[#allocation2 + $0x8] sm:$0xff]
      %v3910 = vld [vmem:[#allocation2 + $0x10] sm:$0xff]
      %v3911 = vld [vmem:[#allocation2 + $0x18] sm:$0xff]
      %v3912 = vpack.c.bf16 %v3909, %v3908
      %v3913 = vpack.c.bf16 %v3911, %v3910
      %v3914 = vld [vmem:[%s3] sm:$0xf]
      %v3915 = vld [vmem:[%s3 + $0x4] sm:$0xf]
      %v3916 = vld [vmem:[%s3 + $0x8] sm:$0xf]
      %v3917 = vld [vmem:[%s3 + $0xc] sm:$0xf]
      %v3918 = vld [vmem:[%s3 + $0x10] sm:$0xf]
      %v3919 = vld [vmem:[%s3 + $0x14] sm:$0xf]
      %v3920 = vld [vmem:[#allocation2 + $0x20] sm:$0xff]
      %v3921 = vpack.c.bf16 %v3910, %v3909
      %v3922 = vpack.c.bf16 %v3920, %v3911
      %s3923 = scalar_lea.vmem %s3, 24
      %v3924 = vld [vmem:[%s3923] sm:$0xf]
      %v3925 = vld [vmem:[%s3923 + $0x4] sm:$0xf]
      %v3926 = vld [vmem:[%s3923 + $0x8] sm:$0xf]
      %v3927 = vld [vmem:[%s3923 + $0xc] sm:$0xf]
      %v3928 = vld [vmem:[%s3923 + $0x10] sm:$0xf]
      %v3929 = vld [vmem:[%s3923 + $0x14] sm:$0xf]
      %v3936 = vunpack.c.l.b16 %v3924
      %v3937 = vunpack.c.l.b16 %v3925
      %v3938 = vunpack.c.l.b16 %v3926
      %v3939 = vunpack.c.l.b16 %v3927
      %v3940 = vunpack.c.l.b16 %v3928
      %v3941 = vunpack.c.l.b16 %v3929
      %v3942 = vpack.c.b16 %v3937, %v3936
      %v3943 = vpack.c.b16 %v3939, %v3938
      %v3944 = vpack.c.b16 %v3941, %v3940
      %vm3948 = vcmask 392192
      %v3950 = vsel %vm3948, %v3921, 0
      %v3953 = vsel %vm3948, %v3922, 0
      %3955 = vmatprep.subr.bf16.mxu0 0
      %3956 = vmatpush1.bf16.msra.mxu0 %v3942
      %3957 = vmatprep.subr.bf16.mxu0 0
      %3958 = vmatpush1.bf16.msra.mxu0 %v3943
      %3959 = vmatprep.subr.bf16.mxu0 0
      %3960 = vmatpush1.bf16.msra.mxu0 %v3944
      %3961 = vmatprep.subr.bf16.mxu0 0
      %3962 = vmatpush1.bf16.msra.mxu0 0
      %3963 = vmatprep.subr.bf16.mxu0 0
      %3964 = vmatpush1.bf16.msra.mxu0 0
      %3965 = vmatprep.subr.bf16.mxu0 0
      %3966 = vmatpush1.bf16.msra.mxu0 0
      %3967 = vmatprep.subr.bf16.mxu0 0
      %3968 = vmatpush1.bf16.msra.mxu0 0
      %3969 = vmatprep.subr.bf16.mxu0 0
      %3970 = vmatpush1.bf16.msra.mxu0 0
      %3971 = vmatprep.subr.bf16.mxu0 0
      %3972 = vmatpush1.bf16.msra.mxu0 0
      %3973 = vmatprep.subr.bf16.mxu0 0
      %3974 = vmatpush1.bf16.msra.mxu0 0
      %3975 = vmatprep.subr.bf16.mxu0 0
      %3976 = vmatpush1.bf16.msra.mxu0 0
      %3977 = vmatprep.subr.bf16.mxu0 0
      %3978 = vmatpush1.bf16.msra.mxu0 0
      %3979 = vmatprep.subr.bf16.mxu0 0
      %3980 = vmatpush1.bf16.msra.mxu0 0
      %3981 = vmatprep.subr.bf16.mxu0 0
      %3982 = vmatpush1.bf16.msra.mxu0 0
      %3983 = vmatprep.subr.bf16.mxu0 0
      %3984 = vmatpush1.bf16.msra.mxu0 0
      %3985 = vmatprep.subr.bf16.mxu0 0
      %3986 = vmatpush1.bf16.msra.mxu0 0
      %3987 = vmatprep.mubr.bf16.mxu0 0
      %3988 = vmatmul.mubr.bf16.gmra.mrb[0].mxu0 %v3950
      %v3989 = vpop.f32.mrb[0].mxu0
      %v3990 = vadd.f32 0.0, %v3989
      %v3991 = vpop.f32.mrb[0].mxu0
      %v3992 = vpop.f32.mrb[0].mxu0
      %v3993 = vadd.f32 0.0, %v3992
      %v3994 = vpop.f32.mrb[0].mxu0
      %3995 = vmatprep.mubr.bf16.mxu0 0
      %3996 = vmatmul.mubr.bf16.gmra.mrb[0].mxu0 %v3953
      %v3997 = vpop.f32.mrb[0].mxu0
      %v3998 = vadd.f32 0.0, %v3997
      %v3999 = vpop.f32.mrb[0].mxu0
      %v4000 = vpop.f32.mrb[0].mxu0
      %v4001 = vadd.f32 0.0, %v4000
      %v4002 = vpop.f32.mrb[0].mxu0
      %4003 = vdwg.mxu0
      %v4010 = vunpack.c.l.b16 %v3914
      %v4011 = vunpack.c.l.b16 %v3915
      %v4012 = vunpack.c.l.b16 %v3916
      %v4013 = vunpack.c.l.b16 %v3917
      %v4014 = vunpack.c.l.b16 %v3918
      %v4015 = vunpack.c.l.b16 %v3919
      %v4016 = vpack.c.b16 %v4011, %v4010
      %v4017 = vpack.c.b16 %v4013, %v4012
      %v4018 = vpack.c.b16 %v4015, %v4014
      %v4023 = vsel %vm3948, %v3912, 0
      %v4026 = vsel %vm3948, %v3913, 0
      %4028 = vmatprep.subr.bf16.mxu0 0
      %4029 = vmatpush1.bf16.msra.mxu0 %v4016
      %4030 = vmatprep.subr.bf16.mxu0 0
      %4031 = vmatpush1.bf16.msra.mxu0 %v4017
      %4032 = vmatprep.subr.bf16.mxu0 0
      %4033 = vmatpush1.bf16.msra.mxu0 %v4018
      %4034 = vmatprep.subr.bf16.mxu0 0
      %4035 = vmatpush1.bf16.msra.mxu0 0
      %4036 = vmatprep.subr.bf16.mxu0 0
      %4037 = vmatpush1.bf16.msra.mxu0 0
      %4038 = vmatprep.subr.bf16.mxu0 0
      %4039 = vmatpush1.bf16.msra.mxu0 0
      %4040 = vmatprep.subr.bf16.mxu0 0
      %4041 = vmatpush1.bf16.msra.mxu0 0
      %4042 = vmatprep.subr.bf16.mxu0 0
      %4043 = vmatpush1.bf16.msra.mxu0 0
      %4044 = vmatprep.subr.bf16.mxu0 0
      %4045 = vmatpush1.bf16.msra.mxu0 0
      %4046 = vmatprep.subr.bf16.mxu0 0
      %4047 = vmatpush1.bf16.msra.mxu0 0
      %4048 = vmatprep.subr.bf16.mxu0 0
      %4049 = vmatpush1.bf16.msra.mxu0 0
      %4050 = vmatprep.subr.bf16.mxu0 0
      %4051 = vmatpush1.bf16.msra.mxu0 0
      %4052 = vmatprep.subr.bf16.mxu0 0
      %4053 = vmatpush1.bf16.msra.mxu0 0
      %4054 = vmatprep.subr.bf16.mxu0 0
      %4055 = vmatpush1.bf16.msra.mxu0 0
      %4056 = vmatprep.subr.bf16.mxu0 0
      %4057 = vmatpush1.bf16.msra.mxu0 0
      %4058 = vmatprep.subr.bf16.mxu0 0
      %4059 = vmatpush1.bf16.msra.mxu0 0
      %4060 = vmatprep.mubr.bf16.mxu0 0
      %4061 = vmatmul.mubr.bf16.gmra.mrb[0].mxu0 %v4023
      %v4062 = vpop.f32.mrb[0].mxu0
      %v4063 = vadd.f32 %v3990, %v4062
      %v4064 = vpop.f32.mrb[0].mxu0
      %v4065 = vpop.f32.mrb[0].mxu0
      %v4066 = vadd.f32 %v3993, %v4065
      %v4067 = vpop.f32.mrb[0].mxu0
      %4068 = vmatprep.mubr.bf16.mxu0 0
      %4069 = vmatmul.mubr.bf16.gmra.mrb[0].mxu0 %v4026
      %v4070 = vpop.f32.mrb[0].mxu0
      %v4071 = vadd.f32 %v3998, %v4070
      %v4072 = vpop.f32.mrb[0].mxu0
      %v4073 = vpop.f32.mrb[0].mxu0
      %v4074 = vadd.f32 %v4001, %v4073
      %v4075 = vpop.f32.mrb[0].mxu0
      %4076 = vdwg.mxu0
      %v4077 = vld [vmem:[#allocation2 + $0x10] sm:$0xff]
      %v4078 = vld [vmem:[#allocation2 + $0x18] sm:$0xff]
      %v4079 = vld [vmem:[#allocation2 + $0x20] sm:$0xff]
      %v4080 = vld [vmem:[#allocation2 + $0x28] sm:$0xff]
      %v4081 = vpack.c.bf16 %v4078, %v4077
      %v4082 = vpack.c.bf16 %v4080, %v4079
      %s4083 = scalar_lea.vmem %s3, 48
      %v4084 = vld [vmem:[%s4083] sm:$0xf]
      %v4085 = vld [vmem:[%s4083 + $0x4] sm:$0xf]
      %v4086 = vld [vmem:[%s4083 + $0x8] sm:$0xf]
      %v4087 = vld [vmem:[%s4083 + $0xc] sm:$0xf]
      %v4088 = vld [vmem:[%s4083 + $0x10] sm:$0xf]
      %v4089 = vld [vmem:[%s4083 + $0x14] sm:$0xf]
      %v4096 = vunpack.c.l.b16 %v4084
      %v4097 = vunpack.c.l.b16 %v4085
      %v4098 = vunpack.c.l.b16 %v4086
      %v4099 = vunpack.c.l.b16 %v4087
      %v4100 = vunpack.c.l.b16 %v4088
      %v4101 = vunpack.c.l.b16 %v4089
      %v4102 = vpack.c.b16 %v4097, %v4096
      %v4103 = vpack.c.b16 %v4099, %v4098
      %v4104 = vpack.c.b16 %v4101, %v4100
      %v4109 = vsel %vm3948, %v4081, 0
      %v4112 = vsel %vm3948, %v4082, 0
      %4114 = vmatprep.subr.bf16.mxu0 0
      %4115 = vmatpush1.bf16.msra.mxu0 %v4102
      %4116 = vmatprep.subr.bf16.mxu0 0
      %4117 = vmatpush1.bf16.msra.mxu0 %v4103
      %4118 = vmatprep.subr.bf16.mxu0 0
      %4119 = vmatpush1.bf16.msra.mxu0 %v4104
      %4120 = vmatprep.subr.bf16.mxu0 0
      %4121 = vmatpush1.bf16.msra.mxu0 0
      %4122 = vmatprep.subr.bf16.mxu0 0
      %4123 = vmatpush1.bf16.msra.mxu0 0
      %4124 = vmatprep.subr.bf16.mxu0 0
      %4125 = vmatpush1.bf16.msra.mxu0 0
      %4126 = vmatprep.subr.bf16.mxu0 0
      %4127 = vmatpush1.bf16.msra.mxu0 0
      %4128 = vmatprep.subr.bf16.mxu0 0
      %4129 = vmatpush1.bf16.msra.mxu0 0
      %4130 = vmatprep.subr.bf16.mxu0 0
      %4131 = vmatpush1.bf16.msra.mxu0 0
      %4132 = vmatprep.subr.bf16.mxu0 0
      %4133 = vmatpush1.bf16.msra.mxu0 0
      %4134 = vmatprep.subr.bf16.mxu0 0
      %4135 = vmatpush1.bf16.msra.mxu0 0
      %4136 = vmatprep.subr.bf16.mxu0 0
      %4137 = vmatpush1.bf16.msra.mxu0 0
      %4138 = vmatprep.subr.bf16.mxu0 0
      %4139 = vmatpush1.bf16.msra.mxu0 0
      %4140 = vmatprep.subr.bf16.mxu0 0
      %4141 = vmatpush1.bf16.msra.mxu0 0
      %4142 = vmatprep.subr.bf16.mxu0 0
      %4143 = vmatpush1.bf16.msra.mxu0 0
      %4144 = vmatprep.subr.bf16.mxu0 0
      %4145 = vmatpush1.bf16.msra.mxu0 0
      %4146 = vmatprep.mubr.bf16.mxu0 0
      %4147 = vmatmul.mubr.bf16.gmra.mrb[0].mxu0 %v4109
      %v4148 = vpop.f32.mrb[0].mxu0
      %v4149 = vadd.f32 0.0, %v4148
      %v4150 = vpop.f32.mrb[0].mxu0
      %v4151 = vpop.f32.mrb[0].mxu0
      %v4152 = vadd.f32 0.0, %v4151
      %v4153 = vpop.f32.mrb[0].mxu0
      %4154 = vmatprep.mubr.bf16.mxu0 0
      %4155 = vmatmul.mubr.bf16.gmra.mrb[0].mxu0 %v4112
      %v4156 = vpop.f32.mrb[0].mxu0
      %v4157 = vadd.f32 0.0, %v4156
      %v4158 = vpop.f32.mrb[0].mxu0
      %v4159 = vpop.f32.mrb[0].mxu0
      %v4160 = vadd.f32 0.0, %v4159
      %v4161 = vpop.f32.mrb[0].mxu0
      %4162 = vdwg.mxu0
      %v4163 = vadd.f32 %v4063, %v4149
      %v4164 = vadd.f32 %v4066, %v4152
      %v4165 = vadd.f32 %v4071, %v4157
      %v4166 = vadd.f32 %v4074, %v4160
      %vm4167 = vcmp.ge.f32.partialorder %v4163, 0.0
      %vm4168 = vcmp.ge.f32.partialorder %v4164, 0.0
      %vm4169 = vcmp.ge.f32.partialorder %v4165, 0.0
      %vm4170 = vcmp.ge.f32.partialorder %v4166, 0.0
      %v4171 = vmul.f32 %v4163, 0.2
      %v4172 = vmul.f32 %v4164, 0.2
      %v4173 = vmul.f32 %v4165, 0.2
      %v4174 = vmul.f32 %v4166, 0.2
      %v4175 = vsel %vm4167, %v4163, %v4171
      %v4176 = vsel %vm4168, %v4164, %v4172
      %v4177 = vsel %vm4169, %v4165, %v4173
      %v4178 = vsel %vm4170, %v4166, %v4174
      %v4179 = vadd.f32 %v4175, %v4176
      %v4180 = vadd.f32 %v4177, %v4178
      %v4181 = vld [vmem:[%s6] sm:$0xff]
      %v4183 = vsel %vm2867, %v4181, 0
      %4185 = vmatprep.subr.mxu0 0.0
      %4186 = vmatpush1.msra.mxu0 %v4179
      %4187 = vmatprep.subr.mxu0 0.0
      %4188 = vmatpush1.msra.mxu0 0.0
      %4189 = vmatprep.subr.mxu0 0.0
      %4190 = vmatpush1.msra.mxu0 0.0
      %4191 = vmatprep.subr.mxu0 0.0
      %4192 = vmatpush1.msra.mxu0 0.0
      %4193 = vmatprep.subr.mxu0 0.0
      %4194 = vmatpush1.msra.mxu0 0.0
      %4195 = vmatprep.subr.mxu0 0.0
      %4196 = vmatpush1.msra.mxu0 0.0
      %4197 = vmatprep.subr.mxu0 0.0
      %4198 = vmatpush1.msra.mxu0 0.0
      %4199 = vmatprep.subr.mxu0 0.0
      %4200 = vmatpush1.msra.mxu0 0.0
      %4201 = vmatprep.subr.mxu0 0.0
      %4202 = vmatpush1.msra.mxu0 0.0
      %4203 = vmatprep.subr.mxu0 0.0
      %4204 = vmatpush1.msra.mxu0 0.0
      %4205 = vmatprep.subr.mxu0 0.0
      %4206 = vmatpush1.msra.mxu0 0.0
      %4207 = vmatprep.subr.mxu0 0.0
      %4208 = vmatpush1.msra.mxu0 0.0
      %4209 = vmatprep.subr.mxu0 0.0
      %4210 = vmatpush1.msra.mxu0 0.0
      %4211 = vmatprep.subr.mxu0 0.0
      %4212 = vmatpush1.msra.mxu0 0.0
      %4213 = vmatprep.subr.mxu0 0.0
      %4214 = vmatpush1.msra.mxu0 0.0
      %4215 = vmatprep.subr.mxu0 0.0
      %4216 = vmatpush1.msra.mxu0 0.0
      %4217 = vmatprep.subr.mxu0 0.0
      %4218 = vmatpush1.msra.mxu0 0.0
      %4219 = vmatprep.subr.mxu0 0.0
      %4220 = vmatpush1.msra.mxu0 0.0
      %4221 = vmatprep.subr.mxu0 0.0
      %4222 = vmatpush1.msra.mxu0 0.0
      %4223 = vmatprep.subr.mxu0 0.0
      %4224 = vmatpush1.msra.mxu0 0.0
      %4225 = vmatprep.subr.mxu0 0.0
      %4226 = vmatpush1.msra.mxu0 0.0
      %4227 = vmatprep.subr.mxu0 0.0
      %4228 = vmatpush1.msra.mxu0 0.0
      %4229 = vmatprep.subr.mxu0 0.0
      %4230 = vmatpush1.msra.mxu0 0.0
      %4231 = vmatprep.subr.mxu0 0.0
      %4232 = vmatpush1.msra.mxu0 0.0
      %4233 = vmatprep.subr.mxu0 0.0
      %4234 = vmatpush1.msra.mxu0 0.0
      %4235 = vmatprep.subr.mxu0 0.0
      %4236 = vmatpush1.msra.mxu0 0.0
      %4237 = vmatprep.subr.mxu0 0.0
      %4238 = vmatpush1.msra.mxu0 0.0
      %4239 = vmatprep.subr.mxu0 0.0
      %4240 = vmatpush1.msra.mxu0 0.0
      %4241 = vmatprep.subr.mxu0 0.0
      %4242 = vmatpush1.msra.mxu0 0.0
      %4243 = vmatprep.subr.mxu0 0.0
      %4244 = vmatpush1.msra.mxu0 0.0
      %4245 = vmatprep.subr.mxu0 0.0
      %4246 = vmatpush1.msra.mxu0 0.0
      %4247 = vmatprep.subr.mxu0 0.0
      %4248 = vmatpush1.msra.mxu0 0.0
      %4249 = vmatprep.mubr.f32.mxu0 0.0
      %4250 = vmatmul.mubr.f32.gmra.mrb[0].mxu0 %v4183
      %v4251 = vpop.f32.mrb[0].mxu0
      %v4252 = vadd.f32 0.0, %v4251
      %v4253 = vpop.f32.mrb[0].mxu0
      %4254 = vdwg.mxu0
      %4255 = vmatprep.subr.mxu0 0.0
      %4256 = vmatpush1.msra.mxu0 %v4180
      %4257 = vmatprep.subr.mxu0 0.0
      %4258 = vmatpush1.msra.mxu0 0.0
      %4259 = vmatprep.subr.mxu0 0.0
      %4260 = vmatpush1.msra.mxu0 0.0
      %4261 = vmatprep.subr.mxu0 0.0
      %4262 = vmatpush1.msra.mxu0 0.0
      %4263 = vmatprep.subr.mxu0 0.0
      %4264 = vmatpush1.msra.mxu0 0.0
      %4265 = vmatprep.subr.mxu0 0.0
      %4266 = vmatpush1.msra.mxu0 0.0
      %4267 = vmatprep.subr.mxu0 0.0
      %4268 = vmatpush1.msra.mxu0 0.0
      %4269 = vmatprep.subr.mxu0 0.0
      %4270 = vmatpush1.msra.mxu0 0.0
      %4271 = vmatprep.subr.mxu0 0.0
      %4272 = vmatpush1.msra.mxu0 0.0
      %4273 = vmatprep.subr.mxu0 0.0
      %4274 = vmatpush1.msra.mxu0 0.0
      %4275 = vmatprep.subr.mxu0 0.0
      %4276 = vmatpush1.msra.mxu0 0.0
      %4277 = vmatprep.subr.mxu0 0.0
      %4278 = vmatpush1.msra.mxu0 0.0
      %4279 = vmatprep.subr.mxu0 0.0
      %4280 = vmatpush1.msra.mxu0 0.0
      %4281 = vmatprep.subr.mxu0 0.0
      %4282 = vmatpush1.msra.mxu0 0.0
      %4283 = vmatprep.subr.mxu0 0.0
      %4284 = vmatpush1.msra.mxu0 0.0
      %4285 = vmatprep.subr.mxu0 0.0
      %4286 = vmatpush1.msra.mxu0 0.0
      %4287 = vmatprep.subr.mxu0 0.0
      %4288 = vmatpush1.msra.mxu0 0.0
      %4289 = vmatprep.subr.mxu0 0.0
      %4290 = vmatpush1.msra.mxu0 0.0
      %4291 = vmatprep.subr.mxu0 0.0
      %4292 = vmatpush1.msra.mxu0 0.0
      %4293 = vmatprep.subr.mxu0 0.0
      %4294 = vmatpush1.msra.mxu0 0.0
      %4295 = vmatprep.subr.mxu0 0.0
      %4296 = vmatpush1.msra.mxu0 0.0
      %4297 = vmatprep.subr.mxu0 0.0
      %4298 = vmatpush1.msra.mxu0 0.0
      %4299 = vmatprep.subr.mxu0 0.0
      %4300 = vmatpush1.msra.mxu0 0.0
      %4301 = vmatprep.subr.mxu0 0.0
      %4302 = vmatpush1.msra.mxu0 0.0
      %4303 = vmatprep.subr.mxu0 0.0
      %4304 = vmatpush1.msra.mxu0 0.0
      %4305 = vmatprep.subr.mxu0 0.0
      %4306 = vmatpush1.msra.mxu0 0.0
      %4307 = vmatprep.subr.mxu0 0.0
      %4308 = vmatpush1.msra.mxu0 0.0
      %4309 = vmatprep.subr.mxu0 0.0
      %4310 = vmatpush1.msra.mxu0 0.0
      %4311 = vmatprep.subr.mxu0 0.0
      %4312 = vmatpush1.msra.mxu0 0.0
      %4313 = vmatprep.subr.mxu0 0.0
      %4314 = vmatpush1.msra.mxu0 0.0
      %4315 = vmatprep.subr.mxu0 0.0
      %4316 = vmatpush1.msra.mxu0 0.0
      %4317 = vmatprep.subr.mxu0 0.0
      %4318 = vmatpush1.msra.mxu0 0.0
      %4319 = vmatprep.mubr.f32.mxu0 0.0
      %4320 = vmatmul.mubr.f32.gmra.mrb[0].mxu0 %v4183
      %v4321 = vpop.f32.mrb[0].mxu0
      %v4322 = vadd.f32 0.0, %v4321
      %v4323 = vpop.f32.mrb[0].mxu0
      %4324 = vdwg.mxu0
      %vm4325 = vcmask 261127
      %4326 = vst.msk [vmem:[#allocation2 - $0x7] sm:$0x80] %vm4325, 0.0
      %vm4327 = vcmask 261120
      %4328 = vst.msk [vmem:[#allocation2 + $0x1] sm:$0xff] %vm4327, 0.0
      %4329 = vst.msk [vmem:[#allocation2 + $0x9] sm:$0xff] %vm4327, %v4252
      %4330 = vst.msk [vmem:[#allocation2 + $0x11] sm:$0xff] %vm4327, %v4322
      %vm4331 = vcmask 260096
      %4332 = vst.msk [vmem:[#allocation2 + $0x19] sm:$0x7f] %vm4331, 0.0
      %4335 = vrot.lane.b32.xlu0 %v4252, 32
      %v4336 = vpop.permute.xlu0 %4335
      %4337 = vrot.lane.b32.xlu0 %v4322, 32
      %v4338 = vpop.permute.xlu0 %4337
      %vm4341 = vcmask 523520
      %4342 = vst.msk [vmem:[#allocation2] sm:$0xff] %vm4341, %v3884
      %4343 = vst.msk [vmem:[#allocation2 + $0x8] sm:$0xff] %vm4341, %v4336
      %4344 = vst.msk [vmem:[#allocation2 + $0x10] sm:$0xff] %vm4341, %v4338
      %4345 = vst.msk [vmem:[#allocation2 + $0x18] sm:$0xff] %vm4341, %v3884
      %4346 = vrot.lane.b32.xlu0 0.0, 64
      %v4347 = vpop.permute.xlu0 %4346
      %4348 = vrot.lane.b32.xlu0 %v4252, 64
      %v4349 = vpop.permute.xlu0 %4348
      %4350 = vrot.lane.b32.xlu0 %v4322, 64
      %v4351 = vpop.permute.xlu0 %4350
      %vm4355 = vcmask 785921
      %4356 = vst.msk [vmem:[#allocation2 - $0x1] sm:$0xfe] %vm4355, %v4347
      %vm4357 = vcmask 785920
      %4358 = vst.msk [vmem:[#allocation2 + $0x7] sm:$0xff] %vm4357, %v4349
      %4359 = vst.msk [vmem:[#allocation2 + $0xf] sm:$0xff] %vm4357, %v4351
      %4360 = vst.msk [vmem:[#allocation2 + $0x17] sm:$0xff] %vm4357, %v4347
      %vm4361 = vcmask 778752
      %4362 = vst.msk [vmem:[#allocation2 + $0x1f] sm:$0x1] %vm4361, %v4347
      %v4363 = vld [vmem:[#allocation2] sm:$0xff]
      %v4364 = vld [vmem:[#allocation2 + $0x8] sm:$0xff]
      %v4365 = vpack.c.bf16 %v4364, %v4363
      %v4366 = vld [vmem:[%s7] sm:$0xf]
      %v4367 = vld [vmem:[%s7 + $0x4] sm:$0xf]
      %v4368 = vld [vmem:[%s7 + $0x8] sm:$0xf]
      %v4369 = vld [vmem:[%s7 + $0xc] sm:$0xf]
      %v4370 = vld [vmem:[%s7 + $0x10] sm:$0xf]
      %v4371 = vld [vmem:[%s7 + $0x14] sm:$0xf]
      %v4372 = vld [vmem:[%s7 + $0x18] sm:$0xf]
      %v4373 = vld [vmem:[%s7 + $0x1c] sm:$0xf]
      %v4374 = vld [vmem:[%s7 + $0x20] sm:$0xf]
      %v4375 = vld [vmem:[%s7 + $0x24] sm:$0xf]
      %v4376 = vld [vmem:[%s7 + $0x28] sm:$0xf]
      %v4377 = vld [vmem:[%s7 + $0x2c] sm:$0xf]
      %v4378 = vld [vmem:[#allocation2 + $0x10] sm:$0xff]
      %v4379 = vpack.c.bf16 %v4378, %v4364
      %s4380 = scalar_lea.vmem %s7, 48
      %v4381 = vld [vmem:[%s4380] sm:$0xf]
      %v4382 = vld [vmem:[%s4380 + $0x4] sm:$0xf]
      %v4383 = vld [vmem:[%s4380 + $0x8] sm:$0xf]
      %v4384 = vld [vmem:[%s4380 + $0xc] sm:$0xf]
      %v4385 = vld [vmem:[%s4380 + $0x10] sm:$0xf]
      %v4386 = vld [vmem:[%s4380 + $0x14] sm:$0xf]
      %v4387 = vld [vmem:[%s4380 + $0x18] sm:$0xf]
      %v4388 = vld [vmem:[%s4380 + $0x1c] sm:$0xf]
      %v4389 = vld [vmem:[%s4380 + $0x20] sm:$0xf]
      %v4390 = vld [vmem:[%s4380 + $0x24] sm:$0xf]
      %v4391 = vld [vmem:[%s4380 + $0x28] sm:$0xf]
      %v4392 = vld [vmem:[%s4380 + $0x2c] sm:$0xf]
      %v4405 = vunpack.c.l.b16 %v4381
      %v4406 = vunpack.c.l.b16 %v4382
      %v4407 = vunpack.c.l.b16 %v4383
      %v4408 = vunpack.c.l.b16 %v4384
      %v4409 = vunpack.c.l.b16 %v4385
      %v4410 = vunpack.c.l.b16 %v4386
      %v4411 = vunpack.c.l.b16 %v4387
      %v4412 = vunpack.c.l.b16 %v4388
      %v4413 = vunpack.c.l.b16 %v4389
      %v4414 = vunpack.c.l.b16 %v4390
      %v4415 = vunpack.c.l.b16 %v4391
      %v4416 = vunpack.c.l.b16 %v4392
      %v4417 = vpack.c.b16 %v4406, %v4405
      %v4418 = vpack.c.b16 %v4408, %v4407
      %v4419 = vpack.c.b16 %v4410, %v4409
      %v4420 = vpack.c.b16 %v4412, %v4411
      %v4421 = vpack.c.b16 %v4414, %v4413
      %v4422 = vpack.c.b16 %v4416, %v4415
      %vm4429 = vcmask 785408
      %v4431 = vsel %vm4429, %v4379, 0
      %4433 = vmatprep.subr.bf16.mxu0 0
      %4434 = vmatpush1.bf16.msra.mxu0 %v4417
      %4435 = vmatprep.subr.bf16.mxu0 0
      %4436 = vmatpush1.bf16.msra.mxu0 %v4418
      %4437 = vmatprep.subr.bf16.mxu0 0
      %4438 = vmatpush1.bf16.msra.mxu0 %v4419
      %4439 = vmatprep.subr.bf16.mxu0 0
      %4440 = vmatpush1.bf16.msra.mxu0 %v4420
      %4441 = vmatprep.subr.bf16.mxu0 0
      %4442 = vmatpush1.bf16.msra.mxu0 %v4421
      %4443 = vmatprep.subr.bf16.mxu0 0
      %4444 = vmatpush1.bf16.msra.mxu0 %v4422
      %4445 = vmatprep.subr.bf16.mxu0 0
      %4446 = vmatpush1.bf16.msra.mxu0 0
      %4447 = vmatprep.subr.bf16.mxu0 0
      %4448 = vmatpush1.bf16.msra.mxu0 0
      %4449 = vmatprep.subr.bf16.mxu0 0
      %4450 = vmatpush1.bf16.msra.mxu0 0
      %4451 = vmatprep.subr.bf16.mxu0 0
      %4452 = vmatpush1.bf16.msra.mxu0 0
      %4453 = vmatprep.subr.bf16.mxu0 0
      %4454 = vmatpush1.bf16.msra.mxu0 0
      %4455 = vmatprep.subr.bf16.mxu0 0
      %4456 = vmatpush1.bf16.msra.mxu0 0
      %4457 = vmatprep.subr.bf16.mxu0 0
      %4458 = vmatpush1.bf16.msra.mxu0 0
      %4459 = vmatprep.subr.bf16.mxu0 0
      %4460 = vmatpush1.bf16.msra.mxu0 0
      %4461 = vmatprep.subr.bf16.mxu0 0
      %4462 = vmatpush1.bf16.msra.mxu0 0
      %4463 = vmatprep.subr.bf16.mxu0 0
      %4464 = vmatpush1.bf16.msra.mxu0 0
      %4465 = vmatprep.mubr.bf16.mxu0 0
      %4466 = vmatmul.mubr.bf16.gmra.mrb[0].mxu0 %v4431
      %v4467 = vpop.f32.mrb[0].mxu0
      %v4468 = vadd.f32 0.0, %v4467
      %v4469 = vpop.f32.mrb[0].mxu0
      %v4470 = vpop.f32.mrb[0].mxu0
      %v4471 = vadd.f32 0.0, %v4470
      %v4472 = vpop.f32.mrb[0].mxu0
      %4473 = vdwg.mxu0
      %v4486 = vunpack.c.l.b16 %v4366
      %v4487 = vunpack.c.l.b16 %v4367
      %v4488 = vunpack.c.l.b16 %v4368
      %v4489 = vunpack.c.l.b16 %v4369
      %v4490 = vunpack.c.l.b16 %v4370
      %v4491 = vunpack.c.l.b16 %v4371
      %v4492 = vunpack.c.l.b16 %v4372
      %v4493 = vunpack.c.l.b16 %v4373
      %v4494 = vunpack.c.l.b16 %v4374
      %v4495 = vunpack.c.l.b16 %v4375
      %v4496 = vunpack.c.l.b16 %v4376
      %v4497 = vunpack.c.l.b16 %v4377
      %v4498 = vpack.c.b16 %v4487, %v4486
      %v4499 = vpack.c.b16 %v4489, %v4488
      %v4500 = vpack.c.b16 %v4491, %v4490
      %v4501 = vpack.c.b16 %v4493, %v4492
      %v4502 = vpack.c.b16 %v4495, %v4494
      %v4503 = vpack.c.b16 %v4497, %v4496
      %v4511 = vsel %vm4429, %v4365, 0
      %4513 = vmatprep.subr.bf16.mxu0 0
      %4514 = vmatpush1.bf16.msra.mxu0 %v4498
      %4515 = vmatprep.subr.bf16.mxu0 0
      %4516 = vmatpush1.bf16.msra.mxu0 %v4499
      %4517 = vmatprep.subr.bf16.mxu0 0
      %4518 = vmatpush1.bf16.msra.mxu0 %v4500
      %4519 = vmatprep.subr.bf16.mxu0 0
      %4520 = vmatpush1.bf16.msra.mxu0 %v4501
      %4521 = vmatprep.subr.bf16.mxu0 0
      %4522 = vmatpush1.bf16.msra.mxu0 %v4502
      %4523 = vmatprep.subr.bf16.mxu0 0
      %4524 = vmatpush1.bf16.msra.mxu0 %v4503
      %4525 = vmatprep.subr.bf16.mxu0 0
      %4526 = vmatpush1.bf16.msra.mxu0 0
      %4527 = vmatprep.subr.bf16.mxu0 0
      %4528 = vmatpush1.bf16.msra.mxu0 0
      %4529 = vmatprep.subr.bf16.mxu0 0
      %4530 = vmatpush1.bf16.msra.mxu0 0
      %4531 = vmatprep.subr.bf16.mxu0 0
      %4532 = vmatpush1.bf16.msra.mxu0 0
      %4533 = vmatprep.subr.bf16.mxu0 0
      %4534 = vmatpush1.bf16.msra.mxu0 0
      %4535 = vmatprep.subr.bf16.mxu0 0
      %4536 = vmatpush1.bf16.msra.mxu0 0
      %4537 = vmatprep.subr.bf16.mxu0 0
      %4538 = vmatpush1.bf16.msra.mxu0 0
      %4539 = vmatprep.subr.bf16.mxu0 0
      %4540 = vmatpush1.bf16.msra.mxu0 0
      %4541 = vmatprep.subr.bf16.mxu0 0
      %4542 = vmatpush1.bf16.msra.mxu0 0
      %4543 = vmatprep.subr.bf16.mxu0 0
      %4544 = vmatpush1.bf16.msra.mxu0 0
      %4545 = vmatprep.mubr.bf16.mxu0 0
      %4546 = vmatmul.mubr.bf16.gmra.mrb[0].mxu0 %v4511
      %v4547 = vpop.f32.mrb[0].mxu0
      %v4548 = vadd.f32 %v4468, %v4547
      %v4549 = vpop.f32.mrb[0].mxu0
      %v4550 = vpop.f32.mrb[0].mxu0
      %v4551 = vadd.f32 %v4471, %v4550
      %v4552 = vpop.f32.mrb[0].mxu0
      %4553 = vdwg.mxu0
      %v4554 = vld [vmem:[#allocation2 + $0x10] sm:$0xff]
      %v4555 = vld [vmem:[#allocation2 + $0x18] sm:$0xff]
      %v4556 = vpack.c.bf16 %v4555, %v4554
      %s4557 = scalar_lea.vmem %s7, 96
      %v4558 = vld [vmem:[%s4557] sm:$0xf]
      %v4559 = vld [vmem:[%s4557 + $0x4] sm:$0xf]
      %v4560 = vld [vmem:[%s4557 + $0x8] sm:$0xf]
      %v4561 = vld [vmem:[%s4557 + $0xc] sm:$0xf]
      %v4562 = vld [vmem:[%s4557 + $0x10] sm:$0xf]
      %v4563 = vld [vmem:[%s4557 + $0x14] sm:$0xf]
      %v4564 = vld [vmem:[%s4557 + $0x18] sm:$0xf]
      %v4565 = vld [vmem:[%s4557 + $0x1c] sm:$0xf]
      %v4566 = vld [vmem:[%s4557 + $0x20] sm:$0xf]
      %v4567 = vld [vmem:[%s4557 + $0x24] sm:$0xf]
      %v4568 = vld [vmem:[%s4557 + $0x28] sm:$0xf]
      %v4569 = vld [vmem:[%s4557 + $0x2c] sm:$0xf]
      %v4582 = vunpack.c.l.b16 %v4558
      %v4583 = vunpack.c.l.b16 %v4559
      %v4584 = vunpack.c.l.b16 %v4560
      %v4585 = vunpack.c.l.b16 %v4561
      %v4586 = vunpack.c.l.b16 %v4562
      %v4587 = vunpack.c.l.b16 %v4563
      %v4588 = vunpack.c.l.b16 %v4564
      %v4589 = vunpack.c.l.b16 %v4565
      %v4590 = vunpack.c.l.b16 %v4566
      %v4591 = vunpack.c.l.b16 %v4567
      %v4592 = vunpack.c.l.b16 %v4568
      %v4593 = vunpack.c.l.b16 %v4569
      %v4594 = vpack.c.b16 %v4583, %v4582
      %v4595 = vpack.c.b16 %v4585, %v4584
      %v4596 = vpack.c.b16 %v4587, %v4586
      %v4597 = vpack.c.b16 %v4589, %v4588
      %v4598 = vpack.c.b16 %v4591, %v4590
      %v4599 = vpack.c.b16 %v4593, %v4592
      %v4607 = vsel %vm4429, %v4556, 0
      %4609 = vmatprep.subr.bf16.mxu0 0
      %4610 = vmatpush1.bf16.msra.mxu0 %v4594
      %4611 = vmatprep.subr.bf16.mxu0 0
      %4612 = vmatpush1.bf16.msra.mxu0 %v4595
      %4613 = vmatprep.subr.bf16.mxu0 0
      %4614 = vmatpush1.bf16.msra.mxu0 %v4596
      %4615 = vmatprep.subr.bf16.mxu0 0
      %4616 = vmatpush1.bf16.msra.mxu0 %v4597
      %4617 = vmatprep.subr.bf16.mxu0 0
      %4618 = vmatpush1.bf16.msra.mxu0 %v4598
      %4619 = vmatprep.subr.bf16.mxu0 0
      %4620 = vmatpush1.bf16.msra.mxu0 %v4599
      %4621 = vmatprep.subr.bf16.mxu0 0
      %4622 = vmatpush1.bf16.msra.mxu0 0
      %4623 = vmatprep.subr.bf16.mxu0 0
      %4624 = vmatpush1.bf16.msra.mxu0 0
      %4625 = vmatprep.subr.bf16.mxu0 0
      %4626 = vmatpush1.bf16.msra.mxu0 0
      %4627 = vmatprep.subr.bf16.mxu0 0
      %4628 = vmatpush1.bf16.msra.mxu0 0
      %4629 = vmatprep.subr.bf16.mxu0 0
      %4630 = vmatpush1.bf16.msra.mxu0 0
      %4631 = vmatprep.subr.bf16.mxu0 0
      %4632 = vmatpush1.bf16.msra.mxu0 0
      %4633 = vmatprep.subr.bf16.mxu0 0
      %4634 = vmatpush1.bf16.msra.mxu0 0
      %4635 = vmatprep.subr.bf16.mxu0 0
      %4636 = vmatpush1.bf16.msra.mxu0 0
      %4637 = vmatprep.subr.bf16.mxu0 0
      %4638 = vmatpush1.bf16.msra.mxu0 0
      %4639 = vmatprep.subr.bf16.mxu0 0
      %4640 = vmatpush1.bf16.msra.mxu0 0
      %4641 = vmatprep.mubr.bf16.mxu0 0
      %4642 = vmatmul.mubr.bf16.gmra.mrb[0].mxu0 %v4607
      %v4643 = vpop.f32.mrb[0].mxu0
      %v4644 = vadd.f32 0.0, %v4643
      %v4645 = vpop.f32.mrb[0].mxu0
      %v4646 = vpop.f32.mrb[0].mxu0
      %v4647 = vadd.f32 0.0, %v4646
      %v4648 = vpop.f32.mrb[0].mxu0
      %4649 = vdwg.mxu0
      %v4650 = vadd.f32 %v4548, %v4644
      %v4651 = vadd.f32 %v4551, %v4647
      %s4652 = sld [smem:[#allocation3]]
      %v4653 = vstv %s4652
      %v4654 = vadd.f32 %v4650, %v4653
      %v4655 = vadd.f32 %v4651, %v4653
      %vm4656 = vcmask 7168
      %4657 = vst.msk [vmem:[%s333] sm:$0xff] %vm4656, %v4654
      %4658 = vst.msk [vmem:[%s333 + $0x8] sm:$0xff] %vm4656, %v4655
      %p4659 = scmp.lt.s32.totalorder %s21, 1
      %s4660 = scalar_select %p4659, %s21, 1
      %s4661 = smul.addr %s4660, 2
      %s4662 = smul.addr %s4661, 8
      %s4663 = scalar_lea.vmem %s9, %s4662
      // Predicated region
      $region57: #{_lambda_.2} parent=55 // pred_check
        %p4664 = pneg %p233
      $region58: #{_lambda_.2} parent=55 // pred_check_branch
        %4666 = sbr.rel (%p4664) target = $region60
      $region59: #{_lambda_.2} parent=55 // pred_region
        _
      $region60: #{_lambda_.2} parent=55 // pred_fallthru
        _
    $region56: #{_lambda_.2} parent=5 // pred_fallthru
      _
    %p4667 = scmp.le.s32.totalorder 2, %s16
    // Predicated region
    $region61: #{_lambda_.2} parent=5 // pred_check
      %p4668 = pneg %p4667
    $region62: #{_lambda_.2} parent=5 // pred_check_branch
      %4670 = sbr.rel (%p4668) target = $region64
    $region63: #{_lambda_.2} parent=5 // pred_region
      %s4671 = ssub.s32 %s16, 2
      // Predicated region
      $region65: #{_lambda_.2} parent=63 // pred_check
        %p4672 = pneg %p239
      $region66: #{_lambda_.2} parent=63 // pred_check_branch
        %4674 = sbr.rel (%p4672) target = $region68
      $region67: #{_lambda_.2} parent=63 // pred_region
        %p4675 = scmp.lt.s32.totalorder %s22, 1
        %s4676 = scalar_select %p4675, %s22, 1
        %s4677 = smul.addr %s4676, 2
        %s4678 = smul.addr %s4677, 8
        %s4679 = scalar_lea.vmem %s9, %s4678
      $region68: #{_lambda_.2} parent=63 // pred_fallthru
        _
    $region64: #{_lambda_.2} parent=5 // pred_fallthru
      _
  $region6: #{_lambda_.2} parent=0 // loop_footer
    %s20 = sadd.s32 1, %s16
  $region7: #{_lambda_.2} parent=0 // loop_footer_branch
    %15 = sbr.rel target = $region3
  $region8: #{_lambda_.2} parent=0 // loop_exit
    _

</llo_original>
